<compile_context>
chip_gen: v6e
topology: v6e:2x2x1
jax: 0.10.0
libtpu: 0.0.40
codegen_flags: <defaults>
</compile_context>

<pallas_src>
import math

import jax
import jax.numpy as jnp
from jax.experimental import pallas as pl
from jax.experimental.pallas import tpu as pltpu


# ---------------------------------------------------------------------------
# Small helpers
# ---------------------------------------------------------------------------
def _round_down(a, b):
    return a // b * b


def _vmem_budget_bytes():
    """~75% of this chip's physical VMEM (64 MiB fallback == v7x size)."""
    try:
        cap = int(pltpu.get_tpu_info().vmem_capacity_bytes)
    except Exception:
        cap = 64 * 1024 * 1024
    return cap * 3 // 4


# Abramowitz & Stegun 7.1.26 erf approximation, |error| <= 1.5e-7.
_ERF_P = 0.3275911
_ERF_A1 = 0.254829592
_ERF_A2 = -0.284496736
_ERF_A3 = 1.421413741
_ERF_A4 = -1.453152027
_ERF_A5 = 1.061405429


def _erf(x):
    a = jnp.abs(x)
    t = 1.0 / (1.0 + _ERF_P * a)
    poly = t * (_ERF_A1 + t * (_ERF_A2 + t * (_ERF_A3 + t * (_ERF_A4 + t * _ERF_A5))))
    y = 1.0 - poly * jnp.exp(-a * a)
    return jnp.where(x < 0.0, -y, y)


def _gelu(x, approximate):
    if approximate:
        # tanh-GELU runs on the EUP (a free VLIW slot); ~1e-3 deviation.
        c = math.sqrt(2.0 / math.pi)
        return 0.5 * x * (1.0 + jnp.tanh(c * (x + 0.044715 * x * x * x)))
    # Exact (erf) GELU, matching torch.nn.GELU() to ~1e-7.
    return 0.5 * x * (1.0 + _erf(x * (1.0 / math.sqrt(2.0))))


# ---------------------------------------------------------------------------
# Fused kernel: for each lane tile, run the whole top-down up-sampling chain.
# ---------------------------------------------------------------------------
def _make_kernel(n_stages, fused_layout, approx_gelu):
    """refs = [x_coarse] + [high]*n + [w1,b1,w2,b2]*n + [out]*n.

    fused_layout=False: every data block is [T_i, TM]   (M = B*D on lanes).
    fused_layout=True : input blocks are [1, TD, T_i] straight from the
                        [B, D, T_i] tensors; output blocks are [1, T_out, TD]
                        of the [B, T_out, D] results (transpose on the XLU).
    """
    def kernel(*refs):
        x_ref = refs[0]
        high_refs = refs[1:1 + n_stages]
        w_refs = refs[1 + n_stages:1 + 5 * n_stages]
        out_refs = refs[1 + 5 * n_stages:]

        def load_tile(ref):
            if fused_layout:
                v = jnp.transpose(ref[0], (1, 0))      # [TD, T] -> [T, TD]
            else:
                v = ref[...]                           # [T, TM]
            return v.astype(jnp.float32)

        x = load_tile(x_ref)                           # [T_0, lanes]
        for s in range(n_stages):
            w1 = w_refs[4 * s + 0][...].astype(jnp.float32)   # [T_out, T_in]
            b1 = w_refs[4 * s + 1][...].astype(jnp.float32)   # [T_out, 1]
            w2 = w_refs[4 * s + 2][...].astype(jnp.float32)   # [T_out, T_out]
            b2 = w_refs[4 * s + 3][...].astype(jnp.float32)   # [T_out, 1]
            high = load_tile(high_refs[s])                     # [T_out, lanes]

            h = jnp.dot(w1, x, preferred_element_type=jnp.float32) + b1
            h = _gelu(h, approx_gelu)
            y = jnp.dot(w2, h, preferred_element_type=jnp.float32) + b2
            out = high + y                                     # residual add

            if fused_layout:
                out_refs[s][0] = out.astype(out_refs[s].dtype)
            else:
                out_refs[s][...] = out.astype(out_refs[s].dtype)
            x = out                                            # chain onward
    return kernel


def _cost_estimate(t_list, M, in_arrays, out_shapes):
    flops = 0
    trans = 0
    for s in range(len(t_list) - 1):
        t_in, t_out = t_list[s], t_list[s + 1]
        flops += 2 * M * (t_in * t_out + t_out * t_out) + 3 * M * t_out
        trans += M * t_out
    bytes_acc = sum(int(a.size) * a.dtype.itemsize for a in in_arrays)
    bytes_acc += sum(math.prod(s.shape) * jnp.dtype(s.dtype).itemsize
                     for s in out_shapes)
    return pl.CostEstimate(flops=int(flops), transcendentals=int(trans),
                           bytes_accessed=int(bytes_acc))


def _run_pallas(n_stages, fused_layout, approx_gelu, grid, dim_sem,
                data_arrays, data_specs, weight_arrays, weight_index_map,
                out_shapes, out_specs, vmem_limit, cost):
    kernel = _make_kernel(n_stages, fused_layout, approx_gelu)

    def call(single_buffer_weights):
        w_specs = []
        for a in weight_arrays:
            if single_buffer_weights:
                w_specs.append(pl.BlockSpec(a.shape, weight_index_map,
                                            pipeline_mode=pl.Buffered(1)))
            else:
                w_specs.append(pl.BlockSpec(a.shape, weight_index_map))
        return pl.pallas_call(
            kernel,
            out_shape=tuple(out_shapes),
            grid=grid,
            in_specs=list(data_specs) + w_specs,
            out_specs=tuple(out_specs),
            compiler_params=pltpu.CompilerParams(
                dimension_semantics=dim_sem,
                vmem_limit_bytes=int(vmem_limit)),
            cost_estimate=cost,
        )(*data_arrays, *weight_arrays)

    try:
        # Weight/bias block indices never change across the grid -> single
        # VMEM buffer instead of the default double buffer (saves VMEM).
        outs = call(True)
    except Exception:
        outs = call(False)
    if not isinstance(outs, (tuple, list)):
        outs = (outs,)
    return list(outs)


# ---------------------------------------------------------------------------
# Path A: fully fused layout (inputs [B,D,T] in, outputs [B,T,D] out).
# ---------------------------------------------------------------------------
def _forward_fused_layout(rev, weight_arrays, t_list, B, D, M, coarsest_out,
                          out_dtype, td_max, budget, tile_bytes, approx_gelu,
                          n_stages):
    td_cands = [td for td in range(128, min(D, td_max) + 1, 128) if D % td == 0]
    TD = td_cands[0]
    for td in sorted(td_cands, reverse=True):
        if B * (D // td) >= 8 and tile_bytes(td) <= budget:
            TD = td
            break
    while tile_bytes(TD) > budget and TD > 128:
        TD -= 128

    grid = (B, D // TD)
    dim_sem = ("parallel", "parallel")
    in_map = lambda b, d: (b, d, 0)
    out_map = lambda b, d: (b, 0, d)
    const_map = lambda b, d: (0, 0)

    data_specs = [pl.BlockSpec((1, TD, t), in_map) for t in t_list]
    out_shapes = [jax.ShapeDtypeStruct((B, t, D), out_dtype) for t in t_list[1:]]
    out_specs = [pl.BlockSpec((1, t, TD), out_map) for t in t_list[1:]]

    cost = _cost_estimate(t_list, M, list(rev) + weight_arrays, out_shapes)
    vmem_limit = min(budget, max(32 << 20, tile_bytes(TD) * 3 // 2))

    outs = _run_pallas(n_stages, True, approx_gelu, grid, dim_sem,
                       list(rev), data_specs, weight_arrays, const_map,
                       out_shapes, out_specs, vmem_limit, cost)

    result = list(reversed(outs))          # finest first, already [B, T, D]
    result.append(coarsest_out)
    return result


# ---------------------------------------------------------------------------
# Path B: lane-dense [T_i, M] layout, cdiv grid with ragged last block.
# ---------------------------------------------------------------------------
def _forward_lane_dense(rev, weight_arrays, t_list, B, D, M, coarsest_out,
                        out_dtype, tm_max, budget, tile_bytes, approx_gelu,
                        n_stages):
    TM = max(128, min(tm_max, _round_down(max(M // 8, 128), 128)))
    while tile_bytes(TM) > budget and TM > 128:
        TM -= 128

    grid = (pl.cdiv(M, TM),)
    dim_sem = ("parallel",)
    tile_map = lambda m: (0, m)
    const_map = lambda m: (0, 0)

    # [B, D, T] -> [T, M]: the reshape is free; the transpose is the one
    # remaining piece of host-side plumbing on this fallback path.
    data_arrays = [jnp.transpose(r.reshape(M, t), (1, 0))
                   for r, t in zip(rev, t_list)]
    data_specs = [pl.BlockSpec((t, TM), tile_map) for t in t_list]
    out_shapes = [jax.ShapeDtypeStruct((t, M), out_dtype) for t in t_list[1:]]
    out_specs = [pl.BlockSpec((t, TM), tile_map) for t in t_list[1:]]

    cost = _cost_estimate(t_list, M, data_arrays + weight_arrays, out_shapes)
    vmem_limit = min(budget, max(32 << 20, tile_bytes(TM) * 3 // 2))

    outs = _run_pallas(n_stages, False, approx_gelu, grid, dim_sem,
                       data_arrays, data_specs, weight_arrays, const_map,
                       out_shapes, out_specs, vmem_limit, cost)

    out_btd = [jnp.transpose(o.reshape(t, B, D), (1, 0, 2))
               for o, t in zip(outs, t_list[1:])]
    result = list(reversed(out_btd))
    result.append(coarsest_out)
    return result


# ---------------------------------------------------------------------------
# Module-equivalent forward
# ---------------------------------------------------------------------------
def multi_scale_trend_mixing(trend_list, params, *, tm_max=512, td_max=512,
                             approx_gelu=False, io_dtype=None):
    """Forward pass of TimeMixer's MultiScaleTrendMixing.

    trend_list : finest scale first, element i has shape [B, D, T_i]
                 (time on the last axis, as in the PyTorch module).
    params[s]  : (w1 [T_out, T_in], b1 [T_out], w2 [T_out, T_out], b2 [T_out])
                 for up_sampling_layers[s] (PyTorch Linear layout, ModuleList
                 order: coarsest -> finer).
    approx_gelu: use tanh-GELU (EUP path) instead of exact erf-GELU.
    io_dtype   : optional storage dtype (e.g. jnp.bfloat16) for the large
                 activation tensors (compute stays f32).

    Returns the module's output list: finest first, each [B, T_i, D].
    """
    n_scales = len(trend_list)
    n_stages = n_scales - 1
    rev = list(reversed(trend_list))                       # coarsest first
    coarsest_out = jnp.transpose(trend_list[-1], (0, 2, 1))  # [B, T_0, D]
    if n_stages == 0:
        return [coarsest_out]

    B, D, _ = rev[0].shape
    out_dtype = rev[0].dtype
    t_list = [int(t.shape[2]) for t in rev]                # coarsest -> finest
    M = B * D

    if io_dtype is not None:
        rev = [r.astype(io_dtype) for r in rev]
    data_itemsize = jnp.dtype(rev[0].dtype).itemsize
    out_itemsize = jnp.dtype(out_dtype).itemsize

    # Weights: biases as columns so they broadcast along the lane axis.
    weight_arrays = []
    for (w1, b1, w2, b2) in params:
        weight_arrays += [jnp.asarray(w1), jnp.asarray(b1).reshape(-1, 1),
                          jnp.asarray(w2), jnp.asarray(b2).reshape(-1, 1)]
    weight_bytes = sum(a.size * a.dtype.itemsize for a in weight_arrays)

    budget = _vmem_budget_bytes()

    def tile_bytes(tile_m):
        # Double-buffered activation tiles + (worst case double-buffered)
        # resident weights + slack for compiler scratch.
        in_b = 2 * sum(t * tile_m for t in t_list) * data_itemsize
        out_b = 2 * sum(t * tile_m for t in t_list[1:]) * out_itemsize
        return in_b + out_b + 2 * weight_bytes + (2 << 20)

    fused_layout = (D % 128 == 0) and all(t % 8 == 0 for t in t_list)
    if fused_layout:
        try:
            return _forward_fused_layout(
                rev, weight_arrays, t_list, B, D, M, coarsest_out, out_dtype,
                td_max, budget, tile_bytes, approx_gelu, n_stages)
        except Exception:
            pass  # fall back to the general lane-dense path below
    return _forward_lane_dense(
        rev, weight_arrays, t_list, B, D, M, coarsest_out, out_dtype,
        tm_max, budget, tile_bytes, approx_gelu, n_stages)


# ---------------------------------------------------------------------------
# Pure-JAX reference (mirrors the PyTorch forward) + test harness
# ---------------------------------------------------------------------------
def _reference(trend_list, params):
    rev = list(reversed(trend_list))
    out_low = rev[0]
    out_high = rev[1]
    outs = [jnp.transpose(out_low, (0, 2, 1))]
    for i in range(len(rev) - 1):
        w1, b1, w2, b2 = params[i]
        h = jax.nn.gelu(out_low @ w1.T + b1, approximate=False)
        res = h @ w2.T + b2
        out_high = out_high + res
        out_low = out_high
        if i + 2 <= len(rev) - 1:
            out_high = rev[i + 2]
        outs.append(jnp.transpose(out_low, (0, 2, 1)))
    outs.reverse()
    return outs


def _init_linear(key, in_f, out_f):
    kw, kb = jax.random.split(key)
    bound = 1.0 / math.sqrt(in_f)
    w = jax.random.uniform(kw, (out_f, in_f), jnp.float32, -bound, bound)
    b = jax.random.uniform(kb, (out_f,), jnp.float32, -bound, bound)
    return w, b


def _build_case(key, B, D, seq_len, dsw, dsl):
    params = []
    for i in reversed(range(dsl)):
        t_in = seq_len // dsw ** (i + 1)
        t_out = seq_len // dsw ** i
        key, k1, k2 = jax.random.split(key, 3)
        w1, b1 = _init_linear(k1, t_in, t_out)
        w2, b2 = _init_linear(k2, t_out, t_out)
        params.append((w1, b1, w2, b2))

    trend_list = []
    for i in range(dsl + 1):
        key, k = jax.random.split(key)
        t_i = seq_len // dsw ** i
        trend_list.append(jax.random.normal(k, (B, D, t_i), jnp.float32))
    return key, trend_list, params


if __name__ == "__main__":
    key = jax.random.PRNGKey(0)

    def check(trend_list, params, atol=5e-4, rtol=5e-4):
        outs = multi_scale_trend_mixing(trend_list, params)
        outs = [jax.block_until_ready(o) for o in outs]
        refs = _reference(trend_list, params)
        assert len(outs) == len(refs)
        for o, r in zip(outs, refs):
            assert o.shape == r.shape, (o.shape, r.shape)
            err = float(jnp.max(jnp.abs(o.astype(jnp.float32) - r)))
            assert jnp.allclose(o, r, atol=atol, rtol=rtol), err

    # Case 1: D % 128 == 0 -> fully fused-layout path; grid (B=4, D/TD=2),
    # scales T = 32, 16, 8.
    key, trend_list, params = _build_case(key, B=4, D=256, seq_len=32, dsw=2, dsl=2)
    check(trend_list, params)

    # Case 2: tiny odd M (B*D = 12) -> lane-dense fallback, single ragged block.
    key, trend_list2, params2 = _build_case(key, B=2, D=6, seq_len=16, dsw=2, dsl=2)
    check(trend_list2, params2)

    # Case 3: fallback path with a multi-block cdiv grid and a ragged tail
    # (M = 300 -> grid of 3 blocks at TM = 128).
    key, trend_list3, params3 = _build_case(key, B=2, D=150, seq_len=32, dsw=2, dsl=2)
    check(trend_list3, params3)

    print("KERNEL_OK")
</pallas_src>

<mosaic_0001>
module attributes {stable_mosaic.version = 11 : i64} {
  func.func @kernel(%arg0: i32, %arg1: i32, %arg2: memref<1x128x8xf32, #tpu.memory_space<vmem>>, %arg3: memref<1x128x16xf32, #tpu.memory_space<vmem>>, %arg4: memref<1x128x32xf32, #tpu.memory_space<vmem>>, %arg5: memref<16x8xf32, #tpu.memory_space<vmem>>, %arg6: memref<16x1xf32, #tpu.memory_space<vmem>>, %arg7: memref<16x16xf32, #tpu.memory_space<vmem>>, %arg8: memref<16x1xf32, #tpu.memory_space<vmem>>, %arg9: memref<32x16xf32, #tpu.memory_space<vmem>>, %arg10: memref<32x1xf32, #tpu.memory_space<vmem>>, %arg11: memref<32x32xf32, #tpu.memory_space<vmem>>, %arg12: memref<32x1xf32, #tpu.memory_space<vmem>>, %arg13: memref<1x16x128xf32, #tpu.memory_space<vmem>>, %arg14: memref<1x32x128xf32, #tpu.memory_space<vmem>>) attributes {dimension_semantics = [#tpu.dimension_semantics<parallel>, #tpu.dimension_semantics<parallel>], iteration_bounds = array<i64: 4, 2>, scalar_prefetch = 0 : i64, scratch_operands = 0 : i64, tpu.core_type = #tpu.core_type<tc>, window_params = [{transform_indices = @transform_0, window_bounds = array<i64: 1, 128, 8>}, {transform_indices = @transform_1, window_bounds = array<i64: 1, 128, 16>}, {transform_indices = @transform_2, window_bounds = array<i64: 1, 128, 32>}, {pipeline_mode = #tpu.pipeline_mode<synchronous>, transform_indices = @transform_3, window_bounds = array<i64: 16, 8>}, {pipeline_mode = #tpu.pipeline_mode<synchronous>, transform_indices = @transform_4, window_bounds = array<i64: 16, 1>}, {pipeline_mode = #tpu.pipeline_mode<synchronous>, transform_indices = @transform_5, window_bounds = array<i64: 16, 16>}, {pipeline_mode = #tpu.pipeline_mode<synchronous>, transform_indices = @transform_6, window_bounds = array<i64: 16, 1>}, {pipeline_mode = #tpu.pipeline_mode<synchronous>, transform_indices = @transform_7, window_bounds = array<i64: 32, 16>}, {pipeline_mode = #tpu.pipeline_mode<synchronous>, transform_indices = @transform_8, window_bounds = array<i64: 32, 1>}, {pipeline_mode = #tpu.pipeline_mode<synchronous>, transform_indices = @transform_9, window_bounds = array<i64: 32, 32>}, {pipeline_mode = #tpu.pipeline_mode<synchronous>, transform_indices = @transform_10, window_bounds = array<i64: 32, 1>}, {transform_indices = @transform_11, window_bounds = array<i64: 1, 16, 128>}, {transform_indices = @transform_12, window_bounds = array<i64: 1, 32, 128>}]} {
    %c0 = arith.constant 0 : index
    %c0_0 = arith.constant 0 : index
    %c0_1 = arith.constant 0 : index
    %0 = vector.load %arg2[%c0, %c0_0, %c0_1] : memref<1x128x8xf32, #tpu.memory_space<vmem>>, vector<1x128x8xf32>
    %1 = vector.shape_cast %0 : vector<1x128x8xf32> to vector<128x8xf32>
    %2 = tpu.transpose %1, [1, 0] : vector<128x8xf32> -> vector<8x128xf32>
    %c0_2 = arith.constant 0 : index
    %c0_3 = arith.constant 0 : index
    %3 = vector.load %arg5[%c0_2, %c0_3] : memref<16x8xf32, #tpu.memory_space<vmem>>, vector<16x8xf32>
    %c0_4 = arith.constant 0 : index
    %c0_5 = arith.constant 0 : index
    %4 = vector.load %arg6[%c0_4, %c0_5] : memref<16x1xf32, #tpu.memory_space<vmem>>, vector<16x1xf32>
    %c0_6 = arith.constant 0 : index
    %c0_7 = arith.constant 0 : index
    %5 = vector.load %arg7[%c0_6, %c0_7] : memref<16x16xf32, #tpu.memory_space<vmem>>, vector<16x16xf32>
    %c0_8 = arith.constant 0 : index
    %c0_9 = arith.constant 0 : index
    %6 = vector.load %arg8[%c0_8, %c0_9] : memref<16x1xf32, #tpu.memory_space<vmem>>, vector<16x1xf32>
    %c0_10 = arith.constant 0 : index
    %c0_11 = arith.constant 0 : index
    %c0_12 = arith.constant 0 : index
    %7 = vector.load %arg3[%c0_10, %c0_11, %c0_12] : memref<1x128x16xf32, #tpu.memory_space<vmem>>, vector<1x128x16xf32>
    %8 = vector.shape_cast %7 : vector<1x128x16xf32> to vector<128x16xf32>
    %9 = tpu.transpose %8, [1, 0] : vector<128x16xf32> -> vector<16x128xf32>
    %cst = arith.constant dense<0.000000e+00> : vector<16x128xf32>
    %10 = tpu.matmul %3, %2, %cst {dimension_numbers = #tpu.dot_dimension_numbers<[1], [0], [0], [1], [0, 0, 1, 1], [], []>} : vector<16x8xf32>, vector<8x128xf32>, vector<16x128xf32> -> vector<16x128xf32>
    %11 = vector.broadcast %4 : vector<16x1xf32> to vector<16x128xf32>
    %12 = arith.addf %10, %11 : vector<16x128xf32>
    %cst_13 = arith.constant 5.000000e-01 : f32
    %13 = vector.broadcast %cst_13 : f32 to vector<16x128xf32>
    %14 = arith.mulf %13, %12 : vector<16x128xf32>
    %cst_14 = arith.constant 0.707106769 : f32
    %15 = vector.broadcast %cst_14 : f32 to vector<16x128xf32>
    %16 = arith.mulf %12, %15 : vector<16x128xf32>
    %17 = math.absf %16 : vector<16x128xf32>
    %cst_15 = arith.constant 0.327591091 : f32
    %18 = vector.broadcast %cst_15 : f32 to vector<16x128xf32>
    %19 = arith.mulf %18, %17 : vector<16x128xf32>
    %cst_16 = arith.constant 1.000000e+00 : f32
    %20 = vector.broadcast %cst_16 : f32 to vector<16x128xf32>
    %21 = arith.addf %20, %19 : vector<16x128xf32>
    %cst_17 = arith.constant 1.000000e+00 : f32
    %22 = vector.broadcast %cst_17 : f32 to vector<16x128xf32>
    %23 = arith.divf %22, %21 : vector<16x128xf32>
    %cst_18 = arith.constant 1.06140542 : f32
    %24 = vector.broadcast %cst_18 : f32 to vector<16x128xf32>
    %25 = arith.mulf %23, %24 : vector<16x128xf32>
    %cst_19 = arith.constant -1.45315206 : f32
    %26 = vector.broadcast %cst_19 : f32 to vector<16x128xf32>
    %27 = arith.addf %26, %25 : vector<16x128xf32>
    %28 = arith.mulf %23, %27 : vector<16x128xf32>
    %cst_20 = arith.constant 1.42141378 : f32
    %29 = vector.broadcast %cst_20 : f32 to vector<16x128xf32>
    %30 = arith.addf %29, %28 : vector<16x128xf32>
    %31 = arith.mulf %23, %30 : vector<16x128xf32>
    %cst_21 = arith.constant -0.284496725 : f32
    %32 = vector.broadcast %cst_21 : f32 to vector<16x128xf32>
    %33 = arith.addf %32, %31 : vector<16x128xf32>
    %34 = arith.mulf %23, %33 : vector<16x128xf32>
    %cst_22 = arith.constant 0.254829586 : f32
    %35 = vector.broadcast %cst_22 : f32 to vector<16x128xf32>
    %36 = arith.addf %35, %34 : vector<16x128xf32>
    %37 = arith.mulf %23, %36 : vector<16x128xf32>
    %cst_23 = arith.constant 0.000000e+00 : f32
    %38 = vector.broadcast %cst_23 : f32 to vector<16x128xf32>
    %39 = arith.subf %38, %17 : vector<16x128xf32>
    %40 = arith.mulf %39, %17 : vector<16x128xf32>
    %41 = math.exp %40 : vector<16x128xf32>
    %42 = arith.mulf %37, %41 : vector<16x128xf32>
    %cst_24 = arith.constant 1.000000e+00 : f32
    %43 = vector.broadcast %cst_24 : f32 to vector<16x128xf32>
    %44 = arith.subf %43, %42 : vector<16x128xf32>
    %cst_25 = arith.constant 0.000000e+00 : f32
    %45 = vector.broadcast %cst_25 : f32 to vector<16x128xf32>
    %46 = arith.cmpf olt, %16, %45 : vector<16x128xf32>
    %cst_26 = arith.constant 0.000000e+00 : f32
    %47 = vector.broadcast %cst_26 : f32 to vector<16x128xf32>
    %48 = arith.subf %47, %44 : vector<16x128xf32>
    %49 = arith.select %46, %48, %44 : vector<16x128xi1>, vector<16x128xf32>
    %cst_27 = arith.constant 1.000000e+00 : f32
    %50 = vector.broadcast %cst_27 : f32 to vector<16x128xf32>
    %51 = arith.addf %50, %49 : vector<16x128xf32>
    %52 = arith.mulf %14, %51 : vector<16x128xf32>
    %cst_28 = arith.constant dense<0.000000e+00> : vector<16x128xf32>
    %53 = tpu.matmul %5, %52, %cst_28 {dimension_numbers = #tpu.dot_dimension_numbers<[1], [0], [0], [1], [0, 0, 1, 1], [], []>} : vector<16x16xf32>, vector<16x128xf32>, vector<16x128xf32> -> vector<16x128xf32>
    %54 = vector.broadcast %6 : vector<16x1xf32> to vector<16x128xf32>
    %55 = arith.addf %53, %54 : vector<16x128xf32>
    %56 = arith.addf %9, %55 : vector<16x128xf32>
    %c0_29 = arith.constant 0 : index
    %c0_30 = arith.constant 0 : index
    %c0_31 = arith.constant 0 : index
    %57 = vector.load %arg13[%c0_29, %c0_30, %c0_31] : memref<1x16x128xf32, #tpu.memory_space<vmem>>, vector<1x16x128xf32>
    %58 = vector.shape_cast %57 : vector<1x16x128xf32> to vector<16x128xf32>
    %59 = vector.shape_cast %56 : vector<16x128xf32> to vector<1x16x128xf32>
    tpu.vector_store %arg13[%c0_29, %c0_30, %c0_31], %59 {strides = array<i32>} : memref<1x16x128xf32, #tpu.memory_space<vmem>>, vector<1x16x128xf32>,
    %c0_32 = arith.constant 0 : index
    %c0_33 = arith.constant 0 : index
    %60 = vector.load %arg9[%c0_32, %c0_33] : memref<32x16xf32, #tpu.memory_space<vmem>>, vector<32x16xf32>
    %c0_34 = arith.constant 0 : index
    %c0_35 = arith.constant 0 : index
    %61 = vector.load %arg10[%c0_34, %c0_35] : memref<32x1xf32, #tpu.memory_space<vmem>>, vector<32x1xf32>
    %c0_36 = arith.constant 0 : index
    %c0_37 = arith.constant 0 : index
    %62 = vector.load %arg11[%c0_36, %c0_37] : memref<32x32xf32, #tpu.memory_space<vmem>>, vector<32x32xf32>
    %c0_38 = arith.constant 0 : index
    %c0_39 = arith.constant 0 : index
    %63 = vector.load %arg12[%c0_38, %c0_39] : memref<32x1xf32, #tpu.memory_space<vmem>>, vector<32x1xf32>
    %c0_40 = arith.constant 0 : index
    %c0_41 = arith.constant 0 : index
    %c0_42 = arith.constant 0 : index
    %64 = vector.load %arg4[%c0_40, %c0_41, %c0_42] : memref<1x128x32xf32, #tpu.memory_space<vmem>>, vector<1x128x32xf32>
    %65 = vector.shape_cast %64 : vector<1x128x32xf32> to vector<128x32xf32>
    %66 = tpu.transpose %65, [1, 0] : vector<128x32xf32> -> vector<32x128xf32>
    %cst_43 = arith.constant dense<0.000000e+00> : vector<32x128xf32>
    %67 = tpu.matmul %60, %56, %cst_43 {dimension_numbers = #tpu.dot_dimension_numbers<[1], [0], [0], [1], [0, 0, 1, 1], [], []>} : vector<32x16xf32>, vector<16x128xf32>, vector<32x128xf32> -> vector<32x128xf32>
    %68 = vector.broadcast %61 : vector<32x1xf32> to vector<32x128xf32>
    %69 = arith.addf %67, %68 : vector<32x128xf32>
    %cst_44 = arith.constant 5.000000e-01 : f32
    %70 = vector.broadcast %cst_44 : f32 to vector<32x128xf32>
    %71 = arith.mulf %70, %69 : vector<32x128xf32>
    %cst_45 = arith.constant 0.707106769 : f32
    %72 = vector.broadcast %cst_45 : f32 to vector<32x128xf32>
    %73 = arith.mulf %69, %72 : vector<32x128xf32>
    %74 = math.absf %73 : vector<32x128xf32>
    %cst_46 = arith.constant 0.327591091 : f32
    %75 = vector.broadcast %cst_46 : f32 to vector<32x128xf32>
    %76 = arith.mulf %75, %74 : vector<32x128xf32>
    %cst_47 = arith.constant 1.000000e+00 : f32
    %77 = vector.broadcast %cst_47 : f32 to vector<32x128xf32>
    %78 = arith.addf %77, %76 : vector<32x128xf32>
    %cst_48 = arith.constant 1.000000e+00 : f32
    %79 = vector.broadcast %cst_48 : f32 to vector<32x128xf32>
    %80 = arith.divf %79, %78 : vector<32x128xf32>
    %cst_49 = arith.constant 1.06140542 : f32
    %81 = vector.broadcast %cst_49 : f32 to vector<32x128xf32>
    %82 = arith.mulf %80, %81 : vector<32x128xf32>
    %cst_50 = arith.constant -1.45315206 : f32
    %83 = vector.broadcast %cst_50 : f32 to vector<32x128xf32>
    %84 = arith.addf %83, %82 : vector<32x128xf32>
    %85 = arith.mulf %80, %84 : vector<32x128xf32>
    %cst_51 = arith.constant 1.42141378 : f32
    %86 = vector.broadcast %cst_51 : f32 to vector<32x128xf32>
    %87 = arith.addf %86, %85 : vector<32x128xf32>
    %88 = arith.mulf %80, %87 : vector<32x128xf32>
    %cst_52 = arith.constant -0.284496725 : f32
    %89 = vector.broadcast %cst_52 : f32 to vector<32x128xf32>
    %90 = arith.addf %89, %88 : vector<32x128xf32>
    %91 = arith.mulf %80, %90 : vector<32x128xf32>
    %cst_53 = arith.constant 0.254829586 : f32
    %92 = vector.broadcast %cst_53 : f32 to vector<32x128xf32>
    %93 = arith.addf %92, %91 : vector<32x128xf32>
    %94 = arith.mulf %80, %93 : vector<32x128xf32>
    %cst_54 = arith.constant 0.000000e+00 : f32
    %95 = vector.broadcast %cst_54 : f32 to vector<32x128xf32>
    %96 = arith.subf %95, %74 : vector<32x128xf32>
    %97 = arith.mulf %96, %74 : vector<32x128xf32>
    %98 = math.exp %97 : vector<32x128xf32>
    %99 = arith.mulf %94, %98 : vector<32x128xf32>
    %cst_55 = arith.constant 1.000000e+00 : f32
    %100 = vector.broadcast %cst_55 : f32 to vector<32x128xf32>
    %101 = arith.subf %100, %99 : vector<32x128xf32>
    %cst_56 = arith.constant 0.000000e+00 : f32
    %102 = vector.broadcast %cst_56 : f32 to vector<32x128xf32>
    %103 = arith.cmpf olt, %73, %102 : vector<32x128xf32>
    %cst_57 = arith.constant 0.000000e+00 : f32
    %104 = vector.broadcast %cst_57 : f32 to vector<32x128xf32>
    %105 = arith.subf %104, %101 : vector<32x128xf32>
    %106 = arith.select %103, %105, %101 : vector<32x128xi1>, vector<32x128xf32>
    %cst_58 = arith.constant 1.000000e+00 : f32
    %107 = vector.broadcast %cst_58 : f32 to vector<32x128xf32>
    %108 = arith.addf %107, %106 : vector<32x128xf32>
    %109 = arith.mulf %71, %108 : vector<32x128xf32>
    %cst_59 = arith.constant dense<0.000000e+00> : vector<32x128xf32>
    %110 = tpu.matmul %62, %109, %cst_59 {dimension_numbers = #tpu.dot_dimension_numbers<[1], [0], [0], [1], [0, 0, 1, 1], [], []>} : vector<32x32xf32>, vector<32x128xf32>, vector<32x128xf32> -> vector<32x128xf32>
    %111 = vector.broadcast %63 : vector<32x1xf32> to vector<32x128xf32>
    %112 = arith.addf %110, %111 : vector<32x128xf32>
    %113 = arith.addf %66, %112 : vector<32x128xf32>
    %c0_60 = arith.constant 0 : index
    %c0_61 = arith.constant 0 : index
    %c0_62 = arith.constant 0 : index
    %114 = vector.load %arg14[%c0_60, %c0_61, %c0_62] : memref<1x32x128xf32, #tpu.memory_space<vmem>>, vector<1x32x128xf32>
    %115 = vector.shape_cast %114 : vector<1x32x128xf32> to vector<32x128xf32>
    %116 = vector.shape_cast %113 : vector<32x128xf32> to vector<1x32x128xf32>
    tpu.vector_store %arg14[%c0_60, %c0_61, %c0_62], %116 {strides = array<i32>} : memref<1x32x128xf32, #tpu.memory_space<vmem>>, vector<1x32x128xf32>,
    return
  }
  func.func @transform_0(%arg0: i32, %arg1: i32) -> (i32, i32, i32) {
    %c0_i32 = arith.constant 0 : i32
    %c0_i32_0 = arith.constant 0 : i32
    return %arg0, %arg1, %c0_i32 : i32, i32, i32
  }
  func.func @transform_1(%arg0: i32, %arg1: i32) -> (i32, i32, i32) {
    %c0_i32 = arith.constant 0 : i32
    %c0_i32_0 = arith.constant 0 : i32
    return %arg0, %arg1, %c0_i32 : i32, i32, i32
  }
  func.func @transform_2(%arg0: i32, %arg1: i32) -> (i32, i32, i32) {
    %c0_i32 = arith.constant 0 : i32
    %c0_i32_0 = arith.constant 0 : i32
    return %arg0, %arg1, %c0_i32 : i32, i32, i32
  }
  func.func @transform_3(%arg0: i32, %arg1: i32) -> (i32, i32) {
    %c0_i32 = arith.constant 0 : i32
    %c0_i32_0 = arith.constant 0 : i32
    %c0_i32_1 = arith.constant 0 : i32
    return %c0_i32, %c0_i32_0 : i32, i32
  }
  func.func @transform_4(%arg0: i32, %arg1: i32) -> (i32, i32) {
    %c0_i32 = arith.constant 0 : i32
    %c0_i32_0 = arith.constant 0 : i32
    %c0_i32_1 = arith.constant 0 : i32
    return %c0_i32, %c0_i32_0 : i32, i32
  }
  func.func @transform_5(%arg0: i32, %arg1: i32) -> (i32, i32) {
    %c0_i32 = arith.constant 0 : i32
    %c0_i32_0 = arith.constant 0 : i32
    %c0_i32_1 = arith.constant 0 : i32
    return %c0_i32, %c0_i32_0 : i32, i32
  }
  func.func @transform_6(%arg0: i32, %arg1: i32) -> (i32, i32) {
    %c0_i32 = arith.constant 0 : i32
    %c0_i32_0 = arith.constant 0 : i32
    %c0_i32_1 = arith.constant 0 : i32
    return %c0_i32, %c0_i32_0 : i32, i32
  }
  func.func @transform_7(%arg0: i32, %arg1: i32) -> (i32, i32) {
    %c0_i32 = arith.constant 0 : i32
    %c0_i32_0 = arith.constant 0 : i32
    %c0_i32_1 = arith.constant 0 : i32
    return %c0_i32, %c0_i32_0 : i32, i32
  }
  func.func @transform_8(%arg0: i32, %arg1: i32) -> (i32, i32) {
    %c0_i32 = arith.constant 0 : i32
    %c0_i32_0 = arith.constant 0 : i32
    %c0_i32_1 = arith.constant 0 : i32
    return %c0_i32, %c0_i32_0 : i32, i32
  }
  func.func @transform_9(%arg0: i32, %arg1: i32) -> (i32, i32) {
    %c0_i32 = arith.constant 0 : i32
    %c0_i32_0 = arith.constant 0 : i32
    %c0_i32_1 = arith.constant 0 : i32
    return %c0_i32, %c0_i32_0 : i32, i32
  }
  func.func @transform_10(%arg0: i32, %arg1: i32) -> (i32, i32) {
    %c0_i32 = arith.constant 0 : i32
    %c0_i32_0 = arith.constant 0 : i32
    %c0_i32_1 = arith.constant 0 : i32
    return %c0_i32, %c0_i32_0 : i32, i32
  }
  func.func @transform_11(%arg0: i32, %arg1: i32) -> (i32, i32, i32) {
    %c0_i32 = arith.constant 0 : i32
    %c0_i32_0 = arith.constant 0 : i32
    return %arg0, %c0_i32, %arg1 : i32, i32, i32
  }
  func.func @transform_12(%arg0: i32, %arg1: i32) -> (i32, i32, i32) {
    %c0_i32 = arith.constant 0 : i32
    %c0_i32_0 = arith.constant 0 : i32
    return %arg0, %c0_i32, %arg1 : i32, i32, i32
  }
}

module attributes {stable_mosaic.version = 11 : i64} {
  func.func @kernel(%arg0: i32, %arg1: i32, %arg2: memref<1x128x8xf32, #tpu.memory_space<vmem>>, %arg3: memref<1x128x16xf32, #tpu.memory_space<vmem>>, %arg4: memref<1x128x32xf32, #tpu.memory_space<vmem>>, %arg5: memref<16x8xf32, #tpu.memory_space<vmem>>, %arg6: memref<16x1xf32, #tpu.memory_space<vmem>>, %arg7: memref<16x16xf32, #tpu.memory_space<vmem>>, %arg8: memref<16x1xf32, #tpu.memory_space<vmem>>, %arg9: memref<32x16xf32, #tpu.memory_space<vmem>>, %arg10: memref<32x1xf32, #tpu.memory_space<vmem>>, %arg11: memref<32x32xf32, #tpu.memory_space<vmem>>, %arg12: memref<32x1xf32, #tpu.memory_space<vmem>>, %arg13: memref<1x16x128xf32, #tpu.memory_space<vmem>>, %arg14: memref<1x32x128xf32, #tpu.memory_space<vmem>>) attributes {dimension_semantics = [#tpu.dimension_semantics<parallel>, #tpu.dimension_semantics<parallel>], iteration_bounds = array<i64: 4, 2>, scalar_prefetch = 0 : i64, scratch_operands = 0 : i64, tpu.core_type = #tpu.core_type<tc>, window_params = [{transform_indices = @transform_0, window_bounds = array<i64: 1, 128, 8>}, {transform_indices = @transform_1, window_bounds = array<i64: 1, 128, 16>}, {transform_indices = @transform_2, window_bounds = array<i64: 1, 128, 32>}, {pipeline_mode = #tpu.pipeline_mode<synchronous>, transform_indices = @transform_3, window_bounds = array<i64: 16, 8>}, {pipeline_mode = #tpu.pipeline_mode<synchronous>, transform_indices = @transform_4, window_bounds = array<i64: 16, 1>}, {pipeline_mode = #tpu.pipeline_mode<synchronous>, transform_indices = @transform_5, window_bounds = array<i64: 16, 16>}, {pipeline_mode = #tpu.pipeline_mode<synchronous>, transform_indices = @transform_6, window_bounds = array<i64: 16, 1>}, {pipeline_mode = #tpu.pipeline_mode<synchronous>, transform_indices = @transform_7, window_bounds = array<i64: 32, 16>}, {pipeline_mode = #tpu.pipeline_mode<synchronous>, transform_indices = @transform_8, window_bounds = array<i64: 32, 1>}, {pipeline_mode = #tpu.pipeline_mode<synchronous>, transform_indices = @transform_9, window_bounds = array<i64: 32, 32>}, {pipeline_mode = #tpu.pipeline_mode<synchronous>, transform_indices = @transform_10, window_bounds = array<i64: 32, 1>}, {transform_indices = @transform_11, window_bounds = array<i64: 1, 16, 128>}, {transform_indices = @transform_12, window_bounds = array<i64: 1, 32, 128>}]} {
    %c0 = arith.constant 0 : index
    %c0_0 = arith.constant 0 : index
    %c0_1 = arith.constant 0 : index
    %0 = vector.load %arg2[%c0, %c0_0, %c0_1] : memref<1x128x8xf32, #tpu.memory_space<vmem>>, vector<1x128x8xf32>
    %1 = vector.shape_cast %0 : vector<1x128x8xf32> to vector<128x8xf32>
    %2 = tpu.transpose %1, [1, 0] : vector<128x8xf32> -> vector<8x128xf32>
    %c0_2 = arith.constant 0 : index
    %c0_3 = arith.constant 0 : index
    %3 = vector.load %arg5[%c0_2, %c0_3] : memref<16x8xf32, #tpu.memory_space<vmem>>, vector<16x8xf32>
    %c0_4 = arith.constant 0 : index
    %c0_5 = arith.constant 0 : index
    %4 = vector.load %arg6[%c0_4, %c0_5] : memref<16x1xf32, #tpu.memory_space<vmem>>, vector<16x1xf32>
    %c0_6 = arith.constant 0 : index
    %c0_7 = arith.constant 0 : index
    %5 = vector.load %arg7[%c0_6, %c0_7] : memref<16x16xf32, #tpu.memory_space<vmem>>, vector<16x16xf32>
    %c0_8 = arith.constant 0 : index
    %c0_9 = arith.constant 0 : index
    %6 = vector.load %arg8[%c0_8, %c0_9] : memref<16x1xf32, #tpu.memory_space<vmem>>, vector<16x1xf32>
    %c0_10 = arith.constant 0 : index
    %c0_11 = arith.constant 0 : index
    %c0_12 = arith.constant 0 : index
    %7 = vector.load %arg3[%c0_10, %c0_11, %c0_12] : memref<1x128x16xf32, #tpu.memory_space<vmem>>, vector<1x128x16xf32>
    %8 = vector.shape_cast %7 : vector<1x128x16xf32> to vector<128x16xf32>
    %9 = tpu.transpose %8, [1, 0] : vector<128x16xf32> -> vector<16x128xf32>
    %cst = arith.constant dense<0.000000e+00> : vector<16x128xf32>
    %10 = tpu.matmul %3, %2, %cst {dimension_numbers = #tpu.dot_dimension_numbers<[1], [0], [0], [1], [0, 0, 1, 1], [], []>} : vector<16x8xf32>, vector<8x128xf32>, vector<16x128xf32> -> vector<16x128xf32>
    %11 = vector.broadcast %4 : vector<16x1xf32> to vector<16x128xf32>
    %12 = arith.addf %10, %11 : vector<16x128xf32>
    %cst_13 = arith.constant 5.000000e-01 : f32
    %13 = vector.broadcast %cst_13 : f32 to vector<16x128xf32>
    %14 = arith.mulf %13, %12 : vector<16x128xf32>
    %cst_14 = arith.constant 0.707106769 : f32
    %15 = vector.broadcast %cst_14 : f32 to vector<16x128xf32>
    %16 = arith.mulf %12, %15 : vector<16x128xf32>
    %17 = math.absf %16 : vector<16x128xf32>
    %cst_15 = arith.constant 0.327591091 : f32
    %18 = vector.broadcast %cst_15 : f32 to vector<16x128xf32>
    %19 = arith.mulf %18, %17 : vector<16x128xf32>
    %cst_16 = arith.constant 1.000000e+00 : f32
    %20 = vector.broadcast %cst_16 : f32 to vector<16x128xf32>
    %21 = arith.addf %20, %19 : vector<16x128xf32>
    %cst_17 = arith.constant 1.000000e+00 : f32
    %22 = vector.broadcast %cst_17 : f32 to vector<16x128xf32>
    %23 = arith.divf %22, %21 : vector<16x128xf32>
    %cst_18 = arith.constant 1.06140542 : f32
    %24 = vector.broadcast %cst_18 : f32 to vector<16x128xf32>
    %25 = arith.mulf %23, %24 : vector<16x128xf32>
    %cst_19 = arith.constant -1.45315206 : f32
    %26 = vector.broadcast %cst_19 : f32 to vector<16x128xf32>
    %27 = arith.addf %26, %25 : vector<16x128xf32>
    %28 = arith.mulf %23, %27 : vector<16x128xf32>
    %cst_20 = arith.constant 1.42141378 : f32
    %29 = vector.broadcast %cst_20 : f32 to vector<16x128xf32>
    %30 = arith.addf %29, %28 : vector<16x128xf32>
    %31 = arith.mulf %23, %30 : vector<16x128xf32>
    %cst_21 = arith.constant -0.284496725 : f32
    %32 = vector.broadcast %cst_21 : f32 to vector<16x128xf32>
    %33 = arith.addf %32, %31 : vector<16x128xf32>
    %34 = arith.mulf %23, %33 : vector<16x128xf32>
    %cst_22 = arith.constant 0.254829586 : f32
    %35 = vector.broadcast %cst_22 : f32 to vector<16x128xf32>
    %36 = arith.addf %35, %34 : vector<16x128xf32>
    %37 = arith.mulf %23, %36 : vector<16x128xf32>
    %cst_23 = arith.constant 0.000000e+00 : f32
    %38 = vector.broadcast %cst_23 : f32 to vector<16x128xf32>
    %39 = arith.subf %38, %17 : vector<16x128xf32>
    %40 = arith.mulf %39, %17 : vector<16x128xf32>
    %41 = math.exp %40 : vector<16x128xf32>
    %42 = arith.mulf %37, %41 : vector<16x128xf32>
    %cst_24 = arith.constant 1.000000e+00 : f32
    %43 = vector.broadcast %cst_24 : f32 to vector<16x128xf32>
    %44 = arith.subf %43, %42 : vector<16x128xf32>
    %cst_25 = arith.constant 0.000000e+00 : f32
    %45 = vector.broadcast %cst_25 : f32 to vector<16x128xf32>
    %46 = arith.cmpf olt, %16, %45 : vector<16x128xf32>
    %cst_26 = arith.constant 0.000000e+00 : f32
    %47 = vector.broadcast %cst_26 : f32 to vector<16x128xf32>
    %48 = arith.subf %47, %44 : vector<16x128xf32>
    %49 = arith.select %46, %48, %44 : vector<16x128xi1>, vector<16x128xf32>
    %cst_27 = arith.constant 1.000000e+00 : f32
    %50 = vector.broadcast %cst_27 : f32 to vector<16x128xf32>
    %51 = arith.addf %50, %49 : vector<16x128xf32>
    %52 = arith.mulf %14, %51 : vector<16x128xf32>
    %cst_28 = arith.constant dense<0.000000e+00> : vector<16x128xf32>
    %53 = tpu.matmul %5, %52, %cst_28 {dimension_numbers = #tpu.dot_dimension_numbers<[1], [0], [0], [1], [0, 0, 1, 1], [], []>} : vector<16x16xf32>, vector<16x128xf32>, vector<16x128xf32> -> vector<16x128xf32>
    %54 = vector.broadcast %6 : vector<16x1xf32> to vector<16x128xf32>
    %55 = arith.addf %53, %54 : vector<16x128xf32>
    %56 = arith.addf %9, %55 : vector<16x128xf32>
    %c0_29 = arith.constant 0 : index
    %c0_30 = arith.constant 0 : index
    %c0_31 = arith.constant 0 : index
    %57 = vector.load %arg13[%c0_29, %c0_30, %c0_31] : memref<1x16x128xf32, #tpu.memory_space<vmem>>, vector<1x16x128xf32>
    %58 = vector.shape_cast %57 : vector<1x16x128xf32> to vector<16x128xf32>
    %59 = vector.shape_cast %56 : vector<16x128xf32> to vector<1x16x128xf32>
    tpu.vector_store %arg13[%c0_29, %c0_30, %c0_31], %59 {strides = array<i32>} : memref<1x16x128xf32, #tpu.memory_space<vmem>>, vector<1x16x128xf32>,
    %c0_32 = arith.constant 0 : index
    %c0_33 = arith.constant 0 : index
    %60 = vector.load %arg9[%c0_32, %c0_33] : memref<32x16xf32, #tpu.memory_space<vmem>>, vector<32x16xf32>
    %c0_34 = arith.constant 0 : index
    %c0_35 = arith.constant 0 : index
    %61 = vector.load %arg10[%c0_34, %c0_35] : memref<32x1xf32, #tpu.memory_space<vmem>>, vector<32x1xf32>
    %c0_36 = arith.constant 0 : index
    %c0_37 = arith.constant 0 : index
    %62 = vector.load %arg11[%c0_36, %c0_37] : memref<32x32xf32, #tpu.memory_space<vmem>>, vector<32x32xf32>
    %c0_38 = arith.constant 0 : index
    %c0_39 = arith.constant 0 : index
    %63 = vector.load %arg12[%c0_38, %c0_39] : memref<32x1xf32, #tpu.memory_space<vmem>>, vector<32x1xf32>
    %c0_40 = arith.constant 0 : index
    %c0_41 = arith.constant 0 : index
    %c0_42 = arith.constant 0 : index
    %64 = vector.load %arg4[%c0_40, %c0_41, %c0_42] : memref<1x128x32xf32, #tpu.memory_space<vmem>>, vector<1x128x32xf32>
    %65 = vector.shape_cast %64 : vector<1x128x32xf32> to vector<128x32xf32>
    %66 = tpu.transpose %65, [1, 0] : vector<128x32xf32> -> vector<32x128xf32>
    %cst_43 = arith.constant dense<0.000000e+00> : vector<32x128xf32>
    %67 = tpu.matmul %60, %56, %cst_43 {dimension_numbers = #tpu.dot_dimension_numbers<[1], [0], [0], [1], [0, 0, 1, 1], [], []>} : vector<32x16xf32>, vector<16x128xf32>, vector<32x128xf32> -> vector<32x128xf32>
    %68 = vector.broadcast %61 : vector<32x1xf32> to vector<32x128xf32>
    %69 = arith.addf %67, %68 : vector<32x128xf32>
    %cst_44 = arith.constant 5.000000e-01 : f32
    %70 = vector.broadcast %cst_44 : f32 to vector<32x128xf32>
    %71 = arith.mulf %70, %69 : vector<32x128xf32>
    %cst_45 = arith.constant 0.707106769 : f32
    %72 = vector.broadcast %cst_45 : f32 to vector<32x128xf32>
    %73 = arith.mulf %69, %72 : vector<32x128xf32>
    %74 = math.absf %73 : vector<32x128xf32>
    %cst_46 = arith.constant 0.327591091 : f32
    %75 = vector.broadcast %cst_46 : f32 to vector<32x128xf32>
    %76 = arith.mulf %75, %74 : vector<32x128xf32>
    %cst_47 = arith.constant 1.000000e+00 : f32
    %77 = vector.broadcast %cst_47 : f32 to vector<32x128xf32>
    %78 = arith.addf %77, %76 : vector<32x128xf32>
    %cst_48 = arith.constant 1.000000e+00 : f32
    %79 = vector.broadcast %cst_48 : f32 to vector<32x128xf32>
    %80 = arith.divf %79, %78 : vector<32x128xf32>
    %cst_49 = arith.constant 1.06140542 : f32
    %81 = vector.broadcast %cst_49 : f32 to vector<32x128xf32>
    %82 = arith.mulf %80, %81 : vector<32x128xf32>
    %cst_50 = arith.constant -1.45315206 : f32
    %83 = vector.broadcast %cst_50 : f32 to vector<32x128xf32>
    %84 = arith.addf %83, %82 : vector<32x128xf32>
    %85 = arith.mulf %80, %84 : vector<32x128xf32>
    %cst_51 = arith.constant 1.42141378 : f32
    %86 = vector.broadcast %cst_51 : f32 to vector<32x128xf32>
    %87 = arith.addf %86, %85 : vector<32x128xf32>
    %88 = arith.mulf %80, %87 : vector<32x128xf32>
    %cst_52 = arith.constant -0.284496725 : f32
    %89 = vector.broadcast %cst_52 : f32 to vector<32x128xf32>
    %90 = arith.addf %89, %88 : vector<32x128xf32>
    %91 = arith.mulf %80, %90 : vector<32x128xf32>
    %cst_53 = arith.constant 0.254829586 : f32
    %92 = vector.broadcast %cst_53 : f32 to vector<32x128xf32>
    %93 = arith.addf %92, %91 : vector<32x128xf32>
    %94 = arith.mulf %80, %93 : vector<32x128xf32>
    %cst_54 = arith.constant 0.000000e+00 : f32
    %95 = vector.broadcast %cst_54 : f32 to vector<32x128xf32>
    %96 = arith.subf %95, %74 : vector<32x128xf32>
    %97 = arith.mulf %96, %74 : vector<32x128xf32>
    %98 = math.exp %97 : vector<32x128xf32>
    %99 = arith.mulf %94, %98 : vector<32x128xf32>
    %cst_55 = arith.constant 1.000000e+00 : f32
    %100 = vector.broadcast %cst_55 : f32 to vector<32x128xf32>
    %101 = arith.subf %100, %99 : vector<32x128xf32>
    %cst_56 = arith.constant 0.000000e+00 : f32
    %102 = vector.broadcast %cst_56 : f32 to vector<32x128xf32>
    %103 = arith.cmpf olt, %73, %102 : vector<32x128xf32>
    %cst_57 = arith.constant 0.000000e+00 : f32
    %104 = vector.broadcast %cst_57 : f32 to vector<32x128xf32>
    %105 = arith.subf %104, %101 : vector<32x128xf32>
    %106 = arith.select %103, %105, %101 : vector<32x128xi1>, vector<32x128xf32>
    %cst_58 = arith.constant 1.000000e+00 : f32
    %107 = vector.broadcast %cst_58 : f32 to vector<32x128xf32>
    %108 = arith.addf %107, %106 : vector<32x128xf32>
    %109 = arith.mulf %71, %108 : vector<32x128xf32>
    %cst_59 = arith.constant dense<0.000000e+00> : vector<32x128xf32>
    %110 = tpu.matmul %62, %109, %cst_59 {dimension_numbers = #tpu.dot_dimension_numbers<[1], [0], [0], [1], [0, 0, 1, 1], [], []>} : vector<32x32xf32>, vector<32x128xf32>, vector<32x128xf32> -> vector<32x128xf32>
    %111 = vector.broadcast %63 : vector<32x1xf32> to vector<32x128xf32>
    %112 = arith.addf %110, %111 : vector<32x128xf32>
    %113 = arith.addf %66, %112 : vector<32x128xf32>
    %c0_60 = arith.constant 0 : index
    %c0_61 = arith.constant 0 : index
    %c0_62 = arith.constant 0 : index
    %114 = vector.load %arg14[%c0_60, %c0_61, %c0_62] : memref<1x32x128xf32, #tpu.memory_space<vmem>>, vector<1x32x128xf32>
    %115 = vector.shape_cast %114 : vector<1x32x128xf32> to vector<32x128xf32>
    %116 = vector.shape_cast %113 : vector<32x128xf32> to vector<1x32x128xf32>
    tpu.vector_store %arg14[%c0_60, %c0_61, %c0_62], %116 {strides = array<i32>} : memref<1x32x128xf32, #tpu.memory_space<vmem>>, vector<1x32x128xf32>,
    return
  }
  func.func @transform_0(%arg0: i32, %arg1: i32) -> (i32, i32, i32) {
    %c0_i32 = arith.constant 0 : i32
    %c0_i32_0 = arith.constant 0 : i32
    return %arg0, %arg1, %c0_i32 : i32, i32, i32
  }
  func.func @transform_1(%arg0: i32, %arg1: i32) -> (i32, i32, i32) {
    %c0_i32 = arith.constant 0 : i32
    %c0_i32_0 = arith.constant 0 : i32
    return %arg0, %arg1, %c0_i32 : i32, i32, i32
  }
  func.func @transform_2(%arg0: i32, %arg1: i32) -> (i32, i32, i32) {
    %c0_i32 = arith.constant 0 : i32
    %c0_i32_0 = arith.constant 0 : i32
    return %arg0, %arg1, %c0_i32 : i32, i32, i32
  }
  func.func @transform_3(%arg0: i32, %arg1: i32) -> (i32, i32) {
    %c0_i32 = arith.constant 0 : i32
    %c0_i32_0 = arith.constant 0 : i32
    %c0_i32_1 = arith.constant 0 : i32
    return %c0_i32, %c0_i32_0 : i32, i32
  }
  func.func @transform_4(%arg0: i32, %arg1: i32) -> (i32, i32) {
    %c0_i32 = arith.constant 0 : i32
    %c0_i32_0 = arith.constant 0 : i32
    %c0_i32_1 = arith.constant 0 : i32
    return %c0_i32, %c0_i32_0 : i32, i32
  }
  func.func @transform_5(%arg0: i32, %arg1: i32) -> (i32, i32) {
    %c0_i32 = arith.constant 0 : i32
    %c0_i32_0 = arith.constant 0 : i32
    %c0_i32_1 = arith.constant 0 : i32
    return %c0_i32, %c0_i32_0 : i32, i32
  }
  func.func @transform_6(%arg0: i32, %arg1: i32) -> (i32, i32) {
    %c0_i32 = arith.constant 0 : i32
    %c0_i32_0 = arith.constant 0 : i32
    %c0_i32_1 = arith.constant 0 : i32
    return %c0_i32, %c0_i32_0 : i32, i32
  }
  func.func @transform_7(%arg0: i32, %arg1: i32) -> (i32, i32) {
    %c0_i32 = arith.constant 0 : i32
    %c0_i32_0 = arith.constant 0 : i32
    %c0_i32_1 = arith.constant 0 : i32
    return %c0_i32, %c0_i32_0 : i32, i32
  }
  func.func @transform_8(%arg0: i32, %arg1: i32) -> (i32, i32) {
    %c0_i32 = arith.constant 0 : i32
    %c0_i32_0 = arith.constant 0 : i32
    %c0_i32_1 = arith.constant 0 : i32
    return %c0_i32, %c0_i32_0 : i32, i32
  }
  func.func @transform_9(%arg0: i32, %arg1: i32) -> (i32, i32) {
    %c0_i32 = arith.constant 0 : i32
    %c0_i32_0 = arith.constant 0 : i32
    %c0_i32_1 = arith.constant 0 : i32
    return %c0_i32, %c0_i32_0 : i32, i32
  }
  func.func @transform_10(%arg0: i32, %arg1: i32) -> (i32, i32) {
    %c0_i32 = arith.constant 0 : i32
    %c0_i32_0 = arith.constant 0 : i32
    %c0_i32_1 = arith.constant 0 : i32
    return %c0_i32, %c0_i32_0 : i32, i32
  }
  func.func @transform_11(%arg0: i32, %arg1: i32) -> (i32, i32, i32) {
    %c0_i32 = arith.constant 0 : i32
    %c0_i32_0 = arith.constant 0 : i32
    return %arg0, %c0_i32, %arg1 : i32, i32, i32
  }
  func.func @transform_12(%arg0: i32, %arg1: i32) -> (i32, i32, i32) {
    %c0_i32 = arith.constant 0 : i32
    %c0_i32_0 = arith.constant 0 : i32
    return %arg0, %c0_i32, %arg1 : i32, i32, i32
  }
}

module attributes {stable_mosaic.version = 11 : i64} {
  func.func @kernel(%arg0: i32, %arg1: memref<8x128xf32, #tpu.memory_space<vmem>>, %arg2: memref<16x128xf32, #tpu.memory_space<vmem>>, %arg3: memref<32x128xf32, #tpu.memory_space<vmem>>, %arg4: memref<16x8xf32, #tpu.memory_space<vmem>>, %arg5: memref<16x1xf32, #tpu.memory_space<vmem>>, %arg6: memref<16x16xf32, #tpu.memory_space<vmem>>, %arg7: memref<16x1xf32, #tpu.memory_space<vmem>>, %arg8: memref<32x16xf32, #tpu.memory_space<vmem>>, %arg9: memref<32x1xf32, #tpu.memory_space<vmem>>, %arg10: memref<32x32xf32, #tpu.memory_space<vmem>>, %arg11: memref<32x1xf32, #tpu.memory_space<vmem>>, %arg12: memref<16x128xf32, #tpu.memory_space<vmem>>, %arg13: memref<32x128xf32, #tpu.memory_space<vmem>>) attributes {dimension_semantics = [#tpu.dimension_semantics<parallel>], iteration_bounds = array<i64: 8>, scalar_prefetch = 0 : i64, scratch_operands = 0 : i64, tpu.core_type = #tpu.core_type<tc>, window_params = [{transform_indices = @transform_0, window_bounds = array<i64: 8, 128>}, {transform_indices = @transform_1, window_bounds = array<i64: 16, 128>}, {transform_indices = @transform_2, window_bounds = array<i64: 32, 128>}, {pipeline_mode = #tpu.pipeline_mode<synchronous>, transform_indices = @transform_3, window_bounds = array<i64: 16, 8>}, {pipeline_mode = #tpu.pipeline_mode<synchronous>, transform_indices = @transform_4, window_bounds = array<i64: 16, 1>}, {pipeline_mode = #tpu.pipeline_mode<synchronous>, transform_indices = @transform_5, window_bounds = array<i64: 16, 16>}, {pipeline_mode = #tpu.pipeline_mode<synchronous>, transform_indices = @transform_6, window_bounds = array<i64: 16, 1>}, {pipeline_mode = #tpu.pipeline_mode<synchronous>, transform_indices = @transform_7, window_bounds = array<i64: 32, 16>}, {pipeline_mode = #tpu.pipeline_mode<synchronous>, transform_indices = @transform_8, window_bounds = array<i64: 32, 1>}, {pipeline_mode = #tpu.pipeline_mode<synchronous>, transform_indices = @transform_9, window_bounds = array<i64: 32, 32>}, {pipeline_mode = #tpu.pipeline_mode<synchronous>, transform_indices = @transform_10, window_bounds = array<i64: 32, 1>}, {transform_indices = @transform_11, window_bounds = array<i64: 16, 128>}, {transform_indices = @transform_12, window_bounds = array<i64: 32, 128>}]} {
    %c0 = arith.constant 0 : index
    %c0_0 = arith.constant 0 : index
    %0 = vector.load %arg1[%c0, %c0_0] : memref<8x128xf32, #tpu.memory_space<vmem>>, vector<8x128xf32>
    %c0_1 = arith.constant 0 : index
    %c0_2 = arith.constant 0 : index
    %1 = vector.load %arg4[%c0_1, %c0_2] : memref<16x8xf32, #tpu.memory_space<vmem>>, vector<16x8xf32>
    %c0_3 = arith.constant 0 : index
    %c0_4 = arith.constant 0 : index
    %2 = vector.load %arg5[%c0_3, %c0_4] : memref<16x1xf32, #tpu.memory_space<vmem>>, vector<16x1xf32>
    %c0_5 = arith.constant 0 : index
    %c0_6 = arith.constant 0 : index
    %3 = vector.load %arg6[%c0_5, %c0_6] : memref<16x16xf32, #tpu.memory_space<vmem>>, vector<16x16xf32>
    %c0_7 = arith.constant 0 : index
    %c0_8 = arith.constant 0 : index
    %4 = vector.load %arg7[%c0_7, %c0_8] : memref<16x1xf32, #tpu.memory_space<vmem>>, vector<16x1xf32>
    %c0_9 = arith.constant 0 : index
    %c0_10 = arith.constant 0 : index
    %5 = vector.load %arg2[%c0_9, %c0_10] : memref<16x128xf32, #tpu.memory_space<vmem>>, vector<16x128xf32>
    %cst = arith.constant dense<0.000000e+00> : vector<16x128xf32>
    %6 = tpu.matmul %1, %0, %cst {dimension_numbers = #tpu.dot_dimension_numbers<[1], [0], [0], [1], [0, 0, 1, 1], [], []>} : vector<16x8xf32>, vector<8x128xf32>, vector<16x128xf32> -> vector<16x128xf32>
    %7 = vector.broadcast %2 : vector<16x1xf32> to vector<16x128xf32>
    %8 = arith.addf %6, %7 : vector<16x128xf32>
    %cst_11 = arith.constant 5.000000e-01 : f32
    %9 = vector.broadcast %cst_11 : f32 to vector<16x128xf32>
    %10 = arith.mulf %9, %8 : vector<16x128xf32>
    %cst_12 = arith.constant 0.707106769 : f32
    %11 = vector.broadcast %cst_12 : f32 to vector<16x128xf32>
    %12 = arith.mulf %8, %11 : vector<16x128xf32>
    %13 = math.absf %12 : vector<16x128xf32>
    %cst_13 = arith.constant 0.327591091 : f32
    %14 = vector.broadcast %cst_13 : f32 to vector<16x128xf32>
    %15 = arith.mulf %14, %13 : vector<16x128xf32>
    %cst_14 = arith.constant 1.000000e+00 : f32
    %16 = vector.broadcast %cst_14 : f32 to vector<16x128xf32>
    %17 = arith.addf %16, %15 : vector<16x128xf32>
    %cst_15 = arith.constant 1.000000e+00 : f32
    %18 = vector.broadcast %cst_15 : f32 to vector<16x128xf32>
    %19 = arith.divf %18, %17 : vector<16x128xf32>
    %cst_16 = arith.constant 1.06140542 : f32
    %20 = vector.broadcast %cst_16 : f32 to vector<16x128xf32>
    %21 = arith.mulf %19, %20 : vector<16x128xf32>
    %cst_17 = arith.constant -1.45315206 : f32
    %22 = vector.broadcast %cst_17 : f32 to vector<16x128xf32>
    %23 = arith.addf %22, %21 : vector<16x128xf32>
    %24 = arith.mulf %19, %23 : vector<16x128xf32>
    %cst_18 = arith.constant 1.42141378 : f32
    %25 = vector.broadcast %cst_18 : f32 to vector<16x128xf32>
    %26 = arith.addf %25, %24 : vector<16x128xf32>
    %27 = arith.mulf %19, %26 : vector<16x128xf32>
    %cst_19 = arith.constant -0.284496725 : f32
    %28 = vector.broadcast %cst_19 : f32 to vector<16x128xf32>
    %29 = arith.addf %28, %27 : vector<16x128xf32>
    %30 = arith.mulf %19, %29 : vector<16x128xf32>
    %cst_20 = arith.constant 0.254829586 : f32
    %31 = vector.broadcast %cst_20 : f32 to vector<16x128xf32>
    %32 = arith.addf %31, %30 : vector<16x128xf32>
    %33 = arith.mulf %19, %32 : vector<16x128xf32>
    %cst_21 = arith.constant 0.000000e+00 : f32
    %34 = vector.broadcast %cst_21 : f32 to vector<16x128xf32>
    %35 = arith.subf %34, %13 : vector<16x128xf32>
    %36 = arith.mulf %35, %13 : vector<16x128xf32>
    %37 = math.exp %36 : vector<16x128xf32>
    %38 = arith.mulf %33, %37 : vector<16x128xf32>
    %cst_22 = arith.constant 1.000000e+00 : f32
    %39 = vector.broadcast %cst_22 : f32 to vector<16x128xf32>
    %40 = arith.subf %39, %38 : vector<16x128xf32>
    %cst_23 = arith.constant 0.000000e+00 : f32
    %41 = vector.broadcast %cst_23 : f32 to vector<16x128xf32>
    %42 = arith.cmpf olt, %12, %41 : vector<16x128xf32>
    %cst_24 = arith.constant 0.000000e+00 : f32
    %43 = vector.broadcast %cst_24 : f32 to vector<16x128xf32>
    %44 = arith.subf %43, %40 : vector<16x128xf32>
    %45 = arith.select %42, %44, %40 : vector<16x128xi1>, vector<16x128xf32>
    %cst_25 = arith.constant 1.000000e+00 : f32
    %46 = vector.broadcast %cst_25 : f32 to vector<16x128xf32>
    %47 = arith.addf %46, %45 : vector<16x128xf32>
    %48 = arith.mulf %10, %47 : vector<16x128xf32>
    %cst_26 = arith.constant dense<0.000000e+00> : vector<16x128xf32>
    %49 = tpu.matmul %3, %48, %cst_26 {dimension_numbers = #tpu.dot_dimension_numbers<[1], [0], [0], [1], [0, 0, 1, 1], [], []>} : vector<16x16xf32>, vector<16x128xf32>, vector<16x128xf32> -> vector<16x128xf32>
    %50 = vector.broadcast %4 : vector<16x1xf32> to vector<16x128xf32>
    %51 = arith.addf %49, %50 : vector<16x128xf32>
    %52 = arith.addf %5, %51 : vector<16x128xf32>
    %c0_27 = arith.constant 0 : index
    %c0_28 = arith.constant 0 : index
    %53 = vector.load %arg12[%c0_27, %c0_28] : memref<16x128xf32, #tpu.memory_space<vmem>>, vector<16x128xf32>
    tpu.vector_store %arg12[%c0_27, %c0_28], %52 {strides = array<i32>} : memref<16x128xf32, #tpu.memory_space<vmem>>, vector<16x128xf32>,
    %c0_29 = arith.constant 0 : index
    %c0_30 = arith.constant 0 : index
    %54 = vector.load %arg8[%c0_29, %c0_30] : memref<32x16xf32, #tpu.memory_space<vmem>>, vector<32x16xf32>
    %c0_31 = arith.constant 0 : index
    %c0_32 = arith.constant 0 : index
    %55 = vector.load %arg9[%c0_31, %c0_32] : memref<32x1xf32, #tpu.memory_space<vmem>>, vector<32x1xf32>
    %c0_33 = arith.constant 0 : index
    %c0_34 = arith.constant 0 : index
    %56 = vector.load %arg10[%c0_33, %c0_34] : memref<32x32xf32, #tpu.memory_space<vmem>>, vector<32x32xf32>
    %c0_35 = arith.constant 0 : index
    %c0_36 = arith.constant 0 : index
    %57 = vector.load %arg11[%c0_35, %c0_36] : memref<32x1xf32, #tpu.memory_space<vmem>>, vector<32x1xf32>
    %c0_37 = arith.constant 0 : index
    %c0_38 = arith.constant 0 : index
    %58 = vector.load %arg3[%c0_37, %c0_38] : memref<32x128xf32, #tpu.memory_space<vmem>>, vector<32x128xf32>
    %cst_39 = arith.constant dense<0.000000e+00> : vector<32x128xf32>
    %59 = tpu.matmul %54, %52, %cst_39 {dimension_numbers = #tpu.dot_dimension_numbers<[1], [0], [0], [1], [0, 0, 1, 1], [], []>} : vector<32x16xf32>, vector<16x128xf32>, vector<32x128xf32> -> vector<32x128xf32>
    %60 = vector.broadcast %55 : vector<32x1xf32> to vector<32x128xf32>
    %61 = arith.addf %59, %60 : vector<32x128xf32>
    %cst_40 = arith.constant 5.000000e-01 : f32
    %62 = vector.broadcast %cst_40 : f32 to vector<32x128xf32>
    %63 = arith.mulf %62, %61 : vector<32x128xf32>
    %cst_41 = arith.constant 0.707106769 : f32
    %64 = vector.broadcast %cst_41 : f32 to vector<32x128xf32>
    %65 = arith.mulf %61, %64 : vector<32x128xf32>
    %66 = math.absf %65 : vector<32x128xf32>
    %cst_42 = arith.constant 0.327591091 : f32
    %67 = vector.broadcast %cst_42 : f32 to vector<32x128xf32>
    %68 = arith.mulf %67, %66 : vector<32x128xf32>
    %cst_43 = arith.constant 1.000000e+00 : f32
    %69 = vector.broadcast %cst_43 : f32 to vector<32x128xf32>
    %70 = arith.addf %69, %68 : vector<32x128xf32>
    %cst_44 = arith.constant 1.000000e+00 : f32
    %71 = vector.broadcast %cst_44 : f32 to vector<32x128xf32>
    %72 = arith.divf %71, %70 : vector<32x128xf32>
    %cst_45 = arith.constant 1.06140542 : f32
    %73 = vector.broadcast %cst_45 : f32 to vector<32x128xf32>
    %74 = arith.mulf %72, %73 : vector<32x128xf32>
    %cst_46 = arith.constant -1.45315206 : f32
    %75 = vector.broadcast %cst_46 : f32 to vector<32x128xf32>
    %76 = arith.addf %75, %74 : vector<32x128xf32>
    %77 = arith.mulf %72, %76 : vector<32x128xf32>
    %cst_47 = arith.constant 1.42141378 : f32
    %78 = vector.broadcast %cst_47 : f32 to vector<32x128xf32>
    %79 = arith.addf %78, %77 : vector<32x128xf32>
    %80 = arith.mulf %72, %79 : vector<32x128xf32>
    %cst_48 = arith.constant -0.284496725 : f32
    %81 = vector.broadcast %cst_48 : f32 to vector<32x128xf32>
    %82 = arith.addf %81, %80 : vector<32x128xf32>
    %83 = arith.mulf %72, %82 : vector<32x128xf32>
    %cst_49 = arith.constant 0.254829586 : f32
    %84 = vector.broadcast %cst_49 : f32 to vector<32x128xf32>
    %85 = arith.addf %84, %83 : vector<32x128xf32>
    %86 = arith.mulf %72, %85 : vector<32x128xf32>
    %cst_50 = arith.constant 0.000000e+00 : f32
    %87 = vector.broadcast %cst_50 : f32 to vector<32x128xf32>
    %88 = arith.subf %87, %66 : vector<32x128xf32>
    %89 = arith.mulf %88, %66 : vector<32x128xf32>
    %90 = math.exp %89 : vector<32x128xf32>
    %91 = arith.mulf %86, %90 : vector<32x128xf32>
    %cst_51 = arith.constant 1.000000e+00 : f32
    %92 = vector.broadcast %cst_51 : f32 to vector<32x128xf32>
    %93 = arith.subf %92, %91 : vector<32x128xf32>
    %cst_52 = arith.constant 0.000000e+00 : f32
    %94 = vector.broadcast %cst_52 : f32 to vector<32x128xf32>
    %95 = arith.cmpf olt, %65, %94 : vector<32x128xf32>
    %cst_53 = arith.constant 0.000000e+00 : f32
    %96 = vector.broadcast %cst_53 : f32 to vector<32x128xf32>
    %97 = arith.subf %96, %93 : vector<32x128xf32>
    %98 = arith.select %95, %97, %93 : vector<32x128xi1>, vector<32x128xf32>
    %cst_54 = arith.constant 1.000000e+00 : f32
    %99 = vector.broadcast %cst_54 : f32 to vector<32x128xf32>
    %100 = arith.addf %99, %98 : vector<32x128xf32>
    %101 = arith.mulf %63, %100 : vector<32x128xf32>
    %cst_55 = arith.constant dense<0.000000e+00> : vector<32x128xf32>
    %102 = tpu.matmul %56, %101, %cst_55 {dimension_numbers = #tpu.dot_dimension_numbers<[1], [0], [0], [1], [0, 0, 1, 1], [], []>} : vector<32x32xf32>, vector<32x128xf32>, vector<32x128xf32> -> vector<32x128xf32>
    %103 = vector.broadcast %57 : vector<32x1xf32> to vector<32x128xf32>
    %104 = arith.addf %102, %103 : vector<32x128xf32>
    %105 = arith.addf %58, %104 : vector<32x128xf32>
    %c0_56 = arith.constant 0 : index
    %c0_57 = arith.constant 0 : index
    %106 = vector.load %arg13[%c0_56, %c0_57] : memref<32x128xf32, #tpu.memory_space<vmem>>, vector<32x128xf32>
    tpu.vector_store %arg13[%c0_56, %c0_57], %105 {strides = array<i32>} : memref<32x128xf32, #tpu.memory_space<vmem>>, vector<32x128xf32>,
    return
  }
  func.func @transform_0(%arg0: i32) -> (i32, i32) {
    %c0_i32 = arith.constant 0 : i32
    %c0_i32_0 = arith.constant 0 : i32
    return %c0_i32, %arg0 : i32, i32
  }
  func.func @transform_1(%arg0: i32) -> (i32, i32) {
    %c0_i32 = arith.constant 0 : i32
    %c0_i32_0 = arith.constant 0 : i32
    return %c0_i32, %arg0 : i32, i32
  }
  func.func @transform_2(%arg0: i32) -> (i32, i32) {
    %c0_i32 = arith.constant 0 : i32
    %c0_i32_0 = arith.constant 0 : i32
    return %c0_i32, %arg0 : i32, i32
  }
  func.func @transform_3(%arg0: i32) -> (i32, i32) {
    %c0_i32 = arith.constant 0 : i32
    %c0_i32_0 = arith.constant 0 : i32
    %c0_i32_1 = arith.constant 0 : i32
    return %c0_i32, %c0_i32_0 : i32, i32
  }
  func.func @transform_4(%arg0: i32) -> (i32, i32) {
    %c0_i32 = arith.constant 0 : i32
    %c0_i32_0 = arith.constant 0 : i32
    %c0_i32_1 = arith.constant 0 : i32
    return %c0_i32, %c0_i32_0 : i32, i32
  }
  func.func @transform_5(%arg0: i32) -> (i32, i32) {
    %c0_i32 = arith.constant 0 : i32
    %c0_i32_0 = arith.constant 0 : i32
    %c0_i32_1 = arith.constant 0 : i32
    return %c0_i32, %c0_i32_0 : i32, i32
  }
  func.func @transform_6(%arg0: i32) -> (i32, i32) {
    %c0_i32 = arith.constant 0 : i32
    %c0_i32_0 = arith.constant 0 : i32
    %c0_i32_1 = arith.constant 0 : i32
    return %c0_i32, %c0_i32_0 : i32, i32
  }
  func.func @transform_7(%arg0: i32) -> (i32, i32) {
    %c0_i32 = arith.constant 0 : i32
    %c0_i32_0 = arith.constant 0 : i32
    %c0_i32_1 = arith.constant 0 : i32
    return %c0_i32, %c0_i32_0 : i32, i32
  }
  func.func @transform_8(%arg0: i32) -> (i32, i32) {
    %c0_i32 = arith.constant 0 : i32
    %c0_i32_0 = arith.constant 0 : i32
    %c0_i32_1 = arith.constant 0 : i32
    return %c0_i32, %c0_i32_0 : i32, i32
  }
  func.func @transform_9(%arg0: i32) -> (i32, i32) {
    %c0_i32 = arith.constant 0 : i32
    %c0_i32_0 = arith.constant 0 : i32
    %c0_i32_1 = arith.constant 0 : i32
    return %c0_i32, %c0_i32_0 : i32, i32
  }
  func.func @transform_10(%arg0: i32) -> (i32, i32) {
    %c0_i32 = arith.constant 0 : i32
    %c0_i32_0 = arith.constant 0 : i32
    %c0_i32_1 = arith.constant 0 : i32
    return %c0_i32, %c0_i32_0 : i32, i32
  }
  func.func @transform_11(%arg0: i32) -> (i32, i32) {
    %c0_i32 = arith.constant 0 : i32
    %c0_i32_0 = arith.constant 0 : i32
    return %c0_i32, %arg0 : i32, i32
  }
  func.func @transform_12(%arg0: i32) -> (i32, i32) {
    %c0_i32 = arith.constant 0 : i32
    %c0_i32_0 = arith.constant 0 : i32
    return %c0_i32, %arg0 : i32, i32
  }
}

module attributes {stable_mosaic.version = 11 : i64} {
  func.func @kernel(%arg0: i32, %arg1: memref<8x128xf32, #tpu.memory_space<vmem>>, %arg2: memref<16x128xf32, #tpu.memory_space<vmem>>, %arg3: memref<32x128xf32, #tpu.memory_space<vmem>>, %arg4: memref<16x8xf32, #tpu.memory_space<vmem>>, %arg5: memref<16x1xf32, #tpu.memory_space<vmem>>, %arg6: memref<16x16xf32, #tpu.memory_space<vmem>>, %arg7: memref<16x1xf32, #tpu.memory_space<vmem>>, %arg8: memref<32x16xf32, #tpu.memory_space<vmem>>, %arg9: memref<32x1xf32, #tpu.memory_space<vmem>>, %arg10: memref<32x32xf32, #tpu.memory_space<vmem>>, %arg11: memref<32x1xf32, #tpu.memory_space<vmem>>, %arg12: memref<16x128xf32, #tpu.memory_space<vmem>>, %arg13: memref<32x128xf32, #tpu.memory_space<vmem>>) attributes {dimension_semantics = [#tpu.dimension_semantics<parallel>], iteration_bounds = array<i64: 8>, scalar_prefetch = 0 : i64, scratch_operands = 0 : i64, tpu.core_type = #tpu.core_type<tc>, window_params = [{transform_indices = @transform_0, window_bounds = array<i64: 8, 128>}, {transform_indices = @transform_1, window_bounds = array<i64: 16, 128>}, {transform_indices = @transform_2, window_bounds = array<i64: 32, 128>}, {pipeline_mode = #tpu.pipeline_mode<synchronous>, transform_indices = @transform_3, window_bounds = array<i64: 16, 8>}, {pipeline_mode = #tpu.pipeline_mode<synchronous>, transform_indices = @transform_4, window_bounds = array<i64: 16, 1>}, {pipeline_mode = #tpu.pipeline_mode<synchronous>, transform_indices = @transform_5, window_bounds = array<i64: 16, 16>}, {pipeline_mode = #tpu.pipeline_mode<synchronous>, transform_indices = @transform_6, window_bounds = array<i64: 16, 1>}, {pipeline_mode = #tpu.pipeline_mode<synchronous>, transform_indices = @transform_7, window_bounds = array<i64: 32, 16>}, {pipeline_mode = #tpu.pipeline_mode<synchronous>, transform_indices = @transform_8, window_bounds = array<i64: 32, 1>}, {pipeline_mode = #tpu.pipeline_mode<synchronous>, transform_indices = @transform_9, window_bounds = array<i64: 32, 32>}, {pipeline_mode = #tpu.pipeline_mode<synchronous>, transform_indices = @transform_10, window_bounds = array<i64: 32, 1>}, {transform_indices = @transform_11, window_bounds = array<i64: 16, 128>}, {transform_indices = @transform_12, window_bounds = array<i64: 32, 128>}]} {
    %c0 = arith.constant 0 : index
    %c0_0 = arith.constant 0 : index
    %0 = vector.load %arg1[%c0, %c0_0] : memref<8x128xf32, #tpu.memory_space<vmem>>, vector<8x128xf32>
    %c0_1 = arith.constant 0 : index
    %c0_2 = arith.constant 0 : index
    %1 = vector.load %arg4[%c0_1, %c0_2] : memref<16x8xf32, #tpu.memory_space<vmem>>, vector<16x8xf32>
    %c0_3 = arith.constant 0 : index
    %c0_4 = arith.constant 0 : index
    %2 = vector.load %arg5[%c0_3, %c0_4] : memref<16x1xf32, #tpu.memory_space<vmem>>, vector<16x1xf32>
    %c0_5 = arith.constant 0 : index
    %c0_6 = arith.constant 0 : index
    %3 = vector.load %arg6[%c0_5, %c0_6] : memref<16x16xf32, #tpu.memory_space<vmem>>, vector<16x16xf32>
    %c0_7 = arith.constant 0 : index
    %c0_8 = arith.constant 0 : index
    %4 = vector.load %arg7[%c0_7, %c0_8] : memref<16x1xf32, #tpu.memory_space<vmem>>, vector<16x1xf32>
    %c0_9 = arith.constant 0 : index
    %c0_10 = arith.constant 0 : index
    %5 = vector.load %arg2[%c0_9, %c0_10] : memref<16x128xf32, #tpu.memory_space<vmem>>, vector<16x128xf32>
    %cst = arith.constant dense<0.000000e+00> : vector<16x128xf32>
    %6 = tpu.matmul %1, %0, %cst {dimension_numbers = #tpu.dot_dimension_numbers<[1], [0], [0], [1], [0, 0, 1, 1], [], []>} : vector<16x8xf32>, vector<8x128xf32>, vector<16x128xf32> -> vector<16x128xf32>
    %7 = vector.broadcast %2 : vector<16x1xf32> to vector<16x128xf32>
    %8 = arith.addf %6, %7 : vector<16x128xf32>
    %cst_11 = arith.constant 5.000000e-01 : f32
    %9 = vector.broadcast %cst_11 : f32 to vector<16x128xf32>
    %10 = arith.mulf %9, %8 : vector<16x128xf32>
    %cst_12 = arith.constant 0.707106769 : f32
    %11 = vector.broadcast %cst_12 : f32 to vector<16x128xf32>
    %12 = arith.mulf %8, %11 : vector<16x128xf32>
    %13 = math.absf %12 : vector<16x128xf32>
    %cst_13 = arith.constant 0.327591091 : f32
    %14 = vector.broadcast %cst_13 : f32 to vector<16x128xf32>
    %15 = arith.mulf %14, %13 : vector<16x128xf32>
    %cst_14 = arith.constant 1.000000e+00 : f32
    %16 = vector.broadcast %cst_14 : f32 to vector<16x128xf32>
    %17 = arith.addf %16, %15 : vector<16x128xf32>
    %cst_15 = arith.constant 1.000000e+00 : f32
    %18 = vector.broadcast %cst_15 : f32 to vector<16x128xf32>
    %19 = arith.divf %18, %17 : vector<16x128xf32>
    %cst_16 = arith.constant 1.06140542 : f32
    %20 = vector.broadcast %cst_16 : f32 to vector<16x128xf32>
    %21 = arith.mulf %19, %20 : vector<16x128xf32>
    %cst_17 = arith.constant -1.45315206 : f32
    %22 = vector.broadcast %cst_17 : f32 to vector<16x128xf32>
    %23 = arith.addf %22, %21 : vector<16x128xf32>
    %24 = arith.mulf %19, %23 : vector<16x128xf32>
    %cst_18 = arith.constant 1.42141378 : f32
    %25 = vector.broadcast %cst_18 : f32 to vector<16x128xf32>
    %26 = arith.addf %25, %24 : vector<16x128xf32>
    %27 = arith.mulf %19, %26 : vector<16x128xf32>
    %cst_19 = arith.constant -0.284496725 : f32
    %28 = vector.broadcast %cst_19 : f32 to vector<16x128xf32>
    %29 = arith.addf %28, %27 : vector<16x128xf32>
    %30 = arith.mulf %19, %29 : vector<16x128xf32>
    %cst_20 = arith.constant 0.254829586 : f32
    %31 = vector.broadcast %cst_20 : f32 to vector<16x128xf32>
    %32 = arith.addf %31, %30 : vector<16x128xf32>
    %33 = arith.mulf %19, %32 : vector<16x128xf32>
    %cst_21 = arith.constant 0.000000e+00 : f32
    %34 = vector.broadcast %cst_21 : f32 to vector<16x128xf32>
    %35 = arith.subf %34, %13 : vector<16x128xf32>
    %36 = arith.mulf %35, %13 : vector<16x128xf32>
    %37 = math.exp %36 : vector<16x128xf32>
    %38 = arith.mulf %33, %37 : vector<16x128xf32>
    %cst_22 = arith.constant 1.000000e+00 : f32
    %39 = vector.broadcast %cst_22 : f32 to vector<16x128xf32>
    %40 = arith.subf %39, %38 : vector<16x128xf32>
    %cst_23 = arith.constant 0.000000e+00 : f32
    %41 = vector.broadcast %cst_23 : f32 to vector<16x128xf32>
    %42 = arith.cmpf olt, %12, %41 : vector<16x128xf32>
    %cst_24 = arith.constant 0.000000e+00 : f32
    %43 = vector.broadcast %cst_24 : f32 to vector<16x128xf32>
    %44 = arith.subf %43, %40 : vector<16x128xf32>
    %45 = arith.select %42, %44, %40 : vector<16x128xi1>, vector<16x128xf32>
    %cst_25 = arith.constant 1.000000e+00 : f32
    %46 = vector.broadcast %cst_25 : f32 to vector<16x128xf32>
    %47 = arith.addf %46, %45 : vector<16x128xf32>
    %48 = arith.mulf %10, %47 : vector<16x128xf32>
    %cst_26 = arith.constant dense<0.000000e+00> : vector<16x128xf32>
    %49 = tpu.matmul %3, %48, %cst_26 {dimension_numbers = #tpu.dot_dimension_numbers<[1], [0], [0], [1], [0, 0, 1, 1], [], []>} : vector<16x16xf32>, vector<16x128xf32>, vector<16x128xf32> -> vector<16x128xf32>
    %50 = vector.broadcast %4 : vector<16x1xf32> to vector<16x128xf32>
    %51 = arith.addf %49, %50 : vector<16x128xf32>
    %52 = arith.addf %5, %51 : vector<16x128xf32>
    %c0_27 = arith.constant 0 : index
    %c0_28 = arith.constant 0 : index
    %53 = vector.load %arg12[%c0_27, %c0_28] : memref<16x128xf32, #tpu.memory_space<vmem>>, vector<16x128xf32>
    tpu.vector_store %arg12[%c0_27, %c0_28], %52 {strides = array<i32>} : memref<16x128xf32, #tpu.memory_space<vmem>>, vector<16x128xf32>,
    %c0_29 = arith.constant 0 : index
    %c0_30 = arith.constant 0 : index
    %54 = vector.load %arg8[%c0_29, %c0_30] : memref<32x16xf32, #tpu.memory_space<vmem>>, vector<32x16xf32>
    %c0_31 = arith.constant 0 : index
    %c0_32 = arith.constant 0 : index
    %55 = vector.load %arg9[%c0_31, %c0_32] : memref<32x1xf32, #tpu.memory_space<vmem>>, vector<32x1xf32>
    %c0_33 = arith.constant 0 : index
    %c0_34 = arith.constant 0 : index
    %56 = vector.load %arg10[%c0_33, %c0_34] : memref<32x32xf32, #tpu.memory_space<vmem>>, vector<32x32xf32>
    %c0_35 = arith.constant 0 : index
    %c0_36 = arith.constant 0 : index
    %57 = vector.load %arg11[%c0_35, %c0_36] : memref<32x1xf32, #tpu.memory_space<vmem>>, vector<32x1xf32>
    %c0_37 = arith.constant 0 : index
    %c0_38 = arith.constant 0 : index
    %58 = vector.load %arg3[%c0_37, %c0_38] : memref<32x128xf32, #tpu.memory_space<vmem>>, vector<32x128xf32>
    %cst_39 = arith.constant dense<0.000000e+00> : vector<32x128xf32>
    %59 = tpu.matmul %54, %52, %cst_39 {dimension_numbers = #tpu.dot_dimension_numbers<[1], [0], [0], [1], [0, 0, 1, 1], [], []>} : vector<32x16xf32>, vector<16x128xf32>, vector<32x128xf32> -> vector<32x128xf32>
    %60 = vector.broadcast %55 : vector<32x1xf32> to vector<32x128xf32>
    %61 = arith.addf %59, %60 : vector<32x128xf32>
    %cst_40 = arith.constant 5.000000e-01 : f32
    %62 = vector.broadcast %cst_40 : f32 to vector<32x128xf32>
    %63 = arith.mulf %62, %61 : vector<32x128xf32>
    %cst_41 = arith.constant 0.707106769 : f32
    %64 = vector.broadcast %cst_41 : f32 to vector<32x128xf32>
    %65 = arith.mulf %61, %64 : vector<32x128xf32>
    %66 = math.absf %65 : vector<32x128xf32>
    %cst_42 = arith.constant 0.327591091 : f32
    %67 = vector.broadcast %cst_42 : f32 to vector<32x128xf32>
    %68 = arith.mulf %67, %66 : vector<32x128xf32>
    %cst_43 = arith.constant 1.000000e+00 : f32
    %69 = vector.broadcast %cst_43 : f32 to vector<32x128xf32>
    %70 = arith.addf %69, %68 : vector<32x128xf32>
    %cst_44 = arith.constant 1.000000e+00 : f32
    %71 = vector.broadcast %cst_44 : f32 to vector<32x128xf32>
    %72 = arith.divf %71, %70 : vector<32x128xf32>
    %cst_45 = arith.constant 1.06140542 : f32
    %73 = vector.broadcast %cst_45 : f32 to vector<32x128xf32>
    %74 = arith.mulf %72, %73 : vector<32x128xf32>
    %cst_46 = arith.constant -1.45315206 : f32
    %75 = vector.broadcast %cst_46 : f32 to vector<32x128xf32>
    %76 = arith.addf %75, %74 : vector<32x128xf32>
    %77 = arith.mulf %72, %76 : vector<32x128xf32>
    %cst_47 = arith.constant 1.42141378 : f32
    %78 = vector.broadcast %cst_47 : f32 to vector<32x128xf32>
    %79 = arith.addf %78, %77 : vector<32x128xf32>
    %80 = arith.mulf %72, %79 : vector<32x128xf32>
    %cst_48 = arith.constant -0.284496725 : f32
    %81 = vector.broadcast %cst_48 : f32 to vector<32x128xf32>
    %82 = arith.addf %81, %80 : vector<32x128xf32>
    %83 = arith.mulf %72, %82 : vector<32x128xf32>
    %cst_49 = arith.constant 0.254829586 : f32
    %84 = vector.broadcast %cst_49 : f32 to vector<32x128xf32>
    %85 = arith.addf %84, %83 : vector<32x128xf32>
    %86 = arith.mulf %72, %85 : vector<32x128xf32>
    %cst_50 = arith.constant 0.000000e+00 : f32
    %87 = vector.broadcast %cst_50 : f32 to vector<32x128xf32>
    %88 = arith.subf %87, %66 : vector<32x128xf32>
    %89 = arith.mulf %88, %66 : vector<32x128xf32>
    %90 = math.exp %89 : vector<32x128xf32>
    %91 = arith.mulf %86, %90 : vector<32x128xf32>
    %cst_51 = arith.constant 1.000000e+00 : f32
    %92 = vector.broadcast %cst_51 : f32 to vector<32x128xf32>
    %93 = arith.subf %92, %91 : vector<32x128xf32>
    %cst_52 = arith.constant 0.000000e+00 : f32
    %94 = vector.broadcast %cst_52 : f32 to vector<32x128xf32>
    %95 = arith.cmpf olt, %65, %94 : vector<32x128xf32>
    %cst_53 = arith.constant 0.000000e+00 : f32
    %96 = vector.broadcast %cst_53 : f32 to vector<32x128xf32>
    %97 = arith.subf %96, %93 : vector<32x128xf32>
    %98 = arith.select %95, %97, %93 : vector<32x128xi1>, vector<32x128xf32>
    %cst_54 = arith.constant 1.000000e+00 : f32
    %99 = vector.broadcast %cst_54 : f32 to vector<32x128xf32>
    %100 = arith.addf %99, %98 : vector<32x128xf32>
    %101 = arith.mulf %63, %100 : vector<32x128xf32>
    %cst_55 = arith.constant dense<0.000000e+00> : vector<32x128xf32>
    %102 = tpu.matmul %56, %101, %cst_55 {dimension_numbers = #tpu.dot_dimension_numbers<[1], [0], [0], [1], [0, 0, 1, 1], [], []>} : vector<32x32xf32>, vector<32x128xf32>, vector<32x128xf32> -> vector<32x128xf32>
    %103 = vector.broadcast %57 : vector<32x1xf32> to vector<32x128xf32>
    %104 = arith.addf %102, %103 : vector<32x128xf32>
    %105 = arith.addf %58, %104 : vector<32x128xf32>
    %c0_56 = arith.constant 0 : index
    %c0_57 = arith.constant 0 : index
    %106 = vector.load %arg13[%c0_56, %c0_57] : memref<32x128xf32, #tpu.memory_space<vmem>>, vector<32x128xf32>
    tpu.vector_store %arg13[%c0_56, %c0_57], %105 {strides = array<i32>} : memref<32x128xf32, #tpu.memory_space<vmem>>, vector<32x128xf32>,
    return
  }
  func.func @transform_0(%arg0: i32) -> (i32, i32) {
    %c0_i32 = arith.constant 0 : i32
    %c0_i32_0 = arith.constant 0 : i32
    return %c0_i32, %arg0 : i32, i32
  }
  func.func @transform_1(%arg0: i32) -> (i32, i32) {
    %c0_i32 = arith.constant 0 : i32
    %c0_i32_0 = arith.constant 0 : i32
    return %c0_i32, %arg0 : i32, i32
  }
  func.func @transform_2(%arg0: i32) -> (i32, i32) {
    %c0_i32 = arith.constant 0 : i32
    %c0_i32_0 = arith.constant 0 : i32
    return %c0_i32, %arg0 : i32, i32
  }
  func.func @transform_3(%arg0: i32) -> (i32, i32) {
    %c0_i32 = arith.constant 0 : i32
    %c0_i32_0 = arith.constant 0 : i32
    %c0_i32_1 = arith.constant 0 : i32
    return %c0_i32, %c0_i32_0 : i32, i32
  }
  func.func @transform_4(%arg0: i32) -> (i32, i32) {
    %c0_i32 = arith.constant 0 : i32
    %c0_i32_0 = arith.constant 0 : i32
    %c0_i32_1 = arith.constant 0 : i32
    return %c0_i32, %c0_i32_0 : i32, i32
  }
  func.func @transform_5(%arg0: i32) -> (i32, i32) {
    %c0_i32 = arith.constant 0 : i32
    %c0_i32_0 = arith.constant 0 : i32
    %c0_i32_1 = arith.constant 0 : i32
    return %c0_i32, %c0_i32_0 : i32, i32
  }
  func.func @transform_6(%arg0: i32) -> (i32, i32) {
    %c0_i32 = arith.constant 0 : i32
    %c0_i32_0 = arith.constant 0 : i32
    %c0_i32_1 = arith.constant 0 : i32
    return %c0_i32, %c0_i32_0 : i32, i32
  }
  func.func @transform_7(%arg0: i32) -> (i32, i32) {
    %c0_i32 = arith.constant 0 : i32
    %c0_i32_0 = arith.constant 0 : i32
    %c0_i32_1 = arith.constant 0 : i32
    return %c0_i32, %c0_i32_0 : i32, i32
  }
  func.func @transform_8(%arg0: i32) -> (i32, i32) {
    %c0_i32 = arith.constant 0 : i32
    %c0_i32_0 = arith.constant 0 : i32
    %c0_i32_1 = arith.constant 0 : i32
    return %c0_i32, %c0_i32_0 : i32, i32
  }
  func.func @transform_9(%arg0: i32) -> (i32, i32) {
    %c0_i32 = arith.constant 0 : i32
    %c0_i32_0 = arith.constant 0 : i32
    %c0_i32_1 = arith.constant 0 : i32
    return %c0_i32, %c0_i32_0 : i32, i32
  }
  func.func @transform_10(%arg0: i32) -> (i32, i32) {
    %c0_i32 = arith.constant 0 : i32
    %c0_i32_0 = arith.constant 0 : i32
    %c0_i32_1 = arith.constant 0 : i32
    return %c0_i32, %c0_i32_0 : i32, i32
  }
  func.func @transform_11(%arg0: i32) -> (i32, i32) {
    %c0_i32 = arith.constant 0 : i32
    %c0_i32_0 = arith.constant 0 : i32
    return %c0_i32, %arg0 : i32, i32
  }
  func.func @transform_12(%arg0: i32) -> (i32, i32) {
    %c0_i32 = arith.constant 0 : i32
    %c0_i32_0 = arith.constant 0 : i32
    return %c0_i32, %arg0 : i32, i32
  }
}

</mosaic_0001>

<llo_original>
// kernel: tpu_custom_call.1
$region0: #{tpu_custom_call.1}
  #allocation0 [shape = 'u32[]', space=smem, size = 0x4, offset = 0x4, fixed_abs, tag = 'smem constant byte address 0x4 - core index']
  #allocation1 [shape = 'u32[144,128]{1,0:T(1,128)}', space=vmem, size = 0x12000, scoped, tag = 'internal scratch']
  %s0 = inlined_call_operand.vmem [shape: f32[4,256,8], index: 0, kind: input, shape index: {}]
  %s1 = inlined_call_operand.vmem [shape: f32[4,256,16], index: 1, kind: input, shape index: {}]
  %s2 = inlined_call_operand.vmem [shape: f32[4,256,32], index: 2, kind: input, shape index: {}]
  %s3 = inlined_call_operand.vmem [shape: f32[16,8], index: 3, kind: input, shape index: {}]
  %s4 = inlined_call_operand.vmem [shape: f32[16,1], index: 4, kind: input, shape index: {}]
  %s5 = inlined_call_operand.vmem [shape: f32[16,16], index: 5, kind: input, shape index: {}]
  %s6 = inlined_call_operand.vmem [shape: f32[16,1], index: 6, kind: input, shape index: {}]
  %s7 = inlined_call_operand.vmem [shape: f32[32,16], index: 7, kind: input, shape index: {}]
  %s8 = inlined_call_operand.vmem [shape: f32[32,1], index: 8, kind: input, shape index: {}]
  %s9 = inlined_call_operand.vmem [shape: f32[32,32], index: 9, kind: input, shape index: {}]
  %s10 = inlined_call_operand.vmem [shape: f32[32,1], index: 10, kind: input, shape index: {}]
  %s11 = inlined_call_operand.hbm [shape: f32[4,16,256], index: 11, kind: output, shape index: {0}]
  %s12 = inlined_call_operand.hbm [shape: f32[4,32,256], index: 12, kind: output, shape index: {1}]
  %13 = xla_tuple %s11, %s12
  %s14 = sld [smem:[#allocation0]]
  $region85: #{tpu_custom_call.1} parent=0
    _
  %s16 = ssub.s32 1, %s14
  %s17 = scalar_select 0, %s16, %s14
  $region1: #{tpu_custom_call.1} parent=0
    #allocation2 [shape = 'u8[16384]{0}', space=vmem, size = 0x4000, scoped, tag = 'output window, operand 0']
    #allocation3 [shape = 's32[2]{0}', space=sflag, size = 0x8, scoped, tag = 'scoped memory for tpu_custom_call.1']
    #allocation4 [shape = 'u8[32768]{0}', space=vmem, size = 0x8000, scoped, tag = 'output window, operand 1']
    #allocation5 [shape = 's32[2]{0}', space=sflag, size = 0x8, scoped, tag = 'scoped memory for tpu_custom_call.1']
    %18 = vsyncpa [#allocation3], 0
    %s19 = scalar_lea.sflag [#allocation3], 1
    %20 = vsyncpa %s19, 0
    %21 = vsyncpa [#allocation5], 0
    %s22 = scalar_lea.sflag [#allocation5], 1
    %23 = vsyncpa %s22, 0
    loop: start=0, step=1, limit=10
    $region2: #{tpu_custom_call.1} parent=1 // loop_pre_header
      _
    $region3: #{tpu_custom_call.1} parent=1 // loop_header
      %s25 = sphi 0, %s29
      %p26 = scmp.ge.s32.totalorder %s25, 10
      %s32 = sphi 0, %s44
      %s33 = sphi 0, %s40
      %s34 = sphi 0, %s32
      %s35 = sphi 0, %s33
      %s36 = sphi 0, %s34
      %s37 = sphi 0, %s35
      %s49 = sphi 0, %s51
      %s52 = sphi 0, %s49
      %s53 = sphi 0, %s52
      %s69 = sphi 0, %s53
      %s77 = sphi 0, %s79
      %s80 = sphi 0, %s77
      %s81 = sphi 0, %s80
      %s97 = sphi 0, %s81
      %s105 = sphi 0, %s107
      %s108 = sphi 0, %s105
      %s109 = sphi 0, %s108
      %s125 = sphi 0, %s109
      %s129 = sphi 0, %s129
      %s131 = sphi 0, %s129
      %s132 = sphi 0, %s131
      %s146 = sphi 0, %s132
      %s150 = sphi 0, %s150
      %s152 = sphi 0, %s150
      %s153 = sphi 0, %s152
      %s167 = sphi 0, %s153
      %s171 = sphi 0, %s171
      %s173 = sphi 0, %s171
      %s174 = sphi 0, %s173
      %s188 = sphi 0, %s174
      %s192 = sphi 0, %s192
      %s194 = sphi 0, %s192
      %s195 = sphi 0, %s194
      %s209 = sphi 0, %s195
      %s213 = sphi 0, %s213
      %s215 = sphi 0, %s213
      %s216 = sphi 0, %s215
      %s230 = sphi 0, %s216
      %s234 = sphi 0, %s234
      %s236 = sphi 0, %s234
      %s237 = sphi 0, %s236
      %s251 = sphi 0, %s237
      %s255 = sphi 0, %s255
      %s257 = sphi 0, %s255
      %s258 = sphi 0, %s257
      %s272 = sphi 0, %s258
      %s276 = sphi 0, %s276
      %s278 = sphi 0, %s276
      %s279 = sphi 0, %s278
      %s293 = sphi 0, %s279
      %s301 = sphi 0, %s303
      %s304 = sphi 0, %s301
      %s305 = sphi 0, %s304
      %s321 = sphi 0, %s305
      %s329 = sphi 0, %s331
      %s332 = sphi 0, %s329
      %s333 = sphi 0, %s332
      %s349 = sphi 0, %s333
    $region4: #{tpu_custom_call.1} parent=1 // loop_header_branch
      %28 = sbr.rel (%p26) target = $region8
    $region5: #{tpu_custom_call.1} parent=1 // loop_body
      %s30 = ssub.s32 %s25, 1
      %s31 = ssub.s32 %s25, 2
      %s38 = sadd.s32 1, %s33
      %p39 = scmp.ge.s32.totalorder %s38, 2
      %s40 = scalar_select %p39, 0, %s38
      %s41 = sadd.s32 1, %s32
      %s42 = scalar_select %p39, %s41, %s32
      %p43 = scmp.ge.s32.totalorder %s42, 4
      %s44 = scalar_select %p43, 0, %s42
      %s45 = ssub.s32 %s32, %s44
      %s46 = ssub.s32 %s33, %s40
      %s47 = sor.u32 %s45, %s46
      %p48 = scmp.eq.s32.totalorder %s47, 0
      %s50 = sadd.s32 %s49, 1
      %s51 = scalar_select %p48, %s49, %s50
      %p54 = pneg %p48
      %p55 = scmp.eq.s32.totalorder %s25, 7
      %p56 = por %p54, %p55
      %p57 = scmp.ne.s32.totalorder %s49, %s52
      %p58 = scmp.eq.s32.totalorder %s25, 0
      %p59 = por %p57, %p58
      %p60 = scmp.ne.s32.totalorder %s49, %s52
      %p61 = scmp.eq.s32.totalorder %s30, 7
      %p62 = por %p60, %p61
      %p63 = scmp.ne.s32.totalorder %s52, %s53
      %p64 = scmp.eq.s32.totalorder %s30, 0
      %p65 = por %p63, %p64
      %p66 = scmp.ne.s32.totalorder %s52, %s53
      %p67 = scmp.eq.s32.totalorder %s31, 7
      %p68 = por %p66, %p67
      %p70 = scmp.ne.s32.totalorder %s53, %s69
      %p71 = scmp.eq.s32.totalorder %s31, 0
      %p72 = por %p70, %p71
      %s73 = ssub.s32 %s32, %s44
      %s74 = ssub.s32 %s33, %s40
      %s75 = sor.u32 %s73, %s74
      %p76 = scmp.eq.s32.totalorder %s75, 0
      %s78 = sadd.s32 %s77, 1
      %s79 = scalar_select %p76, %s77, %s78
      %p82 = pneg %p76
      %p83 = scmp.eq.s32.totalorder %s25, 7
      %p84 = por %p82, %p83
      %p85 = scmp.ne.s32.totalorder %s77, %s80
      %p86 = scmp.eq.s32.totalorder %s25, 0
      %p87 = por %p85, %p86
      %p88 = scmp.ne.s32.totalorder %s77, %s80
      %p89 = scmp.eq.s32.totalorder %s30, 7
      %p90 = por %p88, %p89
      %p91 = scmp.ne.s32.totalorder %s80, %s81
      %p92 = scmp.eq.s32.totalorder %s30, 0
      %p93 = por %p91, %p92
      %p94 = scmp.ne.s32.totalorder %s80, %s81
      %p95 = scmp.eq.s32.totalorder %s31, 7
      %p96 = por %p94, %p95
      %p98 = scmp.ne.s32.totalorder %s81, %s97
      %p99 = scmp.eq.s32.totalorder %s31, 0
      %p100 = por %p98, %p99
      %s101 = ssub.s32 %s32, %s44
      %s102 = ssub.s32 %s33, %s40
      %s103 = sor.u32 %s101, %s102
      %p104 = scmp.eq.s32.totalorder %s103, 0
      %s106 = sadd.s32 %s105, 1
      %s107 = scalar_select %p104, %s105, %s106
      %p110 = pneg %p104
      %p111 = scmp.eq.s32.totalorder %s25, 7
      %p112 = por %p110, %p111
      %p113 = scmp.ne.s32.totalorder %s105, %s108
      %p114 = scmp.eq.s32.totalorder %s25, 0
      %p115 = por %p113, %p114
      %p116 = scmp.ne.s32.totalorder %s105, %s108
      %p117 = scmp.eq.s32.totalorder %s30, 7
      %p118 = por %p116, %p117
      %p119 = scmp.ne.s32.totalorder %s108, %s109
      %p120 = scmp.eq.s32.totalorder %s30, 0
      %p121 = por %p119, %p120
      %p122 = scmp.ne.s32.totalorder %s108, %s109
      %p123 = scmp.eq.s32.totalorder %s31, 7
      %p124 = por %p122, %p123
      %p126 = scmp.ne.s32.totalorder %s109, %s125
      %p127 = scmp.eq.s32.totalorder %s31, 0
      %p128 = por %p126, %p127
      %s130 = sadd.s32 %s129, 1
      %p133 = scmp.eq.s32.totalorder %s25, 7
      %p134 = scmp.ne.s32.totalorder %s129, %s131
      %p135 = scmp.eq.s32.totalorder %s25, 0
      %p136 = por %p134, %p135
      %p137 = scmp.ne.s32.totalorder %s129, %s131
      %p138 = scmp.eq.s32.totalorder %s30, 7
      %p139 = por %p137, %p138
      %p140 = scmp.ne.s32.totalorder %s131, %s132
      %p141 = scmp.eq.s32.totalorder %s30, 0
      %p142 = por %p140, %p141
      %p143 = scmp.ne.s32.totalorder %s131, %s132
      %p144 = scmp.eq.s32.totalorder %s31, 7
      %p145 = por %p143, %p144
      %p147 = scmp.ne.s32.totalorder %s132, %s146
      %p148 = scmp.eq.s32.totalorder %s31, 0
      %p149 = por %p147, %p148
      %s151 = sadd.s32 %s150, 1
      %p154 = scmp.eq.s32.totalorder %s25, 7
      %p155 = scmp.ne.s32.totalorder %s150, %s152
      %p156 = scmp.eq.s32.totalorder %s25, 0
      %p157 = por %p155, %p156
      %p158 = scmp.ne.s32.totalorder %s150, %s152
      %p159 = scmp.eq.s32.totalorder %s30, 7
      %p160 = por %p158, %p159
      %p161 = scmp.ne.s32.totalorder %s152, %s153
      %p162 = scmp.eq.s32.totalorder %s30, 0
      %p163 = por %p161, %p162
      %p164 = scmp.ne.s32.totalorder %s152, %s153
      %p165 = scmp.eq.s32.totalorder %s31, 7
      %p166 = por %p164, %p165
      %p168 = scmp.ne.s32.totalorder %s153, %s167
      %p169 = scmp.eq.s32.totalorder %s31, 0
      %p170 = por %p168, %p169
      %s172 = sadd.s32 %s171, 1
      %p175 = scmp.eq.s32.totalorder %s25, 7
      %p176 = scmp.ne.s32.totalorder %s171, %s173
      %p177 = scmp.eq.s32.totalorder %s25, 0
      %p178 = por %p176, %p177
      %p179 = scmp.ne.s32.totalorder %s171, %s173
      %p180 = scmp.eq.s32.totalorder %s30, 7
      %p181 = por %p179, %p180
      %p182 = scmp.ne.s32.totalorder %s173, %s174
      %p183 = scmp.eq.s32.totalorder %s30, 0
      %p184 = por %p182, %p183
      %p185 = scmp.ne.s32.totalorder %s173, %s174
      %p186 = scmp.eq.s32.totalorder %s31, 7
      %p187 = por %p185, %p186
      %p189 = scmp.ne.s32.totalorder %s174, %s188
      %p190 = scmp.eq.s32.totalorder %s31, 0
      %p191 = por %p189, %p190
      %s193 = sadd.s32 %s192, 1
      %p196 = scmp.eq.s32.totalorder %s25, 7
      %p197 = scmp.ne.s32.totalorder %s192, %s194
      %p198 = scmp.eq.s32.totalorder %s25, 0
      %p199 = por %p197, %p198
      %p200 = scmp.ne.s32.totalorder %s192, %s194
      %p201 = scmp.eq.s32.totalorder %s30, 7
      %p202 = por %p200, %p201
      %p203 = scmp.ne.s32.totalorder %s194, %s195
      %p204 = scmp.eq.s32.totalorder %s30, 0
      %p205 = por %p203, %p204
      %p206 = scmp.ne.s32.totalorder %s194, %s195
      %p207 = scmp.eq.s32.totalorder %s31, 7
      %p208 = por %p206, %p207
      %p210 = scmp.ne.s32.totalorder %s195, %s209
      %p211 = scmp.eq.s32.totalorder %s31, 0
      %p212 = por %p210, %p211
      %s214 = sadd.s32 %s213, 1
      %p217 = scmp.eq.s32.totalorder %s25, 7
      %p218 = scmp.ne.s32.totalorder %s213, %s215
      %p219 = scmp.eq.s32.totalorder %s25, 0
      %p220 = por %p218, %p219
      %p221 = scmp.ne.s32.totalorder %s213, %s215
      %p222 = scmp.eq.s32.totalorder %s30, 7
      %p223 = por %p221, %p222
      %p224 = scmp.ne.s32.totalorder %s215, %s216
      %p225 = scmp.eq.s32.totalorder %s30, 0
      %p226 = por %p224, %p225
      %p227 = scmp.ne.s32.totalorder %s215, %s216
      %p228 = scmp.eq.s32.totalorder %s31, 7
      %p229 = por %p227, %p228
      %p231 = scmp.ne.s32.totalorder %s216, %s230
      %p232 = scmp.eq.s32.totalorder %s31, 0
      %p233 = por %p231, %p232
      %s235 = sadd.s32 %s234, 1
      %p238 = scmp.eq.s32.totalorder %s25, 7
      %p239 = scmp.ne.s32.totalorder %s234, %s236
      %p240 = scmp.eq.s32.totalorder %s25, 0
      %p241 = por %p239, %p240
      %p242 = scmp.ne.s32.totalorder %s234, %s236
      %p243 = scmp.eq.s32.totalorder %s30, 7
      %p244 = por %p242, %p243
      %p245 = scmp.ne.s32.totalorder %s236, %s237
      %p246 = scmp.eq.s32.totalorder %s30, 0
      %p247 = por %p245, %p246
      %p248 = scmp.ne.s32.totalorder %s236, %s237
      %p249 = scmp.eq.s32.totalorder %s31, 7
      %p250 = por %p248, %p249
      %p252 = scmp.ne.s32.totalorder %s237, %s251
      %p253 = scmp.eq.s32.totalorder %s31, 0
      %p254 = por %p252, %p253
      %s256 = sadd.s32 %s255, 1
      %p259 = scmp.eq.s32.totalorder %s25, 7
      %p260 = scmp.ne.s32.totalorder %s255, %s257
      %p261 = scmp.eq.s32.totalorder %s25, 0
      %p262 = por %p260, %p261
      %p263 = scmp.ne.s32.totalorder %s255, %s257
      %p264 = scmp.eq.s32.totalorder %s30, 7
      %p265 = por %p263, %p264
      %p266 = scmp.ne.s32.totalorder %s257, %s258
      %p267 = scmp.eq.s32.totalorder %s30, 0
      %p268 = por %p266, %p267
      %p269 = scmp.ne.s32.totalorder %s257, %s258
      %p270 = scmp.eq.s32.totalorder %s31, 7
      %p271 = por %p269, %p270
      %p273 = scmp.ne.s32.totalorder %s258, %s272
      %p274 = scmp.eq.s32.totalorder %s31, 0
      %p275 = por %p273, %p274
      %s277 = sadd.s32 %s276, 1
      %p280 = scmp.eq.s32.totalorder %s25, 7
      %p281 = scmp.ne.s32.totalorder %s276, %s278
      %p282 = scmp.eq.s32.totalorder %s25, 0
      %p283 = por %p281, %p282
      %p284 = scmp.ne.s32.totalorder %s276, %s278
      %p285 = scmp.eq.s32.totalorder %s30, 7
      %p286 = por %p284, %p285
      %p287 = scmp.ne.s32.totalorder %s278, %s279
      %p288 = scmp.eq.s32.totalorder %s30, 0
      %p289 = por %p287, %p288
      %p290 = scmp.ne.s32.totalorder %s278, %s279
      %p291 = scmp.eq.s32.totalorder %s31, 7
      %p292 = por %p290, %p291
      %p294 = scmp.ne.s32.totalorder %s279, %s293
      %p295 = scmp.eq.s32.totalorder %s31, 0
      %p296 = por %p294, %p295
      %s297 = ssub.s32 %s32, %s44
      %s298 = ssub.s32 %s33, %s40
      %s299 = sor.u32 %s297, %s298
      %p300 = scmp.eq.s32.totalorder %s299, 0
      %s302 = sadd.s32 %s301, 1
      %s303 = scalar_select %p300, %s301, %s302
      %p306 = pneg %p300
      %p307 = scmp.eq.s32.totalorder %s25, 7
      %p308 = por %p306, %p307
      %p309 = scmp.ne.s32.totalorder %s301, %s304
      %p310 = scmp.eq.s32.totalorder %s25, 0
      %p311 = por %p309, %p310
      %p312 = scmp.ne.s32.totalorder %s301, %s304
      %p313 = scmp.eq.s32.totalorder %s30, 7
      %p314 = por %p312, %p313
      %p315 = scmp.ne.s32.totalorder %s304, %s305
      %p316 = scmp.eq.s32.totalorder %s30, 0
      %p317 = por %p315, %p316
      %p318 = scmp.ne.s32.totalorder %s304, %s305
      %p319 = scmp.eq.s32.totalorder %s31, 7
      %p320 = por %p318, %p319
      %p322 = scmp.ne.s32.totalorder %s305, %s321
      %p323 = scmp.eq.s32.totalorder %s31, 0
      %p324 = por %p322, %p323
      %s325 = ssub.s32 %s32, %s44
      %s326 = ssub.s32 %s33, %s40
      %s327 = sor.u32 %s325, %s326
      %p328 = scmp.eq.s32.totalorder %s327, 0
      %s330 = sadd.s32 %s329, 1
      %s331 = scalar_select %p328, %s329, %s330
      %p334 = pneg %p328
      %p335 = scmp.eq.s32.totalorder %s25, 7
      %p336 = por %p334, %p335
      %p337 = scmp.ne.s32.totalorder %s329, %s332
      %p338 = scmp.eq.s32.totalorder %s25, 0
      %p339 = por %p337, %p338
      %p340 = scmp.ne.s32.totalorder %s329, %s332
      %p341 = scmp.eq.s32.totalorder %s30, 7
      %p342 = por %p340, %p341
      %p343 = scmp.ne.s32.totalorder %s332, %s333
      %p344 = scmp.eq.s32.totalorder %s30, 0
      %p345 = por %p343, %p344
      %p346 = scmp.ne.s32.totalorder %s332, %s333
      %p347 = scmp.eq.s32.totalorder %s31, 7
      %p348 = por %p346, %p347
      %p350 = scmp.ne.s32.totalorder %s333, %s349
      %p351 = scmp.eq.s32.totalorder %s31, 0
      %p352 = por %p350, %p351
      %p353 = scmp.le.s32.totalorder 1, %s25
      %p354 = scmp.lt.s32.totalorder %s25, 9
      %p355 = pnand %p353, %p354
      %p356 = pneg %p355
      // Predicated region
      $region9: #{tpu_custom_call.1} parent=5 // pred_check
        _
      $region10: #{tpu_custom_call.1} parent=5 // pred_check_branch
        %358 = sbr.rel (%p355) target = $region12
      $region11: #{tpu_custom_call.1} parent=5 // pred_region
        %s359 = ssub.s32 %s25, 1
        // Predicated region
        $region13: #{tpu_custom_call.1} parent=11 // pred_check
          %p360 = pneg %p142
        $region14: #{tpu_custom_call.1} parent=11 // pred_check_branch
          %362 = sbr.rel (%p360) target = $region16
        $region15: #{tpu_custom_call.1} parent=11 // pred_region
          _
        $region16: #{tpu_custom_call.1} parent=11 // pred_fallthru
          _
        // Predicated region
        $region17: #{tpu_custom_call.1} parent=11 // pred_check
          %p363 = pneg %p163
        $region18: #{tpu_custom_call.1} parent=11 // pred_check_branch
          %365 = sbr.rel (%p363) target = $region20
        $region19: #{tpu_custom_call.1} parent=11 // pred_region
          _
        $region20: #{tpu_custom_call.1} parent=11 // pred_fallthru
          _
        // Predicated region
        $region21: #{tpu_custom_call.1} parent=11 // pred_check
          %p366 = pneg %p184
        $region22: #{tpu_custom_call.1} parent=11 // pred_check_branch
          %368 = sbr.rel (%p366) target = $region24
        $region23: #{tpu_custom_call.1} parent=11 // pred_region
          _
        $region24: #{tpu_custom_call.1} parent=11 // pred_fallthru
          _
        // Predicated region
        $region25: #{tpu_custom_call.1} parent=11 // pred_check
          %p369 = pneg %p205
        $region26: #{tpu_custom_call.1} parent=11 // pred_check_branch
          %371 = sbr.rel (%p369) target = $region28
        $region27: #{tpu_custom_call.1} parent=11 // pred_region
          _
        $region28: #{tpu_custom_call.1} parent=11 // pred_fallthru
          _
        // Predicated region
        $region29: #{tpu_custom_call.1} parent=11 // pred_check
          %p372 = pneg %p226
        $region30: #{tpu_custom_call.1} parent=11 // pred_check_branch
          %374 = sbr.rel (%p372) target = $region32
        $region31: #{tpu_custom_call.1} parent=11 // pred_region
          _
        $region32: #{tpu_custom_call.1} parent=11 // pred_fallthru
          _
        // Predicated region
        $region33: #{tpu_custom_call.1} parent=11 // pred_check
          %p375 = pneg %p247
        $region34: #{tpu_custom_call.1} parent=11 // pred_check_branch
          %377 = sbr.rel (%p375) target = $region36
        $region35: #{tpu_custom_call.1} parent=11 // pred_region
          _
        $region36: #{tpu_custom_call.1} parent=11 // pred_fallthru
          _
        // Predicated region
        $region37: #{tpu_custom_call.1} parent=11 // pred_check
          %p378 = pneg %p268
        $region38: #{tpu_custom_call.1} parent=11 // pred_check_branch
          %380 = sbr.rel (%p378) target = $region40
        $region39: #{tpu_custom_call.1} parent=11 // pred_region
          _
        $region40: #{tpu_custom_call.1} parent=11 // pred_fallthru
          _
        // Predicated region
        $region41: #{tpu_custom_call.1} parent=11 // pred_check
          %p381 = pneg %p289
        $region42: #{tpu_custom_call.1} parent=11 // pred_check_branch
          %383 = sbr.rel (%p381) target = $region44
        $region43: #{tpu_custom_call.1} parent=11 // pred_region
          _
        $region44: #{tpu_custom_call.1} parent=11 // pred_fallthru
          _
      $region12: #{tpu_custom_call.1} parent=5 // pred_fallthru
        _
      %p384 = scmp.lt.s32.totalorder %s25, 8
      // Predicated region
      $region45: #{tpu_custom_call.1} parent=5 // pred_check
        %p385 = pneg %p384
      $region46: #{tpu_custom_call.1} parent=5 // pred_check_branch
        %387 = sbr.rel (%p385) target = $region48
      $region47: #{tpu_custom_call.1} parent=5 // pred_region
        // Predicated region
        $region49: #{tpu_custom_call.1} parent=47 // pred_check
          %p388 = pneg %p59
        $region50: #{tpu_custom_call.1} parent=47 // pred_check_branch
          %390 = sbr.rel (%p388) target = $region52
        $region51: #{tpu_custom_call.1} parent=47 // pred_region
          %s391 = smul.u32 16, %s33
          %p392 = scmp.lt.s32.totalorder %s32, 3
          %s393 = scalar_select %p392, %s32, 3
          %p394 = scmp.lt.s32.totalorder %s391, 31
          %s395 = scalar_select %p394, %s391, 31
          %s396 = smul.addr %s393, 32
          %s397 = sadd.s32 %s395, %s396
          %s398 = smul.addr %s397, 8
          %s399 = scalar_lea.vmem %s0, %s398
          %s400 = smul.u32 16, %s33
        $region52: #{tpu_custom_call.1} parent=47 // pred_fallthru
          _
        // Predicated region
        $region53: #{tpu_custom_call.1} parent=47 // pred_check
          %p401 = pneg %p87
        $region54: #{tpu_custom_call.1} parent=47 // pred_check_branch
          %403 = sbr.rel (%p401) target = $region56
        $region55: #{tpu_custom_call.1} parent=47 // pred_region
          %s404 = smul.u32 16, %s33
          %p405 = scmp.lt.s32.totalorder %s32, 3
          %s406 = scalar_select %p405, %s32, 3
          %p407 = scmp.lt.s32.totalorder %s404, 31
          %s408 = scalar_select %p407, %s404, 31
          %s409 = smul.addr %s406, 32
          %s410 = sadd.s32 %s408, %s409
          %s411 = smul.addr %s410, 8
          %s412 = scalar_lea.vmem %s1, %s411
          %s413 = smul.u32 16, %s33
        $region56: #{tpu_custom_call.1} parent=47 // pred_fallthru
          _
        // Predicated region
        $region57: #{tpu_custom_call.1} parent=47 // pred_check
          %p414 = pneg %p115
        $region58: #{tpu_custom_call.1} parent=47 // pred_check_branch
          %416 = sbr.rel (%p414) target = $region60
        $region59: #{tpu_custom_call.1} parent=47 // pred_region
          %s417 = smul.u32 16, %s33
          %p418 = scmp.lt.s32.totalorder %s32, 3
          %s419 = scalar_select %p418, %s32, 3
          %p420 = scmp.lt.s32.totalorder %s417, 31
          %s421 = scalar_select %p420, %s417, 31
          %s422 = smul.addr %s419, 32
          %s423 = sadd.s32 %s421, %s422
          %s424 = smul.addr %s423, 8
          %s425 = scalar_lea.vmem %s2, %s424
          %s426 = smul.u32 16, %s33
        $region60: #{tpu_custom_call.1} parent=47 // pred_fallthru
          _
      $region48: #{tpu_custom_call.1} parent=5 // pred_fallthru
        _
      %p427 = scmp.le.s32.totalorder 1, %s25
      %p428 = scmp.lt.s32.totalorder %s25, 9
      %p429 = pnand %p427, %p428
      %p430 = pneg %p429
      // Predicated region
      $region61: #{tpu_custom_call.1} parent=5 // pred_check
        _
      $region62: #{tpu_custom_call.1} parent=5 // pred_check_branch
        %432 = sbr.rel (%p429) target = $region64
      $region63: #{tpu_custom_call.1} parent=5 // pred_region
        %s433 = ssub.s32 %s25, 1
        %s434 = smul.u32 16, %s35
        %p435 = scmp.lt.s32.totalorder %s34, 3
        %s436 = scalar_select %p435, %s34, 3
        %p437 = scmp.lt.s32.totalorder %s434, 31
        %s438 = scalar_select %p437, %s434, 31
        %s439 = smul.addr %s436, 32
        %s440 = sadd.s32 %s438, %s439
        %s441 = smul.addr %s440, 8
        %s442 = scalar_lea.vmem %s0, %s441
        %p443 = pneg %p65
        %p444 = pneg %p62
        %s445 = smul.u32 16, %s35
        %p446 = scmp.lt.s32.totalorder %s34, 3
        %s447 = scalar_select %p446, %s34, 3
        %p448 = scmp.lt.s32.totalorder %s445, 31
        %s449 = scalar_select %p448, %s445, 31
        %s450 = smul.addr %s447, 32
        %s451 = sadd.s32 %s449, %s450
        %s452 = smul.addr %s451, 8
        %s453 = scalar_lea.vmem %s1, %s452
        %p454 = pneg %p93
        %p455 = pneg %p90
        %s456 = smul.u32 16, %s35
        %p457 = scmp.lt.s32.totalorder %s34, 3
        %s458 = scalar_select %p457, %s34, 3
        %p459 = scmp.lt.s32.totalorder %s456, 31
        %s460 = scalar_select %p459, %s456, 31
        %s461 = smul.addr %s458, 32
        %s462 = sadd.s32 %s460, %s461
        %s463 = smul.addr %s462, 8
        %s464 = scalar_lea.vmem %s2, %s463
        %p465 = pneg %p121
        %p466 = pneg %p118
        %p467 = pneg %p142
        %p468 = pneg %p139
        %p469 = pneg %p163
        %p470 = pneg %p160
        %p471 = pneg %p184
        %p472 = pneg %p181
        %p473 = pneg %p205
        %p474 = pneg %p202
        %p475 = pneg %p226
        %p476 = pneg %p223
        %p477 = pneg %p247
        %p478 = pneg %p244
        %p479 = pneg %p268
        %p480 = pneg %p265
        %p481 = pneg %p289
        %p482 = pneg %p286
        %p483 = pneg %p317
        %p484 = pneg %p314
        %s485 = sand.u32 %s304, 1
        %s486 = scalar_lea.sflag [#allocation3], %s485
        %s487 = sand.u32 %s304, 1
        %s488 = smul.addr %s487, 16
        %s489 = scalar_lea.vmem [#allocation2], %s488
        %p490 = pneg %p345
        %p491 = pneg %p342
        %s492 = sand.u32 %s332, 1
        %s493 = scalar_lea.sflag [#allocation5], %s492
        %s494 = sand.u32 %s332, 1
        %s495 = smul.addr %s494, 32
        %s496 = scalar_lea.vmem [#allocation4], %s495
        %s497 = smul.u32 16, %s35
        %p498 = scmp.lt.s32.totalorder %s34, 3
        %s499 = scalar_select %p498, %s34, 3
        %p500 = scmp.lt.s32.totalorder %s497, 31
        %s501 = scalar_select %p500, %s497, 31
        %s502 = smul.addr %s499, 32
        %s503 = sadd.s32 %s501, %s502
        %s504 = smul.addr %s503, 8
        %s505 = scalar_lea.vmem %s0, %s504
        %s506 = smul.u32 16, %s35
        %s507 = smul.u32 16, %s35
        %p508 = scmp.lt.s32.totalorder %s34, 3
        %s509 = scalar_select %p508, %s34, 3
        %p510 = scmp.lt.s32.totalorder %s507, 31
        %s511 = scalar_select %p510, %s507, 31
        %s512 = smul.addr %s509, 32
        %s513 = sadd.s32 %s511, %s512
        %s514 = smul.addr %s513, 8
        %s515 = scalar_lea.vmem %s1, %s514
        %s516 = smul.u32 16, %s35
        %s517 = smul.u32 16, %s35
        %p518 = scmp.lt.s32.totalorder %s34, 3
        %s519 = scalar_select %p518, %s34, 3
        %p520 = scmp.lt.s32.totalorder %s517, 31
        %s521 = scalar_select %p520, %s517, 31
        %s522 = smul.addr %s519, 32
        %s523 = sadd.s32 %s521, %s522
        %s524 = smul.addr %s523, 8
        %s525 = scalar_lea.vmem %s2, %s524
        %s526 = smul.u32 16, %s35
        %v527 = vld [vmem:[%s505] sm:$0xff]
        %v528 = vld [vmem:[%s505 + $0x8] sm:$0xff]
        %v529 = vld [vmem:[%s505 + $0x10] sm:$0xff]
        %v530 = vld [vmem:[%s505 + $0x18] sm:$0xff]
        %v531 = vld [vmem:[%s505 + $0x20] sm:$0xff]
        %v532 = vld [vmem:[%s505 + $0x28] sm:$0xff]
        %v533 = vld [vmem:[%s505 + $0x30] sm:$0xff]
        %v534 = vld [vmem:[%s505 + $0x38] sm:$0xff]
        %v535 = vld [vmem:[%s505 + $0x40] sm:$0xff]
        %v536 = vld [vmem:[%s505 + $0x48] sm:$0xff]
        %v537 = vld [vmem:[%s505 + $0x50] sm:$0xff]
        %v538 = vld [vmem:[%s505 + $0x58] sm:$0xff]
        %v539 = vld [vmem:[%s505 + $0x60] sm:$0xff]
        %v540 = vld [vmem:[%s505 + $0x68] sm:$0xff]
        %v541 = vld [vmem:[%s505 + $0x70] sm:$0xff]
        %v542 = vld [vmem:[%s505 + $0x78] sm:$0xff]
        %v543 = vld [vmem:[%s3] sm:$0xff]
        %v544 = vld [vmem:[%s3 + $0x8] sm:$0xff]
        %v545 = vld [vmem:[%s4] sm:$0xff]
        %v546 = vld [vmem:[%s4 + $0x8] sm:$0xff]
        %v547 = vld [vmem:[%s5] sm:$0xff]
        %v548 = vld [vmem:[%s5 + $0x8] sm:$0xff]
        %v549 = vld [vmem:[%s6] sm:$0xff]
        %v550 = vld [vmem:[%s6 + $0x8] sm:$0xff]
        %v551 = vld [vmem:[%s515] sm:$0xff]
        %v552 = vld [vmem:[%s515 + $0x8] sm:$0xff]
        %v553 = vld [vmem:[%s515 + $0x10] sm:$0xff]
        %v554 = vld [vmem:[%s515 + $0x18] sm:$0xff]
        %v555 = vld [vmem:[%s515 + $0x20] sm:$0xff]
        %v556 = vld [vmem:[%s515 + $0x28] sm:$0xff]
        %v557 = vld [vmem:[%s515 + $0x30] sm:$0xff]
        %v558 = vld [vmem:[%s515 + $0x38] sm:$0xff]
        %v559 = vld [vmem:[%s515 + $0x40] sm:$0xff]
        %v560 = vld [vmem:[%s515 + $0x48] sm:$0xff]
        %v561 = vld [vmem:[%s515 + $0x50] sm:$0xff]
        %v562 = vld [vmem:[%s515 + $0x58] sm:$0xff]
        %v563 = vld [vmem:[%s515 + $0x60] sm:$0xff]
        %v564 = vld [vmem:[%s515 + $0x68] sm:$0xff]
        %v565 = vld [vmem:[%s515 + $0x70] sm:$0xff]
        %v566 = vld [vmem:[%s515 + $0x78] sm:$0xff]
        %567 = vxpose.xlu0.b32.start [1/16] %v551, 128
        %568 = vxpose.xlu0.b32.cont [2/16] %v552, 128
        %569 = vxpose.xlu0.b32.cont [3/16] %v553, 128
        %570 = vxpose.xlu0.b32.cont [4/16] %v554, 128
        %571 = vxpose.xlu0.b32.cont [5/16] %v555, 128
        %572 = vxpose.xlu0.b32.cont [6/16] %v556, 128
        %573 = vxpose.xlu0.b32.cont [7/16] %v557, 128
        %574 = vxpose.xlu0.b32.cont [8/16] %v558, 128
        %575 = vxpose.xlu0.b32.cont [9/16] %v559, 128
        %576 = vxpose.xlu0.b32.cont [10/16] %v560, 128
        %577 = vxpose.xlu0.b32.cont [11/16] %v561, 128
        %578 = vxpose.xlu0.b32.cont [12/16] %v562, 128
        %579 = vxpose.xlu0.b32.cont [13/16] %v563, 128
        %580 = vxpose.xlu0.b32.cont [14/16] %v564, 128
        %581 = vxpose.xlu0.b32.cont [15/16] %v565, 128
        %582 = vxpose.xlu0.b32.end [16/16] %v566, 128
        %v583 = vpop.trf.xlu0
        %v584 = vpop.trf.xlu0
        %v585 = vpop.trf.xlu0
        %v586 = vpop.trf.xlu0
        %v587 = vpop.trf.xlu0
        %v588 = vpop.trf.xlu0
        %v589 = vpop.trf.xlu0
        %v590 = vpop.trf.xlu0
        %v591 = vpop.trf.xlu0
        %v592 = vpop.trf.xlu0
        %v593 = vpop.trf.xlu0
        %v594 = vpop.trf.xlu0
        %v595 = vpop.trf.xlu0
        %v596 = vpop.trf.xlu0
        %v597 = vpop.trf.xlu0
        %v598 = vpop.trf.xlu0
        %600 = vset.pattern.permute.xlu0 0
        %601 = vperm.xlu0 %600, %v545
        %v602 = vpop.permute.xlu0 %601
        %605 = vset.pattern.permute.xlu0 0
        %606 = vperm.xlu0 %605, %v546
        %v607 = vpop.permute.xlu0 %606
        %vm609 = vcmask 64512
        %v611 = vsel %vm609, %v543, 0
        %v614 = vsel %vm609, %v544, 0
        %v617 = vsel %vm609, %v527, 0
        %v620 = vsel %vm609, %v528, 0
        %v623 = vsel %vm609, %v529, 0
        %v626 = vsel %vm609, %v530, 0
        %v629 = vsel %vm609, %v531, 0
        %v632 = vsel %vm609, %v532, 0
        %v635 = vsel %vm609, %v533, 0
        %v638 = vsel %vm609, %v534, 0
        %v641 = vsel %vm609, %v535, 0
        %v644 = vsel %vm609, %v536, 0
        %v647 = vsel %vm609, %v537, 0
        %v650 = vsel %vm609, %v538, 0
        %v653 = vsel %vm609, %v539, 0
        %v656 = vsel %vm609, %v540, 0
        %v659 = vsel %vm609, %v541, 0
        %v662 = vsel %vm609, %v542, 0
        %664 = vmatprep.subr.mxu0 0.0
        %665 = vmatpush1.xpose.msra.mxu0 %v662
        %666 = vmatprep.subr.mxu0 0.0
        %667 = vmatpush1.xpose.msra.mxu0 %v659
        %668 = vmatprep.subr.mxu0 0.0
        %669 = vmatpush1.xpose.msra.mxu0 %v656
        %670 = vmatprep.subr.mxu0 0.0
        %671 = vmatpush1.xpose.msra.mxu0 %v653
        %672 = vmatprep.subr.mxu0 0.0
        %673 = vmatpush1.xpose.msra.mxu0 %v650
        %674 = vmatprep.subr.mxu0 0.0
        %675 = vmatpush1.xpose.msra.mxu0 %v647
        %676 = vmatprep.subr.mxu0 0.0
        %677 = vmatpush1.xpose.msra.mxu0 %v644
        %678 = vmatprep.subr.mxu0 0.0
        %679 = vmatpush1.xpose.msra.mxu0 %v641
        %680 = vmatprep.subr.mxu0 0.0
        %681 = vmatpush1.xpose.msra.mxu0 %v638
        %682 = vmatprep.subr.mxu0 0.0
        %683 = vmatpush1.xpose.msra.mxu0 %v635
        %684 = vmatprep.subr.mxu0 0.0
        %685 = vmatpush1.xpose.msra.mxu0 %v632
        %686 = vmatprep.subr.mxu0 0.0
        %687 = vmatpush1.xpose.msra.mxu0 %v629
        %688 = vmatprep.subr.mxu0 0.0
        %689 = vmatpush1.xpose.msra.mxu0 %v626
        %690 = vmatprep.subr.mxu0 0.0
        %691 = vmatpush1.xpose.msra.mxu0 %v623
        %692 = vmatprep.subr.mxu0 0.0
        %693 = vmatpush1.xpose.msra.mxu0 %v620
        %694 = vmatprep.subr.mxu0 0.0
        %695 = vmatpush1.xpose.msra.mxu0 %v617
        %696 = vmatprep.subr.mxu0 0.0
        %697 = vmatpush2.xpose.msra.mxu0 0.0
        %698 = vmatprep.subr.mxu0 0.0
        %699 = vmatpush2.xpose.msra.mxu0 0.0
        %700 = vmatprep.subr.mxu0 0.0
        %701 = vmatpush2.xpose.msra.mxu0 0.0
        %702 = vmatprep.subr.mxu0 0.0
        %703 = vmatpush2.xpose.msra.mxu0 0.0
        %704 = vmatprep.subr.mxu0 0.0
        %705 = vmatpush2.xpose.msra.mxu0 0.0
        %706 = vmatprep.subr.mxu0 0.0
        %707 = vmatpush2.xpose.msra.mxu0 0.0
        %708 = vmatprep.subr.mxu0 0.0
        %709 = vmatpush2.xpose.msra.mxu0 0.0
        %710 = vmatprep.subr.mxu0 0.0
        %711 = vmatpush2.xpose.msra.mxu0 0.0
        %712 = vmatprep.subr.mxu0 0.0
        %713 = vmatpush2.xpose.msra.mxu0 0.0
        %714 = vmatprep.subr.mxu0 0.0
        %715 = vmatpush2.xpose.msra.mxu0 0.0
        %716 = vmatprep.subr.mxu0 0.0
        %717 = vmatpush2.xpose.msra.mxu0 0.0
        %718 = vmatprep.subr.mxu0 0.0
        %719 = vmatpush2.xpose.msra.mxu0 0.0
        %720 = vmatprep.subr.mxu0 0.0
        %721 = vmatpush2.xpose.msra.mxu0 0.0
        %722 = vmatprep.subr.mxu0 0.0
        %723 = vmatpush2.xpose.msra.mxu0 0.0
        %724 = vmatprep.subr.mxu0 0.0
        %725 = vmatpush2.xpose.msra.mxu0 0.0
        %726 = vmatprep.subr.mxu0 0.0
        %727 = vmatpush2.xpose.msra.mxu0 0.0
        %728 = vmatprep.mubr.f32.mxu0 0.0
        %729 = vmatmul.mubr.f32.gmra.mxu0 %v611
        %v730 = vpop.f32.mrf.mxu0
        %v731 = vadd.f32 %v602, %v730
        %v732 = vpop.f32.mrf.mxu0
        %733 = vmatprep.mubr.f32.mxu0 0.0
        %734 = vmatmul.mubr.f32.gmra.mxu0 %v614
        %v735 = vpop.f32.mrf.mxu0
        %v736 = vadd.f32 %v607, %v735
        %v737 = vpop.f32.mrf.mxu0
        %738 = vdwg.mxu0
        %v739 = vmul.f32 %v731, 0.5
        %v740 = vmul.f32 %v736, 0.5
        %v741 = vmul.f32 %v731, 0.70710677
        %v742 = vmul.f32 %v736, 0.70710677
        %v743 = vand.u32 2147483647, %v741
        %v744 = vand.u32 2147483647, %v742
        %v745 = vmul.f32 %v743, 0.3275911
        %v746 = vmul.f32 %v744, 0.3275911
        %v747 = vadd.f32 %v745, 1.0
        %v748 = vadd.f32 %v746, 1.0
        %v749 = vrcp.pop %v747
        %v750 = vmul.f32 1.0, %v749
        %v751 = vrcp.pop %v748
        %v752 = vmul.f32 1.0, %v751
        %v753 = vmul.f32 %v750, 1.0614054
        %v754 = vmul.f32 %v752, 1.0614054
        %v755 = vadd.f32 %v753, -1.4531521
        %v756 = vadd.f32 %v754, -1.4531521
        %v757 = vmul.f32 %v750, %v755
        %v758 = vmul.f32 %v752, %v756
        %v759 = vadd.f32 %v757, 1.4214138
        %v760 = vadd.f32 %v758, 1.4214138
        %v761 = vmul.f32 %v750, %v759
        %v762 = vmul.f32 %v752, %v760
        %v763 = vadd.f32 %v761, -0.28449672
        %v764 = vadd.f32 %v762, -0.28449672
        %v765 = vmul.f32 %v750, %v763
        %v766 = vmul.f32 %v752, %v764
        %v767 = vadd.f32 %v765, 0.2548296
        %v768 = vadd.f32 %v766, 0.2548296
        %v769 = vmul.f32 %v750, %v767
        %v770 = vmul.f32 %v752, %v768
        %v771 = vsub.f32 0.0, %v743
        %v772 = vsub.f32 0.0, %v744
        %v773 = vmul.f32 %v771, %v743
        %v774 = vmul.f32 %v772, %v744
        %v775 = vmul.f32 %v773, 1.442695
        %v776 = vpow.pop %v775
        %v777 = vmul.f32 %v774, 1.442695
        %v778 = vpow.pop %v777
        %v779 = vmul.f32 %v769, %v776
        %v780 = vmul.f32 %v770, %v778
        %v781 = vsub.f32 1.0, %v779
        %v782 = vsub.f32 1.0, %v780
        %vm783 = vcmp.lt.f32.partialorder %v741, 0.0
        %vm784 = vcmp.lt.f32.partialorder %v742, 0.0
        %v785 = vsub.f32 0.0, %v781
        %v786 = vsub.f32 0.0, %v782
        %v787 = vsel %vm783, %v785, %v781
        %v788 = vsel %vm784, %v786, %v782
        %v789 = vadd.f32 %v787, 1.0
        %v790 = vadd.f32 %v788, 1.0
        %v791 = vmul.f32 %v739, %v789
        %v792 = vmul.f32 %v740, %v790
        %794 = vset.pattern.permute.xlu0 0
        %795 = vperm.xlu0 %794, %v549
        %v796 = vpop.permute.xlu0 %795
        %799 = vset.pattern.permute.xlu0 0
        %800 = vperm.xlu0 %799, %v550
        %v801 = vpop.permute.xlu0 %800
        %vm803 = vcmask 130048
        %v805 = vsel %vm803, %v547, 0
        %v808 = vsel %vm803, %v548, 0
        %810 = vmatprep.subr.mxu0 0.0
        %811 = vmatpush1.msra.mxu0 0.0
        %812 = vmatprep.subr.mxu0 0.0
        %813 = vmatpush1.msra.mxu0 0.0
        %814 = vmatprep.subr.mxu0 0.0
        %815 = vmatpush1.msra.mxu0 0.0
        %816 = vmatprep.subr.mxu0 0.0
        %817 = vmatpush1.msra.mxu0 0.0
        %818 = vmatprep.subr.mxu0 0.0
        %819 = vmatpush1.msra.mxu0 0.0
        %820 = vmatprep.subr.mxu0 0.0
        %821 = vmatpush1.msra.mxu0 0.0
        %822 = vmatprep.subr.mxu0 0.0
        %823 = vmatpush1.msra.mxu0 0.0
        %824 = vmatprep.subr.mxu0 0.0
        %825 = vmatpush1.msra.mxu0 0.0
        %826 = vmatprep.subr.mxu0 0.0
        %827 = vmatpush1.msra.mxu0 0.0
        %828 = vmatprep.subr.mxu0 0.0
        %829 = vmatpush1.msra.mxu0 0.0
        %830 = vmatprep.subr.mxu0 0.0
        %831 = vmatpush1.msra.mxu0 0.0
        %832 = vmatprep.subr.mxu0 0.0
        %833 = vmatpush1.msra.mxu0 0.0
        %834 = vmatprep.subr.mxu0 0.0
        %835 = vmatpush1.msra.mxu0 0.0
        %836 = vmatprep.subr.mxu0 0.0
        %837 = vmatpush1.msra.mxu0 0.0
        %838 = vmatprep.subr.mxu0 0.0
        %839 = vmatpush1.msra.mxu0 %v792
        %840 = vmatprep.subr.mxu0 0.0
        %841 = vmatpush1.msra.mxu0 %v791
        %842 = vmatprep.subr.mxu0 0.0
        %843 = vmatpush2.msra.mxu0 0.0
        %844 = vmatprep.subr.mxu0 0.0
        %845 = vmatpush2.msra.mxu0 0.0
        %846 = vmatprep.subr.mxu0 0.0
        %847 = vmatpush2.msra.mxu0 0.0
        %848 = vmatprep.subr.mxu0 0.0
        %849 = vmatpush2.msra.mxu0 0.0
        %850 = vmatprep.subr.mxu0 0.0
        %851 = vmatpush2.msra.mxu0 0.0
        %852 = vmatprep.subr.mxu0 0.0
        %853 = vmatpush2.msra.mxu0 0.0
        %854 = vmatprep.subr.mxu0 0.0
        %855 = vmatpush2.msra.mxu0 0.0
        %856 = vmatprep.subr.mxu0 0.0
        %857 = vmatpush2.msra.mxu0 0.0
        %858 = vmatprep.subr.mxu0 0.0
        %859 = vmatpush2.msra.mxu0 0.0
        %860 = vmatprep.subr.mxu0 0.0
        %861 = vmatpush2.msra.mxu0 0.0
        %862 = vmatprep.subr.mxu0 0.0
        %863 = vmatpush2.msra.mxu0 0.0
        %864 = vmatprep.subr.mxu0 0.0
        %865 = vmatpush2.msra.mxu0 0.0
        %866 = vmatprep.subr.mxu0 0.0
        %867 = vmatpush2.msra.mxu0 0.0
        %868 = vmatprep.subr.mxu0 0.0
        %869 = vmatpush2.msra.mxu0 0.0
        %870 = vmatprep.subr.mxu0 0.0
        %871 = vmatpush2.msra.mxu0 0.0
        %872 = vmatprep.subr.mxu0 0.0
        %873 = vmatpush2.msra.mxu0 0.0
        %874 = vmatprep.mubr.f32.mxu0 0.0
        %875 = vmatmul.mubr.f32.gmra.mxu0 %v805
        %v876 = vpop.f32.mrf.mxu0
        %v877 = vadd.f32 %v796, %v876
        %v878 = vpop.f32.mrf.mxu0
        %879 = vmatprep.mubr.f32.mxu0 0.0
        %880 = vmatmul.mubr.f32.gmra.mxu0 %v808
        %v881 = vpop.f32.mrf.mxu0
        %v882 = vadd.f32 %v801, %v881
        %v883 = vpop.f32.mrf.mxu0
        %884 = vdwg.mxu0
        %v885 = vadd.f32 %v583, %v877
        %v886 = vadd.f32 %v584, %v882
        %887 = vst [vmem:[%s489] sm:$0xff] %v885
        %888 = vst [vmem:[%s489 + $0x8] sm:$0xff] %v886
        %v889 = vld [vmem:[%s7] sm:$0xff]
        %v890 = vld [vmem:[%s7 + $0x8] sm:$0xff]
        %v891 = vld [vmem:[%s7 + $0x10] sm:$0xff]
        %v892 = vld [vmem:[%s7 + $0x18] sm:$0xff]
        %v893 = vld [vmem:[%s8] sm:$0xff]
        %v894 = vld [vmem:[%s8 + $0x8] sm:$0xff]
        %v895 = vld [vmem:[%s8 + $0x10] sm:$0xff]
        %v896 = vld [vmem:[%s8 + $0x18] sm:$0xff]
        %v897 = vld [vmem:[%s9] sm:$0xff]
        %v898 = vld [vmem:[%s9 + $0x8] sm:$0xff]
        %v899 = vld [vmem:[%s9 + $0x10] sm:$0xff]
        %v900 = vld [vmem:[%s9 + $0x18] sm:$0xff]
        %v901 = vld [vmem:[%s10] sm:$0xff]
        %v902 = vld [vmem:[%s10 + $0x8] sm:$0xff]
        %v903 = vld [vmem:[%s10 + $0x10] sm:$0xff]
        %v904 = vld [vmem:[%s10 + $0x18] sm:$0xff]
        %v905 = vld [vmem:[%s525] sm:$0xff]
        %v906 = vld [vmem:[%s525 + $0x8] sm:$0xff]
        %v907 = vld [vmem:[%s525 + $0x10] sm:$0xff]
        %v908 = vld [vmem:[%s525 + $0x18] sm:$0xff]
        %v909 = vld [vmem:[%s525 + $0x20] sm:$0xff]
        %v910 = vld [vmem:[%s525 + $0x28] sm:$0xff]
        %v911 = vld [vmem:[%s525 + $0x30] sm:$0xff]
        %v912 = vld [vmem:[%s525 + $0x38] sm:$0xff]
        %v913 = vld [vmem:[%s525 + $0x40] sm:$0xff]
        %v914 = vld [vmem:[%s525 + $0x48] sm:$0xff]
        %v915 = vld [vmem:[%s525 + $0x50] sm:$0xff]
        %v916 = vld [vmem:[%s525 + $0x58] sm:$0xff]
        %v917 = vld [vmem:[%s525 + $0x60] sm:$0xff]
        %v918 = vld [vmem:[%s525 + $0x68] sm:$0xff]
        %v919 = vld [vmem:[%s525 + $0x70] sm:$0xff]
        %v920 = vld [vmem:[%s525 + $0x78] sm:$0xff]
        %921 = vxpose.xlu0.b32.start [1/16] %v905, 128
        %922 = vxpose.xlu0.b32.cont [2/16] %v906, 128
        %923 = vxpose.xlu0.b32.cont [3/16] %v907, 128
        %924 = vxpose.xlu0.b32.cont [4/16] %v908, 128
        %925 = vxpose.xlu0.b32.cont [5/16] %v909, 128
        %926 = vxpose.xlu0.b32.cont [6/16] %v910, 128
        %927 = vxpose.xlu0.b32.cont [7/16] %v911, 128
        %928 = vxpose.xlu0.b32.cont [8/16] %v912, 128
        %929 = vxpose.xlu0.b32.cont [9/16] %v913, 128
        %930 = vxpose.xlu0.b32.cont [10/16] %v914, 128
        %931 = vxpose.xlu0.b32.cont [11/16] %v915, 128
        %932 = vxpose.xlu0.b32.cont [12/16] %v916, 128
        %933 = vxpose.xlu0.b32.cont [13/16] %v917, 128
        %934 = vxpose.xlu0.b32.cont [14/16] %v918, 128
        %935 = vxpose.xlu0.b32.cont [15/16] %v919, 128
        %936 = vxpose.xlu0.b32.end [16/16] %v920, 128
        %v937 = vpop.trf.xlu0
        %v938 = vpop.trf.xlu0
        %v939 = vpop.trf.xlu0
        %v940 = vpop.trf.xlu0
        %v941 = vpop.trf.xlu0
        %v942 = vpop.trf.xlu0
        %v943 = vpop.trf.xlu0
        %v944 = vpop.trf.xlu0
        %v945 = vpop.trf.xlu0
        %v946 = vpop.trf.xlu0
        %v947 = vpop.trf.xlu0
        %v948 = vpop.trf.xlu0
        %v949 = vpop.trf.xlu0
        %v950 = vpop.trf.xlu0
        %v951 = vpop.trf.xlu0
        %v952 = vpop.trf.xlu0
        %954 = vset.pattern.permute.xlu0 0
        %955 = vperm.xlu0 %954, %v893
        %v956 = vpop.permute.xlu0 %955
        %959 = vset.pattern.permute.xlu0 0
        %960 = vperm.xlu0 %959, %v894
        %v961 = vpop.permute.xlu0 %960
        %964 = vset.pattern.permute.xlu0 0
        %965 = vperm.xlu0 %964, %v895
        %v966 = vpop.permute.xlu0 %965
        %969 = vset.pattern.permute.xlu0 0
        %970 = vperm.xlu0 %969, %v896
        %v971 = vpop.permute.xlu0 %970
        %v974 = vsel %vm803, %v889, 0
        %v977 = vsel %vm803, %v890, 0
        %v980 = vsel %vm803, %v891, 0
        %v983 = vsel %vm803, %v892, 0
        %985 = vmatprep.subr.mxu0 0.0
        %986 = vmatpush1.msra.mxu0 0.0
        %987 = vmatprep.subr.mxu0 0.0
        %988 = vmatpush1.msra.mxu0 0.0
        %989 = vmatprep.subr.mxu0 0.0
        %990 = vmatpush1.msra.mxu0 0.0
        %991 = vmatprep.subr.mxu0 0.0
        %992 = vmatpush1.msra.mxu0 0.0
        %993 = vmatprep.subr.mxu0 0.0
        %994 = vmatpush1.msra.mxu0 0.0
        %995 = vmatprep.subr.mxu0 0.0
        %996 = vmatpush1.msra.mxu0 0.0
        %997 = vmatprep.subr.mxu0 0.0
        %998 = vmatpush1.msra.mxu0 0.0
        %999 = vmatprep.subr.mxu0 0.0
        %1000 = vmatpush1.msra.mxu0 0.0
        %1001 = vmatprep.subr.mxu0 0.0
        %1002 = vmatpush1.msra.mxu0 0.0
        %1003 = vmatprep.subr.mxu0 0.0
        %1004 = vmatpush1.msra.mxu0 0.0
        %1005 = vmatprep.subr.mxu0 0.0
        %1006 = vmatpush1.msra.mxu0 0.0
        %1007 = vmatprep.subr.mxu0 0.0
        %1008 = vmatpush1.msra.mxu0 0.0
        %1009 = vmatprep.subr.mxu0 0.0
        %1010 = vmatpush1.msra.mxu0 0.0
        %1011 = vmatprep.subr.mxu0 0.0
        %1012 = vmatpush1.msra.mxu0 0.0
        %1013 = vmatprep.subr.mxu0 0.0
        %1014 = vmatpush1.msra.mxu0 %v886
        %1015 = vmatprep.subr.mxu0 0.0
        %1016 = vmatpush1.msra.mxu0 %v885
        %1017 = vmatprep.subr.mxu0 0.0
        %1018 = vmatpush2.msra.mxu0 0.0
        %1019 = vmatprep.subr.mxu0 0.0
        %1020 = vmatpush2.msra.mxu0 0.0
        %1021 = vmatprep.subr.mxu0 0.0
        %1022 = vmatpush2.msra.mxu0 0.0
        %1023 = vmatprep.subr.mxu0 0.0
        %1024 = vmatpush2.msra.mxu0 0.0
        %1025 = vmatprep.subr.mxu0 0.0
        %1026 = vmatpush2.msra.mxu0 0.0
        %1027 = vmatprep.subr.mxu0 0.0
        %1028 = vmatpush2.msra.mxu0 0.0
        %1029 = vmatprep.subr.mxu0 0.0
        %1030 = vmatpush2.msra.mxu0 0.0
        %1031 = vmatprep.subr.mxu0 0.0
        %1032 = vmatpush2.msra.mxu0 0.0
        %1033 = vmatprep.subr.mxu0 0.0
        %1034 = vmatpush2.msra.mxu0 0.0
        %1035 = vmatprep.subr.mxu0 0.0
        %1036 = vmatpush2.msra.mxu0 0.0
        %1037 = vmatprep.subr.mxu0 0.0
        %1038 = vmatpush2.msra.mxu0 0.0
        %1039 = vmatprep.subr.mxu0 0.0
        %1040 = vmatpush2.msra.mxu0 0.0
        %1041 = vmatprep.subr.mxu0 0.0
        %1042 = vmatpush2.msra.mxu0 0.0
        %1043 = vmatprep.subr.mxu0 0.0
        %1044 = vmatpush2.msra.mxu0 0.0
        %1045 = vmatprep.subr.mxu0 0.0
        %1046 = vmatpush2.msra.mxu0 0.0
        %1047 = vmatprep.subr.mxu0 0.0
        %1048 = vmatpush2.msra.mxu0 0.0
        %1049 = vmatprep.mubr.f32.mxu0 0.0
        %1050 = vmatmul.mubr.f32.gmra.mxu0 %v974
        %v1051 = vpop.f32.mrf.mxu0
        %v1052 = vadd.f32 %v956, %v1051
        %v1053 = vpop.f32.mrf.mxu0
        %1054 = vmatprep.mubr.f32.mxu0 0.0
        %1055 = vmatmul.mubr.f32.gmra.mxu0 %v977
        %v1056 = vpop.f32.mrf.mxu0
        %v1057 = vadd.f32 %v961, %v1056
        %v1058 = vpop.f32.mrf.mxu0
        %1059 = vmatprep.mubr.f32.mxu0 0.0
        %1060 = vmatmul.mubr.f32.gmra.mxu0 %v980
        %v1061 = vpop.f32.mrf.mxu0
        %v1062 = vadd.f32 %v966, %v1061
        %v1063 = vpop.f32.mrf.mxu0
        %1064 = vmatprep.mubr.f32.mxu0 0.0
        %1065 = vmatmul.mubr.f32.gmra.mxu0 %v983
        %v1066 = vpop.f32.mrf.mxu0
        %v1067 = vadd.f32 %v971, %v1066
        %v1068 = vpop.f32.mrf.mxu0
        %1069 = vdwg.mxu0
        %v1070 = vmul.f32 %v1052, 0.5
        %v1071 = vmul.f32 %v1057, 0.5
        %v1072 = vmul.f32 %v1062, 0.5
        %v1073 = vmul.f32 %v1067, 0.5
        %v1074 = vmul.f32 %v1052, 0.70710677
        %v1075 = vmul.f32 %v1057, 0.70710677
        %v1076 = vmul.f32 %v1062, 0.70710677
        %v1077 = vmul.f32 %v1067, 0.70710677
        %v1078 = vand.u32 2147483647, %v1074
        %v1079 = vand.u32 2147483647, %v1075
        %v1080 = vand.u32 2147483647, %v1076
        %v1081 = vand.u32 2147483647, %v1077
        %v1082 = vmul.f32 %v1078, 0.3275911
        %v1083 = vmul.f32 %v1079, 0.3275911
        %v1084 = vmul.f32 %v1080, 0.3275911
        %v1085 = vmul.f32 %v1081, 0.3275911
        %v1086 = vadd.f32 %v1082, 1.0
        %v1087 = vadd.f32 %v1083, 1.0
        %v1088 = vadd.f32 %v1084, 1.0
        %v1089 = vadd.f32 %v1085, 1.0
        %v1090 = vrcp.pop %v1086
        %v1091 = vmul.f32 1.0, %v1090
        %v1092 = vrcp.pop %v1087
        %v1093 = vmul.f32 1.0, %v1092
        %v1094 = vrcp.pop %v1088
        %v1095 = vmul.f32 1.0, %v1094
        %v1096 = vrcp.pop %v1089
        %v1097 = vmul.f32 1.0, %v1096
        %v1098 = vmul.f32 %v1091, 1.0614054
        %v1099 = vmul.f32 %v1093, 1.0614054
        %v1100 = vmul.f32 %v1095, 1.0614054
        %v1101 = vmul.f32 %v1097, 1.0614054
        %v1102 = vadd.f32 %v1098, -1.4531521
        %v1103 = vadd.f32 %v1099, -1.4531521
        %v1104 = vadd.f32 %v1100, -1.4531521
        %v1105 = vadd.f32 %v1101, -1.4531521
        %v1106 = vmul.f32 %v1091, %v1102
        %v1107 = vmul.f32 %v1093, %v1103
        %v1108 = vmul.f32 %v1095, %v1104
        %v1109 = vmul.f32 %v1097, %v1105
        %v1110 = vadd.f32 %v1106, 1.4214138
        %v1111 = vadd.f32 %v1107, 1.4214138
        %v1112 = vadd.f32 %v1108, 1.4214138
        %v1113 = vadd.f32 %v1109, 1.4214138
        %v1114 = vmul.f32 %v1091, %v1110
        %v1115 = vmul.f32 %v1093, %v1111
        %v1116 = vmul.f32 %v1095, %v1112
        %v1117 = vmul.f32 %v1097, %v1113
        %v1118 = vadd.f32 %v1114, -0.28449672
        %v1119 = vadd.f32 %v1115, -0.28449672
        %v1120 = vadd.f32 %v1116, -0.28449672
        %v1121 = vadd.f32 %v1117, -0.28449672
        %v1122 = vmul.f32 %v1091, %v1118
        %v1123 = vmul.f32 %v1093, %v1119
        %v1124 = vmul.f32 %v1095, %v1120
        %v1125 = vmul.f32 %v1097, %v1121
        %v1126 = vadd.f32 %v1122, 0.2548296
        %v1127 = vadd.f32 %v1123, 0.2548296
        %v1128 = vadd.f32 %v1124, 0.2548296
        %v1129 = vadd.f32 %v1125, 0.2548296
        %v1130 = vmul.f32 %v1091, %v1126
        %v1131 = vmul.f32 %v1093, %v1127
        %v1132 = vmul.f32 %v1095, %v1128
        %v1133 = vmul.f32 %v1097, %v1129
        %v1134 = vsub.f32 0.0, %v1078
        %v1135 = vsub.f32 0.0, %v1079
        %v1136 = vsub.f32 0.0, %v1080
        %v1137 = vsub.f32 0.0, %v1081
        %v1138 = vmul.f32 %v1134, %v1078
        %v1139 = vmul.f32 %v1135, %v1079
        %v1140 = vmul.f32 %v1136, %v1080
        %v1141 = vmul.f32 %v1137, %v1081
        %v1142 = vmul.f32 %v1138, 1.442695
        %v1143 = vpow.pop %v1142
        %v1144 = vmul.f32 %v1139, 1.442695
        %v1145 = vpow.pop %v1144
        %v1146 = vmul.f32 %v1140, 1.442695
        %v1147 = vpow.pop %v1146
        %v1148 = vmul.f32 %v1141, 1.442695
        %v1149 = vpow.pop %v1148
        %v1150 = vmul.f32 %v1130, %v1143
        %v1151 = vmul.f32 %v1131, %v1145
        %v1152 = vmul.f32 %v1132, %v1147
        %v1153 = vmul.f32 %v1133, %v1149
        %v1154 = vsub.f32 1.0, %v1150
        %v1155 = vsub.f32 1.0, %v1151
        %v1156 = vsub.f32 1.0, %v1152
        %v1157 = vsub.f32 1.0, %v1153
        %vm1158 = vcmp.lt.f32.partialorder %v1074, 0.0
        %vm1159 = vcmp.lt.f32.partialorder %v1075, 0.0
        %vm1160 = vcmp.lt.f32.partialorder %v1076, 0.0
        %vm1161 = vcmp.lt.f32.partialorder %v1077, 0.0
        %v1162 = vsub.f32 0.0, %v1154
        %v1163 = vsub.f32 0.0, %v1155
        %v1164 = vsub.f32 0.0, %v1156
        %v1165 = vsub.f32 0.0, %v1157
        %v1166 = vsel %vm1158, %v1162, %v1154
        %v1167 = vsel %vm1159, %v1163, %v1155
        %v1168 = vsel %vm1160, %v1164, %v1156
        %v1169 = vsel %vm1161, %v1165, %v1157
        %v1170 = vadd.f32 %v1166, 1.0
        %v1171 = vadd.f32 %v1167, 1.0
        %v1172 = vadd.f32 %v1168, 1.0
        %v1173 = vadd.f32 %v1169, 1.0
        %v1174 = vmul.f32 %v1070, %v1170
        %v1175 = vmul.f32 %v1071, %v1171
        %v1176 = vmul.f32 %v1072, %v1172
        %v1177 = vmul.f32 %v1073, %v1173
        %1179 = vset.pattern.permute.xlu0 0
        %1180 = vperm.xlu0 %1179, %v901
        %v1181 = vpop.permute.xlu0 %1180
        %1184 = vset.pattern.permute.xlu0 0
        %1185 = vperm.xlu0 %1184, %v902
        %v1186 = vpop.permute.xlu0 %1185
        %1189 = vset.pattern.permute.xlu0 0
        %1190 = vperm.xlu0 %1189, %v903
        %v1191 = vpop.permute.xlu0 %1190
        %1194 = vset.pattern.permute.xlu0 0
        %1195 = vperm.xlu0 %1194, %v904
        %v1196 = vpop.permute.xlu0 %1195
        %vm1198 = vcmask 261120
        %v1200 = vsel %vm1198, %v897, 0
        %v1203 = vsel %vm1198, %v898, 0
        %v1206 = vsel %vm1198, %v899, 0
        %v1209 = vsel %vm1198, %v900, 0
        %1211 = vmatprep.subr.mxu0 0.0
        %1212 = vmatpush1.msra.mxu0 0.0
        %1213 = vmatprep.subr.mxu0 0.0
        %1214 = vmatpush1.msra.mxu0 0.0
        %1215 = vmatprep.subr.mxu0 0.0
        %1216 = vmatpush1.msra.mxu0 0.0
        %1217 = vmatprep.subr.mxu0 0.0
        %1218 = vmatpush1.msra.mxu0 0.0
        %1219 = vmatprep.subr.mxu0 0.0
        %1220 = vmatpush1.msra.mxu0 0.0
        %1221 = vmatprep.subr.mxu0 0.0
        %1222 = vmatpush1.msra.mxu0 0.0
        %1223 = vmatprep.subr.mxu0 0.0
        %1224 = vmatpush1.msra.mxu0 0.0
        %1225 = vmatprep.subr.mxu0 0.0
        %1226 = vmatpush1.msra.mxu0 0.0
        %1227 = vmatprep.subr.mxu0 0.0
        %1228 = vmatpush1.msra.mxu0 0.0
        %1229 = vmatprep.subr.mxu0 0.0
        %1230 = vmatpush1.msra.mxu0 0.0
        %1231 = vmatprep.subr.mxu0 0.0
        %1232 = vmatpush1.msra.mxu0 0.0
        %1233 = vmatprep.subr.mxu0 0.0
        %1234 = vmatpush1.msra.mxu0 0.0
        %1235 = vmatprep.subr.mxu0 0.0
        %1236 = vmatpush1.msra.mxu0 %v1177
        %1237 = vmatprep.subr.mxu0 0.0
        %1238 = vmatpush1.msra.mxu0 %v1176
        %1239 = vmatprep.subr.mxu0 0.0
        %1240 = vmatpush1.msra.mxu0 %v1175
        %1241 = vmatprep.subr.mxu0 0.0
        %1242 = vmatpush1.msra.mxu0 %v1174
        %1243 = vmatprep.subr.mxu0 0.0
        %1244 = vmatpush2.msra.mxu0 0.0
        %1245 = vmatprep.subr.mxu0 0.0
        %1246 = vmatpush2.msra.mxu0 0.0
        %1247 = vmatprep.subr.mxu0 0.0
        %1248 = vmatpush2.msra.mxu0 0.0
        %1249 = vmatprep.subr.mxu0 0.0
        %1250 = vmatpush2.msra.mxu0 0.0
        %1251 = vmatprep.subr.mxu0 0.0
        %1252 = vmatpush2.msra.mxu0 0.0
        %1253 = vmatprep.subr.mxu0 0.0
        %1254 = vmatpush2.msra.mxu0 0.0
        %1255 = vmatprep.subr.mxu0 0.0
        %1256 = vmatpush2.msra.mxu0 0.0
        %1257 = vmatprep.subr.mxu0 0.0
        %1258 = vmatpush2.msra.mxu0 0.0
        %1259 = vmatprep.subr.mxu0 0.0
        %1260 = vmatpush2.msra.mxu0 0.0
        %1261 = vmatprep.subr.mxu0 0.0
        %1262 = vmatpush2.msra.mxu0 0.0
        %1263 = vmatprep.subr.mxu0 0.0
        %1264 = vmatpush2.msra.mxu0 0.0
        %1265 = vmatprep.subr.mxu0 0.0
        %1266 = vmatpush2.msra.mxu0 0.0
        %1267 = vmatprep.subr.mxu0 0.0
        %1268 = vmatpush2.msra.mxu0 0.0
        %1269 = vmatprep.subr.mxu0 0.0
        %1270 = vmatpush2.msra.mxu0 0.0
        %1271 = vmatprep.subr.mxu0 0.0
        %1272 = vmatpush2.msra.mxu0 0.0
        %1273 = vmatprep.subr.mxu0 0.0
        %1274 = vmatpush2.msra.mxu0 0.0
        %1275 = vmatprep.mubr.f32.mxu0 0.0
        %1276 = vmatmul.mubr.f32.gmra.mxu0 %v1200
        %v1277 = vpop.f32.mrf.mxu0
        %v1278 = vadd.f32 %v1181, %v1277
        %v1279 = vpop.f32.mrf.mxu0
        %1280 = vmatprep.mubr.f32.mxu0 0.0
        %1281 = vmatmul.mubr.f32.gmra.mxu0 %v1203
        %v1282 = vpop.f32.mrf.mxu0
        %v1283 = vadd.f32 %v1186, %v1282
        %v1284 = vpop.f32.mrf.mxu0
        %1285 = vmatprep.mubr.f32.mxu0 0.0
        %1286 = vmatmul.mubr.f32.gmra.mxu0 %v1206
        %v1287 = vpop.f32.mrf.mxu0
        %v1288 = vadd.f32 %v1191, %v1287
        %v1289 = vpop.f32.mrf.mxu0
        %1290 = vmatprep.mubr.f32.mxu0 0.0
        %1291 = vmatmul.mubr.f32.gmra.mxu0 %v1209
        %v1292 = vpop.f32.mrf.mxu0
        %v1293 = vadd.f32 %v1196, %v1292
        %v1294 = vpop.f32.mrf.mxu0
        %1295 = vdwg.mxu0
        %v1296 = vadd.f32 %v937, %v1278
        %v1297 = vadd.f32 %v938, %v1283
        %v1298 = vadd.f32 %v939, %v1288
        %v1299 = vadd.f32 %v940, %v1293
        %1300 = vst [vmem:[%s496] sm:$0xff] %v1296
        %1301 = vst [vmem:[%s496 + $0x8] sm:$0xff] %v1297
        %1302 = vst [vmem:[%s496 + $0x10] sm:$0xff] %v1298
        %1303 = vst [vmem:[%s496 + $0x18] sm:$0xff] %v1299
        %s1304 = sand.u32 %s304, 1
        %s1305 = scalar_lea.sflag [#allocation3], %s1304
        %s1306 = sand.u32 %s304, 1
        %s1307 = smul.addr %s1306, 16
        %s1308 = scalar_lea.vmem [#allocation2], %s1307
        %s1309 = sand.u32 %s332, 1
        %s1310 = scalar_lea.sflag [#allocation5], %s1309
        %s1311 = sand.u32 %s332, 1
        %s1312 = smul.addr %s1311, 32
        %s1313 = scalar_lea.vmem [#allocation4], %s1312
        // Predicated region
        $region65: #{tpu_custom_call.1} parent=63 // pred_check
          %p1314 = pneg %p314
        $region66: #{tpu_custom_call.1} parent=63 // pred_check_branch
          %1316 = sbr.rel (%p1314) target = $region68
        $region67: #{tpu_custom_call.1} parent=63 // pred_region
          %s1318 = ssub.s32 256, 256
          %1319 = vsyncadd %s1305, %s1318
          %s1320 = smul.addr %s34, 4
          %s1321 = sadd.s32 %s35, %s1320
          %s1322 = smul.addr %s1321, 128
          %s1323 = scalar_lea.hbm %s11, %s1322
          %s1324 = sshll.u32 %s1308, 4
          %s1325 = int_to_ptr.vmem [resolvable:$true] %s1324
          %1330 = dma.vmem_to_hbm [thread:$0]  %s1325, 256, %s1323, %s1305, 128, 256, 8
        $region68: #{tpu_custom_call.1} parent=63 // pred_fallthru
          _
        // Predicated region
        $region69: #{tpu_custom_call.1} parent=63 // pred_check
          %p1331 = pneg %p342
        $region70: #{tpu_custom_call.1} parent=63 // pred_check_branch
          %1333 = sbr.rel (%p1331) target = $region72
        $region71: #{tpu_custom_call.1} parent=63 // pred_region
          %s1335 = ssub.s32 512, 512
          %1336 = vsyncadd %s1310, %s1335
          %s1337 = smul.addr %s34, 8
          %s1338 = sadd.s32 %s35, %s1337
          %s1339 = smul.addr %s1338, 128
          %s1340 = scalar_lea.hbm %s12, %s1339
          %s1341 = sshll.u32 %s1313, 4
          %s1342 = int_to_ptr.vmem [resolvable:$true] %s1341
          %1347 = dma.vmem_to_hbm [thread:$0]  %s1342, 512, %s1340, %s1310, 128, 256, 8
        $region72: #{tpu_custom_call.1} parent=63 // pred_fallthru
          _
      $region64: #{tpu_custom_call.1} parent=5 // pred_fallthru
        _
      %p1348 = scmp.le.s32.totalorder 2, %s25
      // Predicated region
      $region73: #{tpu_custom_call.1} parent=5 // pred_check
        %p1349 = pneg %p1348
      $region74: #{tpu_custom_call.1} parent=5 // pred_check_branch
        %1351 = sbr.rel (%p1349) target = $region76
      $region75: #{tpu_custom_call.1} parent=5 // pred_region
        %s1352 = ssub.s32 %s25, 2
        // Predicated region
        $region77: #{tpu_custom_call.1} parent=75 // pred_check
          %p1353 = pneg %p320
        $region78: #{tpu_custom_call.1} parent=75 // pred_check_branch
          %1355 = sbr.rel (%p1353) target = $region80
        $region79: #{tpu_custom_call.1} parent=75 // pred_region
          %s1356 = sand.u32 %s305, 1
          %s1357 = scalar_lea.sflag [#allocation3], %s1356
          %s1358 = sand.u32 %s305, 1
          %s1359 = smul.addr %s1358, 16
          %s1360 = scalar_lea.vmem [#allocation2], %s1359
          %1361 = dma.done %s1357, 256
        $region80: #{tpu_custom_call.1} parent=75 // pred_fallthru
          _
        // Predicated region
        $region81: #{tpu_custom_call.1} parent=75 // pred_check
          %p1362 = pneg %p348
        $region82: #{tpu_custom_call.1} parent=75 // pred_check_branch
          %1364 = sbr.rel (%p1362) target = $region84
        $region83: #{tpu_custom_call.1} parent=75 // pred_region
          %s1365 = sand.u32 %s333, 1
          %s1366 = scalar_lea.sflag [#allocation5], %s1365
          %s1367 = sand.u32 %s333, 1
          %s1368 = smul.addr %s1367, 32
          %s1369 = scalar_lea.vmem [#allocation4], %s1368
          %1370 = dma.done %s1366, 512
        $region84: #{tpu_custom_call.1} parent=75 // pred_fallthru
          _
      $region76: #{tpu_custom_call.1} parent=5 // pred_fallthru
        _
    $region6: #{tpu_custom_call.1} parent=1 // loop_footer
      %s29 = sadd.s32 1, %s25
    $region7: #{tpu_custom_call.1} parent=1 // loop_footer_branch
      %24 = sbr.rel target = $region3
    $region8: #{tpu_custom_call.1} parent=1 // loop_exit
      _
    %1371 = vsyncpa [#allocation3], 1
    %s1372 = scalar_lea.sflag [#allocation3], 1
    %1373 = vsyncpa %s1372, 1
    %1374 = vsyncpa [#allocation5], 1
    %s1375 = scalar_lea.sflag [#allocation5], 1
    %1376 = vsyncpa %s1375, 1

// kernel: tpu_custom_call.1
$region0: #{tpu_custom_call.1}
  #allocation0 [shape = 'u32[]', space=smem, size = 0x4, offset = 0x4, fixed_abs, tag = 'smem constant byte address 0x4 - core index']
  #allocation1 [shape = 'u32[144,128]{1,0:T(1,128)}', space=vmem, size = 0x12000, scoped, tag = 'internal scratch']
  %s0 = inlined_call_operand.vmem [shape: f32[4,256,8], index: 0, kind: input, shape index: {}]
  %s1 = inlined_call_operand.vmem [shape: f32[4,256,16], index: 1, kind: input, shape index: {}]
  %s2 = inlined_call_operand.vmem [shape: f32[4,256,32], index: 2, kind: input, shape index: {}]
  %s3 = inlined_call_operand.vmem [shape: f32[16,8], index: 3, kind: input, shape index: {}]
  %s4 = inlined_call_operand.vmem [shape: f32[16,1], index: 4, kind: input, shape index: {}]
  %s5 = inlined_call_operand.vmem [shape: f32[16,16], index: 5, kind: input, shape index: {}]
  %s6 = inlined_call_operand.vmem [shape: f32[16,1], index: 6, kind: input, shape index: {}]
  %s7 = inlined_call_operand.vmem [shape: f32[32,16], index: 7, kind: input, shape index: {}]
  %s8 = inlined_call_operand.vmem [shape: f32[32,1], index: 8, kind: input, shape index: {}]
  %s9 = inlined_call_operand.vmem [shape: f32[32,32], index: 9, kind: input, shape index: {}]
  %s10 = inlined_call_operand.vmem [shape: f32[32,1], index: 10, kind: input, shape index: {}]
  %s11 = inlined_call_operand.hbm [shape: f32[4,16,256], index: 11, kind: output, shape index: {0}]
  %s12 = inlined_call_operand.hbm [shape: f32[4,32,256], index: 12, kind: output, shape index: {1}]
  %13 = xla_tuple %s11, %s12
  %s14 = sld [smem:[#allocation0]]
  $region85: #{tpu_custom_call.1} parent=0
    _
  %s16 = ssub.s32 1, %s14
  %s17 = scalar_select 0, %s16, %s14
  $region1: #{tpu_custom_call.1} parent=0
    #allocation2 [shape = 'u8[16384]{0}', space=vmem, size = 0x4000, scoped, tag = 'output window, operand 0']
    #allocation3 [shape = 's32[2]{0}', space=sflag, size = 0x8, scoped, tag = 'scoped memory for tpu_custom_call.1']
    #allocation4 [shape = 'u8[32768]{0}', space=vmem, size = 0x8000, scoped, tag = 'output window, operand 1']
    #allocation5 [shape = 's32[2]{0}', space=sflag, size = 0x8, scoped, tag = 'scoped memory for tpu_custom_call.1']
    %18 = vsyncpa [#allocation3], 0
    %s19 = scalar_lea.sflag [#allocation3], 1
    %20 = vsyncpa %s19, 0
    %21 = vsyncpa [#allocation5], 0
    %s22 = scalar_lea.sflag [#allocation5], 1
    %23 = vsyncpa %s22, 0
    loop: start=0, step=1, limit=10
    $region2: #{tpu_custom_call.1} parent=1 // loop_pre_header
      _
    $region3: #{tpu_custom_call.1} parent=1 // loop_header
      %s25 = sphi 0, %s29
      %p26 = scmp.ge.s32.totalorder %s25, 10
      %s32 = sphi 0, %s44
      %s33 = sphi 0, %s40
      %s34 = sphi 0, %s32
      %s35 = sphi 0, %s33
      %s36 = sphi 0, %s34
      %s37 = sphi 0, %s35
      %s49 = sphi 0, %s51
      %s52 = sphi 0, %s49
      %s53 = sphi 0, %s52
      %s69 = sphi 0, %s53
      %s77 = sphi 0, %s79
      %s80 = sphi 0, %s77
      %s81 = sphi 0, %s80
      %s97 = sphi 0, %s81
      %s105 = sphi 0, %s107
      %s108 = sphi 0, %s105
      %s109 = sphi 0, %s108
      %s125 = sphi 0, %s109
      %s129 = sphi 0, %s129
      %s131 = sphi 0, %s129
      %s132 = sphi 0, %s131
      %s146 = sphi 0, %s132
      %s150 = sphi 0, %s150
      %s152 = sphi 0, %s150
      %s153 = sphi 0, %s152
      %s167 = sphi 0, %s153
      %s171 = sphi 0, %s171
      %s173 = sphi 0, %s171
      %s174 = sphi 0, %s173
      %s188 = sphi 0, %s174
      %s192 = sphi 0, %s192
      %s194 = sphi 0, %s192
      %s195 = sphi 0, %s194
      %s209 = sphi 0, %s195
      %s213 = sphi 0, %s213
      %s215 = sphi 0, %s213
      %s216 = sphi 0, %s215
      %s230 = sphi 0, %s216
      %s234 = sphi 0, %s234
      %s236 = sphi 0, %s234
      %s237 = sphi 0, %s236
      %s251 = sphi 0, %s237
      %s255 = sphi 0, %s255
      %s257 = sphi 0, %s255
      %s258 = sphi 0, %s257
      %s272 = sphi 0, %s258
      %s276 = sphi 0, %s276
      %s278 = sphi 0, %s276
      %s279 = sphi 0, %s278
      %s293 = sphi 0, %s279
      %s301 = sphi 0, %s303
      %s304 = sphi 0, %s301
      %s305 = sphi 0, %s304
      %s321 = sphi 0, %s305
      %s329 = sphi 0, %s331
      %s332 = sphi 0, %s329
      %s333 = sphi 0, %s332
      %s349 = sphi 0, %s333
    $region4: #{tpu_custom_call.1} parent=1 // loop_header_branch
      %28 = sbr.rel (%p26) target = $region8
    $region5: #{tpu_custom_call.1} parent=1 // loop_body
      %s30 = ssub.s32 %s25, 1
      %s31 = ssub.s32 %s25, 2
      %s38 = sadd.s32 1, %s33
      %p39 = scmp.ge.s32.totalorder %s38, 2
      %s40 = scalar_select %p39, 0, %s38
      %s41 = sadd.s32 1, %s32
      %s42 = scalar_select %p39, %s41, %s32
      %p43 = scmp.ge.s32.totalorder %s42, 4
      %s44 = scalar_select %p43, 0, %s42
      %s45 = ssub.s32 %s32, %s44
      %s46 = ssub.s32 %s33, %s40
      %s47 = sor.u32 %s45, %s46
      %p48 = scmp.eq.s32.totalorder %s47, 0
      %s50 = sadd.s32 %s49, 1
      %s51 = scalar_select %p48, %s49, %s50
      %p54 = pneg %p48
      %p55 = scmp.eq.s32.totalorder %s25, 7
      %p56 = por %p54, %p55
      %p57 = scmp.ne.s32.totalorder %s49, %s52
      %p58 = scmp.eq.s32.totalorder %s25, 0
      %p59 = por %p57, %p58
      %p60 = scmp.ne.s32.totalorder %s49, %s52
      %p61 = scmp.eq.s32.totalorder %s30, 7
      %p62 = por %p60, %p61
      %p63 = scmp.ne.s32.totalorder %s52, %s53
      %p64 = scmp.eq.s32.totalorder %s30, 0
      %p65 = por %p63, %p64
      %p66 = scmp.ne.s32.totalorder %s52, %s53
      %p67 = scmp.eq.s32.totalorder %s31, 7
      %p68 = por %p66, %p67
      %p70 = scmp.ne.s32.totalorder %s53, %s69
      %p71 = scmp.eq.s32.totalorder %s31, 0
      %p72 = por %p70, %p71
      %s73 = ssub.s32 %s32, %s44
      %s74 = ssub.s32 %s33, %s40
      %s75 = sor.u32 %s73, %s74
      %p76 = scmp.eq.s32.totalorder %s75, 0
      %s78 = sadd.s32 %s77, 1
      %s79 = scalar_select %p76, %s77, %s78
      %p82 = pneg %p76
      %p83 = scmp.eq.s32.totalorder %s25, 7
      %p84 = por %p82, %p83
      %p85 = scmp.ne.s32.totalorder %s77, %s80
      %p86 = scmp.eq.s32.totalorder %s25, 0
      %p87 = por %p85, %p86
      %p88 = scmp.ne.s32.totalorder %s77, %s80
      %p89 = scmp.eq.s32.totalorder %s30, 7
      %p90 = por %p88, %p89
      %p91 = scmp.ne.s32.totalorder %s80, %s81
      %p92 = scmp.eq.s32.totalorder %s30, 0
      %p93 = por %p91, %p92
      %p94 = scmp.ne.s32.totalorder %s80, %s81
      %p95 = scmp.eq.s32.totalorder %s31, 7
      %p96 = por %p94, %p95
      %p98 = scmp.ne.s32.totalorder %s81, %s97
      %p99 = scmp.eq.s32.totalorder %s31, 0
      %p100 = por %p98, %p99
      %s101 = ssub.s32 %s32, %s44
      %s102 = ssub.s32 %s33, %s40
      %s103 = sor.u32 %s101, %s102
      %p104 = scmp.eq.s32.totalorder %s103, 0
      %s106 = sadd.s32 %s105, 1
      %s107 = scalar_select %p104, %s105, %s106
      %p110 = pneg %p104
      %p111 = scmp.eq.s32.totalorder %s25, 7
      %p112 = por %p110, %p111
      %p113 = scmp.ne.s32.totalorder %s105, %s108
      %p114 = scmp.eq.s32.totalorder %s25, 0
      %p115 = por %p113, %p114
      %p116 = scmp.ne.s32.totalorder %s105, %s108
      %p117 = scmp.eq.s32.totalorder %s30, 7
      %p118 = por %p116, %p117
      %p119 = scmp.ne.s32.totalorder %s108, %s109
      %p120 = scmp.eq.s32.totalorder %s30, 0
      %p121 = por %p119, %p120
      %p122 = scmp.ne.s32.totalorder %s108, %s109
      %p123 = scmp.eq.s32.totalorder %s31, 7
      %p124 = por %p122, %p123
      %p126 = scmp.ne.s32.totalorder %s109, %s125
      %p127 = scmp.eq.s32.totalorder %s31, 0
      %p128 = por %p126, %p127
      %s130 = sadd.s32 %s129, 1
      %p133 = scmp.eq.s32.totalorder %s25, 7
      %p134 = scmp.ne.s32.totalorder %s129, %s131
      %p135 = scmp.eq.s32.totalorder %s25, 0
      %p136 = por %p134, %p135
      %p137 = scmp.ne.s32.totalorder %s129, %s131
      %p138 = scmp.eq.s32.totalorder %s30, 7
      %p139 = por %p137, %p138
      %p140 = scmp.ne.s32.totalorder %s131, %s132
      %p141 = scmp.eq.s32.totalorder %s30, 0
      %p142 = por %p140, %p141
      %p143 = scmp.ne.s32.totalorder %s131, %s132
      %p144 = scmp.eq.s32.totalorder %s31, 7
      %p145 = por %p143, %p144
      %p147 = scmp.ne.s32.totalorder %s132, %s146
      %p148 = scmp.eq.s32.totalorder %s31, 0
      %p149 = por %p147, %p148
      %s151 = sadd.s32 %s150, 1
      %p154 = scmp.eq.s32.totalorder %s25, 7
      %p155 = scmp.ne.s32.totalorder %s150, %s152
      %p156 = scmp.eq.s32.totalorder %s25, 0
      %p157 = por %p155, %p156
      %p158 = scmp.ne.s32.totalorder %s150, %s152
      %p159 = scmp.eq.s32.totalorder %s30, 7
      %p160 = por %p158, %p159
      %p161 = scmp.ne.s32.totalorder %s152, %s153
      %p162 = scmp.eq.s32.totalorder %s30, 0
      %p163 = por %p161, %p162
      %p164 = scmp.ne.s32.totalorder %s152, %s153
      %p165 = scmp.eq.s32.totalorder %s31, 7
      %p166 = por %p164, %p165
      %p168 = scmp.ne.s32.totalorder %s153, %s167
      %p169 = scmp.eq.s32.totalorder %s31, 0
      %p170 = por %p168, %p169
      %s172 = sadd.s32 %s171, 1
      %p175 = scmp.eq.s32.totalorder %s25, 7
      %p176 = scmp.ne.s32.totalorder %s171, %s173
      %p177 = scmp.eq.s32.totalorder %s25, 0
      %p178 = por %p176, %p177
      %p179 = scmp.ne.s32.totalorder %s171, %s173
      %p180 = scmp.eq.s32.totalorder %s30, 7
      %p181 = por %p179, %p180
      %p182 = scmp.ne.s32.totalorder %s173, %s174
      %p183 = scmp.eq.s32.totalorder %s30, 0
      %p184 = por %p182, %p183
      %p185 = scmp.ne.s32.totalorder %s173, %s174
      %p186 = scmp.eq.s32.totalorder %s31, 7
      %p187 = por %p185, %p186
      %p189 = scmp.ne.s32.totalorder %s174, %s188
      %p190 = scmp.eq.s32.totalorder %s31, 0
      %p191 = por %p189, %p190
      %s193 = sadd.s32 %s192, 1
      %p196 = scmp.eq.s32.totalorder %s25, 7
      %p197 = scmp.ne.s32.totalorder %s192, %s194
      %p198 = scmp.eq.s32.totalorder %s25, 0
      %p199 = por %p197, %p198
      %p200 = scmp.ne.s32.totalorder %s192, %s194
      %p201 = scmp.eq.s32.totalorder %s30, 7
      %p202 = por %p200, %p201
      %p203 = scmp.ne.s32.totalorder %s194, %s195
      %p204 = scmp.eq.s32.totalorder %s30, 0
      %p205 = por %p203, %p204
      %p206 = scmp.ne.s32.totalorder %s194, %s195
      %p207 = scmp.eq.s32.totalorder %s31, 7
      %p208 = por %p206, %p207
      %p210 = scmp.ne.s32.totalorder %s195, %s209
      %p211 = scmp.eq.s32.totalorder %s31, 0
      %p212 = por %p210, %p211
      %s214 = sadd.s32 %s213, 1
      %p217 = scmp.eq.s32.totalorder %s25, 7
      %p218 = scmp.ne.s32.totalorder %s213, %s215
      %p219 = scmp.eq.s32.totalorder %s25, 0
      %p220 = por %p218, %p219
      %p221 = scmp.ne.s32.totalorder %s213, %s215
      %p222 = scmp.eq.s32.totalorder %s30, 7
      %p223 = por %p221, %p222
      %p224 = scmp.ne.s32.totalorder %s215, %s216
      %p225 = scmp.eq.s32.totalorder %s30, 0
      %p226 = por %p224, %p225
      %p227 = scmp.ne.s32.totalorder %s215, %s216
      %p228 = scmp.eq.s32.totalorder %s31, 7
      %p229 = por %p227, %p228
      %p231 = scmp.ne.s32.totalorder %s216, %s230
      %p232 = scmp.eq.s32.totalorder %s31, 0
      %p233 = por %p231, %p232
      %s235 = sadd.s32 %s234, 1
      %p238 = scmp.eq.s32.totalorder %s25, 7
      %p239 = scmp.ne.s32.totalorder %s234, %s236
      %p240 = scmp.eq.s32.totalorder %s25, 0
      %p241 = por %p239, %p240
      %p242 = scmp.ne.s32.totalorder %s234, %s236
      %p243 = scmp.eq.s32.totalorder %s30, 7
      %p244 = por %p242, %p243
      %p245 = scmp.ne.s32.totalorder %s236, %s237
      %p246 = scmp.eq.s32.totalorder %s30, 0
      %p247 = por %p245, %p246
      %p248 = scmp.ne.s32.totalorder %s236, %s237
      %p249 = scmp.eq.s32.totalorder %s31, 7
      %p250 = por %p248, %p249
      %p252 = scmp.ne.s32.totalorder %s237, %s251
      %p253 = scmp.eq.s32.totalorder %s31, 0
      %p254 = por %p252, %p253
      %s256 = sadd.s32 %s255, 1
      %p259 = scmp.eq.s32.totalorder %s25, 7
      %p260 = scmp.ne.s32.totalorder %s255, %s257
      %p261 = scmp.eq.s32.totalorder %s25, 0
      %p262 = por %p260, %p261
      %p263 = scmp.ne.s32.totalorder %s255, %s257
      %p264 = scmp.eq.s32.totalorder %s30, 7
      %p265 = por %p263, %p264
      %p266 = scmp.ne.s32.totalorder %s257, %s258
      %p267 = scmp.eq.s32.totalorder %s30, 0
      %p268 = por %p266, %p267
      %p269 = scmp.ne.s32.totalorder %s257, %s258
      %p270 = scmp.eq.s32.totalorder %s31, 7
      %p271 = por %p269, %p270
      %p273 = scmp.ne.s32.totalorder %s258, %s272
      %p274 = scmp.eq.s32.totalorder %s31, 0
      %p275 = por %p273, %p274
      %s277 = sadd.s32 %s276, 1
      %p280 = scmp.eq.s32.totalorder %s25, 7
      %p281 = scmp.ne.s32.totalorder %s276, %s278
      %p282 = scmp.eq.s32.totalorder %s25, 0
      %p283 = por %p281, %p282
      %p284 = scmp.ne.s32.totalorder %s276, %s278
      %p285 = scmp.eq.s32.totalorder %s30, 7
      %p286 = por %p284, %p285
      %p287 = scmp.ne.s32.totalorder %s278, %s279
      %p288 = scmp.eq.s32.totalorder %s30, 0
      %p289 = por %p287, %p288
      %p290 = scmp.ne.s32.totalorder %s278, %s279
      %p291 = scmp.eq.s32.totalorder %s31, 7
      %p292 = por %p290, %p291
      %p294 = scmp.ne.s32.totalorder %s279, %s293
      %p295 = scmp.eq.s32.totalorder %s31, 0
      %p296 = por %p294, %p295
      %s297 = ssub.s32 %s32, %s44
      %s298 = ssub.s32 %s33, %s40
      %s299 = sor.u32 %s297, %s298
      %p300 = scmp.eq.s32.totalorder %s299, 0
      %s302 = sadd.s32 %s301, 1
      %s303 = scalar_select %p300, %s301, %s302
      %p306 = pneg %p300
      %p307 = scmp.eq.s32.totalorder %s25, 7
      %p308 = por %p306, %p307
      %p309 = scmp.ne.s32.totalorder %s301, %s304
      %p310 = scmp.eq.s32.totalorder %s25, 0
      %p311 = por %p309, %p310
      %p312 = scmp.ne.s32.totalorder %s301, %s304
      %p313 = scmp.eq.s32.totalorder %s30, 7
      %p314 = por %p312, %p313
      %p315 = scmp.ne.s32.totalorder %s304, %s305
      %p316 = scmp.eq.s32.totalorder %s30, 0
      %p317 = por %p315, %p316
      %p318 = scmp.ne.s32.totalorder %s304, %s305
      %p319 = scmp.eq.s32.totalorder %s31, 7
      %p320 = por %p318, %p319
      %p322 = scmp.ne.s32.totalorder %s305, %s321
      %p323 = scmp.eq.s32.totalorder %s31, 0
      %p324 = por %p322, %p323
      %s325 = ssub.s32 %s32, %s44
      %s326 = ssub.s32 %s33, %s40
      %s327 = sor.u32 %s325, %s326
      %p328 = scmp.eq.s32.totalorder %s327, 0
      %s330 = sadd.s32 %s329, 1
      %s331 = scalar_select %p328, %s329, %s330
      %p334 = pneg %p328
      %p335 = scmp.eq.s32.totalorder %s25, 7
      %p336 = por %p334, %p335
      %p337 = scmp.ne.s32.totalorder %s329, %s332
      %p338 = scmp.eq.s32.totalorder %s25, 0
      %p339 = por %p337, %p338
      %p340 = scmp.ne.s32.totalorder %s329, %s332
      %p341 = scmp.eq.s32.totalorder %s30, 7
      %p342 = por %p340, %p341
      %p343 = scmp.ne.s32.totalorder %s332, %s333
      %p344 = scmp.eq.s32.totalorder %s30, 0
      %p345 = por %p343, %p344
      %p346 = scmp.ne.s32.totalorder %s332, %s333
      %p347 = scmp.eq.s32.totalorder %s31, 7
      %p348 = por %p346, %p347
      %p350 = scmp.ne.s32.totalorder %s333, %s349
      %p351 = scmp.eq.s32.totalorder %s31, 0
      %p352 = por %p350, %p351
      %p353 = scmp.le.s32.totalorder 1, %s25
      %p354 = scmp.lt.s32.totalorder %s25, 9
      %p355 = pnand %p353, %p354
      %p356 = pneg %p355
      // Predicated region
      $region9: #{tpu_custom_call.1} parent=5 // pred_check
        _
      $region10: #{tpu_custom_call.1} parent=5 // pred_check_branch
        %358 = sbr.rel (%p355) target = $region12
      $region11: #{tpu_custom_call.1} parent=5 // pred_region
        %s359 = ssub.s32 %s25, 1
        // Predicated region
        $region13: #{tpu_custom_call.1} parent=11 // pred_check
          %p360 = pneg %p142
        $region14: #{tpu_custom_call.1} parent=11 // pred_check_branch
          %362 = sbr.rel (%p360) target = $region16
        $region15: #{tpu_custom_call.1} parent=11 // pred_region
          _
        $region16: #{tpu_custom_call.1} parent=11 // pred_fallthru
          _
        // Predicated region
        $region17: #{tpu_custom_call.1} parent=11 // pred_check
          %p363 = pneg %p163
        $region18: #{tpu_custom_call.1} parent=11 // pred_check_branch
          %365 = sbr.rel (%p363) target = $region20
        $region19: #{tpu_custom_call.1} parent=11 // pred_region
          _
        $region20: #{tpu_custom_call.1} parent=11 // pred_fallthru
          _
        // Predicated region
        $region21: #{tpu_custom_call.1} parent=11 // pred_check
          %p366 = pneg %p184
        $region22: #{tpu_custom_call.1} parent=11 // pred_check_branch
          %368 = sbr.rel (%p366) target = $region24
        $region23: #{tpu_custom_call.1} parent=11 // pred_region
          _
        $region24: #{tpu_custom_call.1} parent=11 // pred_fallthru
          _
        // Predicated region
        $region25: #{tpu_custom_call.1} parent=11 // pred_check
          %p369 = pneg %p205
        $region26: #{tpu_custom_call.1} parent=11 // pred_check_branch
          %371 = sbr.rel (%p369) target = $region28
        $region27: #{tpu_custom_call.1} parent=11 // pred_region
          _
        $region28: #{tpu_custom_call.1} parent=11 // pred_fallthru
          _
        // Predicated region
        $region29: #{tpu_custom_call.1} parent=11 // pred_check
          %p372 = pneg %p226
        $region30: #{tpu_custom_call.1} parent=11 // pred_check_branch
          %374 = sbr.rel (%p372) target = $region32
        $region31: #{tpu_custom_call.1} parent=11 // pred_region
          _
        $region32: #{tpu_custom_call.1} parent=11 // pred_fallthru
          _
        // Predicated region
        $region33: #{tpu_custom_call.1} parent=11 // pred_check
          %p375 = pneg %p247
        $region34: #{tpu_custom_call.1} parent=11 // pred_check_branch
          %377 = sbr.rel (%p375) target = $region36
        $region35: #{tpu_custom_call.1} parent=11 // pred_region
          _
        $region36: #{tpu_custom_call.1} parent=11 // pred_fallthru
          _
        // Predicated region
        $region37: #{tpu_custom_call.1} parent=11 // pred_check
          %p378 = pneg %p268
        $region38: #{tpu_custom_call.1} parent=11 // pred_check_branch
          %380 = sbr.rel (%p378) target = $region40
        $region39: #{tpu_custom_call.1} parent=11 // pred_region
          _
        $region40: #{tpu_custom_call.1} parent=11 // pred_fallthru
          _
        // Predicated region
        $region41: #{tpu_custom_call.1} parent=11 // pred_check
          %p381 = pneg %p289
        $region42: #{tpu_custom_call.1} parent=11 // pred_check_branch
          %383 = sbr.rel (%p381) target = $region44
        $region43: #{tpu_custom_call.1} parent=11 // pred_region
          _
        $region44: #{tpu_custom_call.1} parent=11 // pred_fallthru
          _
      $region12: #{tpu_custom_call.1} parent=5 // pred_fallthru
        _
      %p384 = scmp.lt.s32.totalorder %s25, 8
      // Predicated region
      $region45: #{tpu_custom_call.1} parent=5 // pred_check
        %p385 = pneg %p384
      $region46: #{tpu_custom_call.1} parent=5 // pred_check_branch
        %387 = sbr.rel (%p385) target = $region48
      $region47: #{tpu_custom_call.1} parent=5 // pred_region
        // Predicated region
        $region49: #{tpu_custom_call.1} parent=47 // pred_check
          %p388 = pneg %p59
        $region50: #{tpu_custom_call.1} parent=47 // pred_check_branch
          %390 = sbr.rel (%p388) target = $region52
        $region51: #{tpu_custom_call.1} parent=47 // pred_region
          %s391 = smul.u32 16, %s33
          %p392 = scmp.lt.s32.totalorder %s32, 3
          %s393 = scalar_select %p392, %s32, 3
          %p394 = scmp.lt.s32.totalorder %s391, 31
          %s395 = scalar_select %p394, %s391, 31
          %s396 = smul.addr %s393, 32
          %s397 = sadd.s32 %s395, %s396
          %s398 = smul.addr %s397, 8
          %s399 = scalar_lea.vmem %s0, %s398
          %s400 = smul.u32 16, %s33
        $region52: #{tpu_custom_call.1} parent=47 // pred_fallthru
          _
        // Predicated region
        $region53: #{tpu_custom_call.1} parent=47 // pred_check
          %p401 = pneg %p87
        $region54: #{tpu_custom_call.1} parent=47 // pred_check_branch
          %403 = sbr.rel (%p401) target = $region56
        $region55: #{tpu_custom_call.1} parent=47 // pred_region
          %s404 = smul.u32 16, %s33
          %p405 = scmp.lt.s32.totalorder %s32, 3
          %s406 = scalar_select %p405, %s32, 3
          %p407 = scmp.lt.s32.totalorder %s404, 31
          %s408 = scalar_select %p407, %s404, 31
          %s409 = smul.addr %s406, 32
          %s410 = sadd.s32 %s408, %s409
          %s411 = smul.addr %s410, 8
          %s412 = scalar_lea.vmem %s1, %s411
          %s413 = smul.u32 16, %s33
        $region56: #{tpu_custom_call.1} parent=47 // pred_fallthru
          _
        // Predicated region
        $region57: #{tpu_custom_call.1} parent=47 // pred_check
          %p414 = pneg %p115
        $region58: #{tpu_custom_call.1} parent=47 // pred_check_branch
          %416 = sbr.rel (%p414) target = $region60
        $region59: #{tpu_custom_call.1} parent=47 // pred_region
          %s417 = smul.u32 16, %s33
          %p418 = scmp.lt.s32.totalorder %s32, 3
          %s419 = scalar_select %p418, %s32, 3
          %p420 = scmp.lt.s32.totalorder %s417, 31
          %s421 = scalar_select %p420, %s417, 31
          %s422 = smul.addr %s419, 32
          %s423 = sadd.s32 %s421, %s422
          %s424 = smul.addr %s423, 8
          %s425 = scalar_lea.vmem %s2, %s424
          %s426 = smul.u32 16, %s33
        $region60: #{tpu_custom_call.1} parent=47 // pred_fallthru
          _
      $region48: #{tpu_custom_call.1} parent=5 // pred_fallthru
        _
      %p427 = scmp.le.s32.totalorder 1, %s25
      %p428 = scmp.lt.s32.totalorder %s25, 9
      %p429 = pnand %p427, %p428
      %p430 = pneg %p429
      // Predicated region
      $region61: #{tpu_custom_call.1} parent=5 // pred_check
        _
      $region62: #{tpu_custom_call.1} parent=5 // pred_check_branch
        %432 = sbr.rel (%p429) target = $region64
      $region63: #{tpu_custom_call.1} parent=5 // pred_region
        %s433 = ssub.s32 %s25, 1
        %s434 = smul.u32 16, %s35
        %p435 = scmp.lt.s32.totalorder %s34, 3
        %s436 = scalar_select %p435, %s34, 3
        %p437 = scmp.lt.s32.totalorder %s434, 31
        %s438 = scalar_select %p437, %s434, 31
        %s439 = smul.addr %s436, 32
        %s440 = sadd.s32 %s438, %s439
        %s441 = smul.addr %s440, 8
        %s442 = scalar_lea.vmem %s0, %s441
        %p443 = pneg %p65
        %p444 = pneg %p62
        %s445 = smul.u32 16, %s35
        %p446 = scmp.lt.s32.totalorder %s34, 3
        %s447 = scalar_select %p446, %s34, 3
        %p448 = scmp.lt.s32.totalorder %s445, 31
        %s449 = scalar_select %p448, %s445, 31
        %s450 = smul.addr %s447, 32
        %s451 = sadd.s32 %s449, %s450
        %s452 = smul.addr %s451, 8
        %s453 = scalar_lea.vmem %s1, %s452
        %p454 = pneg %p93
        %p455 = pneg %p90
        %s456 = smul.u32 16, %s35
        %p457 = scmp.lt.s32.totalorder %s34, 3
        %s458 = scalar_select %p457, %s34, 3
        %p459 = scmp.lt.s32.totalorder %s456, 31
        %s460 = scalar_select %p459, %s456, 31
        %s461 = smul.addr %s458, 32
        %s462 = sadd.s32 %s460, %s461
        %s463 = smul.addr %s462, 8
        %s464 = scalar_lea.vmem %s2, %s463
        %p465 = pneg %p121
        %p466 = pneg %p118
        %p467 = pneg %p142
        %p468 = pneg %p139
        %p469 = pneg %p163
        %p470 = pneg %p160
        %p471 = pneg %p184
        %p472 = pneg %p181
        %p473 = pneg %p205
        %p474 = pneg %p202
        %p475 = pneg %p226
        %p476 = pneg %p223
        %p477 = pneg %p247
        %p478 = pneg %p244
        %p479 = pneg %p268
        %p480 = pneg %p265
        %p481 = pneg %p289
        %p482 = pneg %p286
        %p483 = pneg %p317
        %p484 = pneg %p314
        %s485 = sand.u32 %s304, 1
        %s486 = scalar_lea.sflag [#allocation3], %s485
        %s487 = sand.u32 %s304, 1
        %s488 = smul.addr %s487, 16
        %s489 = scalar_lea.vmem [#allocation2], %s488
        %p490 = pneg %p345
        %p491 = pneg %p342
        %s492 = sand.u32 %s332, 1
        %s493 = scalar_lea.sflag [#allocation5], %s492
        %s494 = sand.u32 %s332, 1
        %s495 = smul.addr %s494, 32
        %s496 = scalar_lea.vmem [#allocation4], %s495
        %s497 = smul.u32 16, %s35
        %p498 = scmp.lt.s32.totalorder %s34, 3
        %s499 = scalar_select %p498, %s34, 3
        %p500 = scmp.lt.s32.totalorder %s497, 31
        %s501 = scalar_select %p500, %s497, 31
        %s502 = smul.addr %s499, 32
        %s503 = sadd.s32 %s501, %s502
        %s504 = smul.addr %s503, 8
        %s505 = scalar_lea.vmem %s0, %s504
        %s506 = smul.u32 16, %s35
        %s507 = smul.u32 16, %s35
        %p508 = scmp.lt.s32.totalorder %s34, 3
        %s509 = scalar_select %p508, %s34, 3
        %p510 = scmp.lt.s32.totalorder %s507, 31
        %s511 = scalar_select %p510, %s507, 31
        %s512 = smul.addr %s509, 32
        %s513 = sadd.s32 %s511, %s512
        %s514 = smul.addr %s513, 8
        %s515 = scalar_lea.vmem %s1, %s514
        %s516 = smul.u32 16, %s35
        %s517 = smul.u32 16, %s35
        %p518 = scmp.lt.s32.totalorder %s34, 3
        %s519 = scalar_select %p518, %s34, 3
        %p520 = scmp.lt.s32.totalorder %s517, 31
        %s521 = scalar_select %p520, %s517, 31
        %s522 = smul.addr %s519, 32
        %s523 = sadd.s32 %s521, %s522
        %s524 = smul.addr %s523, 8
        %s525 = scalar_lea.vmem %s2, %s524
        %s526 = smul.u32 16, %s35
        %v527 = vld [vmem:[%s505] sm:$0xff]
        %v528 = vld [vmem:[%s505 + $0x8] sm:$0xff]
        %v529 = vld [vmem:[%s505 + $0x10] sm:$0xff]
        %v530 = vld [vmem:[%s505 + $0x18] sm:$0xff]
        %v531 = vld [vmem:[%s505 + $0x20] sm:$0xff]
        %v532 = vld [vmem:[%s505 + $0x28] sm:$0xff]
        %v533 = vld [vmem:[%s505 + $0x30] sm:$0xff]
        %v534 = vld [vmem:[%s505 + $0x38] sm:$0xff]
        %v535 = vld [vmem:[%s505 + $0x40] sm:$0xff]
        %v536 = vld [vmem:[%s505 + $0x48] sm:$0xff]
        %v537 = vld [vmem:[%s505 + $0x50] sm:$0xff]
        %v538 = vld [vmem:[%s505 + $0x58] sm:$0xff]
        %v539 = vld [vmem:[%s505 + $0x60] sm:$0xff]
        %v540 = vld [vmem:[%s505 + $0x68] sm:$0xff]
        %v541 = vld [vmem:[%s505 + $0x70] sm:$0xff]
        %v542 = vld [vmem:[%s505 + $0x78] sm:$0xff]
        %v543 = vld [vmem:[%s3] sm:$0xff]
        %v544 = vld [vmem:[%s3 + $0x8] sm:$0xff]
        %v545 = vld [vmem:[%s4] sm:$0xff]
        %v546 = vld [vmem:[%s4 + $0x8] sm:$0xff]
        %v547 = vld [vmem:[%s5] sm:$0xff]
        %v548 = vld [vmem:[%s5 + $0x8] sm:$0xff]
        %v549 = vld [vmem:[%s6] sm:$0xff]
        %v550 = vld [vmem:[%s6 + $0x8] sm:$0xff]
        %v551 = vld [vmem:[%s515] sm:$0xff]
        %v552 = vld [vmem:[%s515 + $0x8] sm:$0xff]
        %v553 = vld [vmem:[%s515 + $0x10] sm:$0xff]
        %v554 = vld [vmem:[%s515 + $0x18] sm:$0xff]
        %v555 = vld [vmem:[%s515 + $0x20] sm:$0xff]
        %v556 = vld [vmem:[%s515 + $0x28] sm:$0xff]
        %v557 = vld [vmem:[%s515 + $0x30] sm:$0xff]
        %v558 = vld [vmem:[%s515 + $0x38] sm:$0xff]
        %v559 = vld [vmem:[%s515 + $0x40] sm:$0xff]
        %v560 = vld [vmem:[%s515 + $0x48] sm:$0xff]
        %v561 = vld [vmem:[%s515 + $0x50] sm:$0xff]
        %v562 = vld [vmem:[%s515 + $0x58] sm:$0xff]
        %v563 = vld [vmem:[%s515 + $0x60] sm:$0xff]
        %v564 = vld [vmem:[%s515 + $0x68] sm:$0xff]
        %v565 = vld [vmem:[%s515 + $0x70] sm:$0xff]
        %v566 = vld [vmem:[%s515 + $0x78] sm:$0xff]
        %567 = vxpose.xlu0.b32.start [1/16] %v551, 128
        %568 = vxpose.xlu0.b32.cont [2/16] %v552, 128
        %569 = vxpose.xlu0.b32.cont [3/16] %v553, 128
        %570 = vxpose.xlu0.b32.cont [4/16] %v554, 128
        %571 = vxpose.xlu0.b32.cont [5/16] %v555, 128
        %572 = vxpose.xlu0.b32.cont [6/16] %v556, 128
        %573 = vxpose.xlu0.b32.cont [7/16] %v557, 128
        %574 = vxpose.xlu0.b32.cont [8/16] %v558, 128
        %575 = vxpose.xlu0.b32.cont [9/16] %v559, 128
        %576 = vxpose.xlu0.b32.cont [10/16] %v560, 128
        %577 = vxpose.xlu0.b32.cont [11/16] %v561, 128
        %578 = vxpose.xlu0.b32.cont [12/16] %v562, 128
        %579 = vxpose.xlu0.b32.cont [13/16] %v563, 128
        %580 = vxpose.xlu0.b32.cont [14/16] %v564, 128
        %581 = vxpose.xlu0.b32.cont [15/16] %v565, 128
        %582 = vxpose.xlu0.b32.end [16/16] %v566, 128
        %v583 = vpop.trf.xlu0
        %v584 = vpop.trf.xlu0
        %v585 = vpop.trf.xlu0
        %v586 = vpop.trf.xlu0
        %v587 = vpop.trf.xlu0
        %v588 = vpop.trf.xlu0
        %v589 = vpop.trf.xlu0
        %v590 = vpop.trf.xlu0
        %v591 = vpop.trf.xlu0
        %v592 = vpop.trf.xlu0
        %v593 = vpop.trf.xlu0
        %v594 = vpop.trf.xlu0
        %v595 = vpop.trf.xlu0
        %v596 = vpop.trf.xlu0
        %v597 = vpop.trf.xlu0
        %v598 = vpop.trf.xlu0
        %600 = vset.pattern.permute.xlu0 0
        %601 = vperm.xlu0 %600, %v545
        %v602 = vpop.permute.xlu0 %601
        %605 = vset.pattern.permute.xlu0 0
        %606 = vperm.xlu0 %605, %v546
        %v607 = vpop.permute.xlu0 %606
        %vm609 = vcmask 64512
        %v611 = vsel %vm609, %v543, 0
        %v614 = vsel %vm609, %v544, 0
        %v617 = vsel %vm609, %v527, 0
        %v620 = vsel %vm609, %v528, 0
        %v623 = vsel %vm609, %v529, 0
        %v626 = vsel %vm609, %v530, 0
        %v629 = vsel %vm609, %v531, 0
        %v632 = vsel %vm609, %v532, 0
        %v635 = vsel %vm609, %v533, 0
        %v638 = vsel %vm609, %v534, 0
        %v641 = vsel %vm609, %v535, 0
        %v644 = vsel %vm609, %v536, 0
        %v647 = vsel %vm609, %v537, 0
        %v650 = vsel %vm609, %v538, 0
        %v653 = vsel %vm609, %v539, 0
        %v656 = vsel %vm609, %v540, 0
        %v659 = vsel %vm609, %v541, 0
        %v662 = vsel %vm609, %v542, 0
        %664 = vmatprep.subr.mxu0 0.0
        %665 = vmatpush1.xpose.msra.mxu0 %v662
        %666 = vmatprep.subr.mxu0 0.0
        %667 = vmatpush1.xpose.msra.mxu0 %v659
        %668 = vmatprep.subr.mxu0 0.0
        %669 = vmatpush1.xpose.msra.mxu0 %v656
        %670 = vmatprep.subr.mxu0 0.0
        %671 = vmatpush1.xpose.msra.mxu0 %v653
        %672 = vmatprep.subr.mxu0 0.0
        %673 = vmatpush1.xpose.msra.mxu0 %v650
        %674 = vmatprep.subr.mxu0 0.0
        %675 = vmatpush1.xpose.msra.mxu0 %v647
        %676 = vmatprep.subr.mxu0 0.0
        %677 = vmatpush1.xpose.msra.mxu0 %v644
        %678 = vmatprep.subr.mxu0 0.0
        %679 = vmatpush1.xpose.msra.mxu0 %v641
        %680 = vmatprep.subr.mxu0 0.0
        %681 = vmatpush1.xpose.msra.mxu0 %v638
        %682 = vmatprep.subr.mxu0 0.0
        %683 = vmatpush1.xpose.msra.mxu0 %v635
        %684 = vmatprep.subr.mxu0 0.0
        %685 = vmatpush1.xpose.msra.mxu0 %v632
        %686 = vmatprep.subr.mxu0 0.0
        %687 = vmatpush1.xpose.msra.mxu0 %v629
        %688 = vmatprep.subr.mxu0 0.0
        %689 = vmatpush1.xpose.msra.mxu0 %v626
        %690 = vmatprep.subr.mxu0 0.0
        %691 = vmatpush1.xpose.msra.mxu0 %v623
        %692 = vmatprep.subr.mxu0 0.0
        %693 = vmatpush1.xpose.msra.mxu0 %v620
        %694 = vmatprep.subr.mxu0 0.0
        %695 = vmatpush1.xpose.msra.mxu0 %v617
        %696 = vmatprep.subr.mxu0 0.0
        %697 = vmatpush2.xpose.msra.mxu0 0.0
        %698 = vmatprep.subr.mxu0 0.0
        %699 = vmatpush2.xpose.msra.mxu0 0.0
        %700 = vmatprep.subr.mxu0 0.0
        %701 = vmatpush2.xpose.msra.mxu0 0.0
        %702 = vmatprep.subr.mxu0 0.0
        %703 = vmatpush2.xpose.msra.mxu0 0.0
        %704 = vmatprep.subr.mxu0 0.0
        %705 = vmatpush2.xpose.msra.mxu0 0.0
        %706 = vmatprep.subr.mxu0 0.0
        %707 = vmatpush2.xpose.msra.mxu0 0.0
        %708 = vmatprep.subr.mxu0 0.0
        %709 = vmatpush2.xpose.msra.mxu0 0.0
        %710 = vmatprep.subr.mxu0 0.0
        %711 = vmatpush2.xpose.msra.mxu0 0.0
        %712 = vmatprep.subr.mxu0 0.0
        %713 = vmatpush2.xpose.msra.mxu0 0.0
        %714 = vmatprep.subr.mxu0 0.0
        %715 = vmatpush2.xpose.msra.mxu0 0.0
        %716 = vmatprep.subr.mxu0 0.0
        %717 = vmatpush2.xpose.msra.mxu0 0.0
        %718 = vmatprep.subr.mxu0 0.0
        %719 = vmatpush2.xpose.msra.mxu0 0.0
        %720 = vmatprep.subr.mxu0 0.0
        %721 = vmatpush2.xpose.msra.mxu0 0.0
        %722 = vmatprep.subr.mxu0 0.0
        %723 = vmatpush2.xpose.msra.mxu0 0.0
        %724 = vmatprep.subr.mxu0 0.0
        %725 = vmatpush2.xpose.msra.mxu0 0.0
        %726 = vmatprep.subr.mxu0 0.0
        %727 = vmatpush2.xpose.msra.mxu0 0.0
        %728 = vmatprep.mubr.f32.mxu0 0.0
        %729 = vmatmul.mubr.f32.gmra.mxu0 %v611
        %v730 = vpop.f32.mrf.mxu0
        %v731 = vadd.f32 %v602, %v730
        %v732 = vpop.f32.mrf.mxu0
        %733 = vmatprep.mubr.f32.mxu0 0.0
        %734 = vmatmul.mubr.f32.gmra.mxu0 %v614
        %v735 = vpop.f32.mrf.mxu0
        %v736 = vadd.f32 %v607, %v735
        %v737 = vpop.f32.mrf.mxu0
        %738 = vdwg.mxu0
        %v739 = vmul.f32 %v731, 0.5
        %v740 = vmul.f32 %v736, 0.5
        %v741 = vmul.f32 %v731, 0.70710677
        %v742 = vmul.f32 %v736, 0.70710677
        %v743 = vand.u32 2147483647, %v741
        %v744 = vand.u32 2147483647, %v742
        %v745 = vmul.f32 %v743, 0.3275911
        %v746 = vmul.f32 %v744, 0.3275911
        %v747 = vadd.f32 %v745, 1.0
        %v748 = vadd.f32 %v746, 1.0
        %v749 = vrcp.pop %v747
        %v750 = vmul.f32 1.0, %v749
        %v751 = vrcp.pop %v748
        %v752 = vmul.f32 1.0, %v751
        %v753 = vmul.f32 %v750, 1.0614054
        %v754 = vmul.f32 %v752, 1.0614054
        %v755 = vadd.f32 %v753, -1.4531521
        %v756 = vadd.f32 %v754, -1.4531521
        %v757 = vmul.f32 %v750, %v755
        %v758 = vmul.f32 %v752, %v756
        %v759 = vadd.f32 %v757, 1.4214138
        %v760 = vadd.f32 %v758, 1.4214138
        %v761 = vmul.f32 %v750, %v759
        %v762 = vmul.f32 %v752, %v760
        %v763 = vadd.f32 %v761, -0.28449672
        %v764 = vadd.f32 %v762, -0.28449672
        %v765 = vmul.f32 %v750, %v763
        %v766 = vmul.f32 %v752, %v764
        %v767 = vadd.f32 %v765, 0.2548296
        %v768 = vadd.f32 %v766, 0.2548296
        %v769 = vmul.f32 %v750, %v767
        %v770 = vmul.f32 %v752, %v768
        %v771 = vsub.f32 0.0, %v743
        %v772 = vsub.f32 0.0, %v744
        %v773 = vmul.f32 %v771, %v743
        %v774 = vmul.f32 %v772, %v744
        %v775 = vmul.f32 %v773, 1.442695
        %v776 = vpow.pop %v775
        %v777 = vmul.f32 %v774, 1.442695
        %v778 = vpow.pop %v777
        %v779 = vmul.f32 %v769, %v776
        %v780 = vmul.f32 %v770, %v778
        %v781 = vsub.f32 1.0, %v779
        %v782 = vsub.f32 1.0, %v780
        %vm783 = vcmp.lt.f32.partialorder %v741, 0.0
        %vm784 = vcmp.lt.f32.partialorder %v742, 0.0
        %v785 = vsub.f32 0.0, %v781
        %v786 = vsub.f32 0.0, %v782
        %v787 = vsel %vm783, %v785, %v781
        %v788 = vsel %vm784, %v786, %v782
        %v789 = vadd.f32 %v787, 1.0
        %v790 = vadd.f32 %v788, 1.0
        %v791 = vmul.f32 %v739, %v789
        %v792 = vmul.f32 %v740, %v790
        %794 = vset.pattern.permute.xlu0 0
        %795 = vperm.xlu0 %794, %v549
        %v796 = vpop.permute.xlu0 %795
        %799 = vset.pattern.permute.xlu0 0
        %800 = vperm.xlu0 %799, %v550
        %v801 = vpop.permute.xlu0 %800
        %vm803 = vcmask 130048
        %v805 = vsel %vm803, %v547, 0
        %v808 = vsel %vm803, %v548, 0
        %810 = vmatprep.subr.mxu0 0.0
        %811 = vmatpush1.msra.mxu0 0.0
        %812 = vmatprep.subr.mxu0 0.0
        %813 = vmatpush1.msra.mxu0 0.0
        %814 = vmatprep.subr.mxu0 0.0
        %815 = vmatpush1.msra.mxu0 0.0
        %816 = vmatprep.subr.mxu0 0.0
        %817 = vmatpush1.msra.mxu0 0.0
        %818 = vmatprep.subr.mxu0 0.0
        %819 = vmatpush1.msra.mxu0 0.0
        %820 = vmatprep.subr.mxu0 0.0
        %821 = vmatpush1.msra.mxu0 0.0
        %822 = vmatprep.subr.mxu0 0.0
        %823 = vmatpush1.msra.mxu0 0.0
        %824 = vmatprep.subr.mxu0 0.0
        %825 = vmatpush1.msra.mxu0 0.0
        %826 = vmatprep.subr.mxu0 0.0
        %827 = vmatpush1.msra.mxu0 0.0
        %828 = vmatprep.subr.mxu0 0.0
        %829 = vmatpush1.msra.mxu0 0.0
        %830 = vmatprep.subr.mxu0 0.0
        %831 = vmatpush1.msra.mxu0 0.0
        %832 = vmatprep.subr.mxu0 0.0
        %833 = vmatpush1.msra.mxu0 0.0
        %834 = vmatprep.subr.mxu0 0.0
        %835 = vmatpush1.msra.mxu0 0.0
        %836 = vmatprep.subr.mxu0 0.0
        %837 = vmatpush1.msra.mxu0 0.0
        %838 = vmatprep.subr.mxu0 0.0
        %839 = vmatpush1.msra.mxu0 %v792
        %840 = vmatprep.subr.mxu0 0.0
        %841 = vmatpush1.msra.mxu0 %v791
        %842 = vmatprep.subr.mxu0 0.0
        %843 = vmatpush2.msra.mxu0 0.0
        %844 = vmatprep.subr.mxu0 0.0
        %845 = vmatpush2.msra.mxu0 0.0
        %846 = vmatprep.subr.mxu0 0.0
        %847 = vmatpush2.msra.mxu0 0.0
        %848 = vmatprep.subr.mxu0 0.0
        %849 = vmatpush2.msra.mxu0 0.0
        %850 = vmatprep.subr.mxu0 0.0
        %851 = vmatpush2.msra.mxu0 0.0
        %852 = vmatprep.subr.mxu0 0.0
        %853 = vmatpush2.msra.mxu0 0.0
        %854 = vmatprep.subr.mxu0 0.0
        %855 = vmatpush2.msra.mxu0 0.0
        %856 = vmatprep.subr.mxu0 0.0
        %857 = vmatpush2.msra.mxu0 0.0
        %858 = vmatprep.subr.mxu0 0.0
        %859 = vmatpush2.msra.mxu0 0.0
        %860 = vmatprep.subr.mxu0 0.0
        %861 = vmatpush2.msra.mxu0 0.0
        %862 = vmatprep.subr.mxu0 0.0
        %863 = vmatpush2.msra.mxu0 0.0
        %864 = vmatprep.subr.mxu0 0.0
        %865 = vmatpush2.msra.mxu0 0.0
        %866 = vmatprep.subr.mxu0 0.0
        %867 = vmatpush2.msra.mxu0 0.0
        %868 = vmatprep.subr.mxu0 0.0
        %869 = vmatpush2.msra.mxu0 0.0
        %870 = vmatprep.subr.mxu0 0.0
        %871 = vmatpush2.msra.mxu0 0.0
        %872 = vmatprep.subr.mxu0 0.0
        %873 = vmatpush2.msra.mxu0 0.0
        %874 = vmatprep.mubr.f32.mxu0 0.0
        %875 = vmatmul.mubr.f32.gmra.mxu0 %v805
        %v876 = vpop.f32.mrf.mxu0
        %v877 = vadd.f32 %v796, %v876
        %v878 = vpop.f32.mrf.mxu0
        %879 = vmatprep.mubr.f32.mxu0 0.0
        %880 = vmatmul.mubr.f32.gmra.mxu0 %v808
        %v881 = vpop.f32.mrf.mxu0
        %v882 = vadd.f32 %v801, %v881
        %v883 = vpop.f32.mrf.mxu0
        %884 = vdwg.mxu0
        %v885 = vadd.f32 %v583, %v877
        %v886 = vadd.f32 %v584, %v882
        %887 = vst [vmem:[%s489] sm:$0xff] %v885
        %888 = vst [vmem:[%s489 + $0x8] sm:$0xff] %v886
        %v889 = vld [vmem:[%s7] sm:$0xff]
        %v890 = vld [vmem:[%s7 + $0x8] sm:$0xff]
        %v891 = vld [vmem:[%s7 + $0x10] sm:$0xff]
        %v892 = vld [vmem:[%s7 + $0x18] sm:$0xff]
        %v893 = vld [vmem:[%s8] sm:$0xff]
        %v894 = vld [vmem:[%s8 + $0x8] sm:$0xff]
        %v895 = vld [vmem:[%s8 + $0x10] sm:$0xff]
        %v896 = vld [vmem:[%s8 + $0x18] sm:$0xff]
        %v897 = vld [vmem:[%s9] sm:$0xff]
        %v898 = vld [vmem:[%s9 + $0x8] sm:$0xff]
        %v899 = vld [vmem:[%s9 + $0x10] sm:$0xff]
        %v900 = vld [vmem:[%s9 + $0x18] sm:$0xff]
        %v901 = vld [vmem:[%s10] sm:$0xff]
        %v902 = vld [vmem:[%s10 + $0x8] sm:$0xff]
        %v903 = vld [vmem:[%s10 + $0x10] sm:$0xff]
        %v904 = vld [vmem:[%s10 + $0x18] sm:$0xff]
        %v905 = vld [vmem:[%s525] sm:$0xff]
        %v906 = vld [vmem:[%s525 + $0x8] sm:$0xff]
        %v907 = vld [vmem:[%s525 + $0x10] sm:$0xff]
        %v908 = vld [vmem:[%s525 + $0x18] sm:$0xff]
        %v909 = vld [vmem:[%s525 + $0x20] sm:$0xff]
        %v910 = vld [vmem:[%s525 + $0x28] sm:$0xff]
        %v911 = vld [vmem:[%s525 + $0x30] sm:$0xff]
        %v912 = vld [vmem:[%s525 + $0x38] sm:$0xff]
        %v913 = vld [vmem:[%s525 + $0x40] sm:$0xff]
        %v914 = vld [vmem:[%s525 + $0x48] sm:$0xff]
        %v915 = vld [vmem:[%s525 + $0x50] sm:$0xff]
        %v916 = vld [vmem:[%s525 + $0x58] sm:$0xff]
        %v917 = vld [vmem:[%s525 + $0x60] sm:$0xff]
        %v918 = vld [vmem:[%s525 + $0x68] sm:$0xff]
        %v919 = vld [vmem:[%s525 + $0x70] sm:$0xff]
        %v920 = vld [vmem:[%s525 + $0x78] sm:$0xff]
        %921 = vxpose.xlu0.b32.start [1/16] %v905, 128
        %922 = vxpose.xlu0.b32.cont [2/16] %v906, 128
        %923 = vxpose.xlu0.b32.cont [3/16] %v907, 128
        %924 = vxpose.xlu0.b32.cont [4/16] %v908, 128
        %925 = vxpose.xlu0.b32.cont [5/16] %v909, 128
        %926 = vxpose.xlu0.b32.cont [6/16] %v910, 128
        %927 = vxpose.xlu0.b32.cont [7/16] %v911, 128
        %928 = vxpose.xlu0.b32.cont [8/16] %v912, 128
        %929 = vxpose.xlu0.b32.cont [9/16] %v913, 128
        %930 = vxpose.xlu0.b32.cont [10/16] %v914, 128
        %931 = vxpose.xlu0.b32.cont [11/16] %v915, 128
        %932 = vxpose.xlu0.b32.cont [12/16] %v916, 128
        %933 = vxpose.xlu0.b32.cont [13/16] %v917, 128
        %934 = vxpose.xlu0.b32.cont [14/16] %v918, 128
        %935 = vxpose.xlu0.b32.cont [15/16] %v919, 128
        %936 = vxpose.xlu0.b32.end [16/16] %v920, 128
        %v937 = vpop.trf.xlu0
        %v938 = vpop.trf.xlu0
        %v939 = vpop.trf.xlu0
        %v940 = vpop.trf.xlu0
        %v941 = vpop.trf.xlu0
        %v942 = vpop.trf.xlu0
        %v943 = vpop.trf.xlu0
        %v944 = vpop.trf.xlu0
        %v945 = vpop.trf.xlu0
        %v946 = vpop.trf.xlu0
        %v947 = vpop.trf.xlu0
        %v948 = vpop.trf.xlu0
        %v949 = vpop.trf.xlu0
        %v950 = vpop.trf.xlu0
        %v951 = vpop.trf.xlu0
        %v952 = vpop.trf.xlu0
        %954 = vset.pattern.permute.xlu0 0
        %955 = vperm.xlu0 %954, %v893
        %v956 = vpop.permute.xlu0 %955
        %959 = vset.pattern.permute.xlu0 0
        %960 = vperm.xlu0 %959, %v894
        %v961 = vpop.permute.xlu0 %960
        %964 = vset.pattern.permute.xlu0 0
        %965 = vperm.xlu0 %964, %v895
        %v966 = vpop.permute.xlu0 %965
        %969 = vset.pattern.permute.xlu0 0
        %970 = vperm.xlu0 %969, %v896
        %v971 = vpop.permute.xlu0 %970
        %v974 = vsel %vm803, %v889, 0
        %v977 = vsel %vm803, %v890, 0
        %v980 = vsel %vm803, %v891, 0
        %v983 = vsel %vm803, %v892, 0
        %985 = vmatprep.subr.mxu0 0.0
        %986 = vmatpush1.msra.mxu0 0.0
        %987 = vmatprep.subr.mxu0 0.0
        %988 = vmatpush1.msra.mxu0 0.0
        %989 = vmatprep.subr.mxu0 0.0
        %990 = vmatpush1.msra.mxu0 0.0
        %991 = vmatprep.subr.mxu0 0.0
        %992 = vmatpush1.msra.mxu0 0.0
        %993 = vmatprep.subr.mxu0 0.0
        %994 = vmatpush1.msra.mxu0 0.0
        %995 = vmatprep.subr.mxu0 0.0
        %996 = vmatpush1.msra.mxu0 0.0
        %997 = vmatprep.subr.mxu0 0.0
        %998 = vmatpush1.msra.mxu0 0.0
        %999 = vmatprep.subr.mxu0 0.0
        %1000 = vmatpush1.msra.mxu0 0.0
        %1001 = vmatprep.subr.mxu0 0.0
        %1002 = vmatpush1.msra.mxu0 0.0
        %1003 = vmatprep.subr.mxu0 0.0
        %1004 = vmatpush1.msra.mxu0 0.0
        %1005 = vmatprep.subr.mxu0 0.0
        %1006 = vmatpush1.msra.mxu0 0.0
        %1007 = vmatprep.subr.mxu0 0.0
        %1008 = vmatpush1.msra.mxu0 0.0
        %1009 = vmatprep.subr.mxu0 0.0
        %1010 = vmatpush1.msra.mxu0 0.0
        %1011 = vmatprep.subr.mxu0 0.0
        %1012 = vmatpush1.msra.mxu0 0.0
        %1013 = vmatprep.subr.mxu0 0.0
        %1014 = vmatpush1.msra.mxu0 %v886
        %1015 = vmatprep.subr.mxu0 0.0
        %1016 = vmatpush1.msra.mxu0 %v885
        %1017 = vmatprep.subr.mxu0 0.0
        %1018 = vmatpush2.msra.mxu0 0.0
        %1019 = vmatprep.subr.mxu0 0.0
        %1020 = vmatpush2.msra.mxu0 0.0
        %1021 = vmatprep.subr.mxu0 0.0
        %1022 = vmatpush2.msra.mxu0 0.0
        %1023 = vmatprep.subr.mxu0 0.0
        %1024 = vmatpush2.msra.mxu0 0.0
        %1025 = vmatprep.subr.mxu0 0.0
        %1026 = vmatpush2.msra.mxu0 0.0
        %1027 = vmatprep.subr.mxu0 0.0
        %1028 = vmatpush2.msra.mxu0 0.0
        %1029 = vmatprep.subr.mxu0 0.0
        %1030 = vmatpush2.msra.mxu0 0.0
        %1031 = vmatprep.subr.mxu0 0.0
        %1032 = vmatpush2.msra.mxu0 0.0
        %1033 = vmatprep.subr.mxu0 0.0
        %1034 = vmatpush2.msra.mxu0 0.0
        %1035 = vmatprep.subr.mxu0 0.0
        %1036 = vmatpush2.msra.mxu0 0.0
        %1037 = vmatprep.subr.mxu0 0.0
        %1038 = vmatpush2.msra.mxu0 0.0
        %1039 = vmatprep.subr.mxu0 0.0
        %1040 = vmatpush2.msra.mxu0 0.0
        %1041 = vmatprep.subr.mxu0 0.0
        %1042 = vmatpush2.msra.mxu0 0.0
        %1043 = vmatprep.subr.mxu0 0.0
        %1044 = vmatpush2.msra.mxu0 0.0
        %1045 = vmatprep.subr.mxu0 0.0
        %1046 = vmatpush2.msra.mxu0 0.0
        %1047 = vmatprep.subr.mxu0 0.0
        %1048 = vmatpush2.msra.mxu0 0.0
        %1049 = vmatprep.mubr.f32.mxu0 0.0
        %1050 = vmatmul.mubr.f32.gmra.mxu0 %v974
        %v1051 = vpop.f32.mrf.mxu0
        %v1052 = vadd.f32 %v956, %v1051
        %v1053 = vpop.f32.mrf.mxu0
        %1054 = vmatprep.mubr.f32.mxu0 0.0
        %1055 = vmatmul.mubr.f32.gmra.mxu0 %v977
        %v1056 = vpop.f32.mrf.mxu0
        %v1057 = vadd.f32 %v961, %v1056
        %v1058 = vpop.f32.mrf.mxu0
        %1059 = vmatprep.mubr.f32.mxu0 0.0
        %1060 = vmatmul.mubr.f32.gmra.mxu0 %v980
        %v1061 = vpop.f32.mrf.mxu0
        %v1062 = vadd.f32 %v966, %v1061
        %v1063 = vpop.f32.mrf.mxu0
        %1064 = vmatprep.mubr.f32.mxu0 0.0
        %1065 = vmatmul.mubr.f32.gmra.mxu0 %v983
        %v1066 = vpop.f32.mrf.mxu0
        %v1067 = vadd.f32 %v971, %v1066
        %v1068 = vpop.f32.mrf.mxu0
        %1069 = vdwg.mxu0
        %v1070 = vmul.f32 %v1052, 0.5
        %v1071 = vmul.f32 %v1057, 0.5
        %v1072 = vmul.f32 %v1062, 0.5
        %v1073 = vmul.f32 %v1067, 0.5
        %v1074 = vmul.f32 %v1052, 0.70710677
        %v1075 = vmul.f32 %v1057, 0.70710677
        %v1076 = vmul.f32 %v1062, 0.70710677
        %v1077 = vmul.f32 %v1067, 0.70710677
        %v1078 = vand.u32 2147483647, %v1074
        %v1079 = vand.u32 2147483647, %v1075
        %v1080 = vand.u32 2147483647, %v1076
        %v1081 = vand.u32 2147483647, %v1077
        %v1082 = vmul.f32 %v1078, 0.3275911
        %v1083 = vmul.f32 %v1079, 0.3275911
        %v1084 = vmul.f32 %v1080, 0.3275911
        %v1085 = vmul.f32 %v1081, 0.3275911
        %v1086 = vadd.f32 %v1082, 1.0
        %v1087 = vadd.f32 %v1083, 1.0
        %v1088 = vadd.f32 %v1084, 1.0
        %v1089 = vadd.f32 %v1085, 1.0
        %v1090 = vrcp.pop %v1086
        %v1091 = vmul.f32 1.0, %v1090
        %v1092 = vrcp.pop %v1087
        %v1093 = vmul.f32 1.0, %v1092
        %v1094 = vrcp.pop %v1088
        %v1095 = vmul.f32 1.0, %v1094
        %v1096 = vrcp.pop %v1089
        %v1097 = vmul.f32 1.0, %v1096
        %v1098 = vmul.f32 %v1091, 1.0614054
        %v1099 = vmul.f32 %v1093, 1.0614054
        %v1100 = vmul.f32 %v1095, 1.0614054
        %v1101 = vmul.f32 %v1097, 1.0614054
        %v1102 = vadd.f32 %v1098, -1.4531521
        %v1103 = vadd.f32 %v1099, -1.4531521
        %v1104 = vadd.f32 %v1100, -1.4531521
        %v1105 = vadd.f32 %v1101, -1.4531521
        %v1106 = vmul.f32 %v1091, %v1102
        %v1107 = vmul.f32 %v1093, %v1103
        %v1108 = vmul.f32 %v1095, %v1104
        %v1109 = vmul.f32 %v1097, %v1105
        %v1110 = vadd.f32 %v1106, 1.4214138
        %v1111 = vadd.f32 %v1107, 1.4214138
        %v1112 = vadd.f32 %v1108, 1.4214138
        %v1113 = vadd.f32 %v1109, 1.4214138
        %v1114 = vmul.f32 %v1091, %v1110
        %v1115 = vmul.f32 %v1093, %v1111
        %v1116 = vmul.f32 %v1095, %v1112
        %v1117 = vmul.f32 %v1097, %v1113
        %v1118 = vadd.f32 %v1114, -0.28449672
        %v1119 = vadd.f32 %v1115, -0.28449672
        %v1120 = vadd.f32 %v1116, -0.28449672
        %v1121 = vadd.f32 %v1117, -0.28449672
        %v1122 = vmul.f32 %v1091, %v1118
        %v1123 = vmul.f32 %v1093, %v1119
        %v1124 = vmul.f32 %v1095, %v1120
        %v1125 = vmul.f32 %v1097, %v1121
        %v1126 = vadd.f32 %v1122, 0.2548296
        %v1127 = vadd.f32 %v1123, 0.2548296
        %v1128 = vadd.f32 %v1124, 0.2548296
        %v1129 = vadd.f32 %v1125, 0.2548296
        %v1130 = vmul.f32 %v1091, %v1126
        %v1131 = vmul.f32 %v1093, %v1127
        %v1132 = vmul.f32 %v1095, %v1128
        %v1133 = vmul.f32 %v1097, %v1129
        %v1134 = vsub.f32 0.0, %v1078
        %v1135 = vsub.f32 0.0, %v1079
        %v1136 = vsub.f32 0.0, %v1080
        %v1137 = vsub.f32 0.0, %v1081
        %v1138 = vmul.f32 %v1134, %v1078
        %v1139 = vmul.f32 %v1135, %v1079
        %v1140 = vmul.f32 %v1136, %v1080
        %v1141 = vmul.f32 %v1137, %v1081
        %v1142 = vmul.f32 %v1138, 1.442695
        %v1143 = vpow.pop %v1142
        %v1144 = vmul.f32 %v1139, 1.442695
        %v1145 = vpow.pop %v1144
        %v1146 = vmul.f32 %v1140, 1.442695
        %v1147 = vpow.pop %v1146
        %v1148 = vmul.f32 %v1141, 1.442695
        %v1149 = vpow.pop %v1148
        %v1150 = vmul.f32 %v1130, %v1143
        %v1151 = vmul.f32 %v1131, %v1145
        %v1152 = vmul.f32 %v1132, %v1147
        %v1153 = vmul.f32 %v1133, %v1149
        %v1154 = vsub.f32 1.0, %v1150
        %v1155 = vsub.f32 1.0, %v1151
        %v1156 = vsub.f32 1.0, %v1152
        %v1157 = vsub.f32 1.0, %v1153
        %vm1158 = vcmp.lt.f32.partialorder %v1074, 0.0
        %vm1159 = vcmp.lt.f32.partialorder %v1075, 0.0
        %vm1160 = vcmp.lt.f32.partialorder %v1076, 0.0
        %vm1161 = vcmp.lt.f32.partialorder %v1077, 0.0
        %v1162 = vsub.f32 0.0, %v1154
        %v1163 = vsub.f32 0.0, %v1155
        %v1164 = vsub.f32 0.0, %v1156
        %v1165 = vsub.f32 0.0, %v1157
        %v1166 = vsel %vm1158, %v1162, %v1154
        %v1167 = vsel %vm1159, %v1163, %v1155
        %v1168 = vsel %vm1160, %v1164, %v1156
        %v1169 = vsel %vm1161, %v1165, %v1157
        %v1170 = vadd.f32 %v1166, 1.0
        %v1171 = vadd.f32 %v1167, 1.0
        %v1172 = vadd.f32 %v1168, 1.0
        %v1173 = vadd.f32 %v1169, 1.0
        %v1174 = vmul.f32 %v1070, %v1170
        %v1175 = vmul.f32 %v1071, %v1171
        %v1176 = vmul.f32 %v1072, %v1172
        %v1177 = vmul.f32 %v1073, %v1173
        %1179 = vset.pattern.permute.xlu0 0
        %1180 = vperm.xlu0 %1179, %v901
        %v1181 = vpop.permute.xlu0 %1180
        %1184 = vset.pattern.permute.xlu0 0
        %1185 = vperm.xlu0 %1184, %v902
        %v1186 = vpop.permute.xlu0 %1185
        %1189 = vset.pattern.permute.xlu0 0
        %1190 = vperm.xlu0 %1189, %v903
        %v1191 = vpop.permute.xlu0 %1190
        %1194 = vset.pattern.permute.xlu0 0
        %1195 = vperm.xlu0 %1194, %v904
        %v1196 = vpop.permute.xlu0 %1195
        %vm1198 = vcmask 261120
        %v1200 = vsel %vm1198, %v897, 0
        %v1203 = vsel %vm1198, %v898, 0
        %v1206 = vsel %vm1198, %v899, 0
        %v1209 = vsel %vm1198, %v900, 0
        %1211 = vmatprep.subr.mxu0 0.0
        %1212 = vmatpush1.msra.mxu0 0.0
        %1213 = vmatprep.subr.mxu0 0.0
        %1214 = vmatpush1.msra.mxu0 0.0
        %1215 = vmatprep.subr.mxu0 0.0
        %1216 = vmatpush1.msra.mxu0 0.0
        %1217 = vmatprep.subr.mxu0 0.0
        %1218 = vmatpush1.msra.mxu0 0.0
        %1219 = vmatprep.subr.mxu0 0.0
        %1220 = vmatpush1.msra.mxu0 0.0
        %1221 = vmatprep.subr.mxu0 0.0
        %1222 = vmatpush1.msra.mxu0 0.0
        %1223 = vmatprep.subr.mxu0 0.0
        %1224 = vmatpush1.msra.mxu0 0.0
        %1225 = vmatprep.subr.mxu0 0.0
        %1226 = vmatpush1.msra.mxu0 0.0
        %1227 = vmatprep.subr.mxu0 0.0
        %1228 = vmatpush1.msra.mxu0 0.0
        %1229 = vmatprep.subr.mxu0 0.0
        %1230 = vmatpush1.msra.mxu0 0.0
        %1231 = vmatprep.subr.mxu0 0.0
        %1232 = vmatpush1.msra.mxu0 0.0
        %1233 = vmatprep.subr.mxu0 0.0
        %1234 = vmatpush1.msra.mxu0 0.0
        %1235 = vmatprep.subr.mxu0 0.0
        %1236 = vmatpush1.msra.mxu0 %v1177
        %1237 = vmatprep.subr.mxu0 0.0
        %1238 = vmatpush1.msra.mxu0 %v1176
        %1239 = vmatprep.subr.mxu0 0.0
        %1240 = vmatpush1.msra.mxu0 %v1175
        %1241 = vmatprep.subr.mxu0 0.0
        %1242 = vmatpush1.msra.mxu0 %v1174
        %1243 = vmatprep.subr.mxu0 0.0
        %1244 = vmatpush2.msra.mxu0 0.0
        %1245 = vmatprep.subr.mxu0 0.0
        %1246 = vmatpush2.msra.mxu0 0.0
        %1247 = vmatprep.subr.mxu0 0.0
        %1248 = vmatpush2.msra.mxu0 0.0
        %1249 = vmatprep.subr.mxu0 0.0
        %1250 = vmatpush2.msra.mxu0 0.0
        %1251 = vmatprep.subr.mxu0 0.0
        %1252 = vmatpush2.msra.mxu0 0.0
        %1253 = vmatprep.subr.mxu0 0.0
        %1254 = vmatpush2.msra.mxu0 0.0
        %1255 = vmatprep.subr.mxu0 0.0
        %1256 = vmatpush2.msra.mxu0 0.0
        %1257 = vmatprep.subr.mxu0 0.0
        %1258 = vmatpush2.msra.mxu0 0.0
        %1259 = vmatprep.subr.mxu0 0.0
        %1260 = vmatpush2.msra.mxu0 0.0
        %1261 = vmatprep.subr.mxu0 0.0
        %1262 = vmatpush2.msra.mxu0 0.0
        %1263 = vmatprep.subr.mxu0 0.0
        %1264 = vmatpush2.msra.mxu0 0.0
        %1265 = vmatprep.subr.mxu0 0.0
        %1266 = vmatpush2.msra.mxu0 0.0
        %1267 = vmatprep.subr.mxu0 0.0
        %1268 = vmatpush2.msra.mxu0 0.0
        %1269 = vmatprep.subr.mxu0 0.0
        %1270 = vmatpush2.msra.mxu0 0.0
        %1271 = vmatprep.subr.mxu0 0.0
        %1272 = vmatpush2.msra.mxu0 0.0
        %1273 = vmatprep.subr.mxu0 0.0
        %1274 = vmatpush2.msra.mxu0 0.0
        %1275 = vmatprep.mubr.f32.mxu0 0.0
        %1276 = vmatmul.mubr.f32.gmra.mxu0 %v1200
        %v1277 = vpop.f32.mrf.mxu0
        %v1278 = vadd.f32 %v1181, %v1277
        %v1279 = vpop.f32.mrf.mxu0
        %1280 = vmatprep.mubr.f32.mxu0 0.0
        %1281 = vmatmul.mubr.f32.gmra.mxu0 %v1203
        %v1282 = vpop.f32.mrf.mxu0
        %v1283 = vadd.f32 %v1186, %v1282
        %v1284 = vpop.f32.mrf.mxu0
        %1285 = vmatprep.mubr.f32.mxu0 0.0
        %1286 = vmatmul.mubr.f32.gmra.mxu0 %v1206
        %v1287 = vpop.f32.mrf.mxu0
        %v1288 = vadd.f32 %v1191, %v1287
        %v1289 = vpop.f32.mrf.mxu0
        %1290 = vmatprep.mubr.f32.mxu0 0.0
        %1291 = vmatmul.mubr.f32.gmra.mxu0 %v1209
        %v1292 = vpop.f32.mrf.mxu0
        %v1293 = vadd.f32 %v1196, %v1292
        %v1294 = vpop.f32.mrf.mxu0
        %1295 = vdwg.mxu0
        %v1296 = vadd.f32 %v937, %v1278
        %v1297 = vadd.f32 %v938, %v1283
        %v1298 = vadd.f32 %v939, %v1288
        %v1299 = vadd.f32 %v940, %v1293
        %1300 = vst [vmem:[%s496] sm:$0xff] %v1296
        %1301 = vst [vmem:[%s496 + $0x8] sm:$0xff] %v1297
        %1302 = vst [vmem:[%s496 + $0x10] sm:$0xff] %v1298
        %1303 = vst [vmem:[%s496 + $0x18] sm:$0xff] %v1299
        %s1304 = sand.u32 %s304, 1
        %s1305 = scalar_lea.sflag [#allocation3], %s1304
        %s1306 = sand.u32 %s304, 1
        %s1307 = smul.addr %s1306, 16
        %s1308 = scalar_lea.vmem [#allocation2], %s1307
        %s1309 = sand.u32 %s332, 1
        %s1310 = scalar_lea.sflag [#allocation5], %s1309
        %s1311 = sand.u32 %s332, 1
        %s1312 = smul.addr %s1311, 32
        %s1313 = scalar_lea.vmem [#allocation4], %s1312
        // Predicated region
        $region65: #{tpu_custom_call.1} parent=63 // pred_check
          %p1314 = pneg %p314
        $region66: #{tpu_custom_call.1} parent=63 // pred_check_branch
          %1316 = sbr.rel (%p1314) target = $region68
        $region67: #{tpu_custom_call.1} parent=63 // pred_region
          %s1318 = ssub.s32 256, 256
          %1319 = vsyncadd %s1305, %s1318
          %s1320 = smul.addr %s34, 4
          %s1321 = sadd.s32 %s35, %s1320
          %s1322 = smul.addr %s1321, 128
          %s1323 = scalar_lea.hbm %s11, %s1322
          %s1324 = sshll.u32 %s1308, 4
          %s1325 = int_to_ptr.vmem [resolvable:$true] %s1324
          %1330 = dma.vmem_to_hbm [thread:$0]  %s1325, 256, %s1323, %s1305, 128, 256, 8
        $region68: #{tpu_custom_call.1} parent=63 // pred_fallthru
          _
        // Predicated region
        $region69: #{tpu_custom_call.1} parent=63 // pred_check
          %p1331 = pneg %p342
        $region70: #{tpu_custom_call.1} parent=63 // pred_check_branch
          %1333 = sbr.rel (%p1331) target = $region72
        $region71: #{tpu_custom_call.1} parent=63 // pred_region
          %s1335 = ssub.s32 512, 512
          %1336 = vsyncadd %s1310, %s1335
          %s1337 = smul.addr %s34, 8
          %s1338 = sadd.s32 %s35, %s1337
          %s1339 = smul.addr %s1338, 128
          %s1340 = scalar_lea.hbm %s12, %s1339
          %s1341 = sshll.u32 %s1313, 4
          %s1342 = int_to_ptr.vmem [resolvable:$true] %s1341
          %1347 = dma.vmem_to_hbm [thread:$0]  %s1342, 512, %s1340, %s1310, 128, 256, 8
        $region72: #{tpu_custom_call.1} parent=63 // pred_fallthru
          _
      $region64: #{tpu_custom_call.1} parent=5 // pred_fallthru
        _
      %p1348 = scmp.le.s32.totalorder 2, %s25
      // Predicated region
      $region73: #{tpu_custom_call.1} parent=5 // pred_check
        %p1349 = pneg %p1348
      $region74: #{tpu_custom_call.1} parent=5 // pred_check_branch
        %1351 = sbr.rel (%p1349) target = $region76
      $region75: #{tpu_custom_call.1} parent=5 // pred_region
        %s1352 = ssub.s32 %s25, 2
        // Predicated region
        $region77: #{tpu_custom_call.1} parent=75 // pred_check
          %p1353 = pneg %p320
        $region78: #{tpu_custom_call.1} parent=75 // pred_check_branch
          %1355 = sbr.rel (%p1353) target = $region80
        $region79: #{tpu_custom_call.1} parent=75 // pred_region
          %s1356 = sand.u32 %s305, 1
          %s1357 = scalar_lea.sflag [#allocation3], %s1356
          %s1358 = sand.u32 %s305, 1
          %s1359 = smul.addr %s1358, 16
          %s1360 = scalar_lea.vmem [#allocation2], %s1359
          %1361 = dma.done %s1357, 256
        $region80: #{tpu_custom_call.1} parent=75 // pred_fallthru
          _
        // Predicated region
        $region81: #{tpu_custom_call.1} parent=75 // pred_check
          %p1362 = pneg %p348
        $region82: #{tpu_custom_call.1} parent=75 // pred_check_branch
          %1364 = sbr.rel (%p1362) target = $region84
        $region83: #{tpu_custom_call.1} parent=75 // pred_region
          %s1365 = sand.u32 %s333, 1
          %s1366 = scalar_lea.sflag [#allocation5], %s1365
          %s1367 = sand.u32 %s333, 1
          %s1368 = smul.addr %s1367, 32
          %s1369 = scalar_lea.vmem [#allocation4], %s1368
          %1370 = dma.done %s1366, 512
        $region84: #{tpu_custom_call.1} parent=75 // pred_fallthru
          _
      $region76: #{tpu_custom_call.1} parent=5 // pred_fallthru
        _
    $region6: #{tpu_custom_call.1} parent=1 // loop_footer
      %s29 = sadd.s32 1, %s25
    $region7: #{tpu_custom_call.1} parent=1 // loop_footer_branch
      %24 = sbr.rel target = $region3
    $region8: #{tpu_custom_call.1} parent=1 // loop_exit
      _
    %1371 = vsyncpa [#allocation3], 1
    %s1372 = scalar_lea.sflag [#allocation3], 1
    %1373 = vsyncpa %s1372, 1
    %1374 = vsyncpa [#allocation5], 1
    %s1375 = scalar_lea.sflag [#allocation5], 1
    %1376 = vsyncpa %s1375, 1

// kernel: tpu_custom_call.1
$region0: #{tpu_custom_call.1}
  #allocation0 [shape = 'u32[]', space=smem, size = 0x4, offset = 0x4, fixed_abs, tag = 'smem constant byte address 0x4 - core index']
  #allocation1 [shape = 'u32[144,128]{1,0:T(1,128)}', space=vmem, size = 0x12000, scoped, tag = 'internal scratch']
  %s0 = inlined_call_operand.hbm [shape: f32[8,1024], index: 0, kind: input, shape index: {}]
  %s1 = inlined_call_operand.vmem [shape: f32[16,1024], index: 1, kind: input, shape index: {}]
  %s2 = inlined_call_operand.hbm [shape: f32[32,1024], index: 2, kind: input, shape index: {}]
  %s3 = inlined_call_operand.vmem [shape: f32[16,8], index: 3, kind: input, shape index: {}]
  %s4 = inlined_call_operand.vmem [shape: f32[16,1], index: 4, kind: input, shape index: {}]
  %s5 = inlined_call_operand.hbm [shape: f32[16,16], index: 5, kind: input, shape index: {}]
  %s6 = inlined_call_operand.vmem [shape: f32[16,1], index: 6, kind: input, shape index: {}]
  %s7 = inlined_call_operand.vmem [shape: f32[32,16], index: 7, kind: input, shape index: {}]
  %s8 = inlined_call_operand.vmem [shape: f32[32,1], index: 8, kind: input, shape index: {}]
  %s9 = inlined_call_operand.vmem [shape: f32[32,32], index: 9, kind: input, shape index: {}]
  %s10 = inlined_call_operand.vmem [shape: f32[32,1], index: 10, kind: input, shape index: {}]
  %s11 = inlined_call_operand.hbm [shape: f32[16,1024], index: 11, kind: output, shape index: {0}]
  %s12 = inlined_call_operand.hbm [shape: f32[32,1024], index: 12, kind: output, shape index: {1}]
  %13 = xla_tuple %s11, %s12
  %s14 = sld [smem:[#allocation0]]
  $region135: #{tpu_custom_call.1} parent=0
    _
  %s16 = ssub.s32 1, %s14
  %s17 = scalar_select 0, %s16, %s14
  $region1: #{tpu_custom_call.1} parent=0
    #allocation2 [shape = 'u8[8192]{0}', space=vmem, size = 0x2000, scoped, tag = 'input window, operand 0']
    #allocation3 [shape = 's32[2]{0}', space=sflag, size = 0x8, scoped, tag = 'scoped memory for tpu_custom_call.1']
    #allocation4 [shape = 's32[2]{0}', space=sflag, size = 0x8, scoped, tag = 'scoped memory for tpu_custom_call.1']
    #allocation5 [shape = 'u8[16384]{0}', space=vmem, size = 0x4000, scoped, tag = 'input window, operand 1']
    #allocation6 [shape = 'u8[32768]{0}', space=vmem, size = 0x8000, scoped, tag = 'input window, operand 2']
    #allocation7 [shape = 's32[2]{0}', space=sflag, size = 0x8, scoped, tag = 'scoped memory for tpu_custom_call.1']
    #allocation8 [shape = 'u8[8192]{0}', space=vmem, size = 0x2000, scoped, tag = 'input window, operand 5, single buffered']
    #allocation9 [shape = 'u8[16384]{0}', space=vmem, size = 0x4000, scoped, tag = 'output window, operand 0']
    #allocation10 [shape = 'u8[32768]{0}', space=vmem, size = 0x8000, scoped, tag = 'output window, operand 1']
    #allocation11 [shape = 's32[2]{0}', space=sflag, size = 0x8, scoped, tag = 'scoped memory for tpu_custom_call.1']
    %18 = vsyncpa [#allocation3], 0
    %s19 = scalar_lea.sflag [#allocation3], 1
    %20 = vsyncpa %s19, 0
    %21 = vsyncpa [#allocation7], 0
    %s22 = scalar_lea.sflag [#allocation7], 1
    %23 = vsyncpa %s22, 0
    %24 = vsyncpa [#allocation4], 0
    %s25 = scalar_lea.sflag [#allocation4], 1
    %26 = vsyncpa %s25, 0
    %27 = vsyncpa [#allocation11], 0
    %s28 = scalar_lea.sflag [#allocation11], 1
    %29 = vsyncpa %s28, 0
    loop: start=0, step=1, limit=10
    $region2: #{tpu_custom_call.1} parent=1 // loop_pre_header
      _
    $region3: #{tpu_custom_call.1} parent=1 // loop_header
      %s31 = sphi 0, %s35
      %p32 = scmp.ge.s32.totalorder %s31, 10
      %s41 = sphi 0, %s43
      %s44 = sphi 0, %s41
      %s45 = sphi 0, %s44
      %s61 = sphi 0, %s45
      %s67 = sphi 0, %s69
      %s70 = sphi 0, %s67
      %s71 = sphi 0, %s70
      %s87 = sphi 0, %s71
      %s93 = sphi 0, %s95
      %s96 = sphi 0, %s93
      %s97 = sphi 0, %s96
      %s113 = sphi 0, %s97
      %s117 = sphi 0, %s117
      %s119 = sphi 0, %s117
      %s120 = sphi 0, %s119
      %s134 = sphi 0, %s120
      %s138 = sphi 0, %s138
      %s140 = sphi 0, %s138
      %s141 = sphi 0, %s140
      %s155 = sphi 0, %s141
      %s159 = sphi 0, %s159
      %s161 = sphi 0, %s159
      %s162 = sphi 0, %s161
      %s176 = sphi 0, %s162
      %s180 = sphi 0, %s180
      %s182 = sphi 0, %s180
      %s183 = sphi 0, %s182
      %s197 = sphi 0, %s183
      %s201 = sphi 0, %s201
      %s203 = sphi 0, %s201
      %s204 = sphi 0, %s203
      %s218 = sphi 0, %s204
      %s222 = sphi 0, %s222
      %s224 = sphi 0, %s222
      %s225 = sphi 0, %s224
      %s239 = sphi 0, %s225
      %s243 = sphi 0, %s243
      %s245 = sphi 0, %s243
      %s246 = sphi 0, %s245
      %s260 = sphi 0, %s246
      %s264 = sphi 0, %s264
      %s266 = sphi 0, %s264
      %s267 = sphi 0, %s266
      %s281 = sphi 0, %s267
      %s287 = sphi 0, %s289
      %s290 = sphi 0, %s287
      %s291 = sphi 0, %s290
      %s307 = sphi 0, %s291
      %s313 = sphi 0, %s315
      %s316 = sphi 0, %s313
      %s317 = sphi 0, %s316
      %s333 = sphi 0, %s317
    $region4: #{tpu_custom_call.1} parent=1 // loop_header_branch
      %34 = sbr.rel (%p32) target = $region8
    $region5: #{tpu_custom_call.1} parent=1 // loop_body
      %s36 = ssub.s32 %s31, 1
      %s37 = ssub.s32 %s31, 2
      %s38 = sadd.s32 %s31, 1
      %s39 = ssub.s32 %s31, %s38
      %p40 = scmp.eq.s32.totalorder %s39, 0
      %s42 = sadd.s32 %s41, 1
      %s43 = scalar_select %p40, %s41, %s42
      %p46 = pneg %p40
      %p47 = scmp.eq.s32.totalorder %s31, 7
      %p48 = por %p46, %p47
      %p49 = scmp.ne.s32.totalorder %s41, %s44
      %p50 = scmp.eq.s32.totalorder %s31, 0
      %p51 = por %p49, %p50
      %p52 = scmp.ne.s32.totalorder %s41, %s44
      %p53 = scmp.eq.s32.totalorder %s36, 7
      %p54 = por %p52, %p53
      %p55 = scmp.ne.s32.totalorder %s44, %s45
      %p56 = scmp.eq.s32.totalorder %s36, 0
      %p57 = por %p55, %p56
      %p58 = scmp.ne.s32.totalorder %s44, %s45
      %p59 = scmp.eq.s32.totalorder %s37, 7
      %p60 = por %p58, %p59
      %p62 = scmp.ne.s32.totalorder %s45, %s61
      %p63 = scmp.eq.s32.totalorder %s37, 0
      %p64 = por %p62, %p63
      %s65 = ssub.s32 %s31, %s38
      %p66 = scmp.eq.s32.totalorder %s65, 0
      %s68 = sadd.s32 %s67, 1
      %s69 = scalar_select %p66, %s67, %s68
      %p72 = pneg %p66
      %p73 = scmp.eq.s32.totalorder %s31, 7
      %p74 = por %p72, %p73
      %p75 = scmp.ne.s32.totalorder %s67, %s70
      %p76 = scmp.eq.s32.totalorder %s31, 0
      %p77 = por %p75, %p76
      %p78 = scmp.ne.s32.totalorder %s67, %s70
      %p79 = scmp.eq.s32.totalorder %s36, 7
      %p80 = por %p78, %p79
      %p81 = scmp.ne.s32.totalorder %s70, %s71
      %p82 = scmp.eq.s32.totalorder %s36, 0
      %p83 = por %p81, %p82
      %p84 = scmp.ne.s32.totalorder %s70, %s71
      %p85 = scmp.eq.s32.totalorder %s37, 7
      %p86 = por %p84, %p85
      %p88 = scmp.ne.s32.totalorder %s71, %s87
      %p89 = scmp.eq.s32.totalorder %s37, 0
      %p90 = por %p88, %p89
      %s91 = ssub.s32 %s31, %s38
      %p92 = scmp.eq.s32.totalorder %s91, 0
      %s94 = sadd.s32 %s93, 1
      %s95 = scalar_select %p92, %s93, %s94
      %p98 = pneg %p92
      %p99 = scmp.eq.s32.totalorder %s31, 7
      %p100 = por %p98, %p99
      %p101 = scmp.ne.s32.totalorder %s93, %s96
      %p102 = scmp.eq.s32.totalorder %s31, 0
      %p103 = por %p101, %p102
      %p104 = scmp.ne.s32.totalorder %s93, %s96
      %p105 = scmp.eq.s32.totalorder %s36, 7
      %p106 = por %p104, %p105
      %p107 = scmp.ne.s32.totalorder %s96, %s97
      %p108 = scmp.eq.s32.totalorder %s36, 0
      %p109 = por %p107, %p108
      %p110 = scmp.ne.s32.totalorder %s96, %s97
      %p111 = scmp.eq.s32.totalorder %s37, 7
      %p112 = por %p110, %p111
      %p114 = scmp.ne.s32.totalorder %s97, %s113
      %p115 = scmp.eq.s32.totalorder %s37, 0
      %p116 = por %p114, %p115
      %s118 = sadd.s32 %s117, 1
      %p121 = scmp.eq.s32.totalorder %s31, 7
      %p122 = scmp.ne.s32.totalorder %s117, %s119
      %p123 = scmp.eq.s32.totalorder %s31, 0
      %p124 = por %p122, %p123
      %p125 = scmp.ne.s32.totalorder %s117, %s119
      %p126 = scmp.eq.s32.totalorder %s36, 7
      %p127 = por %p125, %p126
      %p128 = scmp.ne.s32.totalorder %s119, %s120
      %p129 = scmp.eq.s32.totalorder %s36, 0
      %p130 = por %p128, %p129
      %p131 = scmp.ne.s32.totalorder %s119, %s120
      %p132 = scmp.eq.s32.totalorder %s37, 7
      %p133 = por %p131, %p132
      %p135 = scmp.ne.s32.totalorder %s120, %s134
      %p136 = scmp.eq.s32.totalorder %s37, 0
      %p137 = por %p135, %p136
      %s139 = sadd.s32 %s138, 1
      %p142 = scmp.eq.s32.totalorder %s31, 7
      %p143 = scmp.ne.s32.totalorder %s138, %s140
      %p144 = scmp.eq.s32.totalorder %s31, 0
      %p145 = por %p143, %p144
      %p146 = scmp.ne.s32.totalorder %s138, %s140
      %p147 = scmp.eq.s32.totalorder %s36, 7
      %p148 = por %p146, %p147
      %p149 = scmp.ne.s32.totalorder %s140, %s141
      %p150 = scmp.eq.s32.totalorder %s36, 0
      %p151 = por %p149, %p150
      %p152 = scmp.ne.s32.totalorder %s140, %s141
      %p153 = scmp.eq.s32.totalorder %s37, 7
      %p154 = por %p152, %p153
      %p156 = scmp.ne.s32.totalorder %s141, %s155
      %p157 = scmp.eq.s32.totalorder %s37, 0
      %p158 = por %p156, %p157
      %s160 = sadd.s32 %s159, 1
      %p163 = scmp.eq.s32.totalorder %s31, 7
      %p164 = scmp.ne.s32.totalorder %s159, %s161
      %p165 = scmp.eq.s32.totalorder %s31, 0
      %p166 = por %p164, %p165
      %p167 = scmp.ne.s32.totalorder %s159, %s161
      %p168 = scmp.eq.s32.totalorder %s36, 7
      %p169 = por %p167, %p168
      %p170 = scmp.ne.s32.totalorder %s161, %s162
      %p171 = scmp.eq.s32.totalorder %s36, 0
      %p172 = por %p170, %p171
      %p173 = scmp.ne.s32.totalorder %s161, %s162
      %p174 = scmp.eq.s32.totalorder %s37, 7
      %p175 = por %p173, %p174
      %p177 = scmp.ne.s32.totalorder %s162, %s176
      %p178 = scmp.eq.s32.totalorder %s37, 0
      %p179 = por %p177, %p178
      %s181 = sadd.s32 %s180, 1
      %p184 = scmp.eq.s32.totalorder %s31, 7
      %p185 = scmp.ne.s32.totalorder %s180, %s182
      %p186 = scmp.eq.s32.totalorder %s31, 0
      %p187 = por %p185, %p186
      %p188 = scmp.ne.s32.totalorder %s180, %s182
      %p189 = scmp.eq.s32.totalorder %s36, 7
      %p190 = por %p188, %p189
      %p191 = scmp.ne.s32.totalorder %s182, %s183
      %p192 = scmp.eq.s32.totalorder %s36, 0
      %p193 = por %p191, %p192
      %p194 = scmp.ne.s32.totalorder %s182, %s183
      %p195 = scmp.eq.s32.totalorder %s37, 7
      %p196 = por %p194, %p195
      %p198 = scmp.ne.s32.totalorder %s183, %s197
      %p199 = scmp.eq.s32.totalorder %s37, 0
      %p200 = por %p198, %p199
      %s202 = sadd.s32 %s201, 1
      %p205 = scmp.eq.s32.totalorder %s31, 7
      %p206 = scmp.ne.s32.totalorder %s201, %s203
      %p207 = scmp.eq.s32.totalorder %s31, 0
      %p208 = por %p206, %p207
      %p209 = scmp.ne.s32.totalorder %s201, %s203
      %p210 = scmp.eq.s32.totalorder %s36, 7
      %p211 = por %p209, %p210
      %p212 = scmp.ne.s32.totalorder %s203, %s204
      %p213 = scmp.eq.s32.totalorder %s36, 0
      %p214 = por %p212, %p213
      %p215 = scmp.ne.s32.totalorder %s203, %s204
      %p216 = scmp.eq.s32.totalorder %s37, 7
      %p217 = por %p215, %p216
      %p219 = scmp.ne.s32.totalorder %s204, %s218
      %p220 = scmp.eq.s32.totalorder %s37, 0
      %p221 = por %p219, %p220
      %s223 = sadd.s32 %s222, 1
      %p226 = scmp.eq.s32.totalorder %s31, 7
      %p227 = scmp.ne.s32.totalorder %s222, %s224
      %p228 = scmp.eq.s32.totalorder %s31, 0
      %p229 = por %p227, %p228
      %p230 = scmp.ne.s32.totalorder %s222, %s224
      %p231 = scmp.eq.s32.totalorder %s36, 7
      %p232 = por %p230, %p231
      %p233 = scmp.ne.s32.totalorder %s224, %s225
      %p234 = scmp.eq.s32.totalorder %s36, 0
      %p235 = por %p233, %p234
      %p236 = scmp.ne.s32.totalorder %s224, %s225
      %p237 = scmp.eq.s32.totalorder %s37, 7
      %p238 = por %p236, %p237
      %p240 = scmp.ne.s32.totalorder %s225, %s239
      %p241 = scmp.eq.s32.totalorder %s37, 0
      %p242 = por %p240, %p241
      %s244 = sadd.s32 %s243, 1
      %p247 = scmp.eq.s32.totalorder %s31, 7
      %p248 = scmp.ne.s32.totalorder %s243, %s245
      %p249 = scmp.eq.s32.totalorder %s31, 0
      %p250 = por %p248, %p249
      %p251 = scmp.ne.s32.totalorder %s243, %s245
      %p252 = scmp.eq.s32.totalorder %s36, 7
      %p253 = por %p251, %p252
      %p254 = scmp.ne.s32.totalorder %s245, %s246
      %p255 = scmp.eq.s32.totalorder %s36, 0
      %p256 = por %p254, %p255
      %p257 = scmp.ne.s32.totalorder %s245, %s246
      %p258 = scmp.eq.s32.totalorder %s37, 7
      %p259 = por %p257, %p258
      %p261 = scmp.ne.s32.totalorder %s246, %s260
      %p262 = scmp.eq.s32.totalorder %s37, 0
      %p263 = por %p261, %p262
      %s265 = sadd.s32 %s264, 1
      %p268 = scmp.eq.s32.totalorder %s31, 7
      %p269 = scmp.ne.s32.totalorder %s264, %s266
      %p270 = scmp.eq.s32.totalorder %s31, 0
      %p271 = por %p269, %p270
      %p272 = scmp.ne.s32.totalorder %s264, %s266
      %p273 = scmp.eq.s32.totalorder %s36, 7
      %p274 = por %p272, %p273
      %p275 = scmp.ne.s32.totalorder %s266, %s267
      %p276 = scmp.eq.s32.totalorder %s36, 0
      %p277 = por %p275, %p276
      %p278 = scmp.ne.s32.totalorder %s266, %s267
      %p279 = scmp.eq.s32.totalorder %s37, 7
      %p280 = por %p278, %p279
      %p282 = scmp.ne.s32.totalorder %s267, %s281
      %p283 = scmp.eq.s32.totalorder %s37, 0
      %p284 = por %p282, %p283
      %s285 = ssub.s32 %s31, %s38
      %p286 = scmp.eq.s32.totalorder %s285, 0
      %s288 = sadd.s32 %s287, 1
      %s289 = scalar_select %p286, %s287, %s288
      %p292 = pneg %p286
      %p293 = scmp.eq.s32.totalorder %s31, 7
      %p294 = por %p292, %p293
      %p295 = scmp.ne.s32.totalorder %s287, %s290
      %p296 = scmp.eq.s32.totalorder %s31, 0
      %p297 = por %p295, %p296
      %p298 = scmp.ne.s32.totalorder %s287, %s290
      %p299 = scmp.eq.s32.totalorder %s36, 7
      %p300 = por %p298, %p299
      %p301 = scmp.ne.s32.totalorder %s290, %s291
      %p302 = scmp.eq.s32.totalorder %s36, 0
      %p303 = por %p301, %p302
      %p304 = scmp.ne.s32.totalorder %s290, %s291
      %p305 = scmp.eq.s32.totalorder %s37, 7
      %p306 = por %p304, %p305
      %p308 = scmp.ne.s32.totalorder %s291, %s307
      %p309 = scmp.eq.s32.totalorder %s37, 0
      %p310 = por %p308, %p309
      %s311 = ssub.s32 %s31, %s38
      %p312 = scmp.eq.s32.totalorder %s311, 0
      %s314 = sadd.s32 %s313, 1
      %s315 = scalar_select %p312, %s313, %s314
      %p318 = pneg %p312
      %p319 = scmp.eq.s32.totalorder %s31, 7
      %p320 = por %p318, %p319
      %p321 = scmp.ne.s32.totalorder %s313, %s316
      %p322 = scmp.eq.s32.totalorder %s31, 0
      %p323 = por %p321, %p322
      %p324 = scmp.ne.s32.totalorder %s313, %s316
      %p325 = scmp.eq.s32.totalorder %s36, 7
      %p326 = por %p324, %p325
      %p327 = scmp.ne.s32.totalorder %s316, %s317
      %p328 = scmp.eq.s32.totalorder %s36, 0
      %p329 = por %p327, %p328
      %p330 = scmp.ne.s32.totalorder %s316, %s317
      %p331 = scmp.eq.s32.totalorder %s37, 7
      %p332 = por %p330, %p331
      %p334 = scmp.ne.s32.totalorder %s317, %s333
      %p335 = scmp.eq.s32.totalorder %s37, 0
      %p336 = por %p334, %p335
      %p337 = scmp.le.s32.totalorder 1, %s31
      %p338 = scmp.lt.s32.totalorder %s31, 9
      %p339 = pnand %p337, %p338
      %p340 = pneg %p339
      // Predicated region
      $region9: #{tpu_custom_call.1} parent=5 // pred_check
        _
      $region10: #{tpu_custom_call.1} parent=5 // pred_check_branch
        %342 = sbr.rel (%p339) target = $region12
      $region11: #{tpu_custom_call.1} parent=5 // pred_region
        %s343 = ssub.s32 %s31, 1
        // Predicated region
        $region13: #{tpu_custom_call.1} parent=11 // pred_check
          %p344 = pneg %p130
        $region14: #{tpu_custom_call.1} parent=11 // pred_check_branch
          %346 = sbr.rel (%p344) target = $region16
        $region15: #{tpu_custom_call.1} parent=11 // pred_region
          _
        $region16: #{tpu_custom_call.1} parent=11 // pred_fallthru
          _
        // Predicated region
        $region17: #{tpu_custom_call.1} parent=11 // pred_check
          %p347 = pneg %p151
        $region18: #{tpu_custom_call.1} parent=11 // pred_check_branch
          %349 = sbr.rel (%p347) target = $region20
        $region19: #{tpu_custom_call.1} parent=11 // pred_region
          _
        $region20: #{tpu_custom_call.1} parent=11 // pred_fallthru
          _
        // Predicated region
        $region21: #{tpu_custom_call.1} parent=11 // pred_check
          %p350 = pneg %p172
        $region22: #{tpu_custom_call.1} parent=11 // pred_check_branch
          %352 = sbr.rel (%p350) target = $region24
        $region23: #{tpu_custom_call.1} parent=11 // pred_region
          %s354 = ssub.s32 256, 256
          %355 = vsyncadd [#allocation7], %s354
          %s356 = sshll.u32 [#allocation8], 4
          %s357 = int_to_ptr.vmem [resolvable:$true] %s356
          %362 = dma.hbm_to_vmem [thread:$0]  %s5, 256, %s357, [#allocation7], 128, 128, 8
        $region24: #{tpu_custom_call.1} parent=11 // pred_fallthru
          _
        // Predicated region
        $region25: #{tpu_custom_call.1} parent=11 // pred_check
          %p363 = pneg %p193
        $region26: #{tpu_custom_call.1} parent=11 // pred_check_branch
          %365 = sbr.rel (%p363) target = $region28
        $region27: #{tpu_custom_call.1} parent=11 // pred_region
          _
        $region28: #{tpu_custom_call.1} parent=11 // pred_fallthru
          _
        // Predicated region
        $region29: #{tpu_custom_call.1} parent=11 // pred_check
          %p366 = pneg %p214
        $region30: #{tpu_custom_call.1} parent=11 // pred_check_branch
          %368 = sbr.rel (%p366) target = $region32
        $region31: #{tpu_custom_call.1} parent=11 // pred_region
          _
        $region32: #{tpu_custom_call.1} parent=11 // pred_fallthru
          _
        // Predicated region
        $region33: #{tpu_custom_call.1} parent=11 // pred_check
          %p369 = pneg %p235
        $region34: #{tpu_custom_call.1} parent=11 // pred_check_branch
          %371 = sbr.rel (%p369) target = $region36
        $region35: #{tpu_custom_call.1} parent=11 // pred_region
          _
        $region36: #{tpu_custom_call.1} parent=11 // pred_fallthru
          _
        // Predicated region
        $region37: #{tpu_custom_call.1} parent=11 // pred_check
          %p372 = pneg %p256
        $region38: #{tpu_custom_call.1} parent=11 // pred_check_branch
          %374 = sbr.rel (%p372) target = $region40
        $region39: #{tpu_custom_call.1} parent=11 // pred_region
          _
        $region40: #{tpu_custom_call.1} parent=11 // pred_fallthru
          _
        // Predicated region
        $region41: #{tpu_custom_call.1} parent=11 // pred_check
          %p375 = pneg %p277
        $region42: #{tpu_custom_call.1} parent=11 // pred_check_branch
          %377 = sbr.rel (%p375) target = $region44
        $region43: #{tpu_custom_call.1} parent=11 // pred_region
          _
        $region44: #{tpu_custom_call.1} parent=11 // pred_fallthru
          _
      $region12: #{tpu_custom_call.1} parent=5 // pred_fallthru
        _
      %p378 = scmp.lt.s32.totalorder %s31, 8
      // Predicated region
      $region45: #{tpu_custom_call.1} parent=5 // pred_check
        %p379 = pneg %p378
      $region46: #{tpu_custom_call.1} parent=5 // pred_check_branch
        %381 = sbr.rel (%p379) target = $region48
      $region47: #{tpu_custom_call.1} parent=5 // pred_region
        // Predicated region
        $region49: #{tpu_custom_call.1} parent=47 // pred_check
          %p382 = pneg %p51
        $region50: #{tpu_custom_call.1} parent=47 // pred_check_branch
          %384 = sbr.rel (%p382) target = $region52
        $region51: #{tpu_custom_call.1} parent=47 // pred_region
          %s385 = sand.u32 %s41, 1
          %s386 = scalar_lea.sflag [#allocation3], %s385
          %s387 = sand.u32 %s41, 1
          %s388 = smul.addr %s387, 8
          %s389 = scalar_lea.vmem [#allocation2], %s388
          %s391 = ssub.s32 128, 128
          %392 = vsyncadd %s386, %s391
          %s393 = smul.addr %s31, 128
          %s394 = scalar_lea.hbm %s0, %s393
          %s396 = sshll.u32 %s389, 4
          %s397 = int_to_ptr.vmem [resolvable:$true] %s396
          %399 = dma.hbm_to_vmem [thread:$0]  %s394, 128, %s397, %s386
        $region52: #{tpu_custom_call.1} parent=47 // pred_fallthru
          _
        // Predicated region
        $region53: #{tpu_custom_call.1} parent=47 // pred_check
          %p400 = pneg %p77
        $region54: #{tpu_custom_call.1} parent=47 // pred_check_branch
          %402 = sbr.rel (%p400) target = $region56
        $region55: #{tpu_custom_call.1} parent=47 // pred_region
          %s403 = sand.u32 %s67, 1
          %s404 = sand.u32 %s67, 1
          %s405 = smul.addr %s404, 16
          %s406 = scalar_lea.vmem [#allocation5], %s405
          %s407 = smul.addr %s31, 8
          %s408 = scalar_lea.vmem %s1, %s407
          // Predicated region
          $region57: #{tpu_custom_call.1} parent=55 // pred_check
            _
          $region58: #{tpu_custom_call.1} parent=55 // pred_check_branch
            %410 = sbr.rel (0) target = $region60
          $region59: #{tpu_custom_call.1} parent=55 // pred_region
            // Predicated region
            $region61: #{tpu_custom_call.1} parent=59 // pred_check
              _
            $region62: #{tpu_custom_call.1} parent=59 // pred_check_branch
              %412 = sbr.rel (0) target = $region64
            $region63: #{tpu_custom_call.1} parent=59 // pred_region
              // Predicated region
              $region76: #{tpu_custom_call.1} parent=63 // pred_check
                _
              $region77: #{tpu_custom_call.1} parent=63 // pred_check_branch
                %430 = sbr.rel (0) target = $region79
              $region78: #{tpu_custom_call.1} parent=63 // pred_region
                loop: start=0, step=1, limit=1
                $region80: #{tpu_custom_call.1} parent=78 // loop_pre_header
                  _
                $region81: #{tpu_custom_call.1} parent=78 // loop_header
                  %s432 = sphi 0, %s436
                  %p433 = scmp.ge.s32.totalorder %s432, 1
                  %s437 = sphi %s408, %s408
                  %s438 = sphi %s406, %s406
                $region82: #{tpu_custom_call.1} parent=78 // loop_header_branch
                  %435 = sbr.rel (%p433) target = $region86
                $region83: #{tpu_custom_call.1} parent=78 // loop_body
                  %v439 = vld [vmem:[%s437] sm:$0xff]
                  %440 = vst [vmem:[%s438] sm:$0xff] %v439
                  %v441 = vld [vmem:[%s437 + $0x40] sm:$0xff]
                  %442 = vst [vmem:[%s438 + $0x8] sm:$0xff] %v441
                $region84: #{tpu_custom_call.1} parent=78 // loop_footer
                  %s436 = sadd.s32 1, %s432
                $region85: #{tpu_custom_call.1} parent=78 // loop_footer_branch
                  %431 = sbr.rel target = $region81
                $region86: #{tpu_custom_call.1} parent=78 // loop_exit
                  _
              $region79: #{tpu_custom_call.1} parent=63 // pred_fallthru
                _
              // Predicated region
              $region87: #{tpu_custom_call.1} parent=63 // pred_check
                _
              $region88: #{tpu_custom_call.1} parent=63 // pred_check_branch
                %444 = sbr.rel target = $region90
              $region89: #{tpu_custom_call.1} parent=63 // pred_region
                _
              $region90: #{tpu_custom_call.1} parent=63 // pred_fallthru
                _
            $region64: #{tpu_custom_call.1} parent=59 // pred_fallthru
              _
            // Predicated region
            $region65: #{tpu_custom_call.1} parent=59 // pred_check
              _
            $region66: #{tpu_custom_call.1} parent=59 // pred_check_branch
              %414 = sbr.rel target = $region68
            $region67: #{tpu_custom_call.1} parent=59 // pred_region
              %s416 = ssub.s32 256, 1
              loop: start=0, step=1, limit=1
              $region69: #{tpu_custom_call.1} parent=67 // loop_pre_header
                _
              $region70: #{tpu_custom_call.1} parent=67 // loop_header
                %s418 = sphi 0, %s422
                %p419 = scmp.ge.s32.totalorder %s418, 1
                %s423 = sphi %s408, %s408
                %s424 = sphi %s406, %s406
              $region71: #{tpu_custom_call.1} parent=67 // loop_header_branch
                %421 = sbr.rel (%p419) target = $region75
              $region72: #{tpu_custom_call.1} parent=67 // loop_body
                %v425 = vld [vmem:[%s423] sm:%s416]
                %426 = vst [vmem:[%s424] sm:%s416] %v425
                %v427 = vld [vmem:[%s423 + $0x40] sm:%s416]
                %428 = vst [vmem:[%s424 + $0x8] sm:%s416] %v427
              $region73: #{tpu_custom_call.1} parent=67 // loop_footer
                %s422 = sadd.s32 1, %s418
              $region74: #{tpu_custom_call.1} parent=67 // loop_footer_branch
                %417 = sbr.rel target = $region70
              $region75: #{tpu_custom_call.1} parent=67 // loop_exit
                _
            $region68: #{tpu_custom_call.1} parent=59 // pred_fallthru
              _
          $region60: #{tpu_custom_call.1} parent=55 // pred_fallthru
            _
          %445 = vnop
        $region56: #{tpu_custom_call.1} parent=47 // pred_fallthru
          _
        // Predicated region
        $region91: #{tpu_custom_call.1} parent=47 // pred_check
          %p446 = pneg %p103
        $region92: #{tpu_custom_call.1} parent=47 // pred_check_branch
          %448 = sbr.rel (%p446) target = $region94
        $region93: #{tpu_custom_call.1} parent=47 // pred_region
          %s449 = sand.u32 %s31, 1
          %s450 = scalar_lea.sflag [#allocation7], %s449
          %s451 = sand.u32 %s93, 1
          %s452 = smul.addr %s451, 32
          %s453 = scalar_lea.vmem [#allocation6], %s452
          %s455 = ssub.s32 512, 512
          %456 = vsyncadd %s450, %s455
          %s457 = smul.addr %s31, 128
          %s458 = scalar_lea.hbm %s2, %s457
          %s459 = sshll.u32 %s453, 4
          %s460 = int_to_ptr.vmem [resolvable:$true] %s459
          %465 = dma.hbm_to_vmem [thread:$0]  %s458, 512, %s460, %s450, 1024, 128, 8
        $region94: #{tpu_custom_call.1} parent=47 // pred_fallthru
          _
      $region48: #{tpu_custom_call.1} parent=5 // pred_fallthru
        _
      %p466 = scmp.le.s32.totalorder 1, %s31
      %p467 = scmp.lt.s32.totalorder %s31, 9
      %p468 = pnand %p466, %p467
      %p469 = pneg %p468
      // Predicated region
      $region95: #{tpu_custom_call.1} parent=5 // pred_check
        _
      $region96: #{tpu_custom_call.1} parent=5 // pred_check_branch
        %471 = sbr.rel (%p468) target = $region98
      $region97: #{tpu_custom_call.1} parent=5 // pred_region
        %s472 = ssub.s32 %s31, 1
        %s473 = sand.u32 %s44, 1
        %s474 = scalar_lea.sflag [#allocation3], %s473
        %s475 = sand.u32 %s44, 1
        %s476 = smul.addr %s475, 8
        %s477 = scalar_lea.vmem [#allocation2], %s476
        // Predicated region
        $region99: #{tpu_custom_call.1} parent=97 // pred_check
          %p478 = pneg %p57
        $region100: #{tpu_custom_call.1} parent=97 // pred_check_branch
          %480 = sbr.rel (%p478) target = $region102
        $region101: #{tpu_custom_call.1} parent=97 // pred_region
          %481 = dma.done %s474, 128
        $region102: #{tpu_custom_call.1} parent=97 // pred_fallthru
          _
        %s482 = sand.u32 %s70, 1
        %s483 = sand.u32 %s70, 1
        %s484 = smul.addr %s483, 16
        %s485 = scalar_lea.vmem [#allocation5], %s484
        // Predicated region
        $region103: #{tpu_custom_call.1} parent=97 // pred_check
          %p486 = pneg %p83
        $region104: #{tpu_custom_call.1} parent=97 // pred_check_branch
          %488 = sbr.rel (%p486) target = $region106
        $region105: #{tpu_custom_call.1} parent=97 // pred_region
          _
        $region106: #{tpu_custom_call.1} parent=97 // pred_fallthru
          _
        %s489 = sand.u32 %s36, 1
        %s490 = scalar_lea.sflag [#allocation7], %s489
        %s491 = sand.u32 %s96, 1
        %s492 = smul.addr %s491, 32
        %s493 = scalar_lea.vmem [#allocation6], %s492
        // Predicated region
        $region107: #{tpu_custom_call.1} parent=97 // pred_check
          %p494 = pneg %p109
        $region108: #{tpu_custom_call.1} parent=97 // pred_check_branch
          %496 = sbr.rel (%p494) target = $region110
        $region109: #{tpu_custom_call.1} parent=97 // pred_region
          %497 = dma.done %s490, 512
        $region110: #{tpu_custom_call.1} parent=97 // pred_fallthru
          _
        // Predicated region
        $region111: #{tpu_custom_call.1} parent=97 // pred_check
          %p498 = pneg %p172
        $region112: #{tpu_custom_call.1} parent=97 // pred_check_branch
          %500 = sbr.rel (%p498) target = $region114
        $region113: #{tpu_custom_call.1} parent=97 // pred_region
          %501 = dma.done [#allocation7], 256
        $region114: #{tpu_custom_call.1} parent=97 // pred_fallthru
          _
        %s502 = sand.u32 %s44, 1
        %s503 = scalar_lea.sflag [#allocation3], %s502
        %s504 = sand.u32 %s44, 1
        %s505 = smul.addr %s504, 8
        %s506 = scalar_lea.vmem [#allocation2], %s505
        %p507 = pneg %p57
        %p508 = pneg %p54
        %s509 = sand.u32 %s70, 1
        %s510 = sand.u32 %s70, 1
        %s511 = smul.addr %s510, 16
        %s512 = scalar_lea.vmem [#allocation5], %s511
        %p513 = pneg %p83
        %p514 = pneg %p80
        %s515 = sand.u32 %s36, 1
        %s516 = scalar_lea.sflag [#allocation7], %s515
        %s517 = sand.u32 %s96, 1
        %s518 = smul.addr %s517, 32
        %s519 = scalar_lea.vmem [#allocation6], %s518
        %p520 = pneg %p109
        %p521 = pneg %p106
        %p522 = pneg %p130
        %p523 = pneg %p127
        %p524 = pneg %p151
        %p525 = pneg %p148
        %p526 = pneg %p172
        %p527 = pneg %p169
        %p528 = pneg %p193
        %p529 = pneg %p190
        %p530 = pneg %p214
        %p531 = pneg %p211
        %p532 = pneg %p235
        %p533 = pneg %p232
        %p534 = pneg %p256
        %p535 = pneg %p253
        %p536 = pneg %p277
        %p537 = pneg %p274
        %p538 = pneg %p303
        %p539 = pneg %p300
        %s540 = sand.u32 %s290, 1
        %s541 = scalar_lea.sflag [#allocation4], %s540
        %s542 = sand.u32 %s290, 1
        %s543 = smul.addr %s542, 16
        %s544 = scalar_lea.vmem [#allocation9], %s543
        %p545 = pneg %p329
        %p546 = pneg %p326
        %s547 = sand.u32 %s316, 1
        %s548 = scalar_lea.sflag [#allocation11], %s547
        %s549 = sand.u32 %s316, 1
        %s550 = smul.addr %s549, 32
        %s551 = scalar_lea.vmem [#allocation10], %s550
        %v552 = vld [vmem:[%s477] sm:$0xff]
        %v553 = vld [vmem:[%s3] sm:$0xff]
        %v554 = vld [vmem:[%s3 + $0x8] sm:$0xff]
        %v555 = vld [vmem:[%s4] sm:$0xff]
        %v556 = vld [vmem:[%s4 + $0x8] sm:$0xff]
        %v557 = vld [vmem:[#allocation8] sm:$0xff]
        %v558 = vld [vmem:[#allocation8 + $0x8] sm:$0xff]
        %v559 = vld [vmem:[%s6] sm:$0xff]
        %v560 = vld [vmem:[%s6 + $0x8] sm:$0xff]
        %v561 = vld [vmem:[%s485] sm:$0xff]
        %v562 = vld [vmem:[%s485 + $0x8] sm:$0xff]
        %564 = vset.pattern.permute.xlu0 0
        %565 = vperm.xlu0 %564, %v555
        %v566 = vpop.permute.xlu0 %565
        %569 = vset.pattern.permute.xlu0 0
        %570 = vperm.xlu0 %569, %v556
        %v571 = vpop.permute.xlu0 %570
        %vm573 = vcmask 64512
        %v575 = vsel %vm573, %v553, 0
        %v578 = vsel %vm573, %v554, 0
        %580 = vmatprep.subr.mxu0 0.0
        %581 = vmatpush1.msra.mxu0 0.0
        %582 = vmatprep.subr.mxu0 0.0
        %583 = vmatpush1.msra.mxu0 0.0
        %584 = vmatprep.subr.mxu0 0.0
        %585 = vmatpush1.msra.mxu0 0.0
        %586 = vmatprep.subr.mxu0 0.0
        %587 = vmatpush1.msra.mxu0 0.0
        %588 = vmatprep.subr.mxu0 0.0
        %589 = vmatpush1.msra.mxu0 0.0
        %590 = vmatprep.subr.mxu0 0.0
        %591 = vmatpush1.msra.mxu0 0.0
        %592 = vmatprep.subr.mxu0 0.0
        %593 = vmatpush1.msra.mxu0 0.0
        %594 = vmatprep.subr.mxu0 0.0
        %595 = vmatpush1.msra.mxu0 0.0
        %596 = vmatprep.subr.mxu0 0.0
        %597 = vmatpush1.msra.mxu0 0.0
        %598 = vmatprep.subr.mxu0 0.0
        %599 = vmatpush1.msra.mxu0 0.0
        %600 = vmatprep.subr.mxu0 0.0
        %601 = vmatpush1.msra.mxu0 0.0
        %602 = vmatprep.subr.mxu0 0.0
        %603 = vmatpush1.msra.mxu0 0.0
        %604 = vmatprep.subr.mxu0 0.0
        %605 = vmatpush1.msra.mxu0 0.0
        %606 = vmatprep.subr.mxu0 0.0
        %607 = vmatpush1.msra.mxu0 0.0
        %608 = vmatprep.subr.mxu0 0.0
        %609 = vmatpush1.msra.mxu0 0.0
        %610 = vmatprep.subr.mxu0 0.0
        %611 = vmatpush1.msra.mxu0 %v552
        %612 = vmatprep.subr.mxu0 0.0
        %613 = vmatpush2.msra.mxu0 0.0
        %614 = vmatprep.subr.mxu0 0.0
        %615 = vmatpush2.msra.mxu0 0.0
        %616 = vmatprep.subr.mxu0 0.0
        %617 = vmatpush2.msra.mxu0 0.0
        %618 = vmatprep.subr.mxu0 0.0
        %619 = vmatpush2.msra.mxu0 0.0
        %620 = vmatprep.subr.mxu0 0.0
        %621 = vmatpush2.msra.mxu0 0.0
        %622 = vmatprep.subr.mxu0 0.0
        %623 = vmatpush2.msra.mxu0 0.0
        %624 = vmatprep.subr.mxu0 0.0
        %625 = vmatpush2.msra.mxu0 0.0
        %626 = vmatprep.subr.mxu0 0.0
        %627 = vmatpush2.msra.mxu0 0.0
        %628 = vmatprep.subr.mxu0 0.0
        %629 = vmatpush2.msra.mxu0 0.0
        %630 = vmatprep.subr.mxu0 0.0
        %631 = vmatpush2.msra.mxu0 0.0
        %632 = vmatprep.subr.mxu0 0.0
        %633 = vmatpush2.msra.mxu0 0.0
        %634 = vmatprep.subr.mxu0 0.0
        %635 = vmatpush2.msra.mxu0 0.0
        %636 = vmatprep.subr.mxu0 0.0
        %637 = vmatpush2.msra.mxu0 0.0
        %638 = vmatprep.subr.mxu0 0.0
        %639 = vmatpush2.msra.mxu0 0.0
        %640 = vmatprep.subr.mxu0 0.0
        %641 = vmatpush2.msra.mxu0 0.0
        %642 = vmatprep.subr.mxu0 0.0
        %643 = vmatpush2.msra.mxu0 0.0
        %644 = vmatprep.mubr.f32.mxu0 0.0
        %645 = vmatmul.mubr.f32.gmra.mxu0 %v575
        %v646 = vpop.f32.mrf.mxu0
        %v647 = vadd.f32 %v566, %v646
        %v648 = vpop.f32.mrf.mxu0
        %649 = vmatprep.mubr.f32.mxu0 0.0
        %650 = vmatmul.mubr.f32.gmra.mxu0 %v578
        %v651 = vpop.f32.mrf.mxu0
        %v652 = vadd.f32 %v571, %v651
        %v653 = vpop.f32.mrf.mxu0
        %654 = vdwg.mxu0
        %v655 = vmul.f32 %v647, 0.5
        %v656 = vmul.f32 %v652, 0.5
        %v657 = vmul.f32 %v647, 0.70710677
        %v658 = vmul.f32 %v652, 0.70710677
        %v659 = vand.u32 2147483647, %v657
        %v660 = vand.u32 2147483647, %v658
        %v661 = vmul.f32 %v659, 0.3275911
        %v662 = vmul.f32 %v660, 0.3275911
        %v663 = vadd.f32 %v661, 1.0
        %v664 = vadd.f32 %v662, 1.0
        %v665 = vrcp.pop %v663
        %v666 = vmul.f32 1.0, %v665
        %v667 = vrcp.pop %v664
        %v668 = vmul.f32 1.0, %v667
        %v669 = vmul.f32 %v666, 1.0614054
        %v670 = vmul.f32 %v668, 1.0614054
        %v671 = vadd.f32 %v669, -1.4531521
        %v672 = vadd.f32 %v670, -1.4531521
        %v673 = vmul.f32 %v666, %v671
        %v674 = vmul.f32 %v668, %v672
        %v675 = vadd.f32 %v673, 1.4214138
        %v676 = vadd.f32 %v674, 1.4214138
        %v677 = vmul.f32 %v666, %v675
        %v678 = vmul.f32 %v668, %v676
        %v679 = vadd.f32 %v677, -0.28449672
        %v680 = vadd.f32 %v678, -0.28449672
        %v681 = vmul.f32 %v666, %v679
        %v682 = vmul.f32 %v668, %v680
        %v683 = vadd.f32 %v681, 0.2548296
        %v684 = vadd.f32 %v682, 0.2548296
        %v685 = vmul.f32 %v666, %v683
        %v686 = vmul.f32 %v668, %v684
        %v687 = vsub.f32 0.0, %v659
        %v688 = vsub.f32 0.0, %v660
        %v689 = vmul.f32 %v687, %v659
        %v690 = vmul.f32 %v688, %v660
        %v691 = vmul.f32 %v689, 1.442695
        %v692 = vpow.pop %v691
        %v693 = vmul.f32 %v690, 1.442695
        %v694 = vpow.pop %v693
        %v695 = vmul.f32 %v685, %v692
        %v696 = vmul.f32 %v686, %v694
        %v697 = vsub.f32 1.0, %v695
        %v698 = vsub.f32 1.0, %v696
        %vm699 = vcmp.lt.f32.partialorder %v657, 0.0
        %vm700 = vcmp.lt.f32.partialorder %v658, 0.0
        %v701 = vsub.f32 0.0, %v697
        %v702 = vsub.f32 0.0, %v698
        %v703 = vsel %vm699, %v701, %v697
        %v704 = vsel %vm700, %v702, %v698
        %v705 = vadd.f32 %v703, 1.0
        %v706 = vadd.f32 %v704, 1.0
        %v707 = vmul.f32 %v655, %v705
        %v708 = vmul.f32 %v656, %v706
        %710 = vset.pattern.permute.xlu0 0
        %711 = vperm.xlu0 %710, %v559
        %v712 = vpop.permute.xlu0 %711
        %715 = vset.pattern.permute.xlu0 0
        %716 = vperm.xlu0 %715, %v560
        %v717 = vpop.permute.xlu0 %716
        %vm719 = vcmask 130048
        %v721 = vsel %vm719, %v557, 0
        %v724 = vsel %vm719, %v558, 0
        %726 = vmatprep.subr.mxu0 0.0
        %727 = vmatpush1.msra.mxu0 0.0
        %728 = vmatprep.subr.mxu0 0.0
        %729 = vmatpush1.msra.mxu0 0.0
        %730 = vmatprep.subr.mxu0 0.0
        %731 = vmatpush1.msra.mxu0 0.0
        %732 = vmatprep.subr.mxu0 0.0
        %733 = vmatpush1.msra.mxu0 0.0
        %734 = vmatprep.subr.mxu0 0.0
        %735 = vmatpush1.msra.mxu0 0.0
        %736 = vmatprep.subr.mxu0 0.0
        %737 = vmatpush1.msra.mxu0 0.0
        %738 = vmatprep.subr.mxu0 0.0
        %739 = vmatpush1.msra.mxu0 0.0
        %740 = vmatprep.subr.mxu0 0.0
        %741 = vmatpush1.msra.mxu0 0.0
        %742 = vmatprep.subr.mxu0 0.0
        %743 = vmatpush1.msra.mxu0 0.0
        %744 = vmatprep.subr.mxu0 0.0
        %745 = vmatpush1.msra.mxu0 0.0
        %746 = vmatprep.subr.mxu0 0.0
        %747 = vmatpush1.msra.mxu0 0.0
        %748 = vmatprep.subr.mxu0 0.0
        %749 = vmatpush1.msra.mxu0 0.0
        %750 = vmatprep.subr.mxu0 0.0
        %751 = vmatpush1.msra.mxu0 0.0
        %752 = vmatprep.subr.mxu0 0.0
        %753 = vmatpush1.msra.mxu0 0.0
        %754 = vmatprep.subr.mxu0 0.0
        %755 = vmatpush1.msra.mxu0 %v708
        %756 = vmatprep.subr.mxu0 0.0
        %757 = vmatpush1.msra.mxu0 %v707
        %758 = vmatprep.subr.mxu0 0.0
        %759 = vmatpush2.msra.mxu0 0.0
        %760 = vmatprep.subr.mxu0 0.0
        %761 = vmatpush2.msra.mxu0 0.0
        %762 = vmatprep.subr.mxu0 0.0
        %763 = vmatpush2.msra.mxu0 0.0
        %764 = vmatprep.subr.mxu0 0.0
        %765 = vmatpush2.msra.mxu0 0.0
        %766 = vmatprep.subr.mxu0 0.0
        %767 = vmatpush2.msra.mxu0 0.0
        %768 = vmatprep.subr.mxu0 0.0
        %769 = vmatpush2.msra.mxu0 0.0
        %770 = vmatprep.subr.mxu0 0.0
        %771 = vmatpush2.msra.mxu0 0.0
        %772 = vmatprep.subr.mxu0 0.0
        %773 = vmatpush2.msra.mxu0 0.0
        %774 = vmatprep.subr.mxu0 0.0
        %775 = vmatpush2.msra.mxu0 0.0
        %776 = vmatprep.subr.mxu0 0.0
        %777 = vmatpush2.msra.mxu0 0.0
        %778 = vmatprep.subr.mxu0 0.0
        %779 = vmatpush2.msra.mxu0 0.0
        %780 = vmatprep.subr.mxu0 0.0
        %781 = vmatpush2.msra.mxu0 0.0
        %782 = vmatprep.subr.mxu0 0.0
        %783 = vmatpush2.msra.mxu0 0.0
        %784 = vmatprep.subr.mxu0 0.0
        %785 = vmatpush2.msra.mxu0 0.0
        %786 = vmatprep.subr.mxu0 0.0
        %787 = vmatpush2.msra.mxu0 0.0
        %788 = vmatprep.subr.mxu0 0.0
        %789 = vmatpush2.msra.mxu0 0.0
        %790 = vmatprep.mubr.f32.mxu0 0.0
        %791 = vmatmul.mubr.f32.gmra.mxu0 %v721
        %v792 = vpop.f32.mrf.mxu0
        %v793 = vadd.f32 %v712, %v792
        %v794 = vpop.f32.mrf.mxu0
        %795 = vmatprep.mubr.f32.mxu0 0.0
        %796 = vmatmul.mubr.f32.gmra.mxu0 %v724
        %v797 = vpop.f32.mrf.mxu0
        %v798 = vadd.f32 %v717, %v797
        %v799 = vpop.f32.mrf.mxu0
        %800 = vdwg.mxu0
        %v801 = vadd.f32 %v561, %v793
        %v802 = vadd.f32 %v562, %v798
        %803 = vst [vmem:[%s544] sm:$0xff] %v801
        %804 = vst [vmem:[%s544 + $0x8] sm:$0xff] %v802
        %v805 = vld [vmem:[%s7] sm:$0xff]
        %v806 = vld [vmem:[%s7 + $0x8] sm:$0xff]
        %v807 = vld [vmem:[%s7 + $0x10] sm:$0xff]
        %v808 = vld [vmem:[%s7 + $0x18] sm:$0xff]
        %v809 = vld [vmem:[%s8] sm:$0xff]
        %v810 = vld [vmem:[%s8 + $0x8] sm:$0xff]
        %v811 = vld [vmem:[%s8 + $0x10] sm:$0xff]
        %v812 = vld [vmem:[%s8 + $0x18] sm:$0xff]
        %v813 = vld [vmem:[%s9] sm:$0xff]
        %v814 = vld [vmem:[%s9 + $0x8] sm:$0xff]
        %v815 = vld [vmem:[%s9 + $0x10] sm:$0xff]
        %v816 = vld [vmem:[%s9 + $0x18] sm:$0xff]
        %v817 = vld [vmem:[%s10] sm:$0xff]
        %v818 = vld [vmem:[%s10 + $0x8] sm:$0xff]
        %v819 = vld [vmem:[%s10 + $0x10] sm:$0xff]
        %v820 = vld [vmem:[%s10 + $0x18] sm:$0xff]
        %v821 = vld [vmem:[%s493] sm:$0xff]
        %v822 = vld [vmem:[%s493 + $0x8] sm:$0xff]
        %v823 = vld [vmem:[%s493 + $0x10] sm:$0xff]
        %v824 = vld [vmem:[%s493 + $0x18] sm:$0xff]
        %826 = vset.pattern.permute.xlu0 0
        %827 = vperm.xlu0 %826, %v809
        %v828 = vpop.permute.xlu0 %827
        %831 = vset.pattern.permute.xlu0 0
        %832 = vperm.xlu0 %831, %v810
        %v833 = vpop.permute.xlu0 %832
        %836 = vset.pattern.permute.xlu0 0
        %837 = vperm.xlu0 %836, %v811
        %v838 = vpop.permute.xlu0 %837
        %841 = vset.pattern.permute.xlu0 0
        %842 = vperm.xlu0 %841, %v812
        %v843 = vpop.permute.xlu0 %842
        %v846 = vsel %vm719, %v805, 0
        %v849 = vsel %vm719, %v806, 0
        %v852 = vsel %vm719, %v807, 0
        %v855 = vsel %vm719, %v808, 0
        %857 = vmatprep.subr.mxu0 0.0
        %858 = vmatpush1.msra.mxu0 0.0
        %859 = vmatprep.subr.mxu0 0.0
        %860 = vmatpush1.msra.mxu0 0.0
        %861 = vmatprep.subr.mxu0 0.0
        %862 = vmatpush1.msra.mxu0 0.0
        %863 = vmatprep.subr.mxu0 0.0
        %864 = vmatpush1.msra.mxu0 0.0
        %865 = vmatprep.subr.mxu0 0.0
        %866 = vmatpush1.msra.mxu0 0.0
        %867 = vmatprep.subr.mxu0 0.0
        %868 = vmatpush1.msra.mxu0 0.0
        %869 = vmatprep.subr.mxu0 0.0
        %870 = vmatpush1.msra.mxu0 0.0
        %871 = vmatprep.subr.mxu0 0.0
        %872 = vmatpush1.msra.mxu0 0.0
        %873 = vmatprep.subr.mxu0 0.0
        %874 = vmatpush1.msra.mxu0 0.0
        %875 = vmatprep.subr.mxu0 0.0
        %876 = vmatpush1.msra.mxu0 0.0
        %877 = vmatprep.subr.mxu0 0.0
        %878 = vmatpush1.msra.mxu0 0.0
        %879 = vmatprep.subr.mxu0 0.0
        %880 = vmatpush1.msra.mxu0 0.0
        %881 = vmatprep.subr.mxu0 0.0
        %882 = vmatpush1.msra.mxu0 0.0
        %883 = vmatprep.subr.mxu0 0.0
        %884 = vmatpush1.msra.mxu0 0.0
        %885 = vmatprep.subr.mxu0 0.0
        %886 = vmatpush1.msra.mxu0 %v802
        %887 = vmatprep.subr.mxu0 0.0
        %888 = vmatpush1.msra.mxu0 %v801
        %889 = vmatprep.subr.mxu0 0.0
        %890 = vmatpush2.msra.mxu0 0.0
        %891 = vmatprep.subr.mxu0 0.0
        %892 = vmatpush2.msra.mxu0 0.0
        %893 = vmatprep.subr.mxu0 0.0
        %894 = vmatpush2.msra.mxu0 0.0
        %895 = vmatprep.subr.mxu0 0.0
        %896 = vmatpush2.msra.mxu0 0.0
        %897 = vmatprep.subr.mxu0 0.0
        %898 = vmatpush2.msra.mxu0 0.0
        %899 = vmatprep.subr.mxu0 0.0
        %900 = vmatpush2.msra.mxu0 0.0
        %901 = vmatprep.subr.mxu0 0.0
        %902 = vmatpush2.msra.mxu0 0.0
        %903 = vmatprep.subr.mxu0 0.0
        %904 = vmatpush2.msra.mxu0 0.0
        %905 = vmatprep.subr.mxu0 0.0
        %906 = vmatpush2.msra.mxu0 0.0
        %907 = vmatprep.subr.mxu0 0.0
        %908 = vmatpush2.msra.mxu0 0.0
        %909 = vmatprep.subr.mxu0 0.0
        %910 = vmatpush2.msra.mxu0 0.0
        %911 = vmatprep.subr.mxu0 0.0
        %912 = vmatpush2.msra.mxu0 0.0
        %913 = vmatprep.subr.mxu0 0.0
        %914 = vmatpush2.msra.mxu0 0.0
        %915 = vmatprep.subr.mxu0 0.0
        %916 = vmatpush2.msra.mxu0 0.0
        %917 = vmatprep.subr.mxu0 0.0
        %918 = vmatpush2.msra.mxu0 0.0
        %919 = vmatprep.subr.mxu0 0.0
        %920 = vmatpush2.msra.mxu0 0.0
        %921 = vmatprep.mubr.f32.mxu0 0.0
        %922 = vmatmul.mubr.f32.gmra.mxu0 %v846
        %v923 = vpop.f32.mrf.mxu0
        %v924 = vadd.f32 %v828, %v923
        %v925 = vpop.f32.mrf.mxu0
        %926 = vmatprep.mubr.f32.mxu0 0.0
        %927 = vmatmul.mubr.f32.gmra.mxu0 %v849
        %v928 = vpop.f32.mrf.mxu0
        %v929 = vadd.f32 %v833, %v928
        %v930 = vpop.f32.mrf.mxu0
        %931 = vmatprep.mubr.f32.mxu0 0.0
        %932 = vmatmul.mubr.f32.gmra.mxu0 %v852
        %v933 = vpop.f32.mrf.mxu0
        %v934 = vadd.f32 %v838, %v933
        %v935 = vpop.f32.mrf.mxu0
        %936 = vmatprep.mubr.f32.mxu0 0.0
        %937 = vmatmul.mubr.f32.gmra.mxu0 %v855
        %v938 = vpop.f32.mrf.mxu0
        %v939 = vadd.f32 %v843, %v938
        %v940 = vpop.f32.mrf.mxu0
        %941 = vdwg.mxu0
        %v942 = vmul.f32 %v924, 0.5
        %v943 = vmul.f32 %v929, 0.5
        %v944 = vmul.f32 %v934, 0.5
        %v945 = vmul.f32 %v939, 0.5
        %v946 = vmul.f32 %v924, 0.70710677
        %v947 = vmul.f32 %v929, 0.70710677
        %v948 = vmul.f32 %v934, 0.70710677
        %v949 = vmul.f32 %v939, 0.70710677
        %v950 = vand.u32 2147483647, %v946
        %v951 = vand.u32 2147483647, %v947
        %v952 = vand.u32 2147483647, %v948
        %v953 = vand.u32 2147483647, %v949
        %v954 = vmul.f32 %v950, 0.3275911
        %v955 = vmul.f32 %v951, 0.3275911
        %v956 = vmul.f32 %v952, 0.3275911
        %v957 = vmul.f32 %v953, 0.3275911
        %v958 = vadd.f32 %v954, 1.0
        %v959 = vadd.f32 %v955, 1.0
        %v960 = vadd.f32 %v956, 1.0
        %v961 = vadd.f32 %v957, 1.0
        %v962 = vrcp.pop %v958
        %v963 = vmul.f32 1.0, %v962
        %v964 = vrcp.pop %v959
        %v965 = vmul.f32 1.0, %v964
        %v966 = vrcp.pop %v960
        %v967 = vmul.f32 1.0, %v966
        %v968 = vrcp.pop %v961
        %v969 = vmul.f32 1.0, %v968
        %v970 = vmul.f32 %v963, 1.0614054
        %v971 = vmul.f32 %v965, 1.0614054
        %v972 = vmul.f32 %v967, 1.0614054
        %v973 = vmul.f32 %v969, 1.0614054
        %v974 = vadd.f32 %v970, -1.4531521
        %v975 = vadd.f32 %v971, -1.4531521
        %v976 = vadd.f32 %v972, -1.4531521
        %v977 = vadd.f32 %v973, -1.4531521
        %v978 = vmul.f32 %v963, %v974
        %v979 = vmul.f32 %v965, %v975
        %v980 = vmul.f32 %v967, %v976
        %v981 = vmul.f32 %v969, %v977
        %v982 = vadd.f32 %v978, 1.4214138
        %v983 = vadd.f32 %v979, 1.4214138
        %v984 = vadd.f32 %v980, 1.4214138
        %v985 = vadd.f32 %v981, 1.4214138
        %v986 = vmul.f32 %v963, %v982
        %v987 = vmul.f32 %v965, %v983
        %v988 = vmul.f32 %v967, %v984
        %v989 = vmul.f32 %v969, %v985
        %v990 = vadd.f32 %v986, -0.28449672
        %v991 = vadd.f32 %v987, -0.28449672
        %v992 = vadd.f32 %v988, -0.28449672
        %v993 = vadd.f32 %v989, -0.28449672
        %v994 = vmul.f32 %v963, %v990
        %v995 = vmul.f32 %v965, %v991
        %v996 = vmul.f32 %v967, %v992
        %v997 = vmul.f32 %v969, %v993
        %v998 = vadd.f32 %v994, 0.2548296
        %v999 = vadd.f32 %v995, 0.2548296
        %v1000 = vadd.f32 %v996, 0.2548296
        %v1001 = vadd.f32 %v997, 0.2548296
        %v1002 = vmul.f32 %v963, %v998
        %v1003 = vmul.f32 %v965, %v999
        %v1004 = vmul.f32 %v967, %v1000
        %v1005 = vmul.f32 %v969, %v1001
        %v1006 = vsub.f32 0.0, %v950
        %v1007 = vsub.f32 0.0, %v951
        %v1008 = vsub.f32 0.0, %v952
        %v1009 = vsub.f32 0.0, %v953
        %v1010 = vmul.f32 %v1006, %v950
        %v1011 = vmul.f32 %v1007, %v951
        %v1012 = vmul.f32 %v1008, %v952
        %v1013 = vmul.f32 %v1009, %v953
        %v1014 = vmul.f32 %v1010, 1.442695
        %v1015 = vpow.pop %v1014
        %v1016 = vmul.f32 %v1011, 1.442695
        %v1017 = vpow.pop %v1016
        %v1018 = vmul.f32 %v1012, 1.442695
        %v1019 = vpow.pop %v1018
        %v1020 = vmul.f32 %v1013, 1.442695
        %v1021 = vpow.pop %v1020
        %v1022 = vmul.f32 %v1002, %v1015
        %v1023 = vmul.f32 %v1003, %v1017
        %v1024 = vmul.f32 %v1004, %v1019
        %v1025 = vmul.f32 %v1005, %v1021
        %v1026 = vsub.f32 1.0, %v1022
        %v1027 = vsub.f32 1.0, %v1023
        %v1028 = vsub.f32 1.0, %v1024
        %v1029 = vsub.f32 1.0, %v1025
        %vm1030 = vcmp.lt.f32.partialorder %v946, 0.0
        %vm1031 = vcmp.lt.f32.partialorder %v947, 0.0
        %vm1032 = vcmp.lt.f32.partialorder %v948, 0.0
        %vm1033 = vcmp.lt.f32.partialorder %v949, 0.0
        %v1034 = vsub.f32 0.0, %v1026
        %v1035 = vsub.f32 0.0, %v1027
        %v1036 = vsub.f32 0.0, %v1028
        %v1037 = vsub.f32 0.0, %v1029
        %v1038 = vsel %vm1030, %v1034, %v1026
        %v1039 = vsel %vm1031, %v1035, %v1027
        %v1040 = vsel %vm1032, %v1036, %v1028
        %v1041 = vsel %vm1033, %v1037, %v1029
        %v1042 = vadd.f32 %v1038, 1.0
        %v1043 = vadd.f32 %v1039, 1.0
        %v1044 = vadd.f32 %v1040, 1.0
        %v1045 = vadd.f32 %v1041, 1.0
        %v1046 = vmul.f32 %v942, %v1042
        %v1047 = vmul.f32 %v943, %v1043
        %v1048 = vmul.f32 %v944, %v1044
        %v1049 = vmul.f32 %v945, %v1045
        %1051 = vset.pattern.permute.xlu0 0
        %1052 = vperm.xlu0 %1051, %v817
        %v1053 = vpop.permute.xlu0 %1052
        %1056 = vset.pattern.permute.xlu0 0
        %1057 = vperm.xlu0 %1056, %v818
        %v1058 = vpop.permute.xlu0 %1057
        %1061 = vset.pattern.permute.xlu0 0
        %1062 = vperm.xlu0 %1061, %v819
        %v1063 = vpop.permute.xlu0 %1062
        %1066 = vset.pattern.permute.xlu0 0
        %1067 = vperm.xlu0 %1066, %v820
        %v1068 = vpop.permute.xlu0 %1067
        %vm1070 = vcmask 261120
        %v1072 = vsel %vm1070, %v813, 0
        %v1075 = vsel %vm1070, %v814, 0
        %v1078 = vsel %vm1070, %v815, 0
        %v1081 = vsel %vm1070, %v816, 0
        %1083 = vmatprep.subr.mxu0 0.0
        %1084 = vmatpush1.msra.mxu0 0.0
        %1085 = vmatprep.subr.mxu0 0.0
        %1086 = vmatpush1.msra.mxu0 0.0
        %1087 = vmatprep.subr.mxu0 0.0
        %1088 = vmatpush1.msra.mxu0 0.0
        %1089 = vmatprep.subr.mxu0 0.0
        %1090 = vmatpush1.msra.mxu0 0.0
        %1091 = vmatprep.subr.mxu0 0.0
        %1092 = vmatpush1.msra.mxu0 0.0
        %1093 = vmatprep.subr.mxu0 0.0
        %1094 = vmatpush1.msra.mxu0 0.0
        %1095 = vmatprep.subr.mxu0 0.0
        %1096 = vmatpush1.msra.mxu0 0.0
        %1097 = vmatprep.subr.mxu0 0.0
        %1098 = vmatpush1.msra.mxu0 0.0
        %1099 = vmatprep.subr.mxu0 0.0
        %1100 = vmatpush1.msra.mxu0 0.0
        %1101 = vmatprep.subr.mxu0 0.0
        %1102 = vmatpush1.msra.mxu0 0.0
        %1103 = vmatprep.subr.mxu0 0.0
        %1104 = vmatpush1.msra.mxu0 0.0
        %1105 = vmatprep.subr.mxu0 0.0
        %1106 = vmatpush1.msra.mxu0 0.0
        %1107 = vmatprep.subr.mxu0 0.0
        %1108 = vmatpush1.msra.mxu0 %v1049
        %1109 = vmatprep.subr.mxu0 0.0
        %1110 = vmatpush1.msra.mxu0 %v1048
        %1111 = vmatprep.subr.mxu0 0.0
        %1112 = vmatpush1.msra.mxu0 %v1047
        %1113 = vmatprep.subr.mxu0 0.0
        %1114 = vmatpush1.msra.mxu0 %v1046
        %1115 = vmatprep.subr.mxu0 0.0
        %1116 = vmatpush2.msra.mxu0 0.0
        %1117 = vmatprep.subr.mxu0 0.0
        %1118 = vmatpush2.msra.mxu0 0.0
        %1119 = vmatprep.subr.mxu0 0.0
        %1120 = vmatpush2.msra.mxu0 0.0
        %1121 = vmatprep.subr.mxu0 0.0
        %1122 = vmatpush2.msra.mxu0 0.0
        %1123 = vmatprep.subr.mxu0 0.0
        %1124 = vmatpush2.msra.mxu0 0.0
        %1125 = vmatprep.subr.mxu0 0.0
        %1126 = vmatpush2.msra.mxu0 0.0
        %1127 = vmatprep.subr.mxu0 0.0
        %1128 = vmatpush2.msra.mxu0 0.0
        %1129 = vmatprep.subr.mxu0 0.0
        %1130 = vmatpush2.msra.mxu0 0.0
        %1131 = vmatprep.subr.mxu0 0.0
        %1132 = vmatpush2.msra.mxu0 0.0
        %1133 = vmatprep.subr.mxu0 0.0
        %1134 = vmatpush2.msra.mxu0 0.0
        %1135 = vmatprep.subr.mxu0 0.0
        %1136 = vmatpush2.msra.mxu0 0.0
        %1137 = vmatprep.subr.mxu0 0.0
        %1138 = vmatpush2.msra.mxu0 0.0
        %1139 = vmatprep.subr.mxu0 0.0
        %1140 = vmatpush2.msra.mxu0 0.0
        %1141 = vmatprep.subr.mxu0 0.0
        %1142 = vmatpush2.msra.mxu0 0.0
        %1143 = vmatprep.subr.mxu0 0.0
        %1144 = vmatpush2.msra.mxu0 0.0
        %1145 = vmatprep.subr.mxu0 0.0
        %1146 = vmatpush2.msra.mxu0 0.0
        %1147 = vmatprep.mubr.f32.mxu0 0.0
        %1148 = vmatmul.mubr.f32.gmra.mxu0 %v1072
        %v1149 = vpop.f32.mrf.mxu0
        %v1150 = vadd.f32 %v1053, %v1149
        %v1151 = vpop.f32.mrf.mxu0
        %1152 = vmatprep.mubr.f32.mxu0 0.0
        %1153 = vmatmul.mubr.f32.gmra.mxu0 %v1075
        %v1154 = vpop.f32.mrf.mxu0
        %v1155 = vadd.f32 %v1058, %v1154
        %v1156 = vpop.f32.mrf.mxu0
        %1157 = vmatprep.mubr.f32.mxu0 0.0
        %1158 = vmatmul.mubr.f32.gmra.mxu0 %v1078
        %v1159 = vpop.f32.mrf.mxu0
        %v1160 = vadd.f32 %v1063, %v1159
        %v1161 = vpop.f32.mrf.mxu0
        %1162 = vmatprep.mubr.f32.mxu0 0.0
        %1163 = vmatmul.mubr.f32.gmra.mxu0 %v1081
        %v1164 = vpop.f32.mrf.mxu0
        %v1165 = vadd.f32 %v1068, %v1164
        %v1166 = vpop.f32.mrf.mxu0
        %1167 = vdwg.mxu0
        %v1168 = vadd.f32 %v821, %v1150
        %v1169 = vadd.f32 %v822, %v1155
        %v1170 = vadd.f32 %v823, %v1160
        %v1171 = vadd.f32 %v824, %v1165
        %1172 = vst [vmem:[%s551] sm:$0xff] %v1168
        %1173 = vst [vmem:[%s551 + $0x8] sm:$0xff] %v1169
        %1174 = vst [vmem:[%s551 + $0x10] sm:$0xff] %v1170
        %1175 = vst [vmem:[%s551 + $0x18] sm:$0xff] %v1171
        %s1176 = sand.u32 %s290, 1
        %s1177 = scalar_lea.sflag [#allocation4], %s1176
        %s1178 = sand.u32 %s290, 1
        %s1179 = smul.addr %s1178, 16
        %s1180 = scalar_lea.vmem [#allocation9], %s1179
        %s1181 = sand.u32 %s316, 1
        %s1182 = scalar_lea.sflag [#allocation11], %s1181
        %s1183 = sand.u32 %s316, 1
        %s1184 = smul.addr %s1183, 32
        %s1185 = scalar_lea.vmem [#allocation10], %s1184
        // Predicated region
        $region115: #{tpu_custom_call.1} parent=97 // pred_check
          %p1186 = pneg %p300
        $region116: #{tpu_custom_call.1} parent=97 // pred_check_branch
          %1188 = sbr.rel (%p1186) target = $region118
        $region117: #{tpu_custom_call.1} parent=97 // pred_region
          %s1190 = ssub.s32 256, 256
          %1191 = vsyncadd %s1177, %s1190
          %s1192 = smul.addr %s36, 128
          %s1193 = scalar_lea.hbm %s11, %s1192
          %s1194 = sshll.u32 %s1180, 4
          %s1195 = int_to_ptr.vmem [resolvable:$true] %s1194
          %1200 = dma.vmem_to_hbm [thread:$0]  %s1195, 256, %s1193, %s1177, 128, 1024, 8
        $region118: #{tpu_custom_call.1} parent=97 // pred_fallthru
          _
        // Predicated region
        $region119: #{tpu_custom_call.1} parent=97 // pred_check
          %p1201 = pneg %p326
        $region120: #{tpu_custom_call.1} parent=97 // pred_check_branch
          %1203 = sbr.rel (%p1201) target = $region122
        $region121: #{tpu_custom_call.1} parent=97 // pred_region
          %s1205 = ssub.s32 512, 512
          %1206 = vsyncadd %s1182, %s1205
          %s1207 = smul.addr %s36, 128
          %s1208 = scalar_lea.hbm %s12, %s1207
          %s1209 = sshll.u32 %s1185, 4
          %s1210 = int_to_ptr.vmem [resolvable:$true] %s1209
          %1215 = dma.vmem_to_hbm [thread:$0]  %s1210, 512, %s1208, %s1182, 128, 1024, 8
        $region122: #{tpu_custom_call.1} parent=97 // pred_fallthru
          _
      $region98: #{tpu_custom_call.1} parent=5 // pred_fallthru
        _
      %p1216 = scmp.le.s32.totalorder 2, %s31
      // Predicated region
      $region123: #{tpu_custom_call.1} parent=5 // pred_check
        %p1217 = pneg %p1216
      $region124: #{tpu_custom_call.1} parent=5 // pred_check_branch
        %1219 = sbr.rel (%p1217) target = $region126
      $region125: #{tpu_custom_call.1} parent=5 // pred_region
        %s1220 = ssub.s32 %s31, 2
        // Predicated region
        $region127: #{tpu_custom_call.1} parent=125 // pred_check
          %p1221 = pneg %p306
        $region128: #{tpu_custom_call.1} parent=125 // pred_check_branch
          %1223 = sbr.rel (%p1221) target = $region130
        $region129: #{tpu_custom_call.1} parent=125 // pred_region
          %s1224 = sand.u32 %s291, 1
          %s1225 = scalar_lea.sflag [#allocation4], %s1224
          %s1226 = sand.u32 %s291, 1
          %s1227 = smul.addr %s1226, 16
          %s1228 = scalar_lea.vmem [#allocation9], %s1227
          %1229 = dma.done %s1225, 256
        $region130: #{tpu_custom_call.1} parent=125 // pred_fallthru
          _
        // Predicated region
        $region131: #{tpu_custom_call.1} parent=125 // pred_check
          %p1230 = pneg %p332
        $region132: #{tpu_custom_call.1} parent=125 // pred_check_branch
          %1232 = sbr.rel (%p1230) target = $region134
        $region133: #{tpu_custom_call.1} parent=125 // pred_region
          %s1233 = sand.u32 %s317, 1
          %s1234 = scalar_lea.sflag [#allocation11], %s1233
          %s1235 = sand.u32 %s317, 1
          %s1236 = smul.addr %s1235, 32
          %s1237 = scalar_lea.vmem [#allocation10], %s1236
          %1238 = dma.done %s1234, 512
        $region134: #{tpu_custom_call.1} parent=125 // pred_fallthru
          _
      $region126: #{tpu_custom_call.1} parent=5 // pred_fallthru
        _
    $region6: #{tpu_custom_call.1} parent=1 // loop_footer
      %s35 = sadd.s32 1, %s31
    $region7: #{tpu_custom_call.1} parent=1 // loop_footer_branch
      %30 = sbr.rel target = $region3
    $region8: #{tpu_custom_call.1} parent=1 // loop_exit
      _
    %1239 = vsyncpa [#allocation3], 1
    %s1240 = scalar_lea.sflag [#allocation3], 1
    %1241 = vsyncpa %s1240, 1
    %1242 = vsyncpa [#allocation7], 1
    %s1243 = scalar_lea.sflag [#allocation7], 1
    %1244 = vsyncpa %s1243, 1
    %1245 = vsyncpa [#allocation4], 1
    %s1246 = scalar_lea.sflag [#allocation4], 1
    %1247 = vsyncpa %s1246, 1
    %1248 = vsyncpa [#allocation11], 1
    %s1249 = scalar_lea.sflag [#allocation11], 1
    %1250 = vsyncpa %s1249, 1

// kernel: tpu_custom_call.1
$region0: #{tpu_custom_call.1}
  #allocation0 [shape = 'u32[]', space=smem, size = 0x4, offset = 0x4, fixed_abs, tag = 'smem constant byte address 0x4 - core index']
  #allocation1 [shape = 'u32[144,128]{1,0:T(1,128)}', space=vmem, size = 0x12000, scoped, tag = 'internal scratch']
  %s0 = inlined_call_operand.hbm [shape: f32[8,1024], index: 0, kind: input, shape index: {}]
  %s1 = inlined_call_operand.vmem [shape: f32[16,1024], index: 1, kind: input, shape index: {}]
  %s2 = inlined_call_operand.hbm [shape: f32[32,1024], index: 2, kind: input, shape index: {}]
  %s3 = inlined_call_operand.vmem [shape: f32[16,8], index: 3, kind: input, shape index: {}]
  %s4 = inlined_call_operand.vmem [shape: f32[16,1], index: 4, kind: input, shape index: {}]
  %s5 = inlined_call_operand.hbm [shape: f32[16,16], index: 5, kind: input, shape index: {}]
  %s6 = inlined_call_operand.vmem [shape: f32[16,1], index: 6, kind: input, shape index: {}]
  %s7 = inlined_call_operand.vmem [shape: f32[32,16], index: 7, kind: input, shape index: {}]
  %s8 = inlined_call_operand.vmem [shape: f32[32,1], index: 8, kind: input, shape index: {}]
  %s9 = inlined_call_operand.vmem [shape: f32[32,32], index: 9, kind: input, shape index: {}]
  %s10 = inlined_call_operand.vmem [shape: f32[32,1], index: 10, kind: input, shape index: {}]
  %s11 = inlined_call_operand.hbm [shape: f32[16,1024], index: 11, kind: output, shape index: {0}]
  %s12 = inlined_call_operand.hbm [shape: f32[32,1024], index: 12, kind: output, shape index: {1}]
  %13 = xla_tuple %s11, %s12
  %s14 = sld [smem:[#allocation0]]
  $region135: #{tpu_custom_call.1} parent=0
    _
  %s16 = ssub.s32 1, %s14
  %s17 = scalar_select 0, %s16, %s14
  $region1: #{tpu_custom_call.1} parent=0
    #allocation2 [shape = 'u8[8192]{0}', space=vmem, size = 0x2000, scoped, tag = 'input window, operand 0']
    #allocation3 [shape = 's32[2]{0}', space=sflag, size = 0x8, scoped, tag = 'scoped memory for tpu_custom_call.1']
    #allocation4 [shape = 's32[2]{0}', space=sflag, size = 0x8, scoped, tag = 'scoped memory for tpu_custom_call.1']
    #allocation5 [shape = 'u8[16384]{0}', space=vmem, size = 0x4000, scoped, tag = 'input window, operand 1']
    #allocation6 [shape = 'u8[32768]{0}', space=vmem, size = 0x8000, scoped, tag = 'input window, operand 2']
    #allocation7 [shape = 's32[2]{0}', space=sflag, size = 0x8, scoped, tag = 'scoped memory for tpu_custom_call.1']
    #allocation8 [shape = 'u8[8192]{0}', space=vmem, size = 0x2000, scoped, tag = 'input window, operand 5, single buffered']
    #allocation9 [shape = 'u8[16384]{0}', space=vmem, size = 0x4000, scoped, tag = 'output window, operand 0']
    #allocation10 [shape = 'u8[32768]{0}', space=vmem, size = 0x8000, scoped, tag = 'output window, operand 1']
    #allocation11 [shape = 's32[2]{0}', space=sflag, size = 0x8, scoped, tag = 'scoped memory for tpu_custom_call.1']
    %18 = vsyncpa [#allocation3], 0
    %s19 = scalar_lea.sflag [#allocation3], 1
    %20 = vsyncpa %s19, 0
    %21 = vsyncpa [#allocation7], 0
    %s22 = scalar_lea.sflag [#allocation7], 1
    %23 = vsyncpa %s22, 0
    %24 = vsyncpa [#allocation4], 0
    %s25 = scalar_lea.sflag [#allocation4], 1
    %26 = vsyncpa %s25, 0
    %27 = vsyncpa [#allocation11], 0
    %s28 = scalar_lea.sflag [#allocation11], 1
    %29 = vsyncpa %s28, 0
    loop: start=0, step=1, limit=10
    $region2: #{tpu_custom_call.1} parent=1 // loop_pre_header
      _
    $region3: #{tpu_custom_call.1} parent=1 // loop_header
      %s31 = sphi 0, %s35
      %p32 = scmp.ge.s32.totalorder %s31, 10
      %s41 = sphi 0, %s43
      %s44 = sphi 0, %s41
      %s45 = sphi 0, %s44
      %s61 = sphi 0, %s45
      %s67 = sphi 0, %s69
      %s70 = sphi 0, %s67
      %s71 = sphi 0, %s70
      %s87 = sphi 0, %s71
      %s93 = sphi 0, %s95
      %s96 = sphi 0, %s93
      %s97 = sphi 0, %s96
      %s113 = sphi 0, %s97
      %s117 = sphi 0, %s117
      %s119 = sphi 0, %s117
      %s120 = sphi 0, %s119
      %s134 = sphi 0, %s120
      %s138 = sphi 0, %s138
      %s140 = sphi 0, %s138
      %s141 = sphi 0, %s140
      %s155 = sphi 0, %s141
      %s159 = sphi 0, %s159
      %s161 = sphi 0, %s159
      %s162 = sphi 0, %s161
      %s176 = sphi 0, %s162
      %s180 = sphi 0, %s180
      %s182 = sphi 0, %s180
      %s183 = sphi 0, %s182
      %s197 = sphi 0, %s183
      %s201 = sphi 0, %s201
      %s203 = sphi 0, %s201
      %s204 = sphi 0, %s203
      %s218 = sphi 0, %s204
      %s222 = sphi 0, %s222
      %s224 = sphi 0, %s222
      %s225 = sphi 0, %s224
      %s239 = sphi 0, %s225
      %s243 = sphi 0, %s243
      %s245 = sphi 0, %s243
      %s246 = sphi 0, %s245
      %s260 = sphi 0, %s246
      %s264 = sphi 0, %s264
      %s266 = sphi 0, %s264
      %s267 = sphi 0, %s266
      %s281 = sphi 0, %s267
      %s287 = sphi 0, %s289
      %s290 = sphi 0, %s287
      %s291 = sphi 0, %s290
      %s307 = sphi 0, %s291
      %s313 = sphi 0, %s315
      %s316 = sphi 0, %s313
      %s317 = sphi 0, %s316
      %s333 = sphi 0, %s317
    $region4: #{tpu_custom_call.1} parent=1 // loop_header_branch
      %34 = sbr.rel (%p32) target = $region8
    $region5: #{tpu_custom_call.1} parent=1 // loop_body
      %s36 = ssub.s32 %s31, 1
      %s37 = ssub.s32 %s31, 2
      %s38 = sadd.s32 %s31, 1
      %s39 = ssub.s32 %s31, %s38
      %p40 = scmp.eq.s32.totalorder %s39, 0
      %s42 = sadd.s32 %s41, 1
      %s43 = scalar_select %p40, %s41, %s42
      %p46 = pneg %p40
      %p47 = scmp.eq.s32.totalorder %s31, 7
      %p48 = por %p46, %p47
      %p49 = scmp.ne.s32.totalorder %s41, %s44
      %p50 = scmp.eq.s32.totalorder %s31, 0
      %p51 = por %p49, %p50
      %p52 = scmp.ne.s32.totalorder %s41, %s44
      %p53 = scmp.eq.s32.totalorder %s36, 7
      %p54 = por %p52, %p53
      %p55 = scmp.ne.s32.totalorder %s44, %s45
      %p56 = scmp.eq.s32.totalorder %s36, 0
      %p57 = por %p55, %p56
      %p58 = scmp.ne.s32.totalorder %s44, %s45
      %p59 = scmp.eq.s32.totalorder %s37, 7
      %p60 = por %p58, %p59
      %p62 = scmp.ne.s32.totalorder %s45, %s61
      %p63 = scmp.eq.s32.totalorder %s37, 0
      %p64 = por %p62, %p63
      %s65 = ssub.s32 %s31, %s38
      %p66 = scmp.eq.s32.totalorder %s65, 0
      %s68 = sadd.s32 %s67, 1
      %s69 = scalar_select %p66, %s67, %s68
      %p72 = pneg %p66
      %p73 = scmp.eq.s32.totalorder %s31, 7
      %p74 = por %p72, %p73
      %p75 = scmp.ne.s32.totalorder %s67, %s70
      %p76 = scmp.eq.s32.totalorder %s31, 0
      %p77 = por %p75, %p76
      %p78 = scmp.ne.s32.totalorder %s67, %s70
      %p79 = scmp.eq.s32.totalorder %s36, 7
      %p80 = por %p78, %p79
      %p81 = scmp.ne.s32.totalorder %s70, %s71
      %p82 = scmp.eq.s32.totalorder %s36, 0
      %p83 = por %p81, %p82
      %p84 = scmp.ne.s32.totalorder %s70, %s71
      %p85 = scmp.eq.s32.totalorder %s37, 7
      %p86 = por %p84, %p85
      %p88 = scmp.ne.s32.totalorder %s71, %s87
      %p89 = scmp.eq.s32.totalorder %s37, 0
      %p90 = por %p88, %p89
      %s91 = ssub.s32 %s31, %s38
      %p92 = scmp.eq.s32.totalorder %s91, 0
      %s94 = sadd.s32 %s93, 1
      %s95 = scalar_select %p92, %s93, %s94
      %p98 = pneg %p92
      %p99 = scmp.eq.s32.totalorder %s31, 7
      %p100 = por %p98, %p99
      %p101 = scmp.ne.s32.totalorder %s93, %s96
      %p102 = scmp.eq.s32.totalorder %s31, 0
      %p103 = por %p101, %p102
      %p104 = scmp.ne.s32.totalorder %s93, %s96
      %p105 = scmp.eq.s32.totalorder %s36, 7
      %p106 = por %p104, %p105
      %p107 = scmp.ne.s32.totalorder %s96, %s97
      %p108 = scmp.eq.s32.totalorder %s36, 0
      %p109 = por %p107, %p108
      %p110 = scmp.ne.s32.totalorder %s96, %s97
      %p111 = scmp.eq.s32.totalorder %s37, 7
      %p112 = por %p110, %p111
      %p114 = scmp.ne.s32.totalorder %s97, %s113
      %p115 = scmp.eq.s32.totalorder %s37, 0
      %p116 = por %p114, %p115
      %s118 = sadd.s32 %s117, 1
      %p121 = scmp.eq.s32.totalorder %s31, 7
      %p122 = scmp.ne.s32.totalorder %s117, %s119
      %p123 = scmp.eq.s32.totalorder %s31, 0
      %p124 = por %p122, %p123
      %p125 = scmp.ne.s32.totalorder %s117, %s119
      %p126 = scmp.eq.s32.totalorder %s36, 7
      %p127 = por %p125, %p126
      %p128 = scmp.ne.s32.totalorder %s119, %s120
      %p129 = scmp.eq.s32.totalorder %s36, 0
      %p130 = por %p128, %p129
      %p131 = scmp.ne.s32.totalorder %s119, %s120
      %p132 = scmp.eq.s32.totalorder %s37, 7
      %p133 = por %p131, %p132
      %p135 = scmp.ne.s32.totalorder %s120, %s134
      %p136 = scmp.eq.s32.totalorder %s37, 0
      %p137 = por %p135, %p136
      %s139 = sadd.s32 %s138, 1
      %p142 = scmp.eq.s32.totalorder %s31, 7
      %p143 = scmp.ne.s32.totalorder %s138, %s140
      %p144 = scmp.eq.s32.totalorder %s31, 0
      %p145 = por %p143, %p144
      %p146 = scmp.ne.s32.totalorder %s138, %s140
      %p147 = scmp.eq.s32.totalorder %s36, 7
      %p148 = por %p146, %p147
      %p149 = scmp.ne.s32.totalorder %s140, %s141
      %p150 = scmp.eq.s32.totalorder %s36, 0
      %p151 = por %p149, %p150
      %p152 = scmp.ne.s32.totalorder %s140, %s141
      %p153 = scmp.eq.s32.totalorder %s37, 7
      %p154 = por %p152, %p153
      %p156 = scmp.ne.s32.totalorder %s141, %s155
      %p157 = scmp.eq.s32.totalorder %s37, 0
      %p158 = por %p156, %p157
      %s160 = sadd.s32 %s159, 1
      %p163 = scmp.eq.s32.totalorder %s31, 7
      %p164 = scmp.ne.s32.totalorder %s159, %s161
      %p165 = scmp.eq.s32.totalorder %s31, 0
      %p166 = por %p164, %p165
      %p167 = scmp.ne.s32.totalorder %s159, %s161
      %p168 = scmp.eq.s32.totalorder %s36, 7
      %p169 = por %p167, %p168
      %p170 = scmp.ne.s32.totalorder %s161, %s162
      %p171 = scmp.eq.s32.totalorder %s36, 0
      %p172 = por %p170, %p171
      %p173 = scmp.ne.s32.totalorder %s161, %s162
      %p174 = scmp.eq.s32.totalorder %s37, 7
      %p175 = por %p173, %p174
      %p177 = scmp.ne.s32.totalorder %s162, %s176
      %p178 = scmp.eq.s32.totalorder %s37, 0
      %p179 = por %p177, %p178
      %s181 = sadd.s32 %s180, 1
      %p184 = scmp.eq.s32.totalorder %s31, 7
      %p185 = scmp.ne.s32.totalorder %s180, %s182
      %p186 = scmp.eq.s32.totalorder %s31, 0
      %p187 = por %p185, %p186
      %p188 = scmp.ne.s32.totalorder %s180, %s182
      %p189 = scmp.eq.s32.totalorder %s36, 7
      %p190 = por %p188, %p189
      %p191 = scmp.ne.s32.totalorder %s182, %s183
      %p192 = scmp.eq.s32.totalorder %s36, 0
      %p193 = por %p191, %p192
      %p194 = scmp.ne.s32.totalorder %s182, %s183
      %p195 = scmp.eq.s32.totalorder %s37, 7
      %p196 = por %p194, %p195
      %p198 = scmp.ne.s32.totalorder %s183, %s197
      %p199 = scmp.eq.s32.totalorder %s37, 0
      %p200 = por %p198, %p199
      %s202 = sadd.s32 %s201, 1
      %p205 = scmp.eq.s32.totalorder %s31, 7
      %p206 = scmp.ne.s32.totalorder %s201, %s203
      %p207 = scmp.eq.s32.totalorder %s31, 0
      %p208 = por %p206, %p207
      %p209 = scmp.ne.s32.totalorder %s201, %s203
      %p210 = scmp.eq.s32.totalorder %s36, 7
      %p211 = por %p209, %p210
      %p212 = scmp.ne.s32.totalorder %s203, %s204
      %p213 = scmp.eq.s32.totalorder %s36, 0
      %p214 = por %p212, %p213
      %p215 = scmp.ne.s32.totalorder %s203, %s204
      %p216 = scmp.eq.s32.totalorder %s37, 7
      %p217 = por %p215, %p216
      %p219 = scmp.ne.s32.totalorder %s204, %s218
      %p220 = scmp.eq.s32.totalorder %s37, 0
      %p221 = por %p219, %p220
      %s223 = sadd.s32 %s222, 1
      %p226 = scmp.eq.s32.totalorder %s31, 7
      %p227 = scmp.ne.s32.totalorder %s222, %s224
      %p228 = scmp.eq.s32.totalorder %s31, 0
      %p229 = por %p227, %p228
      %p230 = scmp.ne.s32.totalorder %s222, %s224
      %p231 = scmp.eq.s32.totalorder %s36, 7
      %p232 = por %p230, %p231
      %p233 = scmp.ne.s32.totalorder %s224, %s225
      %p234 = scmp.eq.s32.totalorder %s36, 0
      %p235 = por %p233, %p234
      %p236 = scmp.ne.s32.totalorder %s224, %s225
      %p237 = scmp.eq.s32.totalorder %s37, 7
      %p238 = por %p236, %p237
      %p240 = scmp.ne.s32.totalorder %s225, %s239
      %p241 = scmp.eq.s32.totalorder %s37, 0
      %p242 = por %p240, %p241
      %s244 = sadd.s32 %s243, 1
      %p247 = scmp.eq.s32.totalorder %s31, 7
      %p248 = scmp.ne.s32.totalorder %s243, %s245
      %p249 = scmp.eq.s32.totalorder %s31, 0
      %p250 = por %p248, %p249
      %p251 = scmp.ne.s32.totalorder %s243, %s245
      %p252 = scmp.eq.s32.totalorder %s36, 7
      %p253 = por %p251, %p252
      %p254 = scmp.ne.s32.totalorder %s245, %s246
      %p255 = scmp.eq.s32.totalorder %s36, 0
      %p256 = por %p254, %p255
      %p257 = scmp.ne.s32.totalorder %s245, %s246
      %p258 = scmp.eq.s32.totalorder %s37, 7
      %p259 = por %p257, %p258
      %p261 = scmp.ne.s32.totalorder %s246, %s260
      %p262 = scmp.eq.s32.totalorder %s37, 0
      %p263 = por %p261, %p262
      %s265 = sadd.s32 %s264, 1
      %p268 = scmp.eq.s32.totalorder %s31, 7
      %p269 = scmp.ne.s32.totalorder %s264, %s266
      %p270 = scmp.eq.s32.totalorder %s31, 0
      %p271 = por %p269, %p270
      %p272 = scmp.ne.s32.totalorder %s264, %s266
      %p273 = scmp.eq.s32.totalorder %s36, 7
      %p274 = por %p272, %p273
      %p275 = scmp.ne.s32.totalorder %s266, %s267
      %p276 = scmp.eq.s32.totalorder %s36, 0
      %p277 = por %p275, %p276
      %p278 = scmp.ne.s32.totalorder %s266, %s267
      %p279 = scmp.eq.s32.totalorder %s37, 7
      %p280 = por %p278, %p279
      %p282 = scmp.ne.s32.totalorder %s267, %s281
      %p283 = scmp.eq.s32.totalorder %s37, 0
      %p284 = por %p282, %p283
      %s285 = ssub.s32 %s31, %s38
      %p286 = scmp.eq.s32.totalorder %s285, 0
      %s288 = sadd.s32 %s287, 1
      %s289 = scalar_select %p286, %s287, %s288
      %p292 = pneg %p286
      %p293 = scmp.eq.s32.totalorder %s31, 7
      %p294 = por %p292, %p293
      %p295 = scmp.ne.s32.totalorder %s287, %s290
      %p296 = scmp.eq.s32.totalorder %s31, 0
      %p297 = por %p295, %p296
      %p298 = scmp.ne.s32.totalorder %s287, %s290
      %p299 = scmp.eq.s32.totalorder %s36, 7
      %p300 = por %p298, %p299
      %p301 = scmp.ne.s32.totalorder %s290, %s291
      %p302 = scmp.eq.s32.totalorder %s36, 0
      %p303 = por %p301, %p302
      %p304 = scmp.ne.s32.totalorder %s290, %s291
      %p305 = scmp.eq.s32.totalorder %s37, 7
      %p306 = por %p304, %p305
      %p308 = scmp.ne.s32.totalorder %s291, %s307
      %p309 = scmp.eq.s32.totalorder %s37, 0
      %p310 = por %p308, %p309
      %s311 = ssub.s32 %s31, %s38
      %p312 = scmp.eq.s32.totalorder %s311, 0
      %s314 = sadd.s32 %s313, 1
      %s315 = scalar_select %p312, %s313, %s314
      %p318 = pneg %p312
      %p319 = scmp.eq.s32.totalorder %s31, 7
      %p320 = por %p318, %p319
      %p321 = scmp.ne.s32.totalorder %s313, %s316
      %p322 = scmp.eq.s32.totalorder %s31, 0
      %p323 = por %p321, %p322
      %p324 = scmp.ne.s32.totalorder %s313, %s316
      %p325 = scmp.eq.s32.totalorder %s36, 7
      %p326 = por %p324, %p325
      %p327 = scmp.ne.s32.totalorder %s316, %s317
      %p328 = scmp.eq.s32.totalorder %s36, 0
      %p329 = por %p327, %p328
      %p330 = scmp.ne.s32.totalorder %s316, %s317
      %p331 = scmp.eq.s32.totalorder %s37, 7
      %p332 = por %p330, %p331
      %p334 = scmp.ne.s32.totalorder %s317, %s333
      %p335 = scmp.eq.s32.totalorder %s37, 0
      %p336 = por %p334, %p335
      %p337 = scmp.le.s32.totalorder 1, %s31
      %p338 = scmp.lt.s32.totalorder %s31, 9
      %p339 = pnand %p337, %p338
      %p340 = pneg %p339
      // Predicated region
      $region9: #{tpu_custom_call.1} parent=5 // pred_check
        _
      $region10: #{tpu_custom_call.1} parent=5 // pred_check_branch
        %342 = sbr.rel (%p339) target = $region12
      $region11: #{tpu_custom_call.1} parent=5 // pred_region
        %s343 = ssub.s32 %s31, 1
        // Predicated region
        $region13: #{tpu_custom_call.1} parent=11 // pred_check
          %p344 = pneg %p130
        $region14: #{tpu_custom_call.1} parent=11 // pred_check_branch
          %346 = sbr.rel (%p344) target = $region16
        $region15: #{tpu_custom_call.1} parent=11 // pred_region
          _
        $region16: #{tpu_custom_call.1} parent=11 // pred_fallthru
          _
        // Predicated region
        $region17: #{tpu_custom_call.1} parent=11 // pred_check
          %p347 = pneg %p151
        $region18: #{tpu_custom_call.1} parent=11 // pred_check_branch
          %349 = sbr.rel (%p347) target = $region20
        $region19: #{tpu_custom_call.1} parent=11 // pred_region
          _
        $region20: #{tpu_custom_call.1} parent=11 // pred_fallthru
          _
        // Predicated region
        $region21: #{tpu_custom_call.1} parent=11 // pred_check
          %p350 = pneg %p172
        $region22: #{tpu_custom_call.1} parent=11 // pred_check_branch
          %352 = sbr.rel (%p350) target = $region24
        $region23: #{tpu_custom_call.1} parent=11 // pred_region
          %s354 = ssub.s32 256, 256
          %355 = vsyncadd [#allocation7], %s354
          %s356 = sshll.u32 [#allocation8], 4
          %s357 = int_to_ptr.vmem [resolvable:$true] %s356
          %362 = dma.hbm_to_vmem [thread:$0]  %s5, 256, %s357, [#allocation7], 128, 128, 8
        $region24: #{tpu_custom_call.1} parent=11 // pred_fallthru
          _
        // Predicated region
        $region25: #{tpu_custom_call.1} parent=11 // pred_check
          %p363 = pneg %p193
        $region26: #{tpu_custom_call.1} parent=11 // pred_check_branch
          %365 = sbr.rel (%p363) target = $region28
        $region27: #{tpu_custom_call.1} parent=11 // pred_region
          _
        $region28: #{tpu_custom_call.1} parent=11 // pred_fallthru
          _
        // Predicated region
        $region29: #{tpu_custom_call.1} parent=11 // pred_check
          %p366 = pneg %p214
        $region30: #{tpu_custom_call.1} parent=11 // pred_check_branch
          %368 = sbr.rel (%p366) target = $region32
        $region31: #{tpu_custom_call.1} parent=11 // pred_region
          _
        $region32: #{tpu_custom_call.1} parent=11 // pred_fallthru
          _
        // Predicated region
        $region33: #{tpu_custom_call.1} parent=11 // pred_check
          %p369 = pneg %p235
        $region34: #{tpu_custom_call.1} parent=11 // pred_check_branch
          %371 = sbr.rel (%p369) target = $region36
        $region35: #{tpu_custom_call.1} parent=11 // pred_region
          _
        $region36: #{tpu_custom_call.1} parent=11 // pred_fallthru
          _
        // Predicated region
        $region37: #{tpu_custom_call.1} parent=11 // pred_check
          %p372 = pneg %p256
        $region38: #{tpu_custom_call.1} parent=11 // pred_check_branch
          %374 = sbr.rel (%p372) target = $region40
        $region39: #{tpu_custom_call.1} parent=11 // pred_region
          _
        $region40: #{tpu_custom_call.1} parent=11 // pred_fallthru
          _
        // Predicated region
        $region41: #{tpu_custom_call.1} parent=11 // pred_check
          %p375 = pneg %p277
        $region42: #{tpu_custom_call.1} parent=11 // pred_check_branch
          %377 = sbr.rel (%p375) target = $region44
        $region43: #{tpu_custom_call.1} parent=11 // pred_region
          _
        $region44: #{tpu_custom_call.1} parent=11 // pred_fallthru
          _
      $region12: #{tpu_custom_call.1} parent=5 // pred_fallthru
        _
      %p378 = scmp.lt.s32.totalorder %s31, 8
      // Predicated region
      $region45: #{tpu_custom_call.1} parent=5 // pred_check
        %p379 = pneg %p378
      $region46: #{tpu_custom_call.1} parent=5 // pred_check_branch
        %381 = sbr.rel (%p379) target = $region48
      $region47: #{tpu_custom_call.1} parent=5 // pred_region
        // Predicated region
        $region49: #{tpu_custom_call.1} parent=47 // pred_check
          %p382 = pneg %p51
        $region50: #{tpu_custom_call.1} parent=47 // pred_check_branch
          %384 = sbr.rel (%p382) target = $region52
        $region51: #{tpu_custom_call.1} parent=47 // pred_region
          %s385 = sand.u32 %s41, 1
          %s386 = scalar_lea.sflag [#allocation3], %s385
          %s387 = sand.u32 %s41, 1
          %s388 = smul.addr %s387, 8
          %s389 = scalar_lea.vmem [#allocation2], %s388
          %s391 = ssub.s32 128, 128
          %392 = vsyncadd %s386, %s391
          %s393 = smul.addr %s31, 128
          %s394 = scalar_lea.hbm %s0, %s393
          %s396 = sshll.u32 %s389, 4
          %s397 = int_to_ptr.vmem [resolvable:$true] %s396
          %399 = dma.hbm_to_vmem [thread:$0]  %s394, 128, %s397, %s386
        $region52: #{tpu_custom_call.1} parent=47 // pred_fallthru
          _
        // Predicated region
        $region53: #{tpu_custom_call.1} parent=47 // pred_check
          %p400 = pneg %p77
        $region54: #{tpu_custom_call.1} parent=47 // pred_check_branch
          %402 = sbr.rel (%p400) target = $region56
        $region55: #{tpu_custom_call.1} parent=47 // pred_region
          %s403 = sand.u32 %s67, 1
          %s404 = sand.u32 %s67, 1
          %s405 = smul.addr %s404, 16
          %s406 = scalar_lea.vmem [#allocation5], %s405
          %s407 = smul.addr %s31, 8
          %s408 = scalar_lea.vmem %s1, %s407
          // Predicated region
          $region57: #{tpu_custom_call.1} parent=55 // pred_check
            _
          $region58: #{tpu_custom_call.1} parent=55 // pred_check_branch
            %410 = sbr.rel (0) target = $region60
          $region59: #{tpu_custom_call.1} parent=55 // pred_region
            // Predicated region
            $region61: #{tpu_custom_call.1} parent=59 // pred_check
              _
            $region62: #{tpu_custom_call.1} parent=59 // pred_check_branch
              %412 = sbr.rel (0) target = $region64
            $region63: #{tpu_custom_call.1} parent=59 // pred_region
              // Predicated region
              $region76: #{tpu_custom_call.1} parent=63 // pred_check
                _
              $region77: #{tpu_custom_call.1} parent=63 // pred_check_branch
                %430 = sbr.rel (0) target = $region79
              $region78: #{tpu_custom_call.1} parent=63 // pred_region
                loop: start=0, step=1, limit=1
                $region80: #{tpu_custom_call.1} parent=78 // loop_pre_header
                  _
                $region81: #{tpu_custom_call.1} parent=78 // loop_header
                  %s432 = sphi 0, %s436
                  %p433 = scmp.ge.s32.totalorder %s432, 1
                  %s437 = sphi %s408, %s408
                  %s438 = sphi %s406, %s406
                $region82: #{tpu_custom_call.1} parent=78 // loop_header_branch
                  %435 = sbr.rel (%p433) target = $region86
                $region83: #{tpu_custom_call.1} parent=78 // loop_body
                  %v439 = vld [vmem:[%s437] sm:$0xff]
                  %440 = vst [vmem:[%s438] sm:$0xff] %v439
                  %v441 = vld [vmem:[%s437 + $0x40] sm:$0xff]
                  %442 = vst [vmem:[%s438 + $0x8] sm:$0xff] %v441
                $region84: #{tpu_custom_call.1} parent=78 // loop_footer
                  %s436 = sadd.s32 1, %s432
                $region85: #{tpu_custom_call.1} parent=78 // loop_footer_branch
                  %431 = sbr.rel target = $region81
                $region86: #{tpu_custom_call.1} parent=78 // loop_exit
                  _
              $region79: #{tpu_custom_call.1} parent=63 // pred_fallthru
                _
              // Predicated region
              $region87: #{tpu_custom_call.1} parent=63 // pred_check
                _
              $region88: #{tpu_custom_call.1} parent=63 // pred_check_branch
                %444 = sbr.rel target = $region90
              $region89: #{tpu_custom_call.1} parent=63 // pred_region
                _
              $region90: #{tpu_custom_call.1} parent=63 // pred_fallthru
                _
            $region64: #{tpu_custom_call.1} parent=59 // pred_fallthru
              _
            // Predicated region
            $region65: #{tpu_custom_call.1} parent=59 // pred_check
              _
            $region66: #{tpu_custom_call.1} parent=59 // pred_check_branch
              %414 = sbr.rel target = $region68
            $region67: #{tpu_custom_call.1} parent=59 // pred_region
              %s416 = ssub.s32 256, 1
              loop: start=0, step=1, limit=1
              $region69: #{tpu_custom_call.1} parent=67 // loop_pre_header
                _
              $region70: #{tpu_custom_call.1} parent=67 // loop_header
                %s418 = sphi 0, %s422
                %p419 = scmp.ge.s32.totalorder %s418, 1
                %s423 = sphi %s408, %s408
                %s424 = sphi %s406, %s406
              $region71: #{tpu_custom_call.1} parent=67 // loop_header_branch
                %421 = sbr.rel (%p419) target = $region75
              $region72: #{tpu_custom_call.1} parent=67 // loop_body
                %v425 = vld [vmem:[%s423] sm:%s416]
                %426 = vst [vmem:[%s424] sm:%s416] %v425
                %v427 = vld [vmem:[%s423 + $0x40] sm:%s416]
                %428 = vst [vmem:[%s424 + $0x8] sm:%s416] %v427
              $region73: #{tpu_custom_call.1} parent=67 // loop_footer
                %s422 = sadd.s32 1, %s418
              $region74: #{tpu_custom_call.1} parent=67 // loop_footer_branch
                %417 = sbr.rel target = $region70
              $region75: #{tpu_custom_call.1} parent=67 // loop_exit
                _
            $region68: #{tpu_custom_call.1} parent=59 // pred_fallthru
              _
          $region60: #{tpu_custom_call.1} parent=55 // pred_fallthru
            _
          %445 = vnop
        $region56: #{tpu_custom_call.1} parent=47 // pred_fallthru
          _
        // Predicated region
        $region91: #{tpu_custom_call.1} parent=47 // pred_check
          %p446 = pneg %p103
        $region92: #{tpu_custom_call.1} parent=47 // pred_check_branch
          %448 = sbr.rel (%p446) target = $region94
        $region93: #{tpu_custom_call.1} parent=47 // pred_region
          %s449 = sand.u32 %s31, 1
          %s450 = scalar_lea.sflag [#allocation7], %s449
          %s451 = sand.u32 %s93, 1
          %s452 = smul.addr %s451, 32
          %s453 = scalar_lea.vmem [#allocation6], %s452
          %s455 = ssub.s32 512, 512
          %456 = vsyncadd %s450, %s455
          %s457 = smul.addr %s31, 128
          %s458 = scalar_lea.hbm %s2, %s457
          %s459 = sshll.u32 %s453, 4
          %s460 = int_to_ptr.vmem [resolvable:$true] %s459
          %465 = dma.hbm_to_vmem [thread:$0]  %s458, 512, %s460, %s450, 1024, 128, 8
        $region94: #{tpu_custom_call.1} parent=47 // pred_fallthru
          _
      $region48: #{tpu_custom_call.1} parent=5 // pred_fallthru
        _
      %p466 = scmp.le.s32.totalorder 1, %s31
      %p467 = scmp.lt.s32.totalorder %s31, 9
      %p468 = pnand %p466, %p467
      %p469 = pneg %p468
      // Predicated region
      $region95: #{tpu_custom_call.1} parent=5 // pred_check
        _
      $region96: #{tpu_custom_call.1} parent=5 // pred_check_branch
        %471 = sbr.rel (%p468) target = $region98
      $region97: #{tpu_custom_call.1} parent=5 // pred_region
        %s472 = ssub.s32 %s31, 1
        %s473 = sand.u32 %s44, 1
        %s474 = scalar_lea.sflag [#allocation3], %s473
        %s475 = sand.u32 %s44, 1
        %s476 = smul.addr %s475, 8
        %s477 = scalar_lea.vmem [#allocation2], %s476
        // Predicated region
        $region99: #{tpu_custom_call.1} parent=97 // pred_check
          %p478 = pneg %p57
        $region100: #{tpu_custom_call.1} parent=97 // pred_check_branch
          %480 = sbr.rel (%p478) target = $region102
        $region101: #{tpu_custom_call.1} parent=97 // pred_region
          %481 = dma.done %s474, 128
        $region102: #{tpu_custom_call.1} parent=97 // pred_fallthru
          _
        %s482 = sand.u32 %s70, 1
        %s483 = sand.u32 %s70, 1
        %s484 = smul.addr %s483, 16
        %s485 = scalar_lea.vmem [#allocation5], %s484
        // Predicated region
        $region103: #{tpu_custom_call.1} parent=97 // pred_check
          %p486 = pneg %p83
        $region104: #{tpu_custom_call.1} parent=97 // pred_check_branch
          %488 = sbr.rel (%p486) target = $region106
        $region105: #{tpu_custom_call.1} parent=97 // pred_region
          _
        $region106: #{tpu_custom_call.1} parent=97 // pred_fallthru
          _
        %s489 = sand.u32 %s36, 1
        %s490 = scalar_lea.sflag [#allocation7], %s489
        %s491 = sand.u32 %s96, 1
        %s492 = smul.addr %s491, 32
        %s493 = scalar_lea.vmem [#allocation6], %s492
        // Predicated region
        $region107: #{tpu_custom_call.1} parent=97 // pred_check
          %p494 = pneg %p109
        $region108: #{tpu_custom_call.1} parent=97 // pred_check_branch
          %496 = sbr.rel (%p494) target = $region110
        $region109: #{tpu_custom_call.1} parent=97 // pred_region
          %497 = dma.done %s490, 512
        $region110: #{tpu_custom_call.1} parent=97 // pred_fallthru
          _
        // Predicated region
        $region111: #{tpu_custom_call.1} parent=97 // pred_check
          %p498 = pneg %p172
        $region112: #{tpu_custom_call.1} parent=97 // pred_check_branch
          %500 = sbr.rel (%p498) target = $region114
        $region113: #{tpu_custom_call.1} parent=97 // pred_region
          %501 = dma.done [#allocation7], 256
        $region114: #{tpu_custom_call.1} parent=97 // pred_fallthru
          _
        %s502 = sand.u32 %s44, 1
        %s503 = scalar_lea.sflag [#allocation3], %s502
        %s504 = sand.u32 %s44, 1
        %s505 = smul.addr %s504, 8
        %s506 = scalar_lea.vmem [#allocation2], %s505
        %p507 = pneg %p57
        %p508 = pneg %p54
        %s509 = sand.u32 %s70, 1
        %s510 = sand.u32 %s70, 1
        %s511 = smul.addr %s510, 16
        %s512 = scalar_lea.vmem [#allocation5], %s511
        %p513 = pneg %p83
        %p514 = pneg %p80
        %s515 = sand.u32 %s36, 1
        %s516 = scalar_lea.sflag [#allocation7], %s515
        %s517 = sand.u32 %s96, 1
        %s518 = smul.addr %s517, 32
        %s519 = scalar_lea.vmem [#allocation6], %s518
        %p520 = pneg %p109
        %p521 = pneg %p106
        %p522 = pneg %p130
        %p523 = pneg %p127
        %p524 = pneg %p151
        %p525 = pneg %p148
        %p526 = pneg %p172
        %p527 = pneg %p169
        %p528 = pneg %p193
        %p529 = pneg %p190
        %p530 = pneg %p214
        %p531 = pneg %p211
        %p532 = pneg %p235
        %p533 = pneg %p232
        %p534 = pneg %p256
        %p535 = pneg %p253
        %p536 = pneg %p277
        %p537 = pneg %p274
        %p538 = pneg %p303
        %p539 = pneg %p300
        %s540 = sand.u32 %s290, 1
        %s541 = scalar_lea.sflag [#allocation4], %s540
        %s542 = sand.u32 %s290, 1
        %s543 = smul.addr %s542, 16
        %s544 = scalar_lea.vmem [#allocation9], %s543
        %p545 = pneg %p329
        %p546 = pneg %p326
        %s547 = sand.u32 %s316, 1
        %s548 = scalar_lea.sflag [#allocation11], %s547
        %s549 = sand.u32 %s316, 1
        %s550 = smul.addr %s549, 32
        %s551 = scalar_lea.vmem [#allocation10], %s550
        %v552 = vld [vmem:[%s477] sm:$0xff]
        %v553 = vld [vmem:[%s3] sm:$0xff]
        %v554 = vld [vmem:[%s3 + $0x8] sm:$0xff]
        %v555 = vld [vmem:[%s4] sm:$0xff]
        %v556 = vld [vmem:[%s4 + $0x8] sm:$0xff]
        %v557 = vld [vmem:[#allocation8] sm:$0xff]
        %v558 = vld [vmem:[#allocation8 + $0x8] sm:$0xff]
        %v559 = vld [vmem:[%s6] sm:$0xff]
        %v560 = vld [vmem:[%s6 + $0x8] sm:$0xff]
        %v561 = vld [vmem:[%s485] sm:$0xff]
        %v562 = vld [vmem:[%s485 + $0x8] sm:$0xff]
        %564 = vset.pattern.permute.xlu0 0
        %565 = vperm.xlu0 %564, %v555
        %v566 = vpop.permute.xlu0 %565
        %569 = vset.pattern.permute.xlu0 0
        %570 = vperm.xlu0 %569, %v556
        %v571 = vpop.permute.xlu0 %570
        %vm573 = vcmask 64512
        %v575 = vsel %vm573, %v553, 0
        %v578 = vsel %vm573, %v554, 0
        %580 = vmatprep.subr.mxu0 0.0
        %581 = vmatpush1.msra.mxu0 0.0
        %582 = vmatprep.subr.mxu0 0.0
        %583 = vmatpush1.msra.mxu0 0.0
        %584 = vmatprep.subr.mxu0 0.0
        %585 = vmatpush1.msra.mxu0 0.0
        %586 = vmatprep.subr.mxu0 0.0
        %587 = vmatpush1.msra.mxu0 0.0
        %588 = vmatprep.subr.mxu0 0.0
        %589 = vmatpush1.msra.mxu0 0.0
        %590 = vmatprep.subr.mxu0 0.0
        %591 = vmatpush1.msra.mxu0 0.0
        %592 = vmatprep.subr.mxu0 0.0
        %593 = vmatpush1.msra.mxu0 0.0
        %594 = vmatprep.subr.mxu0 0.0
        %595 = vmatpush1.msra.mxu0 0.0
        %596 = vmatprep.subr.mxu0 0.0
        %597 = vmatpush1.msra.mxu0 0.0
        %598 = vmatprep.subr.mxu0 0.0
        %599 = vmatpush1.msra.mxu0 0.0
        %600 = vmatprep.subr.mxu0 0.0
        %601 = vmatpush1.msra.mxu0 0.0
        %602 = vmatprep.subr.mxu0 0.0
        %603 = vmatpush1.msra.mxu0 0.0
        %604 = vmatprep.subr.mxu0 0.0
        %605 = vmatpush1.msra.mxu0 0.0
        %606 = vmatprep.subr.mxu0 0.0
        %607 = vmatpush1.msra.mxu0 0.0
        %608 = vmatprep.subr.mxu0 0.0
        %609 = vmatpush1.msra.mxu0 0.0
        %610 = vmatprep.subr.mxu0 0.0
        %611 = vmatpush1.msra.mxu0 %v552
        %612 = vmatprep.subr.mxu0 0.0
        %613 = vmatpush2.msra.mxu0 0.0
        %614 = vmatprep.subr.mxu0 0.0
        %615 = vmatpush2.msra.mxu0 0.0
        %616 = vmatprep.subr.mxu0 0.0
        %617 = vmatpush2.msra.mxu0 0.0
        %618 = vmatprep.subr.mxu0 0.0
        %619 = vmatpush2.msra.mxu0 0.0
        %620 = vmatprep.subr.mxu0 0.0
        %621 = vmatpush2.msra.mxu0 0.0
        %622 = vmatprep.subr.mxu0 0.0
        %623 = vmatpush2.msra.mxu0 0.0
        %624 = vmatprep.subr.mxu0 0.0
        %625 = vmatpush2.msra.mxu0 0.0
        %626 = vmatprep.subr.mxu0 0.0
        %627 = vmatpush2.msra.mxu0 0.0
        %628 = vmatprep.subr.mxu0 0.0
        %629 = vmatpush2.msra.mxu0 0.0
        %630 = vmatprep.subr.mxu0 0.0
        %631 = vmatpush2.msra.mxu0 0.0
        %632 = vmatprep.subr.mxu0 0.0
        %633 = vmatpush2.msra.mxu0 0.0
        %634 = vmatprep.subr.mxu0 0.0
        %635 = vmatpush2.msra.mxu0 0.0
        %636 = vmatprep.subr.mxu0 0.0
        %637 = vmatpush2.msra.mxu0 0.0
        %638 = vmatprep.subr.mxu0 0.0
        %639 = vmatpush2.msra.mxu0 0.0
        %640 = vmatprep.subr.mxu0 0.0
        %641 = vmatpush2.msra.mxu0 0.0
        %642 = vmatprep.subr.mxu0 0.0
        %643 = vmatpush2.msra.mxu0 0.0
        %644 = vmatprep.mubr.f32.mxu0 0.0
        %645 = vmatmul.mubr.f32.gmra.mxu0 %v575
        %v646 = vpop.f32.mrf.mxu0
        %v647 = vadd.f32 %v566, %v646
        %v648 = vpop.f32.mrf.mxu0
        %649 = vmatprep.mubr.f32.mxu0 0.0
        %650 = vmatmul.mubr.f32.gmra.mxu0 %v578
        %v651 = vpop.f32.mrf.mxu0
        %v652 = vadd.f32 %v571, %v651
        %v653 = vpop.f32.mrf.mxu0
        %654 = vdwg.mxu0
        %v655 = vmul.f32 %v647, 0.5
        %v656 = vmul.f32 %v652, 0.5
        %v657 = vmul.f32 %v647, 0.70710677
        %v658 = vmul.f32 %v652, 0.70710677
        %v659 = vand.u32 2147483647, %v657
        %v660 = vand.u32 2147483647, %v658
        %v661 = vmul.f32 %v659, 0.3275911
        %v662 = vmul.f32 %v660, 0.3275911
        %v663 = vadd.f32 %v661, 1.0
        %v664 = vadd.f32 %v662, 1.0
        %v665 = vrcp.pop %v663
        %v666 = vmul.f32 1.0, %v665
        %v667 = vrcp.pop %v664
        %v668 = vmul.f32 1.0, %v667
        %v669 = vmul.f32 %v666, 1.0614054
        %v670 = vmul.f32 %v668, 1.0614054
        %v671 = vadd.f32 %v669, -1.4531521
        %v672 = vadd.f32 %v670, -1.4531521
        %v673 = vmul.f32 %v666, %v671
        %v674 = vmul.f32 %v668, %v672
        %v675 = vadd.f32 %v673, 1.4214138
        %v676 = vadd.f32 %v674, 1.4214138
        %v677 = vmul.f32 %v666, %v675
        %v678 = vmul.f32 %v668, %v676
        %v679 = vadd.f32 %v677, -0.28449672
        %v680 = vadd.f32 %v678, -0.28449672
        %v681 = vmul.f32 %v666, %v679
        %v682 = vmul.f32 %v668, %v680
        %v683 = vadd.f32 %v681, 0.2548296
        %v684 = vadd.f32 %v682, 0.2548296
        %v685 = vmul.f32 %v666, %v683
        %v686 = vmul.f32 %v668, %v684
        %v687 = vsub.f32 0.0, %v659
        %v688 = vsub.f32 0.0, %v660
        %v689 = vmul.f32 %v687, %v659
        %v690 = vmul.f32 %v688, %v660
        %v691 = vmul.f32 %v689, 1.442695
        %v692 = vpow.pop %v691
        %v693 = vmul.f32 %v690, 1.442695
        %v694 = vpow.pop %v693
        %v695 = vmul.f32 %v685, %v692
        %v696 = vmul.f32 %v686, %v694
        %v697 = vsub.f32 1.0, %v695
        %v698 = vsub.f32 1.0, %v696
        %vm699 = vcmp.lt.f32.partialorder %v657, 0.0
        %vm700 = vcmp.lt.f32.partialorder %v658, 0.0
        %v701 = vsub.f32 0.0, %v697
        %v702 = vsub.f32 0.0, %v698
        %v703 = vsel %vm699, %v701, %v697
        %v704 = vsel %vm700, %v702, %v698
        %v705 = vadd.f32 %v703, 1.0
        %v706 = vadd.f32 %v704, 1.0
        %v707 = vmul.f32 %v655, %v705
        %v708 = vmul.f32 %v656, %v706
        %710 = vset.pattern.permute.xlu0 0
        %711 = vperm.xlu0 %710, %v559
        %v712 = vpop.permute.xlu0 %711
        %715 = vset.pattern.permute.xlu0 0
        %716 = vperm.xlu0 %715, %v560
        %v717 = vpop.permute.xlu0 %716
        %vm719 = vcmask 130048
        %v721 = vsel %vm719, %v557, 0
        %v724 = vsel %vm719, %v558, 0
        %726 = vmatprep.subr.mxu0 0.0
        %727 = vmatpush1.msra.mxu0 0.0
        %728 = vmatprep.subr.mxu0 0.0
        %729 = vmatpush1.msra.mxu0 0.0
        %730 = vmatprep.subr.mxu0 0.0
        %731 = vmatpush1.msra.mxu0 0.0
        %732 = vmatprep.subr.mxu0 0.0
        %733 = vmatpush1.msra.mxu0 0.0
        %734 = vmatprep.subr.mxu0 0.0
        %735 = vmatpush1.msra.mxu0 0.0
        %736 = vmatprep.subr.mxu0 0.0
        %737 = vmatpush1.msra.mxu0 0.0
        %738 = vmatprep.subr.mxu0 0.0
        %739 = vmatpush1.msra.mxu0 0.0
        %740 = vmatprep.subr.mxu0 0.0
        %741 = vmatpush1.msra.mxu0 0.0
        %742 = vmatprep.subr.mxu0 0.0
        %743 = vmatpush1.msra.mxu0 0.0
        %744 = vmatprep.subr.mxu0 0.0
        %745 = vmatpush1.msra.mxu0 0.0
        %746 = vmatprep.subr.mxu0 0.0
        %747 = vmatpush1.msra.mxu0 0.0
        %748 = vmatprep.subr.mxu0 0.0
        %749 = vmatpush1.msra.mxu0 0.0
        %750 = vmatprep.subr.mxu0 0.0
        %751 = vmatpush1.msra.mxu0 0.0
        %752 = vmatprep.subr.mxu0 0.0
        %753 = vmatpush1.msra.mxu0 0.0
        %754 = vmatprep.subr.mxu0 0.0
        %755 = vmatpush1.msra.mxu0 %v708
        %756 = vmatprep.subr.mxu0 0.0
        %757 = vmatpush1.msra.mxu0 %v707
        %758 = vmatprep.subr.mxu0 0.0
        %759 = vmatpush2.msra.mxu0 0.0
        %760 = vmatprep.subr.mxu0 0.0
        %761 = vmatpush2.msra.mxu0 0.0
        %762 = vmatprep.subr.mxu0 0.0
        %763 = vmatpush2.msra.mxu0 0.0
        %764 = vmatprep.subr.mxu0 0.0
        %765 = vmatpush2.msra.mxu0 0.0
        %766 = vmatprep.subr.mxu0 0.0
        %767 = vmatpush2.msra.mxu0 0.0
        %768 = vmatprep.subr.mxu0 0.0
        %769 = vmatpush2.msra.mxu0 0.0
        %770 = vmatprep.subr.mxu0 0.0
        %771 = vmatpush2.msra.mxu0 0.0
        %772 = vmatprep.subr.mxu0 0.0
        %773 = vmatpush2.msra.mxu0 0.0
        %774 = vmatprep.subr.mxu0 0.0
        %775 = vmatpush2.msra.mxu0 0.0
        %776 = vmatprep.subr.mxu0 0.0
        %777 = vmatpush2.msra.mxu0 0.0
        %778 = vmatprep.subr.mxu0 0.0
        %779 = vmatpush2.msra.mxu0 0.0
        %780 = vmatprep.subr.mxu0 0.0
        %781 = vmatpush2.msra.mxu0 0.0
        %782 = vmatprep.subr.mxu0 0.0
        %783 = vmatpush2.msra.mxu0 0.0
        %784 = vmatprep.subr.mxu0 0.0
        %785 = vmatpush2.msra.mxu0 0.0
        %786 = vmatprep.subr.mxu0 0.0
        %787 = vmatpush2.msra.mxu0 0.0
        %788 = vmatprep.subr.mxu0 0.0
        %789 = vmatpush2.msra.mxu0 0.0
        %790 = vmatprep.mubr.f32.mxu0 0.0
        %791 = vmatmul.mubr.f32.gmra.mxu0 %v721
        %v792 = vpop.f32.mrf.mxu0
        %v793 = vadd.f32 %v712, %v792
        %v794 = vpop.f32.mrf.mxu0
        %795 = vmatprep.mubr.f32.mxu0 0.0
        %796 = vmatmul.mubr.f32.gmra.mxu0 %v724
        %v797 = vpop.f32.mrf.mxu0
        %v798 = vadd.f32 %v717, %v797
        %v799 = vpop.f32.mrf.mxu0
        %800 = vdwg.mxu0
        %v801 = vadd.f32 %v561, %v793
        %v802 = vadd.f32 %v562, %v798
        %803 = vst [vmem:[%s544] sm:$0xff] %v801
        %804 = vst [vmem:[%s544 + $0x8] sm:$0xff] %v802
        %v805 = vld [vmem:[%s7] sm:$0xff]
        %v806 = vld [vmem:[%s7 + $0x8] sm:$0xff]
        %v807 = vld [vmem:[%s7 + $0x10] sm:$0xff]
        %v808 = vld [vmem:[%s7 + $0x18] sm:$0xff]
        %v809 = vld [vmem:[%s8] sm:$0xff]
        %v810 = vld [vmem:[%s8 + $0x8] sm:$0xff]
        %v811 = vld [vmem:[%s8 + $0x10] sm:$0xff]
        %v812 = vld [vmem:[%s8 + $0x18] sm:$0xff]
        %v813 = vld [vmem:[%s9] sm:$0xff]
        %v814 = vld [vmem:[%s9 + $0x8] sm:$0xff]
        %v815 = vld [vmem:[%s9 + $0x10] sm:$0xff]
        %v816 = vld [vmem:[%s9 + $0x18] sm:$0xff]
        %v817 = vld [vmem:[%s10] sm:$0xff]
        %v818 = vld [vmem:[%s10 + $0x8] sm:$0xff]
        %v819 = vld [vmem:[%s10 + $0x10] sm:$0xff]
        %v820 = vld [vmem:[%s10 + $0x18] sm:$0xff]
        %v821 = vld [vmem:[%s493] sm:$0xff]
        %v822 = vld [vmem:[%s493 + $0x8] sm:$0xff]
        %v823 = vld [vmem:[%s493 + $0x10] sm:$0xff]
        %v824 = vld [vmem:[%s493 + $0x18] sm:$0xff]
        %826 = vset.pattern.permute.xlu0 0
        %827 = vperm.xlu0 %826, %v809
        %v828 = vpop.permute.xlu0 %827
        %831 = vset.pattern.permute.xlu0 0
        %832 = vperm.xlu0 %831, %v810
        %v833 = vpop.permute.xlu0 %832
        %836 = vset.pattern.permute.xlu0 0
        %837 = vperm.xlu0 %836, %v811
        %v838 = vpop.permute.xlu0 %837
        %841 = vset.pattern.permute.xlu0 0
        %842 = vperm.xlu0 %841, %v812
        %v843 = vpop.permute.xlu0 %842
        %v846 = vsel %vm719, %v805, 0
        %v849 = vsel %vm719, %v806, 0
        %v852 = vsel %vm719, %v807, 0
        %v855 = vsel %vm719, %v808, 0
        %857 = vmatprep.subr.mxu0 0.0
        %858 = vmatpush1.msra.mxu0 0.0
        %859 = vmatprep.subr.mxu0 0.0
        %860 = vmatpush1.msra.mxu0 0.0
        %861 = vmatprep.subr.mxu0 0.0
        %862 = vmatpush1.msra.mxu0 0.0
        %863 = vmatprep.subr.mxu0 0.0
        %864 = vmatpush1.msra.mxu0 0.0
        %865 = vmatprep.subr.mxu0 0.0
        %866 = vmatpush1.msra.mxu0 0.0
        %867 = vmatprep.subr.mxu0 0.0
        %868 = vmatpush1.msra.mxu0 0.0
        %869 = vmatprep.subr.mxu0 0.0
        %870 = vmatpush1.msra.mxu0 0.0
        %871 = vmatprep.subr.mxu0 0.0
        %872 = vmatpush1.msra.mxu0 0.0
        %873 = vmatprep.subr.mxu0 0.0
        %874 = vmatpush1.msra.mxu0 0.0
        %875 = vmatprep.subr.mxu0 0.0
        %876 = vmatpush1.msra.mxu0 0.0
        %877 = vmatprep.subr.mxu0 0.0
        %878 = vmatpush1.msra.mxu0 0.0
        %879 = vmatprep.subr.mxu0 0.0
        %880 = vmatpush1.msra.mxu0 0.0
        %881 = vmatprep.subr.mxu0 0.0
        %882 = vmatpush1.msra.mxu0 0.0
        %883 = vmatprep.subr.mxu0 0.0
        %884 = vmatpush1.msra.mxu0 0.0
        %885 = vmatprep.subr.mxu0 0.0
        %886 = vmatpush1.msra.mxu0 %v802
        %887 = vmatprep.subr.mxu0 0.0
        %888 = vmatpush1.msra.mxu0 %v801
        %889 = vmatprep.subr.mxu0 0.0
        %890 = vmatpush2.msra.mxu0 0.0
        %891 = vmatprep.subr.mxu0 0.0
        %892 = vmatpush2.msra.mxu0 0.0
        %893 = vmatprep.subr.mxu0 0.0
        %894 = vmatpush2.msra.mxu0 0.0
        %895 = vmatprep.subr.mxu0 0.0
        %896 = vmatpush2.msra.mxu0 0.0
        %897 = vmatprep.subr.mxu0 0.0
        %898 = vmatpush2.msra.mxu0 0.0
        %899 = vmatprep.subr.mxu0 0.0
        %900 = vmatpush2.msra.mxu0 0.0
        %901 = vmatprep.subr.mxu0 0.0
        %902 = vmatpush2.msra.mxu0 0.0
        %903 = vmatprep.subr.mxu0 0.0
        %904 = vmatpush2.msra.mxu0 0.0
        %905 = vmatprep.subr.mxu0 0.0
        %906 = vmatpush2.msra.mxu0 0.0
        %907 = vmatprep.subr.mxu0 0.0
        %908 = vmatpush2.msra.mxu0 0.0
        %909 = vmatprep.subr.mxu0 0.0
        %910 = vmatpush2.msra.mxu0 0.0
        %911 = vmatprep.subr.mxu0 0.0
        %912 = vmatpush2.msra.mxu0 0.0
        %913 = vmatprep.subr.mxu0 0.0
        %914 = vmatpush2.msra.mxu0 0.0
        %915 = vmatprep.subr.mxu0 0.0
        %916 = vmatpush2.msra.mxu0 0.0
        %917 = vmatprep.subr.mxu0 0.0
        %918 = vmatpush2.msra.mxu0 0.0
        %919 = vmatprep.subr.mxu0 0.0
        %920 = vmatpush2.msra.mxu0 0.0
        %921 = vmatprep.mubr.f32.mxu0 0.0
        %922 = vmatmul.mubr.f32.gmra.mxu0 %v846
        %v923 = vpop.f32.mrf.mxu0
        %v924 = vadd.f32 %v828, %v923
        %v925 = vpop.f32.mrf.mxu0
        %926 = vmatprep.mubr.f32.mxu0 0.0
        %927 = vmatmul.mubr.f32.gmra.mxu0 %v849
        %v928 = vpop.f32.mrf.mxu0
        %v929 = vadd.f32 %v833, %v928
        %v930 = vpop.f32.mrf.mxu0
        %931 = vmatprep.mubr.f32.mxu0 0.0
        %932 = vmatmul.mubr.f32.gmra.mxu0 %v852
        %v933 = vpop.f32.mrf.mxu0
        %v934 = vadd.f32 %v838, %v933
        %v935 = vpop.f32.mrf.mxu0
        %936 = vmatprep.mubr.f32.mxu0 0.0
        %937 = vmatmul.mubr.f32.gmra.mxu0 %v855
        %v938 = vpop.f32.mrf.mxu0
        %v939 = vadd.f32 %v843, %v938
        %v940 = vpop.f32.mrf.mxu0
        %941 = vdwg.mxu0
        %v942 = vmul.f32 %v924, 0.5
        %v943 = vmul.f32 %v929, 0.5
        %v944 = vmul.f32 %v934, 0.5
        %v945 = vmul.f32 %v939, 0.5
        %v946 = vmul.f32 %v924, 0.70710677
        %v947 = vmul.f32 %v929, 0.70710677
        %v948 = vmul.f32 %v934, 0.70710677
        %v949 = vmul.f32 %v939, 0.70710677
        %v950 = vand.u32 2147483647, %v946
        %v951 = vand.u32 2147483647, %v947
        %v952 = vand.u32 2147483647, %v948
        %v953 = vand.u32 2147483647, %v949
        %v954 = vmul.f32 %v950, 0.3275911
        %v955 = vmul.f32 %v951, 0.3275911
        %v956 = vmul.f32 %v952, 0.3275911
        %v957 = vmul.f32 %v953, 0.3275911
        %v958 = vadd.f32 %v954, 1.0
        %v959 = vadd.f32 %v955, 1.0
        %v960 = vadd.f32 %v956, 1.0
        %v961 = vadd.f32 %v957, 1.0
        %v962 = vrcp.pop %v958
        %v963 = vmul.f32 1.0, %v962
        %v964 = vrcp.pop %v959
        %v965 = vmul.f32 1.0, %v964
        %v966 = vrcp.pop %v960
        %v967 = vmul.f32 1.0, %v966
        %v968 = vrcp.pop %v961
        %v969 = vmul.f32 1.0, %v968
        %v970 = vmul.f32 %v963, 1.0614054
        %v971 = vmul.f32 %v965, 1.0614054
        %v972 = vmul.f32 %v967, 1.0614054
        %v973 = vmul.f32 %v969, 1.0614054
        %v974 = vadd.f32 %v970, -1.4531521
        %v975 = vadd.f32 %v971, -1.4531521
        %v976 = vadd.f32 %v972, -1.4531521
        %v977 = vadd.f32 %v973, -1.4531521
        %v978 = vmul.f32 %v963, %v974
        %v979 = vmul.f32 %v965, %v975
        %v980 = vmul.f32 %v967, %v976
        %v981 = vmul.f32 %v969, %v977
        %v982 = vadd.f32 %v978, 1.4214138
        %v983 = vadd.f32 %v979, 1.4214138
        %v984 = vadd.f32 %v980, 1.4214138
        %v985 = vadd.f32 %v981, 1.4214138
        %v986 = vmul.f32 %v963, %v982
        %v987 = vmul.f32 %v965, %v983
        %v988 = vmul.f32 %v967, %v984
        %v989 = vmul.f32 %v969, %v985
        %v990 = vadd.f32 %v986, -0.28449672
        %v991 = vadd.f32 %v987, -0.28449672
        %v992 = vadd.f32 %v988, -0.28449672
        %v993 = vadd.f32 %v989, -0.28449672
        %v994 = vmul.f32 %v963, %v990
        %v995 = vmul.f32 %v965, %v991
        %v996 = vmul.f32 %v967, %v992
        %v997 = vmul.f32 %v969, %v993
        %v998 = vadd.f32 %v994, 0.2548296
        %v999 = vadd.f32 %v995, 0.2548296
        %v1000 = vadd.f32 %v996, 0.2548296
        %v1001 = vadd.f32 %v997, 0.2548296
        %v1002 = vmul.f32 %v963, %v998
        %v1003 = vmul.f32 %v965, %v999
        %v1004 = vmul.f32 %v967, %v1000
        %v1005 = vmul.f32 %v969, %v1001
        %v1006 = vsub.f32 0.0, %v950
        %v1007 = vsub.f32 0.0, %v951
        %v1008 = vsub.f32 0.0, %v952
        %v1009 = vsub.f32 0.0, %v953
        %v1010 = vmul.f32 %v1006, %v950
        %v1011 = vmul.f32 %v1007, %v951
        %v1012 = vmul.f32 %v1008, %v952
        %v1013 = vmul.f32 %v1009, %v953
        %v1014 = vmul.f32 %v1010, 1.442695
        %v1015 = vpow.pop %v1014
        %v1016 = vmul.f32 %v1011, 1.442695
        %v1017 = vpow.pop %v1016
        %v1018 = vmul.f32 %v1012, 1.442695
        %v1019 = vpow.pop %v1018
        %v1020 = vmul.f32 %v1013, 1.442695
        %v1021 = vpow.pop %v1020
        %v1022 = vmul.f32 %v1002, %v1015
        %v1023 = vmul.f32 %v1003, %v1017
        %v1024 = vmul.f32 %v1004, %v1019
        %v1025 = vmul.f32 %v1005, %v1021
        %v1026 = vsub.f32 1.0, %v1022
        %v1027 = vsub.f32 1.0, %v1023
        %v1028 = vsub.f32 1.0, %v1024
        %v1029 = vsub.f32 1.0, %v1025
        %vm1030 = vcmp.lt.f32.partialorder %v946, 0.0
        %vm1031 = vcmp.lt.f32.partialorder %v947, 0.0
        %vm1032 = vcmp.lt.f32.partialorder %v948, 0.0
        %vm1033 = vcmp.lt.f32.partialorder %v949, 0.0
        %v1034 = vsub.f32 0.0, %v1026
        %v1035 = vsub.f32 0.0, %v1027
        %v1036 = vsub.f32 0.0, %v1028
        %v1037 = vsub.f32 0.0, %v1029
        %v1038 = vsel %vm1030, %v1034, %v1026
        %v1039 = vsel %vm1031, %v1035, %v1027
        %v1040 = vsel %vm1032, %v1036, %v1028
        %v1041 = vsel %vm1033, %v1037, %v1029
        %v1042 = vadd.f32 %v1038, 1.0
        %v1043 = vadd.f32 %v1039, 1.0
        %v1044 = vadd.f32 %v1040, 1.0
        %v1045 = vadd.f32 %v1041, 1.0
        %v1046 = vmul.f32 %v942, %v1042
        %v1047 = vmul.f32 %v943, %v1043
        %v1048 = vmul.f32 %v944, %v1044
        %v1049 = vmul.f32 %v945, %v1045
        %1051 = vset.pattern.permute.xlu0 0
        %1052 = vperm.xlu0 %1051, %v817
        %v1053 = vpop.permute.xlu0 %1052
        %1056 = vset.pattern.permute.xlu0 0
        %1057 = vperm.xlu0 %1056, %v818
        %v1058 = vpop.permute.xlu0 %1057
        %1061 = vset.pattern.permute.xlu0 0
        %1062 = vperm.xlu0 %1061, %v819
        %v1063 = vpop.permute.xlu0 %1062
        %1066 = vset.pattern.permute.xlu0 0
        %1067 = vperm.xlu0 %1066, %v820
        %v1068 = vpop.permute.xlu0 %1067
        %vm1070 = vcmask 261120
        %v1072 = vsel %vm1070, %v813, 0
        %v1075 = vsel %vm1070, %v814, 0
        %v1078 = vsel %vm1070, %v815, 0
        %v1081 = vsel %vm1070, %v816, 0
        %1083 = vmatprep.subr.mxu0 0.0
        %1084 = vmatpush1.msra.mxu0 0.0
        %1085 = vmatprep.subr.mxu0 0.0
        %1086 = vmatpush1.msra.mxu0 0.0
        %1087 = vmatprep.subr.mxu0 0.0
        %1088 = vmatpush1.msra.mxu0 0.0
        %1089 = vmatprep.subr.mxu0 0.0
        %1090 = vmatpush1.msra.mxu0 0.0
        %1091 = vmatprep.subr.mxu0 0.0
        %1092 = vmatpush1.msra.mxu0 0.0
        %1093 = vmatprep.subr.mxu0 0.0
        %1094 = vmatpush1.msra.mxu0 0.0
        %1095 = vmatprep.subr.mxu0 0.0
        %1096 = vmatpush1.msra.mxu0 0.0
        %1097 = vmatprep.subr.mxu0 0.0
        %1098 = vmatpush1.msra.mxu0 0.0
        %1099 = vmatprep.subr.mxu0 0.0
        %1100 = vmatpush1.msra.mxu0 0.0
        %1101 = vmatprep.subr.mxu0 0.0
        %1102 = vmatpush1.msra.mxu0 0.0
        %1103 = vmatprep.subr.mxu0 0.0
        %1104 = vmatpush1.msra.mxu0 0.0
        %1105 = vmatprep.subr.mxu0 0.0
        %1106 = vmatpush1.msra.mxu0 0.0
        %1107 = vmatprep.subr.mxu0 0.0
        %1108 = vmatpush1.msra.mxu0 %v1049
        %1109 = vmatprep.subr.mxu0 0.0
        %1110 = vmatpush1.msra.mxu0 %v1048
        %1111 = vmatprep.subr.mxu0 0.0
        %1112 = vmatpush1.msra.mxu0 %v1047
        %1113 = vmatprep.subr.mxu0 0.0
        %1114 = vmatpush1.msra.mxu0 %v1046
        %1115 = vmatprep.subr.mxu0 0.0
        %1116 = vmatpush2.msra.mxu0 0.0
        %1117 = vmatprep.subr.mxu0 0.0
        %1118 = vmatpush2.msra.mxu0 0.0
        %1119 = vmatprep.subr.mxu0 0.0
        %1120 = vmatpush2.msra.mxu0 0.0
        %1121 = vmatprep.subr.mxu0 0.0
        %1122 = vmatpush2.msra.mxu0 0.0
        %1123 = vmatprep.subr.mxu0 0.0
        %1124 = vmatpush2.msra.mxu0 0.0
        %1125 = vmatprep.subr.mxu0 0.0
        %1126 = vmatpush2.msra.mxu0 0.0
        %1127 = vmatprep.subr.mxu0 0.0
        %1128 = vmatpush2.msra.mxu0 0.0
        %1129 = vmatprep.subr.mxu0 0.0
        %1130 = vmatpush2.msra.mxu0 0.0
        %1131 = vmatprep.subr.mxu0 0.0
        %1132 = vmatpush2.msra.mxu0 0.0
        %1133 = vmatprep.subr.mxu0 0.0
        %1134 = vmatpush2.msra.mxu0 0.0
        %1135 = vmatprep.subr.mxu0 0.0
        %1136 = vmatpush2.msra.mxu0 0.0
        %1137 = vmatprep.subr.mxu0 0.0
        %1138 = vmatpush2.msra.mxu0 0.0
        %1139 = vmatprep.subr.mxu0 0.0
        %1140 = vmatpush2.msra.mxu0 0.0
        %1141 = vmatprep.subr.mxu0 0.0
        %1142 = vmatpush2.msra.mxu0 0.0
        %1143 = vmatprep.subr.mxu0 0.0
        %1144 = vmatpush2.msra.mxu0 0.0
        %1145 = vmatprep.subr.mxu0 0.0
        %1146 = vmatpush2.msra.mxu0 0.0
        %1147 = vmatprep.mubr.f32.mxu0 0.0
        %1148 = vmatmul.mubr.f32.gmra.mxu0 %v1072
        %v1149 = vpop.f32.mrf.mxu0
        %v1150 = vadd.f32 %v1053, %v1149
        %v1151 = vpop.f32.mrf.mxu0
        %1152 = vmatprep.mubr.f32.mxu0 0.0
        %1153 = vmatmul.mubr.f32.gmra.mxu0 %v1075
        %v1154 = vpop.f32.mrf.mxu0
        %v1155 = vadd.f32 %v1058, %v1154
        %v1156 = vpop.f32.mrf.mxu0
        %1157 = vmatprep.mubr.f32.mxu0 0.0
        %1158 = vmatmul.mubr.f32.gmra.mxu0 %v1078
        %v1159 = vpop.f32.mrf.mxu0
        %v1160 = vadd.f32 %v1063, %v1159
        %v1161 = vpop.f32.mrf.mxu0
        %1162 = vmatprep.mubr.f32.mxu0 0.0
        %1163 = vmatmul.mubr.f32.gmra.mxu0 %v1081
        %v1164 = vpop.f32.mrf.mxu0
        %v1165 = vadd.f32 %v1068, %v1164
        %v1166 = vpop.f32.mrf.mxu0
        %1167 = vdwg.mxu0
        %v1168 = vadd.f32 %v821, %v1150
        %v1169 = vadd.f32 %v822, %v1155
        %v1170 = vadd.f32 %v823, %v1160
        %v1171 = vadd.f32 %v824, %v1165
        %1172 = vst [vmem:[%s551] sm:$0xff] %v1168
        %1173 = vst [vmem:[%s551 + $0x8] sm:$0xff] %v1169
        %1174 = vst [vmem:[%s551 + $0x10] sm:$0xff] %v1170
        %1175 = vst [vmem:[%s551 + $0x18] sm:$0xff] %v1171
        %s1176 = sand.u32 %s290, 1
        %s1177 = scalar_lea.sflag [#allocation4], %s1176
        %s1178 = sand.u32 %s290, 1
        %s1179 = smul.addr %s1178, 16
        %s1180 = scalar_lea.vmem [#allocation9], %s1179
        %s1181 = sand.u32 %s316, 1
        %s1182 = scalar_lea.sflag [#allocation11], %s1181
        %s1183 = sand.u32 %s316, 1
        %s1184 = smul.addr %s1183, 32
        %s1185 = scalar_lea.vmem [#allocation10], %s1184
        // Predicated region
        $region115: #{tpu_custom_call.1} parent=97 // pred_check
          %p1186 = pneg %p300
        $region116: #{tpu_custom_call.1} parent=97 // pred_check_branch
          %1188 = sbr.rel (%p1186) target = $region118
        $region117: #{tpu_custom_call.1} parent=97 // pred_region
          %s1190 = ssub.s32 256, 256
          %1191 = vsyncadd %s1177, %s1190
          %s1192 = smul.addr %s36, 128
          %s1193 = scalar_lea.hbm %s11, %s1192
          %s1194 = sshll.u32 %s1180, 4
          %s1195 = int_to_ptr.vmem [resolvable:$true] %s1194
          %1200 = dma.vmem_to_hbm [thread:$0]  %s1195, 256, %s1193, %s1177, 128, 1024, 8
        $region118: #{tpu_custom_call.1} parent=97 // pred_fallthru
          _
        // Predicated region
        $region119: #{tpu_custom_call.1} parent=97 // pred_check
          %p1201 = pneg %p326
        $region120: #{tpu_custom_call.1} parent=97 // pred_check_branch
          %1203 = sbr.rel (%p1201) target = $region122
        $region121: #{tpu_custom_call.1} parent=97 // pred_region
          %s1205 = ssub.s32 512, 512
          %1206 = vsyncadd %s1182, %s1205
          %s1207 = smul.addr %s36, 128
          %s1208 = scalar_lea.hbm %s12, %s1207
          %s1209 = sshll.u32 %s1185, 4
          %s1210 = int_to_ptr.vmem [resolvable:$true] %s1209
          %1215 = dma.vmem_to_hbm [thread:$0]  %s1210, 512, %s1208, %s1182, 128, 1024, 8
        $region122: #{tpu_custom_call.1} parent=97 // pred_fallthru
          _
      $region98: #{tpu_custom_call.1} parent=5 // pred_fallthru
        _
      %p1216 = scmp.le.s32.totalorder 2, %s31
      // Predicated region
      $region123: #{tpu_custom_call.1} parent=5 // pred_check
        %p1217 = pneg %p1216
      $region124: #{tpu_custom_call.1} parent=5 // pred_check_branch
        %1219 = sbr.rel (%p1217) target = $region126
      $region125: #{tpu_custom_call.1} parent=5 // pred_region
        %s1220 = ssub.s32 %s31, 2
        // Predicated region
        $region127: #{tpu_custom_call.1} parent=125 // pred_check
          %p1221 = pneg %p306
        $region128: #{tpu_custom_call.1} parent=125 // pred_check_branch
          %1223 = sbr.rel (%p1221) target = $region130
        $region129: #{tpu_custom_call.1} parent=125 // pred_region
          %s1224 = sand.u32 %s291, 1
          %s1225 = scalar_lea.sflag [#allocation4], %s1224
          %s1226 = sand.u32 %s291, 1
          %s1227 = smul.addr %s1226, 16
          %s1228 = scalar_lea.vmem [#allocation9], %s1227
          %1229 = dma.done %s1225, 256
        $region130: #{tpu_custom_call.1} parent=125 // pred_fallthru
          _
        // Predicated region
        $region131: #{tpu_custom_call.1} parent=125 // pred_check
          %p1230 = pneg %p332
        $region132: #{tpu_custom_call.1} parent=125 // pred_check_branch
          %1232 = sbr.rel (%p1230) target = $region134
        $region133: #{tpu_custom_call.1} parent=125 // pred_region
          %s1233 = sand.u32 %s317, 1
          %s1234 = scalar_lea.sflag [#allocation11], %s1233
          %s1235 = sand.u32 %s317, 1
          %s1236 = smul.addr %s1235, 32
          %s1237 = scalar_lea.vmem [#allocation10], %s1236
          %1238 = dma.done %s1234, 512
        $region134: #{tpu_custom_call.1} parent=125 // pred_fallthru
          _
      $region126: #{tpu_custom_call.1} parent=5 // pred_fallthru
        _
    $region6: #{tpu_custom_call.1} parent=1 // loop_footer
      %s35 = sadd.s32 1, %s31
    $region7: #{tpu_custom_call.1} parent=1 // loop_footer_branch
      %30 = sbr.rel target = $region3
    $region8: #{tpu_custom_call.1} parent=1 // loop_exit
      _
    %1239 = vsyncpa [#allocation3], 1
    %s1240 = scalar_lea.sflag [#allocation3], 1
    %1241 = vsyncpa %s1240, 1
    %1242 = vsyncpa [#allocation7], 1
    %s1243 = scalar_lea.sflag [#allocation7], 1
    %1244 = vsyncpa %s1243, 1
    %1245 = vsyncpa [#allocation4], 1
    %s1246 = scalar_lea.sflag [#allocation4], 1
    %1247 = vsyncpa %s1246, 1
    %1248 = vsyncpa [#allocation11], 1
    %s1249 = scalar_lea.sflag [#allocation11], 1
    %1250 = vsyncpa %s1249, 1

</llo_original>
